<compile_context>
chip_gen: v5e
topology: v5e:2x2
jax: 0.10.0
libtpu: 0.0.40
codegen_flags: <defaults>
</compile_context>

<pallas_src>
import functools
import math

import jax
import jax.numpy as jnp
from jax import lax
from jax.experimental import pallas as pl
from jax.experimental.pallas import tpu as pltpu


def koopman_kernel(t_chunk, K,
                   y0_ref, w1_ref, b1_ref, w2e_ref, b2e_ref, w2t_ref, b2t_ref,
                   rsum_ref, pswap_ref,
                   out_ref, y_scr):
    """One grid point = t_chunk recurrence steps, written as one lane-dense slab.

    y0_ref   : (B, K)            initial Koopman state
    w1_ref   : (K, NTH)          fused first layers (all models, lane-concat)
    b1_ref   : (1, NTH)
    w2e_ref  : (NTH, NTK)        block-diag second layers -> exp arguments (dt folded)
    b2e_ref  : (1, NTK)
    w2t_ref  : (NTH, NTK)        block-diag second layers -> trig arguments (dt folded)
    b2t_ref  : (1, NTK)
    rsum_ref : (NTK, K)          block-stacked identity / n_tot (per-model reduction)
    pswap_ref: (K, K)            signed complex-pair swap permutation
    out_ref  : (B, t_chunk*K)    lane-dense output block for this chunk
    y_scr    : (B, K) f32        Koopman state carried across chunks
    """
    c = pl.program_id(0)

    @pl.when(c == 0)
    def _():
        y_scr[...] = y0_ref[...].astype(jnp.float32)

    w1 = w1_ref[...]
    b1 = b1_ref[...]
    w2e = w2e_ref[...]
    b2e = b2e_ref[...]
    w2t = w2t_ref[...]
    b2t = b2t_ref[...]
    rsum = rsum_ref[...]
    pswap = pswap_ref[...]

    y = y_scr[...]                                    # (B, K) carried state

    # Fully-unrolled static time loop (t_chunk is a small Python int).
    # TODO(synk): for production K/B/t_chunk switch to lax.fori_loop(unroll=4-8)
    # with out_ref[:, pl.ds(t*K, K)] writes to bound code size / vreg live ranges.
    for t in range(t_chunk):
        # Fused parametrization MLPs: one wide first-layer matmul, then two
        # separate second-layer matmuls (exp args / trig args) so no mid-vreg
        # lane slicing is needed.
        h = jnp.tanh(jnp.dot(y, w1, preferred_element_type=jnp.float32) + b1)
        ae = jnp.dot(h, w2e, preferred_element_type=jnp.float32) + b2e   # (B, NTK)
        at = jnp.dot(h, w2t, preferred_element_type=jnp.float32) + b2t   # (B, NTK)

        # TODO(synk): on v5e dedupe the complex-pair transcendentals (mu/omega
        # are duplicated on even/odd lanes) before exp/cos/sin.
        e = jnp.exp(ae)
        gc = e * jnp.cos(at)                          # per-model exp*cos gains
        gs = e * jnp.sin(at)                          # per-model exp*sin gains

        # Per-model reduction and signed pair-swap as tiny constant matmuls on
        # the idle MXU (no concats / rolls / masked selects on the VPU/XLU
        # critical path).
        a_gain = jnp.dot(gc, rsum, preferred_element_type=jnp.float32)   # (B, K)
        b_gain = jnp.dot(gs, rsum, preferred_element_type=jnp.float32)   # (B, K)
        y_skew = jnp.dot(y, pswap, preferred_element_type=jnp.float32)   # (B, K)

        y = a_gain * y + b_gain * y_skew

        out_ref[:, t * K:(t + 1) * K] = y             # stays in VMEM; one dense DMA/chunk

    y_scr[...] = y


def _dup_even(w):
    """(..., K) -> duplicate even-indexed lanes onto each complex pair (== w @ Dmu)."""
    return jnp.repeat(w[..., 0::2], 2, axis=-1)


def _dup_odd(w):
    """(..., K) -> duplicate odd-indexed lanes onto each complex pair (== w @ Dom)."""
    return jnp.repeat(w[..., 1::2], 2, axis=-1)


def _pack_params(params, delta_t, K):
    """Fuse all parametrization nets into (W1, b1, W2e, b2e, W2t, b2t) plus the
    constant reduction / pair-swap matrices; dt and the mu/omega duplication
    are folded in exactly (lane duplication, no rounding). One-time, wrapper-side."""
    wc1, bc1, wc2, bc2, wr1, br1, wr2, br2 = params
    n_com, _, H = wc1.shape
    n_real = wr1.shape[0]
    n_tot = n_com + n_real
    dt = jnp.float32(delta_t)

    # First layer: lane-concatenate every model's (K, H) weight -> (K, NTH).
    W1all = jnp.concatenate([wc1, wr1], axis=0)            # (n_tot, K, H)
    b1all = jnp.concatenate([bc1, br1], axis=0)            # (n_tot, 1, H)
    W1 = jnp.transpose(W1all, (1, 0, 2)).reshape(K, n_tot * H)
    b1 = jnp.transpose(b1all, (1, 0, 2)).reshape(1, n_tot * H)

    # Second layer, split into exp-argument and trig-argument halves.
    exp_blocks = [dt * _dup_even(wc2[i]) for i in range(n_com)] + \
                 [dt * wr2[i] for i in range(n_real)]
    trig_blocks = [dt * _dup_odd(wc2[i]) for i in range(n_com)] + \
                  [jnp.zeros((H, K), jnp.float32) for _ in range(n_real)]
    bexp = [dt * _dup_even(bc2[i]) for i in range(n_com)] + \
           [dt * br2[i] for i in range(n_real)]
    btrig = [dt * _dup_odd(bc2[i]) for i in range(n_com)] + \
            [jnp.zeros((1, K), jnp.float32) for _ in range(n_real)]

    # TODO(synk): block-diag W2 scales as (n_tot*H)x(n_tot*K); for production
    # sizes (> ~1/4 VMEM, esp. v7x's 64 MiB) switch to a stacked (n_tot,H,K)
    # batched dot and set vmem_limit_bytes explicitly.
    def block_diag(blocks):
        Ball = jnp.stack(blocks, axis=0)                   # (n_tot, H, K)
        return jnp.einsum('ij,ihk->ihjk',
                          jnp.eye(n_tot, dtype=jnp.float32),
                          Ball).reshape(n_tot * H, n_tot * K)

    W2e = block_diag(exp_blocks)
    W2t = block_diag(trig_blocks)
    b2e = jnp.concatenate(bexp, axis=-1)
    b2t = jnp.concatenate(btrig, axis=-1)

    # Per-model sum (1/n_tot folded) and the signed pair-swap as constant matrices.
    Rsum = jnp.tile(jnp.eye(K, dtype=jnp.float32), (n_tot, 1)) / n_tot    # (NTK, K)
    ev = jnp.arange(0, K, 2)
    od = jnp.arange(1, K, 2)
    Pswap = (jnp.zeros((K, K), jnp.float32)
             .at[od, od - 1].set(-1.0)     # y_skew[2j]   = -y[2j+1]
             .at[ev, ev + 1].set(1.0))     # y_skew[2j+1] =  y[2j]
    return W1, b1, W2e, b2e, W2t, b2t, Rsum, Pswap


def _round_up(a, m):
    return (a + m - 1) // m * m


def koopman_forward(x, T, params, delta_t, t_chunk=16):
    """x: (B, S, K) float32; returns Y: (B, T, K) float32."""
    wc1 = params[0]
    wr1 = params[4]
    B, _, K = x.shape
    assert K % 2 == 0, "koopman_dim must be even (complex-conjugate pairs)"

    # Pad batch to a sublane multiple so matmul M dim / vregs are dense.
    B_pad = max(8, _round_up(B, 8))
    y0 = jnp.zeros((B_pad, K), jnp.float32).at[:B].set(x[:, 0, :].astype(jnp.float32))

    W1, b1, W2e, b2e, W2t, b2t, Rsum, Pswap = _pack_params(params, delta_t, K)

    # Time chunking: each grid step runs Tc recurrence steps and emits one
    # lane-dense (B_pad, Tc*K) block. Tc is rounded so Tc*K is a multiple of
    # 128 lanes -> unmasked dense output stores and amortised per-grid-step
    # overhead. (The last chunk may compute a few extra steps; sliced off below.)
    step_align = 128 // math.gcd(128, K)
    Tc = _round_up(max(1, min(t_chunk, T)), step_align)
    n_chunks = pl.cdiv(T, Tc)
    T_pad = n_chunks * Tc

    kernel = functools.partial(koopman_kernel, Tc, K)

    def full_spec(a):
        return pl.BlockSpec(a.shape, lambda c, _nd=a.ndim: (0,) * _nd)

    inputs = (y0, W1, b1, W2e, b2e, W2t, b2t, Rsum, Pswap)

    # TODO(synk): for production sizes cast W1/W2e/W2t to bf16 (f32 accum) and
    # add a leading "parallel" batch-tile grid axis so v7x's 2 TCs are both used.
    Y_flat = pl.pallas_call(
        kernel,
        out_shape=jax.ShapeDtypeStruct((B_pad, T_pad * K), jnp.float32),
        grid_spec=pltpu.PrefetchScalarGridSpec(
            num_scalar_prefetch=0,
            grid=(n_chunks,),
            in_specs=[full_spec(a) for a in inputs],
            out_specs=pl.BlockSpec((B_pad, Tc * K), lambda c: (0, c)),
            scratch_shapes=[pltpu.VMEM((B_pad, K), jnp.float32)],
        ),
        compiler_params=pltpu.CompilerParams(
            dimension_semantics=("arbitrary",)),   # serial recurrence over chunks
    )(*inputs)

    # Free row-major reshape (no transpose), then drop batch/time padding.
    return Y_flat.reshape(B_pad, T_pad, K)[:B, :T, :]


def koopman_ref(x, T, params, delta_t):
    """Pure-JAX reference matching the PyTorch forward exactly."""
    wc1, bc1, wc2, bc2, wr1, br1, wr2, br2 = params
    n_com, K, _ = wc1.shape
    n_real = wr1.shape[0]
    ne = K // 2
    y = x[:, 0, :]
    ys = []
    for _ in range(T):
        acc = jnp.zeros_like(y)
        for i in range(n_com):
            out = jnp.tanh(y @ wc1[i] + bc1[i][0]) @ wc2[i] + bc2[i][0]
            out = out.reshape(-1, ne, 2)
            mu, omega = out[..., 0], out[..., 1]
            E = jnp.exp(delta_t * mu)
            C = jnp.cos(delta_t * omega)
            S = jnp.sin(delta_t * omega)
            ye, yo = y[:, 0::2], y[:, 1::2]
            new_e = C * E * ye - S * E * yo
            new_o = S * E * ye + C * E * yo
            acc = acc + jnp.stack([new_e, new_o], axis=-1).reshape(-1, K)
        for i in range(n_real):
            re = jnp.tanh(y @ wr1[i] + br1[i][0]) @ wr2[i] + br2[i][0]
            acc = acc + jnp.exp(delta_t * re) * y
        y = acc / (n_com + n_real)
        ys.append(y)
    return jnp.stack(ys, axis=1)


def init_params(key, koopman_dim, hidden_dim, n_com, n_real):
    """Deterministic synthetic weights for the stacked MLP parametrization nets.
    Each net: Linear(K -> H) -> tanh -> Linear(H -> K)  (num_eigenvalues*2 == K)."""
    K, H = koopman_dim, hidden_dim
    ks = jax.random.split(key, 8)
    s1 = 1.0 / jnp.sqrt(K)
    s2 = 1.0 / jnp.sqrt(H)
    wc1 = jax.random.uniform(ks[0], (n_com, K, H), jnp.float32, -s1, s1)
    bc1 = jax.random.uniform(ks[1], (n_com, 1, H), jnp.float32, -s1, s1)
    wc2 = jax.random.uniform(ks[2], (n_com, H, K), jnp.float32, -s2, s2)
    bc2 = jax.random.uniform(ks[3], (n_com, 1, K), jnp.float32, -s2, s2)
    wr1 = jax.random.uniform(ks[4], (n_real, K, H), jnp.float32, -s1, s1)
    br1 = jax.random.uniform(ks[5], (n_real, 1, H), jnp.float32, -s1, s1)
    wr2 = jax.random.uniform(ks[6], (n_real, H, K), jnp.float32, -s2, s2)
    br2 = jax.random.uniform(ks[7], (n_real, 1, K), jnp.float32, -s2, s2)
    return (wc1, bc1, wc2, bc2, wr1, br1, wr2, br2)


if __name__ == "__main__":
    B, S, K, H, T = 4, 8, 8, 32, 8
    n_com, n_real = 2, 1
    delta_t = 0.05

    key = jax.random.PRNGKey(0)
    kx, kp = jax.random.split(key)
    x = jax.random.normal(kx, (B, S, K), jnp.float32)
    params = init_params(kp, K, H, n_com, n_real)

    Y = koopman_forward(x, T, params, delta_t)
    Y = jax.block_until_ready(Y)

    Y_ref = koopman_ref(x, T, params, delta_t)
    assert Y.shape == (B, T, K)
    assert jnp.allclose(Y, Y_ref, atol=1e-4, rtol=1e-4), float(jnp.max(jnp.abs(Y - Y_ref)))

    print("KERNEL_OK")
</pallas_src>

<mosaic_0001>
module attributes {stable_mosaic.version = 11 : i64} {
  func.func @koopman_kernel(%arg0: i32, %arg1: memref<8x8xf32, #tpu.memory_space<vmem>>, %arg2: memref<8x96xf32, #tpu.memory_space<vmem>>, %arg3: memref<1x96xf32, #tpu.memory_space<vmem>>, %arg4: memref<96x24xf32, #tpu.memory_space<vmem>>, %arg5: memref<1x24xf32, #tpu.memory_space<vmem>>, %arg6: memref<96x24xf32, #tpu.memory_space<vmem>>, %arg7: memref<1x24xf32, #tpu.memory_space<vmem>>, %arg8: memref<24x8xf32, #tpu.memory_space<vmem>>, %arg9: memref<8x8xf32, #tpu.memory_space<vmem>>, %arg10: memref<8x128xf32, #tpu.memory_space<vmem>>, %arg11: memref<8x8xf32, #tpu.memory_space<vmem>>) attributes {dimension_semantics = [#tpu.dimension_semantics<arbitrary>], iteration_bounds = array<i64: 1>, scalar_prefetch = 0 : i64, scratch_operands = 1 : i64, tpu.core_type = #tpu.core_type<tc>, window_params = [{pipeline_mode = #tpu.pipeline_mode<synchronous>, transform_indices = @transform_0, window_bounds = array<i64: 8, 8>}, {pipeline_mode = #tpu.pipeline_mode<synchronous>, transform_indices = @transform_1, window_bounds = array<i64: 8, 96>}, {pipeline_mode = #tpu.pipeline_mode<synchronous>, transform_indices = @transform_2, window_bounds = array<i64: 1, 96>}, {pipeline_mode = #tpu.pipeline_mode<synchronous>, transform_indices = @transform_3, window_bounds = array<i64: 96, 24>}, {pipeline_mode = #tpu.pipeline_mode<synchronous>, transform_indices = @transform_4, window_bounds = array<i64: 1, 24>}, {pipeline_mode = #tpu.pipeline_mode<synchronous>, transform_indices = @transform_5, window_bounds = array<i64: 96, 24>}, {pipeline_mode = #tpu.pipeline_mode<synchronous>, transform_indices = @transform_6, window_bounds = array<i64: 1, 24>}, {pipeline_mode = #tpu.pipeline_mode<synchronous>, transform_indices = @transform_7, window_bounds = array<i64: 24, 8>}, {pipeline_mode = #tpu.pipeline_mode<synchronous>, transform_indices = @transform_8, window_bounds = array<i64: 8, 8>}, {transform_indices = @transform_9, window_bounds = array<i64: 8, 128>}]} {
    %c0_i32 = arith.constant 0 : i32
    %0 = arith.cmpi eq, %arg0, %c0_i32 : i32
    %1 = arith.extui %0 : i1 to i32
    %c0_i32_0 = arith.constant 0 : i32
    %2 = arith.cmpi ne, %1, %c0_i32_0 : i32
    scf.if %2 {
      %c0_132 = arith.constant 0 : index
      %c0_133 = arith.constant 0 : index
      %365 = vector.load %arg1[%c0_132, %c0_133] : memref<8x8xf32, #tpu.memory_space<vmem>>, vector<8x8xf32>
      %c0_134 = arith.constant 0 : index
      %c0_135 = arith.constant 0 : index
      %366 = vector.load %arg11[%c0_134, %c0_135] : memref<8x8xf32, #tpu.memory_space<vmem>>, vector<8x8xf32>
      tpu.vector_store %arg11[%c0_134, %c0_135], %365 {strides = array<i32>} : memref<8x8xf32, #tpu.memory_space<vmem>>, vector<8x8xf32>,
    } else {
    }
    %c0 = arith.constant 0 : index
    %c0_1 = arith.constant 0 : index
    %3 = vector.load %arg2[%c0, %c0_1] : memref<8x96xf32, #tpu.memory_space<vmem>>, vector<8x96xf32>
    %c0_2 = arith.constant 0 : index
    %c0_3 = arith.constant 0 : index
    %4 = vector.load %arg3[%c0_2, %c0_3] : memref<1x96xf32, #tpu.memory_space<vmem>>, vector<1x96xf32>
    %c0_4 = arith.constant 0 : index
    %c0_5 = arith.constant 0 : index
    %5 = vector.load %arg4[%c0_4, %c0_5] : memref<96x24xf32, #tpu.memory_space<vmem>>, vector<96x24xf32>
    %c0_6 = arith.constant 0 : index
    %c0_7 = arith.constant 0 : index
    %6 = vector.load %arg5[%c0_6, %c0_7] : memref<1x24xf32, #tpu.memory_space<vmem>>, vector<1x24xf32>
    %c0_8 = arith.constant 0 : index
    %c0_9 = arith.constant 0 : index
    %7 = vector.load %arg6[%c0_8, %c0_9] : memref<96x24xf32, #tpu.memory_space<vmem>>, vector<96x24xf32>
    %c0_10 = arith.constant 0 : index
    %c0_11 = arith.constant 0 : index
    %8 = vector.load %arg7[%c0_10, %c0_11] : memref<1x24xf32, #tpu.memory_space<vmem>>, vector<1x24xf32>
    %c0_12 = arith.constant 0 : index
    %c0_13 = arith.constant 0 : index
    %9 = vector.load %arg8[%c0_12, %c0_13] : memref<24x8xf32, #tpu.memory_space<vmem>>, vector<24x8xf32>
    %c0_14 = arith.constant 0 : index
    %c0_15 = arith.constant 0 : index
    %10 = vector.load %arg9[%c0_14, %c0_15] : memref<8x8xf32, #tpu.memory_space<vmem>>, vector<8x8xf32>
    %c0_16 = arith.constant 0 : index
    %c0_17 = arith.constant 0 : index
    %11 = vector.load %arg11[%c0_16, %c0_17] : memref<8x8xf32, #tpu.memory_space<vmem>>, vector<8x8xf32>
    %cst = arith.constant dense<0.000000e+00> : vector<8x96xf32>
    %12 = tpu.matmul %11, %3, %cst {dimension_numbers = #tpu.dot_dimension_numbers<[1], [0], [0], [1], [0, 0, 1, 1], [], []>} : vector<8x8xf32>, vector<8x96xf32>, vector<8x96xf32> -> vector<8x96xf32>
    %13 = vector.broadcast %4 : vector<1x96xf32> to vector<8x96xf32>
    %14 = arith.addf %12, %13 : vector<8x96xf32>
    %15 = math.tanh %14 : vector<8x96xf32>
    %cst_18 = arith.constant dense<0.000000e+00> : vector<8x24xf32>
    %16 = tpu.matmul %15, %5, %cst_18 {dimension_numbers = #tpu.dot_dimension_numbers<[1], [0], [0], [1], [0, 0, 1, 1], [], []>} : vector<8x96xf32>, vector<96x24xf32>, vector<8x24xf32> -> vector<8x24xf32>
    %17 = vector.broadcast %6 : vector<1x24xf32> to vector<8x24xf32>
    %18 = arith.addf %16, %17 : vector<8x24xf32>
    %cst_19 = arith.constant dense<0.000000e+00> : vector<8x24xf32>
    %19 = tpu.matmul %15, %7, %cst_19 {dimension_numbers = #tpu.dot_dimension_numbers<[1], [0], [0], [1], [0, 0, 1, 1], [], []>} : vector<8x96xf32>, vector<96x24xf32>, vector<8x24xf32> -> vector<8x24xf32>
    %20 = vector.broadcast %8 : vector<1x24xf32> to vector<8x24xf32>
    %21 = arith.addf %19, %20 : vector<8x24xf32>
    %22 = math.exp %18 : vector<8x24xf32>
    %23 = math.cos %21 : vector<8x24xf32>
    %24 = arith.mulf %22, %23 : vector<8x24xf32>
    %25 = math.sin %21 : vector<8x24xf32>
    %26 = arith.mulf %22, %25 : vector<8x24xf32>
    %cst_20 = arith.constant dense<0.000000e+00> : vector<8x8xf32>
    %27 = tpu.matmul %24, %9, %cst_20 {dimension_numbers = #tpu.dot_dimension_numbers<[1], [0], [0], [1], [0, 0, 1, 1], [], []>} : vector<8x24xf32>, vector<24x8xf32>, vector<8x8xf32> -> vector<8x8xf32>
    %cst_21 = arith.constant dense<0.000000e+00> : vector<8x8xf32>
    %28 = tpu.matmul %26, %9, %cst_21 {dimension_numbers = #tpu.dot_dimension_numbers<[1], [0], [0], [1], [0, 0, 1, 1], [], []>} : vector<8x24xf32>, vector<24x8xf32>, vector<8x8xf32> -> vector<8x8xf32>
    %cst_22 = arith.constant dense<0.000000e+00> : vector<8x8xf32>
    %29 = tpu.matmul %11, %10, %cst_22 {dimension_numbers = #tpu.dot_dimension_numbers<[1], [0], [0], [1], [0, 0, 1, 1], [], []>} : vector<8x8xf32>, vector<8x8xf32>, vector<8x8xf32> -> vector<8x8xf32>
    %30 = arith.mulf %27, %11 : vector<8x8xf32>
    %31 = arith.mulf %28, %29 : vector<8x8xf32>
    %32 = arith.addf %30, %31 : vector<8x8xf32>
    %c0_23 = arith.constant 0 : index
    %c0_24 = arith.constant 0 : index
    %33 = vector.load %arg10[%c0_23, %c0_24] : memref<8x128xf32, #tpu.memory_space<vmem>>, vector<8x8xf32>
    tpu.vector_store %arg10[%c0_23, %c0_24], %32 {strides = array<i32>} : memref<8x128xf32, #tpu.memory_space<vmem>>, vector<8x8xf32>,
    %cst_25 = arith.constant dense<0.000000e+00> : vector<8x96xf32>
    %34 = tpu.matmul %32, %3, %cst_25 {dimension_numbers = #tpu.dot_dimension_numbers<[1], [0], [0], [1], [0, 0, 1, 1], [], []>} : vector<8x8xf32>, vector<8x96xf32>, vector<8x96xf32> -> vector<8x96xf32>
    %35 = vector.broadcast %4 : vector<1x96xf32> to vector<8x96xf32>
    %36 = arith.addf %34, %35 : vector<8x96xf32>
    %37 = math.tanh %36 : vector<8x96xf32>
    %cst_26 = arith.constant dense<0.000000e+00> : vector<8x24xf32>
    %38 = tpu.matmul %37, %5, %cst_26 {dimension_numbers = #tpu.dot_dimension_numbers<[1], [0], [0], [1], [0, 0, 1, 1], [], []>} : vector<8x96xf32>, vector<96x24xf32>, vector<8x24xf32> -> vector<8x24xf32>
    %39 = vector.broadcast %6 : vector<1x24xf32> to vector<8x24xf32>
    %40 = arith.addf %38, %39 : vector<8x24xf32>
    %cst_27 = arith.constant dense<0.000000e+00> : vector<8x24xf32>
    %41 = tpu.matmul %37, %7, %cst_27 {dimension_numbers = #tpu.dot_dimension_numbers<[1], [0], [0], [1], [0, 0, 1, 1], [], []>} : vector<8x96xf32>, vector<96x24xf32>, vector<8x24xf32> -> vector<8x24xf32>
    %42 = vector.broadcast %8 : vector<1x24xf32> to vector<8x24xf32>
    %43 = arith.addf %41, %42 : vector<8x24xf32>
    %44 = math.exp %40 : vector<8x24xf32>
    %45 = math.cos %43 : vector<8x24xf32>
    %46 = arith.mulf %44, %45 : vector<8x24xf32>
    %47 = math.sin %43 : vector<8x24xf32>
    %48 = arith.mulf %44, %47 : vector<8x24xf32>
    %cst_28 = arith.constant dense<0.000000e+00> : vector<8x8xf32>
    %49 = tpu.matmul %46, %9, %cst_28 {dimension_numbers = #tpu.dot_dimension_numbers<[1], [0], [0], [1], [0, 0, 1, 1], [], []>} : vector<8x24xf32>, vector<24x8xf32>, vector<8x8xf32> -> vector<8x8xf32>
    %cst_29 = arith.constant dense<0.000000e+00> : vector<8x8xf32>
    %50 = tpu.matmul %48, %9, %cst_29 {dimension_numbers = #tpu.dot_dimension_numbers<[1], [0], [0], [1], [0, 0, 1, 1], [], []>} : vector<8x24xf32>, vector<24x8xf32>, vector<8x8xf32> -> vector<8x8xf32>
    %cst_30 = arith.constant dense<0.000000e+00> : vector<8x8xf32>
    %51 = tpu.matmul %32, %10, %cst_30 {dimension_numbers = #tpu.dot_dimension_numbers<[1], [0], [0], [1], [0, 0, 1, 1], [], []>} : vector<8x8xf32>, vector<8x8xf32>, vector<8x8xf32> -> vector<8x8xf32>
    %52 = arith.mulf %49, %32 : vector<8x8xf32>
    %53 = arith.mulf %50, %51 : vector<8x8xf32>
    %54 = arith.addf %52, %53 : vector<8x8xf32>
    %c0_31 = arith.constant 0 : index
    %c8 = arith.constant 8 : index
    %55 = vector.load %arg10[%c0_31, %c8] : memref<8x128xf32, #tpu.memory_space<vmem>>, vector<8x8xf32>
    tpu.vector_store %arg10[%c0_31, %c8], %54 {strides = array<i32>} : memref<8x128xf32, #tpu.memory_space<vmem>>, vector<8x8xf32>,
    %cst_32 = arith.constant dense<0.000000e+00> : vector<8x96xf32>
    %56 = tpu.matmul %54, %3, %cst_32 {dimension_numbers = #tpu.dot_dimension_numbers<[1], [0], [0], [1], [0, 0, 1, 1], [], []>} : vector<8x8xf32>, vector<8x96xf32>, vector<8x96xf32> -> vector<8x96xf32>
    %57 = vector.broadcast %4 : vector<1x96xf32> to vector<8x96xf32>
    %58 = arith.addf %56, %57 : vector<8x96xf32>
    %59 = math.tanh %58 : vector<8x96xf32>
    %cst_33 = arith.constant dense<0.000000e+00> : vector<8x24xf32>
    %60 = tpu.matmul %59, %5, %cst_33 {dimension_numbers = #tpu.dot_dimension_numbers<[1], [0], [0], [1], [0, 0, 1, 1], [], []>} : vector<8x96xf32>, vector<96x24xf32>, vector<8x24xf32> -> vector<8x24xf32>
    %61 = vector.broadcast %6 : vector<1x24xf32> to vector<8x24xf32>
    %62 = arith.addf %60, %61 : vector<8x24xf32>
    %cst_34 = arith.constant dense<0.000000e+00> : vector<8x24xf32>
    %63 = tpu.matmul %59, %7, %cst_34 {dimension_numbers = #tpu.dot_dimension_numbers<[1], [0], [0], [1], [0, 0, 1, 1], [], []>} : vector<8x96xf32>, vector<96x24xf32>, vector<8x24xf32> -> vector<8x24xf32>
    %64 = vector.broadcast %8 : vector<1x24xf32> to vector<8x24xf32>
    %65 = arith.addf %63, %64 : vector<8x24xf32>
    %66 = math.exp %62 : vector<8x24xf32>
    %67 = math.cos %65 : vector<8x24xf32>
    %68 = arith.mulf %66, %67 : vector<8x24xf32>
    %69 = math.sin %65 : vector<8x24xf32>
    %70 = arith.mulf %66, %69 : vector<8x24xf32>
    %cst_35 = arith.constant dense<0.000000e+00> : vector<8x8xf32>
    %71 = tpu.matmul %68, %9, %cst_35 {dimension_numbers = #tpu.dot_dimension_numbers<[1], [0], [0], [1], [0, 0, 1, 1], [], []>} : vector<8x24xf32>, vector<24x8xf32>, vector<8x8xf32> -> vector<8x8xf32>
    %cst_36 = arith.constant dense<0.000000e+00> : vector<8x8xf32>
    %72 = tpu.matmul %70, %9, %cst_36 {dimension_numbers = #tpu.dot_dimension_numbers<[1], [0], [0], [1], [0, 0, 1, 1], [], []>} : vector<8x24xf32>, vector<24x8xf32>, vector<8x8xf32> -> vector<8x8xf32>
    %cst_37 = arith.constant dense<0.000000e+00> : vector<8x8xf32>
    %73 = tpu.matmul %54, %10, %cst_37 {dimension_numbers = #tpu.dot_dimension_numbers<[1], [0], [0], [1], [0, 0, 1, 1], [], []>} : vector<8x8xf32>, vector<8x8xf32>, vector<8x8xf32> -> vector<8x8xf32>
    %74 = arith.mulf %71, %54 : vector<8x8xf32>
    %75 = arith.mulf %72, %73 : vector<8x8xf32>
    %76 = arith.addf %74, %75 : vector<8x8xf32>
    %c0_38 = arith.constant 0 : index
    %c16 = arith.constant 16 : index
    %77 = vector.load %arg10[%c0_38, %c16] : memref<8x128xf32, #tpu.memory_space<vmem>>, vector<8x8xf32>
    tpu.vector_store %arg10[%c0_38, %c16], %76 {strides = array<i32>} : memref<8x128xf32, #tpu.memory_space<vmem>>, vector<8x8xf32>,
    %cst_39 = arith.constant dense<0.000000e+00> : vector<8x96xf32>
    %78 = tpu.matmul %76, %3, %cst_39 {dimension_numbers = #tpu.dot_dimension_numbers<[1], [0], [0], [1], [0, 0, 1, 1], [], []>} : vector<8x8xf32>, vector<8x96xf32>, vector<8x96xf32> -> vector<8x96xf32>
    %79 = vector.broadcast %4 : vector<1x96xf32> to vector<8x96xf32>
    %80 = arith.addf %78, %79 : vector<8x96xf32>
    %81 = math.tanh %80 : vector<8x96xf32>
    %cst_40 = arith.constant dense<0.000000e+00> : vector<8x24xf32>
    %82 = tpu.matmul %81, %5, %cst_40 {dimension_numbers = #tpu.dot_dimension_numbers<[1], [0], [0], [1], [0, 0, 1, 1], [], []>} : vector<8x96xf32>, vector<96x24xf32>, vector<8x24xf32> -> vector<8x24xf32>
    %83 = vector.broadcast %6 : vector<1x24xf32> to vector<8x24xf32>
    %84 = arith.addf %82, %83 : vector<8x24xf32>
    %cst_41 = arith.constant dense<0.000000e+00> : vector<8x24xf32>
    %85 = tpu.matmul %81, %7, %cst_41 {dimension_numbers = #tpu.dot_dimension_numbers<[1], [0], [0], [1], [0, 0, 1, 1], [], []>} : vector<8x96xf32>, vector<96x24xf32>, vector<8x24xf32> -> vector<8x24xf32>
    %86 = vector.broadcast %8 : vector<1x24xf32> to vector<8x24xf32>
    %87 = arith.addf %85, %86 : vector<8x24xf32>
    %88 = math.exp %84 : vector<8x24xf32>
    %89 = math.cos %87 : vector<8x24xf32>
    %90 = arith.mulf %88, %89 : vector<8x24xf32>
    %91 = math.sin %87 : vector<8x24xf32>
    %92 = arith.mulf %88, %91 : vector<8x24xf32>
    %cst_42 = arith.constant dense<0.000000e+00> : vector<8x8xf32>
    %93 = tpu.matmul %90, %9, %cst_42 {dimension_numbers = #tpu.dot_dimension_numbers<[1], [0], [0], [1], [0, 0, 1, 1], [], []>} : vector<8x24xf32>, vector<24x8xf32>, vector<8x8xf32> -> vector<8x8xf32>
    %cst_43 = arith.constant dense<0.000000e+00> : vector<8x8xf32>
    %94 = tpu.matmul %92, %9, %cst_43 {dimension_numbers = #tpu.dot_dimension_numbers<[1], [0], [0], [1], [0, 0, 1, 1], [], []>} : vector<8x24xf32>, vector<24x8xf32>, vector<8x8xf32> -> vector<8x8xf32>
    %cst_44 = arith.constant dense<0.000000e+00> : vector<8x8xf32>
    %95 = tpu.matmul %76, %10, %cst_44 {dimension_numbers = #tpu.dot_dimension_numbers<[1], [0], [0], [1], [0, 0, 1, 1], [], []>} : vector<8x8xf32>, vector<8x8xf32>, vector<8x8xf32> -> vector<8x8xf32>
    %96 = arith.mulf %93, %76 : vector<8x8xf32>
    %97 = arith.mulf %94, %95 : vector<8x8xf32>
    %98 = arith.addf %96, %97 : vector<8x8xf32>
    %c0_45 = arith.constant 0 : index
    %c24 = arith.constant 24 : index
    %99 = vector.load %arg10[%c0_45, %c24] : memref<8x128xf32, #tpu.memory_space<vmem>>, vector<8x8xf32>
    tpu.vector_store %arg10[%c0_45, %c24], %98 {strides = array<i32>} : memref<8x128xf32, #tpu.memory_space<vmem>>, vector<8x8xf32>,
    %cst_46 = arith.constant dense<0.000000e+00> : vector<8x96xf32>
    %100 = tpu.matmul %98, %3, %cst_46 {dimension_numbers = #tpu.dot_dimension_numbers<[1], [0], [0], [1], [0, 0, 1, 1], [], []>} : vector<8x8xf32>, vector<8x96xf32>, vector<8x96xf32> -> vector<8x96xf32>
    %101 = vector.broadcast %4 : vector<1x96xf32> to vector<8x96xf32>
    %102 = arith.addf %100, %101 : vector<8x96xf32>
    %103 = math.tanh %102 : vector<8x96xf32>
    %cst_47 = arith.constant dense<0.000000e+00> : vector<8x24xf32>
    %104 = tpu.matmul %103, %5, %cst_47 {dimension_numbers = #tpu.dot_dimension_numbers<[1], [0], [0], [1], [0, 0, 1, 1], [], []>} : vector<8x96xf32>, vector<96x24xf32>, vector<8x24xf32> -> vector<8x24xf32>
    %105 = vector.broadcast %6 : vector<1x24xf32> to vector<8x24xf32>
    %106 = arith.addf %104, %105 : vector<8x24xf32>
    %cst_48 = arith.constant dense<0.000000e+00> : vector<8x24xf32>
    %107 = tpu.matmul %103, %7, %cst_48 {dimension_numbers = #tpu.dot_dimension_numbers<[1], [0], [0], [1], [0, 0, 1, 1], [], []>} : vector<8x96xf32>, vector<96x24xf32>, vector<8x24xf32> -> vector<8x24xf32>
    %108 = vector.broadcast %8 : vector<1x24xf32> to vector<8x24xf32>
    %109 = arith.addf %107, %108 : vector<8x24xf32>
    %110 = math.exp %106 : vector<8x24xf32>
    %111 = math.cos %109 : vector<8x24xf32>
    %112 = arith.mulf %110, %111 : vector<8x24xf32>
    %113 = math.sin %109 : vector<8x24xf32>
    %114 = arith.mulf %110, %113 : vector<8x24xf32>
    %cst_49 = arith.constant dense<0.000000e+00> : vector<8x8xf32>
    %115 = tpu.matmul %112, %9, %cst_49 {dimension_numbers = #tpu.dot_dimension_numbers<[1], [0], [0], [1], [0, 0, 1, 1], [], []>} : vector<8x24xf32>, vector<24x8xf32>, vector<8x8xf32> -> vector<8x8xf32>
    %cst_50 = arith.constant dense<0.000000e+00> : vector<8x8xf32>
    %116 = tpu.matmul %114, %9, %cst_50 {dimension_numbers = #tpu.dot_dimension_numbers<[1], [0], [0], [1], [0, 0, 1, 1], [], []>} : vector<8x24xf32>, vector<24x8xf32>, vector<8x8xf32> -> vector<8x8xf32>
    %cst_51 = arith.constant dense<0.000000e+00> : vector<8x8xf32>
    %117 = tpu.matmul %98, %10, %cst_51 {dimension_numbers = #tpu.dot_dimension_numbers<[1], [0], [0], [1], [0, 0, 1, 1], [], []>} : vector<8x8xf32>, vector<8x8xf32>, vector<8x8xf32> -> vector<8x8xf32>
    %118 = arith.mulf %115, %98 : vector<8x8xf32>
    %119 = arith.mulf %116, %117 : vector<8x8xf32>
    %120 = arith.addf %118, %119 : vector<8x8xf32>
    %c0_52 = arith.constant 0 : index
    %c32 = arith.constant 32 : index
    %121 = vector.load %arg10[%c0_52, %c32] : memref<8x128xf32, #tpu.memory_space<vmem>>, vector<8x8xf32>
    tpu.vector_store %arg10[%c0_52, %c32], %120 {strides = array<i32>} : memref<8x128xf32, #tpu.memory_space<vmem>>, vector<8x8xf32>,
    %cst_53 = arith.constant dense<0.000000e+00> : vector<8x96xf32>
    %122 = tpu.matmul %120, %3, %cst_53 {dimension_numbers = #tpu.dot_dimension_numbers<[1], [0], [0], [1], [0, 0, 1, 1], [], []>} : vector<8x8xf32>, vector<8x96xf32>, vector<8x96xf32> -> vector<8x96xf32>
    %123 = vector.broadcast %4 : vector<1x96xf32> to vector<8x96xf32>
    %124 = arith.addf %122, %123 : vector<8x96xf32>
    %125 = math.tanh %124 : vector<8x96xf32>
    %cst_54 = arith.constant dense<0.000000e+00> : vector<8x24xf32>
    %126 = tpu.matmul %125, %5, %cst_54 {dimension_numbers = #tpu.dot_dimension_numbers<[1], [0], [0], [1], [0, 0, 1, 1], [], []>} : vector<8x96xf32>, vector<96x24xf32>, vector<8x24xf32> -> vector<8x24xf32>
    %127 = vector.broadcast %6 : vector<1x24xf32> to vector<8x24xf32>
    %128 = arith.addf %126, %127 : vector<8x24xf32>
    %cst_55 = arith.constant dense<0.000000e+00> : vector<8x24xf32>
    %129 = tpu.matmul %125, %7, %cst_55 {dimension_numbers = #tpu.dot_dimension_numbers<[1], [0], [0], [1], [0, 0, 1, 1], [], []>} : vector<8x96xf32>, vector<96x24xf32>, vector<8x24xf32> -> vector<8x24xf32>
    %130 = vector.broadcast %8 : vector<1x24xf32> to vector<8x24xf32>
    %131 = arith.addf %129, %130 : vector<8x24xf32>
    %132 = math.exp %128 : vector<8x24xf32>
    %133 = math.cos %131 : vector<8x24xf32>
    %134 = arith.mulf %132, %133 : vector<8x24xf32>
    %135 = math.sin %131 : vector<8x24xf32>
    %136 = arith.mulf %132, %135 : vector<8x24xf32>
    %cst_56 = arith.constant dense<0.000000e+00> : vector<8x8xf32>
    %137 = tpu.matmul %134, %9, %cst_56 {dimension_numbers = #tpu.dot_dimension_numbers<[1], [0], [0], [1], [0, 0, 1, 1], [], []>} : vector<8x24xf32>, vector<24x8xf32>, vector<8x8xf32> -> vector<8x8xf32>
    %cst_57 = arith.constant dense<0.000000e+00> : vector<8x8xf32>
    %138 = tpu.matmul %136, %9, %cst_57 {dimension_numbers = #tpu.dot_dimension_numbers<[1], [0], [0], [1], [0, 0, 1, 1], [], []>} : vector<8x24xf32>, vector<24x8xf32>, vector<8x8xf32> -> vector<8x8xf32>
    %cst_58 = arith.constant dense<0.000000e+00> : vector<8x8xf32>
    %139 = tpu.matmul %120, %10, %cst_58 {dimension_numbers = #tpu.dot_dimension_numbers<[1], [0], [0], [1], [0, 0, 1, 1], [], []>} : vector<8x8xf32>, vector<8x8xf32>, vector<8x8xf32> -> vector<8x8xf32>
    %140 = arith.mulf %137, %120 : vector<8x8xf32>
    %141 = arith.mulf %138, %139 : vector<8x8xf32>
    %142 = arith.addf %140, %141 : vector<8x8xf32>
    %c0_59 = arith.constant 0 : index
    %c40 = arith.constant 40 : index
    %143 = vector.load %arg10[%c0_59, %c40] : memref<8x128xf32, #tpu.memory_space<vmem>>, vector<8x8xf32>
    tpu.vector_store %arg10[%c0_59, %c40], %142 {strides = array<i32>} : memref<8x128xf32, #tpu.memory_space<vmem>>, vector<8x8xf32>,
    %cst_60 = arith.constant dense<0.000000e+00> : vector<8x96xf32>
    %144 = tpu.matmul %142, %3, %cst_60 {dimension_numbers = #tpu.dot_dimension_numbers<[1], [0], [0], [1], [0, 0, 1, 1], [], []>} : vector<8x8xf32>, vector<8x96xf32>, vector<8x96xf32> -> vector<8x96xf32>
    %145 = vector.broadcast %4 : vector<1x96xf32> to vector<8x96xf32>
    %146 = arith.addf %144, %145 : vector<8x96xf32>
    %147 = math.tanh %146 : vector<8x96xf32>
    %cst_61 = arith.constant dense<0.000000e+00> : vector<8x24xf32>
    %148 = tpu.matmul %147, %5, %cst_61 {dimension_numbers = #tpu.dot_dimension_numbers<[1], [0], [0], [1], [0, 0, 1, 1], [], []>} : vector<8x96xf32>, vector<96x24xf32>, vector<8x24xf32> -> vector<8x24xf32>
    %149 = vector.broadcast %6 : vector<1x24xf32> to vector<8x24xf32>
    %150 = arith.addf %148, %149 : vector<8x24xf32>
    %cst_62 = arith.constant dense<0.000000e+00> : vector<8x24xf32>
    %151 = tpu.matmul %147, %7, %cst_62 {dimension_numbers = #tpu.dot_dimension_numbers<[1], [0], [0], [1], [0, 0, 1, 1], [], []>} : vector<8x96xf32>, vector<96x24xf32>, vector<8x24xf32> -> vector<8x24xf32>
    %152 = vector.broadcast %8 : vector<1x24xf32> to vector<8x24xf32>
    %153 = arith.addf %151, %152 : vector<8x24xf32>
    %154 = math.exp %150 : vector<8x24xf32>
    %155 = math.cos %153 : vector<8x24xf32>
    %156 = arith.mulf %154, %155 : vector<8x24xf32>
    %157 = math.sin %153 : vector<8x24xf32>
    %158 = arith.mulf %154, %157 : vector<8x24xf32>
    %cst_63 = arith.constant dense<0.000000e+00> : vector<8x8xf32>
    %159 = tpu.matmul %156, %9, %cst_63 {dimension_numbers = #tpu.dot_dimension_numbers<[1], [0], [0], [1], [0, 0, 1, 1], [], []>} : vector<8x24xf32>, vector<24x8xf32>, vector<8x8xf32> -> vector<8x8xf32>
    %cst_64 = arith.constant dense<0.000000e+00> : vector<8x8xf32>
    %160 = tpu.matmul %158, %9, %cst_64 {dimension_numbers = #tpu.dot_dimension_numbers<[1], [0], [0], [1], [0, 0, 1, 1], [], []>} : vector<8x24xf32>, vector<24x8xf32>, vector<8x8xf32> -> vector<8x8xf32>
    %cst_65 = arith.constant dense<0.000000e+00> : vector<8x8xf32>
    %161 = tpu.matmul %142, %10, %cst_65 {dimension_numbers = #tpu.dot_dimension_numbers<[1], [0], [0], [1], [0, 0, 1, 1], [], []>} : vector<8x8xf32>, vector<8x8xf32>, vector<8x8xf32> -> vector<8x8xf32>
    %162 = arith.mulf %159, %142 : vector<8x8xf32>
    %163 = arith.mulf %160, %161 : vector<8x8xf32>
    %164 = arith.addf %162, %163 : vector<8x8xf32>
    %c0_66 = arith.constant 0 : index
    %c48 = arith.constant 48 : index
    %165 = vector.load %arg10[%c0_66, %c48] : memref<8x128xf32, #tpu.memory_space<vmem>>, vector<8x8xf32>
    tpu.vector_store %arg10[%c0_66, %c48], %164 {strides = array<i32>} : memref<8x128xf32, #tpu.memory_space<vmem>>, vector<8x8xf32>,
    %cst_67 = arith.constant dense<0.000000e+00> : vector<8x96xf32>
    %166 = tpu.matmul %164, %3, %cst_67 {dimension_numbers = #tpu.dot_dimension_numbers<[1], [0], [0], [1], [0, 0, 1, 1], [], []>} : vector<8x8xf32>, vector<8x96xf32>, vector<8x96xf32> -> vector<8x96xf32>
    %167 = vector.broadcast %4 : vector<1x96xf32> to vector<8x96xf32>
    %168 = arith.addf %166, %167 : vector<8x96xf32>
    %169 = math.tanh %168 : vector<8x96xf32>
    %cst_68 = arith.constant dense<0.000000e+00> : vector<8x24xf32>
    %170 = tpu.matmul %169, %5, %cst_68 {dimension_numbers = #tpu.dot_dimension_numbers<[1], [0], [0], [1], [0, 0, 1, 1], [], []>} : vector<8x96xf32>, vector<96x24xf32>, vector<8x24xf32> -> vector<8x24xf32>
    %171 = vector.broadcast %6 : vector<1x24xf32> to vector<8x24xf32>
    %172 = arith.addf %170, %171 : vector<8x24xf32>
    %cst_69 = arith.constant dense<0.000000e+00> : vector<8x24xf32>
    %173 = tpu.matmul %169, %7, %cst_69 {dimension_numbers = #tpu.dot_dimension_numbers<[1], [0], [0], [1], [0, 0, 1, 1], [], []>} : vector<8x96xf32>, vector<96x24xf32>, vector<8x24xf32> -> vector<8x24xf32>
    %174 = vector.broadcast %8 : vector<1x24xf32> to vector<8x24xf32>
    %175 = arith.addf %173, %174 : vector<8x24xf32>
    %176 = math.exp %172 : vector<8x24xf32>
    %177 = math.cos %175 : vector<8x24xf32>
    %178 = arith.mulf %176, %177 : vector<8x24xf32>
    %179 = math.sin %175 : vector<8x24xf32>
    %180 = arith.mulf %176, %179 : vector<8x24xf32>
    %cst_70 = arith.constant dense<0.000000e+00> : vector<8x8xf32>
    %181 = tpu.matmul %178, %9, %cst_70 {dimension_numbers = #tpu.dot_dimension_numbers<[1], [0], [0], [1], [0, 0, 1, 1], [], []>} : vector<8x24xf32>, vector<24x8xf32>, vector<8x8xf32> -> vector<8x8xf32>
    %cst_71 = arith.constant dense<0.000000e+00> : vector<8x8xf32>
    %182 = tpu.matmul %180, %9, %cst_71 {dimension_numbers = #tpu.dot_dimension_numbers<[1], [0], [0], [1], [0, 0, 1, 1], [], []>} : vector<8x24xf32>, vector<24x8xf32>, vector<8x8xf32> -> vector<8x8xf32>
    %cst_72 = arith.constant dense<0.000000e+00> : vector<8x8xf32>
    %183 = tpu.matmul %164, %10, %cst_72 {dimension_numbers = #tpu.dot_dimension_numbers<[1], [0], [0], [1], [0, 0, 1, 1], [], []>} : vector<8x8xf32>, vector<8x8xf32>, vector<8x8xf32> -> vector<8x8xf32>
    %184 = arith.mulf %181, %164 : vector<8x8xf32>
    %185 = arith.mulf %182, %183 : vector<8x8xf32>
    %186 = arith.addf %184, %185 : vector<8x8xf32>
    %c0_73 = arith.constant 0 : index
    %c56 = arith.constant 56 : index
    %187 = vector.load %arg10[%c0_73, %c56] : memref<8x128xf32, #tpu.memory_space<vmem>>, vector<8x8xf32>
    tpu.vector_store %arg10[%c0_73, %c56], %186 {strides = array<i32>} : memref<8x128xf32, #tpu.memory_space<vmem>>, vector<8x8xf32>,
    %cst_74 = arith.constant dense<0.000000e+00> : vector<8x96xf32>
    %188 = tpu.matmul %186, %3, %cst_74 {dimension_numbers = #tpu.dot_dimension_numbers<[1], [0], [0], [1], [0, 0, 1, 1], [], []>} : vector<8x8xf32>, vector<8x96xf32>, vector<8x96xf32> -> vector<8x96xf32>
    %189 = vector.broadcast %4 : vector<1x96xf32> to vector<8x96xf32>
    %190 = arith.addf %188, %189 : vector<8x96xf32>
    %191 = math.tanh %190 : vector<8x96xf32>
    %cst_75 = arith.constant dense<0.000000e+00> : vector<8x24xf32>
    %192 = tpu.matmul %191, %5, %cst_75 {dimension_numbers = #tpu.dot_dimension_numbers<[1], [0], [0], [1], [0, 0, 1, 1], [], []>} : vector<8x96xf32>, vector<96x24xf32>, vector<8x24xf32> -> vector<8x24xf32>
    %193 = vector.broadcast %6 : vector<1x24xf32> to vector<8x24xf32>
    %194 = arith.addf %192, %193 : vector<8x24xf32>
    %cst_76 = arith.constant dense<0.000000e+00> : vector<8x24xf32>
    %195 = tpu.matmul %191, %7, %cst_76 {dimension_numbers = #tpu.dot_dimension_numbers<[1], [0], [0], [1], [0, 0, 1, 1], [], []>} : vector<8x96xf32>, vector<96x24xf32>, vector<8x24xf32> -> vector<8x24xf32>
    %196 = vector.broadcast %8 : vector<1x24xf32> to vector<8x24xf32>
    %197 = arith.addf %195, %196 : vector<8x24xf32>
    %198 = math.exp %194 : vector<8x24xf32>
    %199 = math.cos %197 : vector<8x24xf32>
    %200 = arith.mulf %198, %199 : vector<8x24xf32>
    %201 = math.sin %197 : vector<8x24xf32>
    %202 = arith.mulf %198, %201 : vector<8x24xf32>
    %cst_77 = arith.constant dense<0.000000e+00> : vector<8x8xf32>
    %203 = tpu.matmul %200, %9, %cst_77 {dimension_numbers = #tpu.dot_dimension_numbers<[1], [0], [0], [1], [0, 0, 1, 1], [], []>} : vector<8x24xf32>, vector<24x8xf32>, vector<8x8xf32> -> vector<8x8xf32>
    %cst_78 = arith.constant dense<0.000000e+00> : vector<8x8xf32>
    %204 = tpu.matmul %202, %9, %cst_78 {dimension_numbers = #tpu.dot_dimension_numbers<[1], [0], [0], [1], [0, 0, 1, 1], [], []>} : vector<8x24xf32>, vector<24x8xf32>, vector<8x8xf32> -> vector<8x8xf32>
    %cst_79 = arith.constant dense<0.000000e+00> : vector<8x8xf32>
    %205 = tpu.matmul %186, %10, %cst_79 {dimension_numbers = #tpu.dot_dimension_numbers<[1], [0], [0], [1], [0, 0, 1, 1], [], []>} : vector<8x8xf32>, vector<8x8xf32>, vector<8x8xf32> -> vector<8x8xf32>
    %206 = arith.mulf %203, %186 : vector<8x8xf32>
    %207 = arith.mulf %204, %205 : vector<8x8xf32>
    %208 = arith.addf %206, %207 : vector<8x8xf32>
    %c0_80 = arith.constant 0 : index
    %c64 = arith.constant 64 : index
    %209 = vector.load %arg10[%c0_80, %c64] : memref<8x128xf32, #tpu.memory_space<vmem>>, vector<8x8xf32>
    tpu.vector_store %arg10[%c0_80, %c64], %208 {strides = array<i32>} : memref<8x128xf32, #tpu.memory_space<vmem>>, vector<8x8xf32>,
    %cst_81 = arith.constant dense<0.000000e+00> : vector<8x96xf32>
    %210 = tpu.matmul %208, %3, %cst_81 {dimension_numbers = #tpu.dot_dimension_numbers<[1], [0], [0], [1], [0, 0, 1, 1], [], []>} : vector<8x8xf32>, vector<8x96xf32>, vector<8x96xf32> -> vector<8x96xf32>
    %211 = vector.broadcast %4 : vector<1x96xf32> to vector<8x96xf32>
    %212 = arith.addf %210, %211 : vector<8x96xf32>
    %213 = math.tanh %212 : vector<8x96xf32>
    %cst_82 = arith.constant dense<0.000000e+00> : vector<8x24xf32>
    %214 = tpu.matmul %213, %5, %cst_82 {dimension_numbers = #tpu.dot_dimension_numbers<[1], [0], [0], [1], [0, 0, 1, 1], [], []>} : vector<8x96xf32>, vector<96x24xf32>, vector<8x24xf32> -> vector<8x24xf32>
    %215 = vector.broadcast %6 : vector<1x24xf32> to vector<8x24xf32>
    %216 = arith.addf %214, %215 : vector<8x24xf32>
    %cst_83 = arith.constant dense<0.000000e+00> : vector<8x24xf32>
    %217 = tpu.matmul %213, %7, %cst_83 {dimension_numbers = #tpu.dot_dimension_numbers<[1], [0], [0], [1], [0, 0, 1, 1], [], []>} : vector<8x96xf32>, vector<96x24xf32>, vector<8x24xf32> -> vector<8x24xf32>
    %218 = vector.broadcast %8 : vector<1x24xf32> to vector<8x24xf32>
    %219 = arith.addf %217, %218 : vector<8x24xf32>
    %220 = math.exp %216 : vector<8x24xf32>
    %221 = math.cos %219 : vector<8x24xf32>
    %222 = arith.mulf %220, %221 : vector<8x24xf32>
    %223 = math.sin %219 : vector<8x24xf32>
    %224 = arith.mulf %220, %223 : vector<8x24xf32>
    %cst_84 = arith.constant dense<0.000000e+00> : vector<8x8xf32>
    %225 = tpu.matmul %222, %9, %cst_84 {dimension_numbers = #tpu.dot_dimension_numbers<[1], [0], [0], [1], [0, 0, 1, 1], [], []>} : vector<8x24xf32>, vector<24x8xf32>, vector<8x8xf32> -> vector<8x8xf32>
    %cst_85 = arith.constant dense<0.000000e+00> : vector<8x8xf32>
    %226 = tpu.matmul %224, %9, %cst_85 {dimension_numbers = #tpu.dot_dimension_numbers<[1], [0], [0], [1], [0, 0, 1, 1], [], []>} : vector<8x24xf32>, vector<24x8xf32>, vector<8x8xf32> -> vector<8x8xf32>
    %cst_86 = arith.constant dense<0.000000e+00> : vector<8x8xf32>
    %227 = tpu.matmul %208, %10, %cst_86 {dimension_numbers = #tpu.dot_dimension_numbers<[1], [0], [0], [1], [0, 0, 1, 1], [], []>} : vector<8x8xf32>, vector<8x8xf32>, vector<8x8xf32> -> vector<8x8xf32>
    %228 = arith.mulf %225, %208 : vector<8x8xf32>
    %229 = arith.mulf %226, %227 : vector<8x8xf32>
    %230 = arith.addf %228, %229 : vector<8x8xf32>
    %c0_87 = arith.constant 0 : index
    %c72 = arith.constant 72 : index
    %231 = vector.load %arg10[%c0_87, %c72] : memref<8x128xf32, #tpu.memory_space<vmem>>, vector<8x8xf32>
    tpu.vector_store %arg10[%c0_87, %c72], %230 {strides = array<i32>} : memref<8x128xf32, #tpu.memory_space<vmem>>, vector<8x8xf32>,
    %cst_88 = arith.constant dense<0.000000e+00> : vector<8x96xf32>
    %232 = tpu.matmul %230, %3, %cst_88 {dimension_numbers = #tpu.dot_dimension_numbers<[1], [0], [0], [1], [0, 0, 1, 1], [], []>} : vector<8x8xf32>, vector<8x96xf32>, vector<8x96xf32> -> vector<8x96xf32>
    %233 = vector.broadcast %4 : vector<1x96xf32> to vector<8x96xf32>
    %234 = arith.addf %232, %233 : vector<8x96xf32>
    %235 = math.tanh %234 : vector<8x96xf32>
    %cst_89 = arith.constant dense<0.000000e+00> : vector<8x24xf32>
    %236 = tpu.matmul %235, %5, %cst_89 {dimension_numbers = #tpu.dot_dimension_numbers<[1], [0], [0], [1], [0, 0, 1, 1], [], []>} : vector<8x96xf32>, vector<96x24xf32>, vector<8x24xf32> -> vector<8x24xf32>
    %237 = vector.broadcast %6 : vector<1x24xf32> to vector<8x24xf32>
    %238 = arith.addf %236, %237 : vector<8x24xf32>
    %cst_90 = arith.constant dense<0.000000e+00> : vector<8x24xf32>
    %239 = tpu.matmul %235, %7, %cst_90 {dimension_numbers = #tpu.dot_dimension_numbers<[1], [0], [0], [1], [0, 0, 1, 1], [], []>} : vector<8x96xf32>, vector<96x24xf32>, vector<8x24xf32> -> vector<8x24xf32>
    %240 = vector.broadcast %8 : vector<1x24xf32> to vector<8x24xf32>
    %241 = arith.addf %239, %240 : vector<8x24xf32>
    %242 = math.exp %238 : vector<8x24xf32>
    %243 = math.cos %241 : vector<8x24xf32>
    %244 = arith.mulf %242, %243 : vector<8x24xf32>
    %245 = math.sin %241 : vector<8x24xf32>
    %246 = arith.mulf %242, %245 : vector<8x24xf32>
    %cst_91 = arith.constant dense<0.000000e+00> : vector<8x8xf32>
    %247 = tpu.matmul %244, %9, %cst_91 {dimension_numbers = #tpu.dot_dimension_numbers<[1], [0], [0], [1], [0, 0, 1, 1], [], []>} : vector<8x24xf32>, vector<24x8xf32>, vector<8x8xf32> -> vector<8x8xf32>
    %cst_92 = arith.constant dense<0.000000e+00> : vector<8x8xf32>
    %248 = tpu.matmul %246, %9, %cst_92 {dimension_numbers = #tpu.dot_dimension_numbers<[1], [0], [0], [1], [0, 0, 1, 1], [], []>} : vector<8x24xf32>, vector<24x8xf32>, vector<8x8xf32> -> vector<8x8xf32>
    %cst_93 = arith.constant dense<0.000000e+00> : vector<8x8xf32>
    %249 = tpu.matmul %230, %10, %cst_93 {dimension_numbers = #tpu.dot_dimension_numbers<[1], [0], [0], [1], [0, 0, 1, 1], [], []>} : vector<8x8xf32>, vector<8x8xf32>, vector<8x8xf32> -> vector<8x8xf32>
    %250 = arith.mulf %247, %230 : vector<8x8xf32>
    %251 = arith.mulf %248, %249 : vector<8x8xf32>
    %252 = arith.addf %250, %251 : vector<8x8xf32>
    %c0_94 = arith.constant 0 : index
    %c80 = arith.constant 80 : index
    %253 = vector.load %arg10[%c0_94, %c80] : memref<8x128xf32, #tpu.memory_space<vmem>>, vector<8x8xf32>
    tpu.vector_store %arg10[%c0_94, %c80], %252 {strides = array<i32>} : memref<8x128xf32, #tpu.memory_space<vmem>>, vector<8x8xf32>,
    %cst_95 = arith.constant dense<0.000000e+00> : vector<8x96xf32>
    %254 = tpu.matmul %252, %3, %cst_95 {dimension_numbers = #tpu.dot_dimension_numbers<[1], [0], [0], [1], [0, 0, 1, 1], [], []>} : vector<8x8xf32>, vector<8x96xf32>, vector<8x96xf32> -> vector<8x96xf32>
    %255 = vector.broadcast %4 : vector<1x96xf32> to vector<8x96xf32>
    %256 = arith.addf %254, %255 : vector<8x96xf32>
    %257 = math.tanh %256 : vector<8x96xf32>
    %cst_96 = arith.constant dense<0.000000e+00> : vector<8x24xf32>
    %258 = tpu.matmul %257, %5, %cst_96 {dimension_numbers = #tpu.dot_dimension_numbers<[1], [0], [0], [1], [0, 0, 1, 1], [], []>} : vector<8x96xf32>, vector<96x24xf32>, vector<8x24xf32> -> vector<8x24xf32>
    %259 = vector.broadcast %6 : vector<1x24xf32> to vector<8x24xf32>
    %260 = arith.addf %258, %259 : vector<8x24xf32>
    %cst_97 = arith.constant dense<0.000000e+00> : vector<8x24xf32>
    %261 = tpu.matmul %257, %7, %cst_97 {dimension_numbers = #tpu.dot_dimension_numbers<[1], [0], [0], [1], [0, 0, 1, 1], [], []>} : vector<8x96xf32>, vector<96x24xf32>, vector<8x24xf32> -> vector<8x24xf32>
    %262 = vector.broadcast %8 : vector<1x24xf32> to vector<8x24xf32>
    %263 = arith.addf %261, %262 : vector<8x24xf32>
    %264 = math.exp %260 : vector<8x24xf32>
    %265 = math.cos %263 : vector<8x24xf32>
    %266 = arith.mulf %264, %265 : vector<8x24xf32>
    %267 = math.sin %263 : vector<8x24xf32>
    %268 = arith.mulf %264, %267 : vector<8x24xf32>
    %cst_98 = arith.constant dense<0.000000e+00> : vector<8x8xf32>
    %269 = tpu.matmul %266, %9, %cst_98 {dimension_numbers = #tpu.dot_dimension_numbers<[1], [0], [0], [1], [0, 0, 1, 1], [], []>} : vector<8x24xf32>, vector<24x8xf32>, vector<8x8xf32> -> vector<8x8xf32>
    %cst_99 = arith.constant dense<0.000000e+00> : vector<8x8xf32>
    %270 = tpu.matmul %268, %9, %cst_99 {dimension_numbers = #tpu.dot_dimension_numbers<[1], [0], [0], [1], [0, 0, 1, 1], [], []>} : vector<8x24xf32>, vector<24x8xf32>, vector<8x8xf32> -> vector<8x8xf32>
    %cst_100 = arith.constant dense<0.000000e+00> : vector<8x8xf32>
    %271 = tpu.matmul %252, %10, %cst_100 {dimension_numbers = #tpu.dot_dimension_numbers<[1], [0], [0], [1], [0, 0, 1, 1], [], []>} : vector<8x8xf32>, vector<8x8xf32>, vector<8x8xf32> -> vector<8x8xf32>
    %272 = arith.mulf %269, %252 : vector<8x8xf32>
    %273 = arith.mulf %270, %271 : vector<8x8xf32>
    %274 = arith.addf %272, %273 : vector<8x8xf32>
    %c0_101 = arith.constant 0 : index
    %c88 = arith.constant 88 : index
    %275 = vector.load %arg10[%c0_101, %c88] : memref<8x128xf32, #tpu.memory_space<vmem>>, vector<8x8xf32>
    tpu.vector_store %arg10[%c0_101, %c88], %274 {strides = array<i32>} : memref<8x128xf32, #tpu.memory_space<vmem>>, vector<8x8xf32>,
    %cst_102 = arith.constant dense<0.000000e+00> : vector<8x96xf32>
    %276 = tpu.matmul %274, %3, %cst_102 {dimension_numbers = #tpu.dot_dimension_numbers<[1], [0], [0], [1], [0, 0, 1, 1], [], []>} : vector<8x8xf32>, vector<8x96xf32>, vector<8x96xf32> -> vector<8x96xf32>
    %277 = vector.broadcast %4 : vector<1x96xf32> to vector<8x96xf32>
    %278 = arith.addf %276, %277 : vector<8x96xf32>
    %279 = math.tanh %278 : vector<8x96xf32>
    %cst_103 = arith.constant dense<0.000000e+00> : vector<8x24xf32>
    %280 = tpu.matmul %279, %5, %cst_103 {dimension_numbers = #tpu.dot_dimension_numbers<[1], [0], [0], [1], [0, 0, 1, 1], [], []>} : vector<8x96xf32>, vector<96x24xf32>, vector<8x24xf32> -> vector<8x24xf32>
    %281 = vector.broadcast %6 : vector<1x24xf32> to vector<8x24xf32>
    %282 = arith.addf %280, %281 : vector<8x24xf32>
    %cst_104 = arith.constant dense<0.000000e+00> : vector<8x24xf32>
    %283 = tpu.matmul %279, %7, %cst_104 {dimension_numbers = #tpu.dot_dimension_numbers<[1], [0], [0], [1], [0, 0, 1, 1], [], []>} : vector<8x96xf32>, vector<96x24xf32>, vector<8x24xf32> -> vector<8x24xf32>
    %284 = vector.broadcast %8 : vector<1x24xf32> to vector<8x24xf32>
    %285 = arith.addf %283, %284 : vector<8x24xf32>
    %286 = math.exp %282 : vector<8x24xf32>
    %287 = math.cos %285 : vector<8x24xf32>
    %288 = arith.mulf %286, %287 : vector<8x24xf32>
    %289 = math.sin %285 : vector<8x24xf32>
    %290 = arith.mulf %286, %289 : vector<8x24xf32>
    %cst_105 = arith.constant dense<0.000000e+00> : vector<8x8xf32>
    %291 = tpu.matmul %288, %9, %cst_105 {dimension_numbers = #tpu.dot_dimension_numbers<[1], [0], [0], [1], [0, 0, 1, 1], [], []>} : vector<8x24xf32>, vector<24x8xf32>, vector<8x8xf32> -> vector<8x8xf32>
    %cst_106 = arith.constant dense<0.000000e+00> : vector<8x8xf32>
    %292 = tpu.matmul %290, %9, %cst_106 {dimension_numbers = #tpu.dot_dimension_numbers<[1], [0], [0], [1], [0, 0, 1, 1], [], []>} : vector<8x24xf32>, vector<24x8xf32>, vector<8x8xf32> -> vector<8x8xf32>
    %cst_107 = arith.constant dense<0.000000e+00> : vector<8x8xf32>
    %293 = tpu.matmul %274, %10, %cst_107 {dimension_numbers = #tpu.dot_dimension_numbers<[1], [0], [0], [1], [0, 0, 1, 1], [], []>} : vector<8x8xf32>, vector<8x8xf32>, vector<8x8xf32> -> vector<8x8xf32>
    %294 = arith.mulf %291, %274 : vector<8x8xf32>
    %295 = arith.mulf %292, %293 : vector<8x8xf32>
    %296 = arith.addf %294, %295 : vector<8x8xf32>
    %c0_108 = arith.constant 0 : index
    %c96 = arith.constant 96 : index
    %297 = vector.load %arg10[%c0_108, %c96] : memref<8x128xf32, #tpu.memory_space<vmem>>, vector<8x8xf32>
    tpu.vector_store %arg10[%c0_108, %c96], %296 {strides = array<i32>} : memref<8x128xf32, #tpu.memory_space<vmem>>, vector<8x8xf32>,
    %cst_109 = arith.constant dense<0.000000e+00> : vector<8x96xf32>
    %298 = tpu.matmul %296, %3, %cst_109 {dimension_numbers = #tpu.dot_dimension_numbers<[1], [0], [0], [1], [0, 0, 1, 1], [], []>} : vector<8x8xf32>, vector<8x96xf32>, vector<8x96xf32> -> vector<8x96xf32>
    %299 = vector.broadcast %4 : vector<1x96xf32> to vector<8x96xf32>
    %300 = arith.addf %298, %299 : vector<8x96xf32>
    %301 = math.tanh %300 : vector<8x96xf32>
    %cst_110 = arith.constant dense<0.000000e+00> : vector<8x24xf32>
    %302 = tpu.matmul %301, %5, %cst_110 {dimension_numbers = #tpu.dot_dimension_numbers<[1], [0], [0], [1], [0, 0, 1, 1], [], []>} : vector<8x96xf32>, vector<96x24xf32>, vector<8x24xf32> -> vector<8x24xf32>
    %303 = vector.broadcast %6 : vector<1x24xf32> to vector<8x24xf32>
    %304 = arith.addf %302, %303 : vector<8x24xf32>
    %cst_111 = arith.constant dense<0.000000e+00> : vector<8x24xf32>
    %305 = tpu.matmul %301, %7, %cst_111 {dimension_numbers = #tpu.dot_dimension_numbers<[1], [0], [0], [1], [0, 0, 1, 1], [], []>} : vector<8x96xf32>, vector<96x24xf32>, vector<8x24xf32> -> vector<8x24xf32>
    %306 = vector.broadcast %8 : vector<1x24xf32> to vector<8x24xf32>
    %307 = arith.addf %305, %306 : vector<8x24xf32>
    %308 = math.exp %304 : vector<8x24xf32>
    %309 = math.cos %307 : vector<8x24xf32>
    %310 = arith.mulf %308, %309 : vector<8x24xf32>
    %311 = math.sin %307 : vector<8x24xf32>
    %312 = arith.mulf %308, %311 : vector<8x24xf32>
    %cst_112 = arith.constant dense<0.000000e+00> : vector<8x8xf32>
    %313 = tpu.matmul %310, %9, %cst_112 {dimension_numbers = #tpu.dot_dimension_numbers<[1], [0], [0], [1], [0, 0, 1, 1], [], []>} : vector<8x24xf32>, vector<24x8xf32>, vector<8x8xf32> -> vector<8x8xf32>
    %cst_113 = arith.constant dense<0.000000e+00> : vector<8x8xf32>
    %314 = tpu.matmul %312, %9, %cst_113 {dimension_numbers = #tpu.dot_dimension_numbers<[1], [0], [0], [1], [0, 0, 1, 1], [], []>} : vector<8x24xf32>, vector<24x8xf32>, vector<8x8xf32> -> vector<8x8xf32>
    %cst_114 = arith.constant dense<0.000000e+00> : vector<8x8xf32>
    %315 = tpu.matmul %296, %10, %cst_114 {dimension_numbers = #tpu.dot_dimension_numbers<[1], [0], [0], [1], [0, 0, 1, 1], [], []>} : vector<8x8xf32>, vector<8x8xf32>, vector<8x8xf32> -> vector<8x8xf32>
    %316 = arith.mulf %313, %296 : vector<8x8xf32>
    %317 = arith.mulf %314, %315 : vector<8x8xf32>
    %318 = arith.addf %316, %317 : vector<8x8xf32>
    %c0_115 = arith.constant 0 : index
    %c104 = arith.constant 104 : index
    %319 = vector.load %arg10[%c0_115, %c104] : memref<8x128xf32, #tpu.memory_space<vmem>>, vector<8x8xf32>
    tpu.vector_store %arg10[%c0_115, %c104], %318 {strides = array<i32>} : memref<8x128xf32, #tpu.memory_space<vmem>>, vector<8x8xf32>,
    %cst_116 = arith.constant dense<0.000000e+00> : vector<8x96xf32>
    %320 = tpu.matmul %318, %3, %cst_116 {dimension_numbers = #tpu.dot_dimension_numbers<[1], [0], [0], [1], [0, 0, 1, 1], [], []>} : vector<8x8xf32>, vector<8x96xf32>, vector<8x96xf32> -> vector<8x96xf32>
    %321 = vector.broadcast %4 : vector<1x96xf32> to vector<8x96xf32>
    %322 = arith.addf %320, %321 : vector<8x96xf32>
    %323 = math.tanh %322 : vector<8x96xf32>
    %cst_117 = arith.constant dense<0.000000e+00> : vector<8x24xf32>
    %324 = tpu.matmul %323, %5, %cst_117 {dimension_numbers = #tpu.dot_dimension_numbers<[1], [0], [0], [1], [0, 0, 1, 1], [], []>} : vector<8x96xf32>, vector<96x24xf32>, vector<8x24xf32> -> vector<8x24xf32>
    %325 = vector.broadcast %6 : vector<1x24xf32> to vector<8x24xf32>
    %326 = arith.addf %324, %325 : vector<8x24xf32>
    %cst_118 = arith.constant dense<0.000000e+00> : vector<8x24xf32>
    %327 = tpu.matmul %323, %7, %cst_118 {dimension_numbers = #tpu.dot_dimension_numbers<[1], [0], [0], [1], [0, 0, 1, 1], [], []>} : vector<8x96xf32>, vector<96x24xf32>, vector<8x24xf32> -> vector<8x24xf32>
    %328 = vector.broadcast %8 : vector<1x24xf32> to vector<8x24xf32>
    %329 = arith.addf %327, %328 : vector<8x24xf32>
    %330 = math.exp %326 : vector<8x24xf32>
    %331 = math.cos %329 : vector<8x24xf32>
    %332 = arith.mulf %330, %331 : vector<8x24xf32>
    %333 = math.sin %329 : vector<8x24xf32>
    %334 = arith.mulf %330, %333 : vector<8x24xf32>
    %cst_119 = arith.constant dense<0.000000e+00> : vector<8x8xf32>
    %335 = tpu.matmul %332, %9, %cst_119 {dimension_numbers = #tpu.dot_dimension_numbers<[1], [0], [0], [1], [0, 0, 1, 1], [], []>} : vector<8x24xf32>, vector<24x8xf32>, vector<8x8xf32> -> vector<8x8xf32>
    %cst_120 = arith.constant dense<0.000000e+00> : vector<8x8xf32>
    %336 = tpu.matmul %334, %9, %cst_120 {dimension_numbers = #tpu.dot_dimension_numbers<[1], [0], [0], [1], [0, 0, 1, 1], [], []>} : vector<8x24xf32>, vector<24x8xf32>, vector<8x8xf32> -> vector<8x8xf32>
    %cst_121 = arith.constant dense<0.000000e+00> : vector<8x8xf32>
    %337 = tpu.matmul %318, %10, %cst_121 {dimension_numbers = #tpu.dot_dimension_numbers<[1], [0], [0], [1], [0, 0, 1, 1], [], []>} : vector<8x8xf32>, vector<8x8xf32>, vector<8x8xf32> -> vector<8x8xf32>
    %338 = arith.mulf %335, %318 : vector<8x8xf32>
    %339 = arith.mulf %336, %337 : vector<8x8xf32>
    %340 = arith.addf %338, %339 : vector<8x8xf32>
    %c0_122 = arith.constant 0 : index
    %c112 = arith.constant 112 : index
    %341 = vector.load %arg10[%c0_122, %c112] : memref<8x128xf32, #tpu.memory_space<vmem>>, vector<8x8xf32>
    tpu.vector_store %arg10[%c0_122, %c112], %340 {strides = array<i32>} : memref<8x128xf32, #tpu.memory_space<vmem>>, vector<8x8xf32>,
    %cst_123 = arith.constant dense<0.000000e+00> : vector<8x96xf32>
    %342 = tpu.matmul %340, %3, %cst_123 {dimension_numbers = #tpu.dot_dimension_numbers<[1], [0], [0], [1], [0, 0, 1, 1], [], []>} : vector<8x8xf32>, vector<8x96xf32>, vector<8x96xf32> -> vector<8x96xf32>
    %343 = vector.broadcast %4 : vector<1x96xf32> to vector<8x96xf32>
    %344 = arith.addf %342, %343 : vector<8x96xf32>
    %345 = math.tanh %344 : vector<8x96xf32>
    %cst_124 = arith.constant dense<0.000000e+00> : vector<8x24xf32>
    %346 = tpu.matmul %345, %5, %cst_124 {dimension_numbers = #tpu.dot_dimension_numbers<[1], [0], [0], [1], [0, 0, 1, 1], [], []>} : vector<8x96xf32>, vector<96x24xf32>, vector<8x24xf32> -> vector<8x24xf32>
    %347 = vector.broadcast %6 : vector<1x24xf32> to vector<8x24xf32>
    %348 = arith.addf %346, %347 : vector<8x24xf32>
    %cst_125 = arith.constant dense<0.000000e+00> : vector<8x24xf32>
    %349 = tpu.matmul %345, %7, %cst_125 {dimension_numbers = #tpu.dot_dimension_numbers<[1], [0], [0], [1], [0, 0, 1, 1], [], []>} : vector<8x96xf32>, vector<96x24xf32>, vector<8x24xf32> -> vector<8x24xf32>
    %350 = vector.broadcast %8 : vector<1x24xf32> to vector<8x24xf32>
    %351 = arith.addf %349, %350 : vector<8x24xf32>
    %352 = math.exp %348 : vector<8x24xf32>
    %353 = math.cos %351 : vector<8x24xf32>
    %354 = arith.mulf %352, %353 : vector<8x24xf32>
    %355 = math.sin %351 : vector<8x24xf32>
    %356 = arith.mulf %352, %355 : vector<8x24xf32>
    %cst_126 = arith.constant dense<0.000000e+00> : vector<8x8xf32>
    %357 = tpu.matmul %354, %9, %cst_126 {dimension_numbers = #tpu.dot_dimension_numbers<[1], [0], [0], [1], [0, 0, 1, 1], [], []>} : vector<8x24xf32>, vector<24x8xf32>, vector<8x8xf32> -> vector<8x8xf32>
    %cst_127 = arith.constant dense<0.000000e+00> : vector<8x8xf32>
    %358 = tpu.matmul %356, %9, %cst_127 {dimension_numbers = #tpu.dot_dimension_numbers<[1], [0], [0], [1], [0, 0, 1, 1], [], []>} : vector<8x24xf32>, vector<24x8xf32>, vector<8x8xf32> -> vector<8x8xf32>
    %cst_128 = arith.constant dense<0.000000e+00> : vector<8x8xf32>
    %359 = tpu.matmul %340, %10, %cst_128 {dimension_numbers = #tpu.dot_dimension_numbers<[1], [0], [0], [1], [0, 0, 1, 1], [], []>} : vector<8x8xf32>, vector<8x8xf32>, vector<8x8xf32> -> vector<8x8xf32>
    %360 = arith.mulf %357, %340 : vector<8x8xf32>
    %361 = arith.mulf %358, %359 : vector<8x8xf32>
    %362 = arith.addf %360, %361 : vector<8x8xf32>
    %c0_129 = arith.constant 0 : index
    %c120 = arith.constant 120 : index
    %363 = vector.load %arg10[%c0_129, %c120] : memref<8x128xf32, #tpu.memory_space<vmem>>, vector<8x8xf32>
    tpu.vector_store %arg10[%c0_129, %c120], %362 {strides = array<i32>} : memref<8x128xf32, #tpu.memory_space<vmem>>, vector<8x8xf32>,
    %c0_130 = arith.constant 0 : index
    %c0_131 = arith.constant 0 : index
    %364 = vector.load %arg11[%c0_130, %c0_131] : memref<8x8xf32, #tpu.memory_space<vmem>>, vector<8x8xf32>
    tpu.vector_store %arg11[%c0_130, %c0_131], %362 {strides = array<i32>} : memref<8x8xf32, #tpu.memory_space<vmem>>, vector<8x8xf32>,
    return
  }
  func.func @transform_0(%arg0: i32) -> (i32, i32) {
    %c0_i32 = arith.constant 0 : i32
    %c0_i32_0 = arith.constant 0 : i32
    %c0_i32_1 = arith.constant 0 : i32
    return %c0_i32, %c0_i32_0 : i32, i32
  }
  func.func @transform_1(%arg0: i32) -> (i32, i32) {
    %c0_i32 = arith.constant 0 : i32
    %c0_i32_0 = arith.constant 0 : i32
    %c0_i32_1 = arith.constant 0 : i32
    return %c0_i32, %c0_i32_0 : i32, i32
  }
  func.func @transform_2(%arg0: i32) -> (i32, i32) {
    %c0_i32 = arith.constant 0 : i32
    %c0_i32_0 = arith.constant 0 : i32
    %c0_i32_1 = arith.constant 0 : i32
    return %c0_i32, %c0_i32_0 : i32, i32
  }
  func.func @transform_3(%arg0: i32) -> (i32, i32) {
    %c0_i32 = arith.constant 0 : i32
    %c0_i32_0 = arith.constant 0 : i32
    %c0_i32_1 = arith.constant 0 : i32
    return %c0_i32, %c0_i32_0 : i32, i32
  }
  func.func @transform_4(%arg0: i32) -> (i32, i32) {
    %c0_i32 = arith.constant 0 : i32
    %c0_i32_0 = arith.constant 0 : i32
    %c0_i32_1 = arith.constant 0 : i32
    return %c0_i32, %c0_i32_0 : i32, i32
  }
  func.func @transform_5(%arg0: i32) -> (i32, i32) {
    %c0_i32 = arith.constant 0 : i32
    %c0_i32_0 = arith.constant 0 : i32
    %c0_i32_1 = arith.constant 0 : i32
    return %c0_i32, %c0_i32_0 : i32, i32
  }
  func.func @transform_6(%arg0: i32) -> (i32, i32) {
    %c0_i32 = arith.constant 0 : i32
    %c0_i32_0 = arith.constant 0 : i32
    %c0_i32_1 = arith.constant 0 : i32
    return %c0_i32, %c0_i32_0 : i32, i32
  }
  func.func @transform_7(%arg0: i32) -> (i32, i32) {
    %c0_i32 = arith.constant 0 : i32
    %c0_i32_0 = arith.constant 0 : i32
    %c0_i32_1 = arith.constant 0 : i32
    return %c0_i32, %c0_i32_0 : i32, i32
  }
  func.func @transform_8(%arg0: i32) -> (i32, i32) {
    %c0_i32 = arith.constant 0 : i32
    %c0_i32_0 = arith.constant 0 : i32
    %c0_i32_1 = arith.constant 0 : i32
    return %c0_i32, %c0_i32_0 : i32, i32
  }
  func.func @transform_9(%arg0: i32) -> (i32, i32) {
    %c0_i32 = arith.constant 0 : i32
    %c0_i32_0 = arith.constant 0 : i32
    return %c0_i32, %arg0 : i32, i32
  }
}

</mosaic_0001>

<llo_original>
// kernel: tpu_custom_call.1
$region0: #{tpu_custom_call.1}
  #allocation0 [shape = 'u32[]', space=smem, size = 0x4, offset = 0x4, fixed_abs, tag = 'smem constant byte address 0x4 - core index']
  #allocation1 [shape = 'u32[72,128]{1,0:T(1,128)}', space=vmem, size = 0x9000, scoped, tag = 'internal scratch']
  #allocation2 [shape = 'f32[8,8]{1,0:T(8,128)}', space=vmem, size = 0x1000, scoped, tag = 'scratch operand']
  %s0 = inlined_call_operand.vmem [shape: f32[8,8], index: 0, kind: input, shape index: {}]
  %s1 = inlined_call_operand.vmem [shape: f32[8,96], index: 1, kind: input, shape index: {}]
  %s2 = inlined_call_operand.vmem [shape: f32[1,96], index: 2, kind: input, shape index: {}]
  %s3 = inlined_call_operand.vmem [shape: f32[96,24], index: 3, kind: input, shape index: {}]
  %s4 = inlined_call_operand.vmem [shape: f32[1,24], index: 4, kind: input, shape index: {}]
  %s5 = inlined_call_operand.vmem [shape: f32[96,24], index: 5, kind: input, shape index: {}]
  %s6 = inlined_call_operand.vmem [shape: f32[1,24], index: 6, kind: input, shape index: {}]
  %s7 = inlined_call_operand.vmem [shape: f32[24,8], index: 7, kind: input, shape index: {}]
  %s8 = inlined_call_operand.vmem [shape: f32[8,8], index: 8, kind: input, shape index: {}]
  %s9 = inlined_call_operand.hbm [shape: f32[8,128], index: 9, kind: output, shape index: {}]
  %s10 = sld [smem:[#allocation0]]
  $region50: #{tpu_custom_call.1} parent=0
    _
  %s12 = ssub.s32 1, %s10
  %s13 = scalar_select 0, %s12, %s10
  $region1: #{tpu_custom_call.1} parent=0
    #allocation3 [shape = 'u8[4096]{0}', space=vmem, size = 0x1000, scoped, tag = 'output window, operand 0, single buffered']
    #allocation4 [shape = 's32[1]{0}', space=sflag, size = 0x4, scoped, tag = 'scoped memory for tpu_custom_call.1']
    %14 = vsyncpa [#allocation4], 0
    // Predicated region
    $region2: #{tpu_custom_call.1} parent=1 // pred_check
      _
    $region3: #{tpu_custom_call.1} parent=1 // pred_check_branch
      %16 = sbr.rel (0) target = $region5
    $region4: #{tpu_custom_call.1} parent=1 // pred_region
      _
    $region5: #{tpu_custom_call.1} parent=1 // pred_fallthru
      _
    // Predicated region
    $region6: #{tpu_custom_call.1} parent=1 // pred_check
      _
    $region7: #{tpu_custom_call.1} parent=1 // pred_check_branch
      %18 = sbr.rel (0) target = $region9
    $region8: #{tpu_custom_call.1} parent=1 // pred_region
      _
    $region9: #{tpu_custom_call.1} parent=1 // pred_fallthru
      _
    // Predicated region
    $region10: #{tpu_custom_call.1} parent=1 // pred_check
      _
    $region11: #{tpu_custom_call.1} parent=1 // pred_check_branch
      %20 = sbr.rel (0) target = $region13
    $region12: #{tpu_custom_call.1} parent=1 // pred_region
      _
    $region13: #{tpu_custom_call.1} parent=1 // pred_fallthru
      _
    // Predicated region
    $region14: #{tpu_custom_call.1} parent=1 // pred_check
      _
    $region15: #{tpu_custom_call.1} parent=1 // pred_check_branch
      %22 = sbr.rel (0) target = $region17
    $region16: #{tpu_custom_call.1} parent=1 // pred_region
      _
    $region17: #{tpu_custom_call.1} parent=1 // pred_fallthru
      _
    // Predicated region
    $region18: #{tpu_custom_call.1} parent=1 // pred_check
      _
    $region19: #{tpu_custom_call.1} parent=1 // pred_check_branch
      %24 = sbr.rel (0) target = $region21
    $region20: #{tpu_custom_call.1} parent=1 // pred_region
      _
    $region21: #{tpu_custom_call.1} parent=1 // pred_fallthru
      _
    // Predicated region
    $region22: #{tpu_custom_call.1} parent=1 // pred_check
      _
    $region23: #{tpu_custom_call.1} parent=1 // pred_check_branch
      %26 = sbr.rel (0) target = $region25
    $region24: #{tpu_custom_call.1} parent=1 // pred_region
      _
    $region25: #{tpu_custom_call.1} parent=1 // pred_fallthru
      _
    // Predicated region
    $region26: #{tpu_custom_call.1} parent=1 // pred_check
      _
    $region27: #{tpu_custom_call.1} parent=1 // pred_check_branch
      %28 = sbr.rel (0) target = $region29
    $region28: #{tpu_custom_call.1} parent=1 // pred_region
      _
    $region29: #{tpu_custom_call.1} parent=1 // pred_fallthru
      _
    // Predicated region
    $region30: #{tpu_custom_call.1} parent=1 // pred_check
      _
    $region31: #{tpu_custom_call.1} parent=1 // pred_check_branch
      %30 = sbr.rel (0) target = $region33
    $region32: #{tpu_custom_call.1} parent=1 // pred_region
      _
    $region33: #{tpu_custom_call.1} parent=1 // pred_fallthru
      _
    // Predicated region
    $region34: #{tpu_custom_call.1} parent=1 // pred_check
      _
    $region35: #{tpu_custom_call.1} parent=1 // pred_check_branch
      %32 = sbr.rel (0) target = $region37
    $region36: #{tpu_custom_call.1} parent=1 // pred_region
      _
    $region37: #{tpu_custom_call.1} parent=1 // pred_fallthru
      _
    %p33 = scmp.eq.s32.totalorder 0, 0
    // Predicated region
    $region38: #{tpu_custom_call.1} parent=1 // pred_check
      %p34 = pneg %p33
    $region39: #{tpu_custom_call.1} parent=1 // pred_check_branch
      %36 = sbr.rel (%p34) target = $region41
    $region40: #{tpu_custom_call.1} parent=1 // pred_region
      %v37 = vld [vmem:[%s0] sm:$0xff]
      %vm38 = vcmask 64512
      %39 = vst.msk [vmem:[#allocation2] sm:$0xff] %vm38, %v37
    $region41: #{tpu_custom_call.1} parent=1 // pred_fallthru
      _
    %v40 = vld [vmem:[%s1] sm:$0xff]
    %v41 = vld [vmem:[%s2] sm:$0x1]
    %v42 = vld [vmem:[%s3] sm:$0xff]
    %v43 = vld [vmem:[%s3 + $0x8] sm:$0xff]
    %v44 = vld [vmem:[%s3 + $0x10] sm:$0xff]
    %v45 = vld [vmem:[%s3 + $0x18] sm:$0xff]
    %v46 = vld [vmem:[%s3 + $0x20] sm:$0xff]
    %v47 = vld [vmem:[%s3 + $0x28] sm:$0xff]
    %v48 = vld [vmem:[%s3 + $0x30] sm:$0xff]
    %v49 = vld [vmem:[%s3 + $0x38] sm:$0xff]
    %v50 = vld [vmem:[%s3 + $0x40] sm:$0xff]
    %v51 = vld [vmem:[%s3 + $0x48] sm:$0xff]
    %v52 = vld [vmem:[%s3 + $0x50] sm:$0xff]
    %v53 = vld [vmem:[%s3 + $0x58] sm:$0xff]
    %v54 = vld [vmem:[%s4] sm:$0x1]
    %v55 = vld [vmem:[%s5] sm:$0xff]
    %v56 = vld [vmem:[%s5 + $0x8] sm:$0xff]
    %v57 = vld [vmem:[%s5 + $0x10] sm:$0xff]
    %v58 = vld [vmem:[%s5 + $0x18] sm:$0xff]
    %v59 = vld [vmem:[%s5 + $0x20] sm:$0xff]
    %v60 = vld [vmem:[%s5 + $0x28] sm:$0xff]
    %v61 = vld [vmem:[%s5 + $0x30] sm:$0xff]
    %v62 = vld [vmem:[%s5 + $0x38] sm:$0xff]
    %v63 = vld [vmem:[%s5 + $0x40] sm:$0xff]
    %v64 = vld [vmem:[%s5 + $0x48] sm:$0xff]
    %v65 = vld [vmem:[%s5 + $0x50] sm:$0xff]
    %v66 = vld [vmem:[%s5 + $0x58] sm:$0xff]
    %v67 = vld [vmem:[%s6] sm:$0x1]
    %v68 = vld [vmem:[%s7] sm:$0xff]
    %v69 = vld [vmem:[%s7 + $0x8] sm:$0xff]
    %v70 = vld [vmem:[%s7 + $0x10] sm:$0xff]
    %v71 = vld [vmem:[%s8] sm:$0xff]
    %v72 = vld [vmem:[#allocation2] sm:$0xff]
    %v74 = vperm.slane %v41, 0
    %vm76 = vcmask 64512
    %v78 = vsel %vm76, %v72, 0
    %80 = vmatpush.msra.mxu0 0.0
    %81 = vmatpush.msra.mxu0 0.0
    %82 = vmatpush.msra.mxu0 0.0
    %83 = vmatpush.msra.mxu0 0.0
    %84 = vmatpush.msra.mxu0 0.0
    %85 = vmatpush.msra.mxu0 0.0
    %86 = vmatpush.msra.mxu0 0.0
    %87 = vmatpush.msra.mxu0 0.0
    %88 = vmatpush.msra.mxu0 0.0
    %89 = vmatpush.msra.mxu0 0.0
    %90 = vmatpush.msra.mxu0 0.0
    %91 = vmatpush.msra.mxu0 0.0
    %92 = vmatpush.msra.mxu0 0.0
    %93 = vmatpush.msra.mxu0 0.0
    %94 = vmatpush.msra.mxu0 0.0
    %95 = vmatpush.msra.mxu0 %v40
    %96 = vmatmul.f32.gmra.mxu0 %v78
    %v97 = vpop.f32.mrf.mxu0
    %v98 = vadd.f32 %v74, %v97
    %99 = vdwg.mxu0
    %v100 = vtanh.pop %v98
    %v102 = vperm.slane %v54, 0
    %vm104 = vcmask 785408
    %v106 = vsel %vm104, %v100, 0
    %108 = vmatpush.msra.mxu0 0.0
    %109 = vmatpush.msra.mxu0 0.0
    %110 = vmatpush.msra.mxu0 0.0
    %111 = vmatpush.msra.mxu0 0.0
    %112 = vmatpush.msra.mxu0 %v53
    %113 = vmatpush.msra.mxu0 %v52
    %114 = vmatpush.msra.mxu0 %v51
    %115 = vmatpush.msra.mxu0 %v50
    %116 = vmatpush.msra.mxu0 %v49
    %117 = vmatpush.msra.mxu0 %v48
    %118 = vmatpush.msra.mxu0 %v47
    %119 = vmatpush.msra.mxu0 %v46
    %120 = vmatpush.msra.mxu0 %v45
    %121 = vmatpush.msra.mxu0 %v44
    %122 = vmatpush.msra.mxu0 %v43
    %123 = vmatpush.msra.mxu0 %v42
    %124 = vmatmul.f32.gmra.mxu0 %v106
    %v125 = vpop.f32.mrf.mxu0
    %v126 = vadd.f32 %v102, %v125
    %127 = vdwg.mxu0
    %v129 = vperm.slane %v67, 0
    %131 = vmatpush.msra.mxu0 0.0
    %132 = vmatpush.msra.mxu0 0.0
    %133 = vmatpush.msra.mxu0 0.0
    %134 = vmatpush.msra.mxu0 0.0
    %135 = vmatpush.msra.mxu0 %v66
    %136 = vmatpush.msra.mxu0 %v65
    %137 = vmatpush.msra.mxu0 %v64
    %138 = vmatpush.msra.mxu0 %v63
    %139 = vmatpush.msra.mxu0 %v62
    %140 = vmatpush.msra.mxu0 %v61
    %141 = vmatpush.msra.mxu0 %v60
    %142 = vmatpush.msra.mxu0 %v59
    %143 = vmatpush.msra.mxu0 %v58
    %144 = vmatpush.msra.mxu0 %v57
    %145 = vmatpush.msra.mxu0 %v56
    %146 = vmatpush.msra.mxu0 %v55
    %147 = vmatmul.f32.gmra.mxu0 %v106
    %v148 = vpop.f32.mrf.mxu0
    %v149 = vadd.f32 %v129, %v148
    %150 = vdwg.mxu0
    %v151 = vmul.f32 %v126, 1.442695
    %v152 = vpow.pop %v151
    %v153 = vand.u32 2147483647, %v149
    %vm154 = vcmp.le.f32.partialorder %v153, 0.7853982
    %vm155 = vcmp.lt.s32.totalorder %v149, 0
    %v156 = vand.u32 %v149, 2139095040
    %v157 = vshrl.u32 %v156, 23
    %v158 = vsub.s32 %v157, 127
    %v159 = vand.u32 2147483647, %v149
    %v160 = vand.u32 %v159, 8388607
    %v161 = vor.u32 %v160, 8388608
    %v162 = vsub.s32 0, %v161
    %v163 = vadd.s32 %v158, 1
    %vm164 = vcmp.gt.s32.totalorder %v163, 0
    %v165 = vsel %vm164, %v163, 0
    %v166 = vshrl.u32 %v165, 5
    %v167 = vand.u32 %v165, 31
    %v168 = vsub.s32 32, %v167
    %v169 = vshrl.u32 683565275, %v168
    %v170 = vshll.u32 683565275, %v167
    %v171 = vshrl.u32 2475754826, %v168
    %v172 = vor.u32 %v170, %v171
    %v173 = vshll.u32 2475754826, %v167
    %v174 = vshrl.u32 2131351028, %v168
    %v175 = vor.u32 %v173, %v174
    %v176 = vshll.u32 2131351028, %v167
    %v177 = vshrl.u32 2102212464, %v168
    %v178 = vor.u32 %v176, %v177
    %v179 = vshll.u32 2102212464, %v167
    %v180 = vshrl.u32 920167782, %v168
    %v181 = vor.u32 %v179, %v180
    %v182 = vshll.u32 920167782, %v167
    %v183 = vshrl.u32 1326507024, %v168
    %v184 = vor.u32 %v182, %v183
    %vm185 = vcmp.lt.s32.totalorder %v166, 1
    %vm186 = vcmp.lt.s32.totalorder %v166, 2
    %vm187 = vcmp.lt.s32.totalorder %v166, 3
    %vm188 = vcmp.lt.s32.totalorder %v166, 4
    %v189 = vsel %vm185, %v169, %v172
    %v190 = vsel %vm188, %v178, 2102212464
    %v191 = vsel %vm187, %v175, %v190
    %v192 = vsel %vm186, %v189, %v191
    %v193 = vsel %vm185, %v172, %v175
    %v194 = vsel %vm188, %v181, 920167782
    %v195 = vsel %vm187, %v178, %v194
    %v196 = vsel %vm186, %v193, %v195
    %v197 = vsel %vm185, %v175, %v178
    %v198 = vsel %vm188, %v184, 1326507024
    %v199 = vsel %vm187, %v181, %v198
    %v200 = vsel %vm186, %v197, %v199
    %v201 = vshll.u32 %v161, 8
    %v202 = vand.u32 %v201, 65535
    %v203 = vshrl.u32 %v201, 16
    %v204 = vand.u32 %v200, 65535
    %v205 = vshrl.u32 %v200, 16
    %v206 = vmul.u32 %v202, %v204
    %v207 = vmul.u32 %v202, %v205
    %v208 = vmul.u32 %v203, %v204
    %v209 = vmul.u32 %v203, %v205
    %v210 = vshll.u32 %v207, 16
    %v211 = vshrl.u32 %v207, 16
    %v212 = vshll.u32 %v208, 16
    %v213 = vshrl.u32 %v208, 16
    %vm214 = vc.u32 %v206, %v210
    %v215 = vsel %vm214, 1, 0
    %v216 = vadd.s32 %v206, %v210
    %v217 = vadd.s32 %v209, %v215
    %vm218 = vc.u32 %v216, %v212
    %v219 = vsel %vm218, 1, 0
    %v220 = vadd.s32 %v216, %v212
    %v221 = vadd.s32 %v217, %v219
    %v222 = vadd.s32 %v221, %v211
    %v223 = vadd.s32 %v222, %v213
    %v224 = vand.u32 %v201, 65535
    %v225 = vshrl.u32 %v201, 16
    %v226 = vand.u32 %v196, 65535
    %v227 = vshrl.u32 %v196, 16
    %v228 = vmul.u32 %v224, %v226
    %v229 = vmul.u32 %v224, %v227
    %v230 = vmul.u32 %v225, %v226
    %v231 = vmul.u32 %v225, %v227
    %v232 = vshll.u32 %v229, 16
    %v233 = vshrl.u32 %v229, 16
    %v234 = vshll.u32 %v230, 16
    %v235 = vshrl.u32 %v230, 16
    %vm236 = vc.u32 %v228, %v232
    %v237 = vsel %vm236, 1, 0
    %v238 = vadd.s32 %v228, %v232
    %v239 = vadd.s32 %v231, %v237
    %vm240 = vc.u32 %v238, %v234
    %v241 = vsel %vm240, 1, 0
    %v242 = vadd.s32 %v238, %v234
    %v243 = vadd.s32 %v239, %v241
    %v244 = vadd.s32 %v243, %v233
    %v245 = vadd.s32 %v244, %v235
    %v246 = vmul.u32 %v201, %v192
    %v247 = vadd.s32 %v223, %v242
    %vm248 = vc.u32 %v223, %v242
    %v249 = vadd.s32 %v245, 1
    %v250 = vsel %vm248, %v249, %v245
    %v251 = vadd.s32 %v246, %v250
    %v252 = vadd.s32 %v251, 536870912
    %v253 = vshrl.u32 %v252, 30
    %v254 = vshll.u32 %v253, 30
    %v255 = vsub.s32 %v251, %v254
    %vm256 = vcmp.lt.s32.totalorder %v255, 0
    %v257 = vsub.s32 0, %v255
    %v258 = vsel %vm256, %v257, %v255
    %v259 = vclz %v258
    %v260 = vsub.s32 %v259, 2
    %vm261 = vcmp.gt.s32.totalorder 0, %v260
    %v262 = vsel %vm261, 0, %v260
    %v263 = vsub.s32 32, %v262
    %v264 = vshll.u32 %v255, %v262
    %v265 = vshrl.u32 %v247, %v263
    %v266 = vor.u32 %v264, %v265
    %v267 = vsub.s32 4294967266, %v262
    %v268 = vadd.s32 %v267, 127
    %v269 = vshll.u32 %v268, 23
    %v270 = vor.u32 4788187, %v269
    %v271 = vand.u32 2147483647, %v270
    %v273 = vcvt.s32.f32 %v266
    %v274 = vmul.f32 %v273, %v271
    %v275 = vxor.u32 %v274, 2147483648
    %v276 = vsel %vm155, %v275, %v274
    %v277 = vsub.s32 4, %v253
    %v278 = vsel %vm155, %v277, %v253
    %v279 = vsel %vm154, %v149, %v276
    %v280 = vsel %vm154, 0, %v278
    %v281 = vmul.f32 %v279, %v279
    %v282 = vmul.f32 %v281, -0.001358992
    %v283 = vadd.f32 %v282, 0.041655596
    %v284 = vmul.f32 %v281, %v283
    %v285 = vadd.f32 %v284, -0.4999988
    %v286 = vmul.f32 %v281, %v285
    %v287 = vadd.f32 1.0, %v286
    %v288 = vmul.f32 %v279, %v279
    %v289 = vmul.f32 %v288, -0.00019511016
    %v290 = vadd.f32 %v289, 0.008332121
    %v291 = vmul.f32 %v288, %v290
    %v292 = vadd.f32 %v291, -0.16666654
    %v293 = vmul.f32 %v288, %v292
    %v294 = vadd.f32 %v293, 1.0
    %v295 = vmul.f32 %v294, %v279
    %vm296 = vweird.f32 %v149
    %v297 = vand.u32 %v280, 3
    %vm298 = vcmp.lt.s32.totalorder %v297, 2
    %vm299 = vcmp.eq.s32.totalorder %v297, 0
    %v300 = vxor.u32 %v295, 2147483648
    %v301 = vsel %vm299, %v287, %v300
    %vm302 = vcmp.eq.s32.totalorder %v297, 2
    %v303 = vxor.u32 %v287, 2147483648
    %v304 = vsel %vm302, %v303, %v295
    %v305 = vsel %vm298, %v301, %v304
    %v306 = vsel %vm296, nan, %v305
    %v307 = vmul.f32 %v152, %v306
    %v308 = vand.u32 2147483647, %v149
    %vm309 = vcmp.le.f32.partialorder %v308, 0.7853982
    %vm310 = vcmp.lt.s32.totalorder %v149, 0
    %v311 = vand.u32 %v149, 2139095040
    %v312 = vshrl.u32 %v311, 23
    %v313 = vsub.s32 %v312, 127
    %v314 = vand.u32 2147483647, %v149
    %v315 = vand.u32 %v314, 8388607
    %v316 = vor.u32 %v315, 8388608
    %v317 = vsub.s32 0, %v316
    %v318 = vadd.s32 %v313, 1
    %vm319 = vcmp.gt.s32.totalorder %v318, 0
    %v320 = vsel %vm319, %v318, 0
    %v321 = vshrl.u32 %v320, 5
    %v322 = vand.u32 %v320, 31
    %v323 = vsub.s32 32, %v322
    %v324 = vshrl.u32 683565275, %v323
    %v325 = vshll.u32 683565275, %v322
    %v326 = vshrl.u32 2475754826, %v323
    %v327 = vor.u32 %v325, %v326
    %v328 = vshll.u32 2475754826, %v322
    %v329 = vshrl.u32 2131351028, %v323
    %v330 = vor.u32 %v328, %v329
    %v331 = vshll.u32 2131351028, %v322
    %v332 = vshrl.u32 2102212464, %v323
    %v333 = vor.u32 %v331, %v332
    %v334 = vshll.u32 2102212464, %v322
    %v335 = vshrl.u32 920167782, %v323
    %v336 = vor.u32 %v334, %v335
    %v337 = vshll.u32 920167782, %v322
    %v338 = vshrl.u32 1326507024, %v323
    %v339 = vor.u32 %v337, %v338
    %vm340 = vcmp.lt.s32.totalorder %v321, 1
    %vm341 = vcmp.lt.s32.totalorder %v321, 2
    %vm342 = vcmp.lt.s32.totalorder %v321, 3
    %vm343 = vcmp.lt.s32.totalorder %v321, 4
    %v344 = vsel %vm340, %v324, %v327
    %v345 = vsel %vm343, %v333, 2102212464
    %v346 = vsel %vm342, %v330, %v345
    %v347 = vsel %vm341, %v344, %v346
    %v348 = vsel %vm340, %v327, %v330
    %v349 = vsel %vm343, %v336, 920167782
    %v350 = vsel %vm342, %v333, %v349
    %v351 = vsel %vm341, %v348, %v350
    %v352 = vsel %vm340, %v330, %v333
    %v353 = vsel %vm343, %v339, 1326507024
    %v354 = vsel %vm342, %v336, %v353
    %v355 = vsel %vm341, %v352, %v354
    %v356 = vshll.u32 %v316, 8
    %v357 = vand.u32 %v356, 65535
    %v358 = vshrl.u32 %v356, 16
    %v359 = vand.u32 %v355, 65535
    %v360 = vshrl.u32 %v355, 16
    %v361 = vmul.u32 %v357, %v359
    %v362 = vmul.u32 %v357, %v360
    %v363 = vmul.u32 %v358, %v359
    %v364 = vmul.u32 %v358, %v360
    %v365 = vshll.u32 %v362, 16
    %v366 = vshrl.u32 %v362, 16
    %v367 = vshll.u32 %v363, 16
    %v368 = vshrl.u32 %v363, 16
    %vm369 = vc.u32 %v361, %v365
    %v370 = vsel %vm369, 1, 0
    %v371 = vadd.s32 %v361, %v365
    %v372 = vadd.s32 %v364, %v370
    %vm373 = vc.u32 %v371, %v367
    %v374 = vsel %vm373, 1, 0
    %v375 = vadd.s32 %v371, %v367
    %v376 = vadd.s32 %v372, %v374
    %v377 = vadd.s32 %v376, %v366
    %v378 = vadd.s32 %v377, %v368
    %v379 = vand.u32 %v356, 65535
    %v380 = vshrl.u32 %v356, 16
    %v381 = vand.u32 %v351, 65535
    %v382 = vshrl.u32 %v351, 16
    %v383 = vmul.u32 %v379, %v381
    %v384 = vmul.u32 %v379, %v382
    %v385 = vmul.u32 %v380, %v381
    %v386 = vmul.u32 %v380, %v382
    %v387 = vshll.u32 %v384, 16
    %v388 = vshrl.u32 %v384, 16
    %v389 = vshll.u32 %v385, 16
    %v390 = vshrl.u32 %v385, 16
    %vm391 = vc.u32 %v383, %v387
    %v392 = vsel %vm391, 1, 0
    %v393 = vadd.s32 %v383, %v387
    %v394 = vadd.s32 %v386, %v392
    %vm395 = vc.u32 %v393, %v389
    %v396 = vsel %vm395, 1, 0
    %v397 = vadd.s32 %v393, %v389
    %v398 = vadd.s32 %v394, %v396
    %v399 = vadd.s32 %v398, %v388
    %v400 = vadd.s32 %v399, %v390
    %v401 = vmul.u32 %v356, %v347
    %v402 = vadd.s32 %v378, %v397
    %vm403 = vc.u32 %v378, %v397
    %v404 = vadd.s32 %v400, 1
    %v405 = vsel %vm403, %v404, %v400
    %v406 = vadd.s32 %v401, %v405
    %v407 = vadd.s32 %v406, 536870912
    %v408 = vshrl.u32 %v407, 30
    %v409 = vshll.u32 %v408, 30
    %v410 = vsub.s32 %v406, %v409
    %vm411 = vcmp.lt.s32.totalorder %v410, 0
    %v412 = vsub.s32 0, %v410
    %v413 = vsel %vm411, %v412, %v410
    %v414 = vclz %v413
    %v415 = vsub.s32 %v414, 2
    %vm416 = vcmp.gt.s32.totalorder 0, %v415
    %v417 = vsel %vm416, 0, %v415
    %v418 = vsub.s32 32, %v417
    %v419 = vshll.u32 %v410, %v417
    %v420 = vshrl.u32 %v402, %v418
    %v421 = vor.u32 %v419, %v420
    %v422 = vsub.s32 4294967266, %v417
    %v423 = vadd.s32 %v422, 127
    %v424 = vshll.u32 %v423, 23
    %v425 = vor.u32 4788187, %v424
    %v426 = vand.u32 2147483647, %v425
    %v428 = vcvt.s32.f32 %v421
    %v429 = vmul.f32 %v428, %v426
    %v430 = vxor.u32 %v429, 2147483648
    %v431 = vsel %vm310, %v430, %v429
    %v432 = vsub.s32 4, %v408
    %v433 = vsel %vm310, %v432, %v408
    %v434 = vsel %vm309, %v149, %v431
    %v435 = vsel %vm309, 0, %v433
    %v436 = vmul.f32 %v434, %v434
    %v437 = vmul.f32 %v436, -0.001358992
    %v438 = vadd.f32 %v437, 0.041655596
    %v439 = vmul.f32 %v436, %v438
    %v440 = vadd.f32 %v439, -0.4999988
    %v441 = vmul.f32 %v436, %v440
    %v442 = vadd.f32 1.0, %v441
    %v443 = vmul.f32 %v434, %v434
    %v444 = vmul.f32 %v443, -0.00019511016
    %v445 = vadd.f32 %v444, 0.008332121
    %v446 = vmul.f32 %v443, %v445
    %v447 = vadd.f32 %v446, -0.16666654
    %v448 = vmul.f32 %v443, %v447
    %v449 = vadd.f32 %v448, 1.0
    %v450 = vmul.f32 %v449, %v434
    %vm451 = vweird.f32 %v149
    %v452 = vadd.s32 %v435, 3
    %v453 = vand.u32 %v452, 3
    %vm454 = vcmp.lt.s32.totalorder %v453, 2
    %vm455 = vcmp.eq.s32.totalorder %v453, 0
    %v456 = vxor.u32 %v450, 2147483648
    %v457 = vsel %vm455, %v442, %v456
    %vm458 = vcmp.eq.s32.totalorder %v453, 2
    %v459 = vxor.u32 %v442, 2147483648
    %v460 = vsel %vm458, %v459, %v450
    %v461 = vsel %vm454, %v457, %v460
    %v462 = vsel %vm451, nan, %v461
    %v463 = vmul.f32 %v152, %v462
    %vm464 = vcmask 195584
    %v466 = vsel %vm464, %v307, 0
    %468 = vmatpush.msra.mxu0 0.0
    %469 = vmatpush.msra.mxu0 0.0
    %470 = vmatpush.msra.mxu0 0.0
    %471 = vmatpush.msra.mxu0 0.0
    %472 = vmatpush.msra.mxu0 0.0
    %473 = vmatpush.msra.mxu0 0.0
    %474 = vmatpush.msra.mxu0 0.0
    %475 = vmatpush.msra.mxu0 0.0
    %476 = vmatpush.msra.mxu0 0.0
    %477 = vmatpush.msra.mxu0 0.0
    %478 = vmatpush.msra.mxu0 0.0
    %479 = vmatpush.msra.mxu0 0.0
    %480 = vmatpush.msra.mxu0 0.0
    %481 = vmatpush.msra.mxu0 %v70
    %482 = vmatpush.msra.mxu0 %v69
    %483 = vmatpush.msra.mxu0 %v68
    %484 = vmatmul.f32.gmra.mxu0 %v466
    %v485 = vpop.f32.mrf.mxu0
    %v486 = vadd.f32 0.0, %v485
    %487 = vdwg.mxu0
    %v489 = vsel %vm464, %v463, 0
    %491 = vmatpush.msra.mxu0 0.0
    %492 = vmatpush.msra.mxu0 0.0
    %493 = vmatpush.msra.mxu0 0.0
    %494 = vmatpush.msra.mxu0 0.0
    %495 = vmatpush.msra.mxu0 0.0
    %496 = vmatpush.msra.mxu0 0.0
    %497 = vmatpush.msra.mxu0 0.0
    %498 = vmatpush.msra.mxu0 0.0
    %499 = vmatpush.msra.mxu0 0.0
    %500 = vmatpush.msra.mxu0 0.0
    %501 = vmatpush.msra.mxu0 0.0
    %502 = vmatpush.msra.mxu0 0.0
    %503 = vmatpush.msra.mxu0 0.0
    %504 = vmatpush.msra.mxu0 %v70
    %505 = vmatpush.msra.mxu0 %v69
    %506 = vmatpush.msra.mxu0 %v68
    %507 = vmatmul.f32.gmra.mxu0 %v489
    %v508 = vpop.f32.mrf.mxu0
    %v509 = vadd.f32 0.0, %v508
    %510 = vdwg.mxu0
    %511 = vmatpush.msra.mxu0 0.0
    %512 = vmatpush.msra.mxu0 0.0
    %513 = vmatpush.msra.mxu0 0.0
    %514 = vmatpush.msra.mxu0 0.0
    %515 = vmatpush.msra.mxu0 0.0
    %516 = vmatpush.msra.mxu0 0.0
    %517 = vmatpush.msra.mxu0 0.0
    %518 = vmatpush.msra.mxu0 0.0
    %519 = vmatpush.msra.mxu0 0.0
    %520 = vmatpush.msra.mxu0 0.0
    %521 = vmatpush.msra.mxu0 0.0
    %522 = vmatpush.msra.mxu0 0.0
    %523 = vmatpush.msra.mxu0 0.0
    %524 = vmatpush.msra.mxu0 0.0
    %525 = vmatpush.msra.mxu0 0.0
    %526 = vmatpush.msra.mxu0 %v71
    %527 = vmatmul.f32.gmra.mxu0 %v78
    %v528 = vpop.f32.mrf.mxu0
    %v529 = vadd.f32 0.0, %v528
    %530 = vdwg.mxu0
    %v531 = vmul.f32 %v486, %v72
    %v532 = vmul.f32 %v509, %v529
    %v533 = vadd.f32 %v531, %v532
    %534 = vst.msk [vmem:[#allocation3] sm:$0xff] %vm76, %v533
    %v536 = vsel %vm76, %v533, 0
    %538 = vmatpush.msra.mxu0 0.0
    %539 = vmatpush.msra.mxu0 0.0
    %540 = vmatpush.msra.mxu0 0.0
    %541 = vmatpush.msra.mxu0 0.0
    %542 = vmatpush.msra.mxu0 0.0
    %543 = vmatpush.msra.mxu0 0.0
    %544 = vmatpush.msra.mxu0 0.0
    %545 = vmatpush.msra.mxu0 0.0
    %546 = vmatpush.msra.mxu0 0.0
    %547 = vmatpush.msra.mxu0 0.0
    %548 = vmatpush.msra.mxu0 0.0
    %549 = vmatpush.msra.mxu0 0.0
    %550 = vmatpush.msra.mxu0 0.0
    %551 = vmatpush.msra.mxu0 0.0
    %552 = vmatpush.msra.mxu0 0.0
    %553 = vmatpush.msra.mxu0 %v40
    %554 = vmatmul.f32.gmra.mxu0 %v536
    %v555 = vpop.f32.mrf.mxu0
    %v556 = vadd.f32 %v74, %v555
    %557 = vdwg.mxu0
    %v558 = vtanh.pop %v556
    %v560 = vsel %vm104, %v558, 0
    %562 = vmatpush.msra.mxu0 0.0
    %563 = vmatpush.msra.mxu0 0.0
    %564 = vmatpush.msra.mxu0 0.0
    %565 = vmatpush.msra.mxu0 0.0
    %566 = vmatpush.msra.mxu0 %v53
    %567 = vmatpush.msra.mxu0 %v52
    %568 = vmatpush.msra.mxu0 %v51
    %569 = vmatpush.msra.mxu0 %v50
    %570 = vmatpush.msra.mxu0 %v49
    %571 = vmatpush.msra.mxu0 %v48
    %572 = vmatpush.msra.mxu0 %v47
    %573 = vmatpush.msra.mxu0 %v46
    %574 = vmatpush.msra.mxu0 %v45
    %575 = vmatpush.msra.mxu0 %v44
    %576 = vmatpush.msra.mxu0 %v43
    %577 = vmatpush.msra.mxu0 %v42
    %578 = vmatmul.f32.gmra.mxu0 %v560
    %v579 = vpop.f32.mrf.mxu0
    %v580 = vadd.f32 %v102, %v579
    %581 = vdwg.mxu0
    %582 = vmatpush.msra.mxu0 0.0
    %583 = vmatpush.msra.mxu0 0.0
    %584 = vmatpush.msra.mxu0 0.0
    %585 = vmatpush.msra.mxu0 0.0
    %586 = vmatpush.msra.mxu0 %v66
    %587 = vmatpush.msra.mxu0 %v65
    %588 = vmatpush.msra.mxu0 %v64
    %589 = vmatpush.msra.mxu0 %v63
    %590 = vmatpush.msra.mxu0 %v62
    %591 = vmatpush.msra.mxu0 %v61
    %592 = vmatpush.msra.mxu0 %v60
    %593 = vmatpush.msra.mxu0 %v59
    %594 = vmatpush.msra.mxu0 %v58
    %595 = vmatpush.msra.mxu0 %v57
    %596 = vmatpush.msra.mxu0 %v56
    %597 = vmatpush.msra.mxu0 %v55
    %598 = vmatmul.f32.gmra.mxu0 %v560
    %v599 = vpop.f32.mrf.mxu0
    %v600 = vadd.f32 %v129, %v599
    %601 = vdwg.mxu0
    %v602 = vmul.f32 %v580, 1.442695
    %v603 = vpow.pop %v602
    %v604 = vand.u32 2147483647, %v600
    %vm605 = vcmp.le.f32.partialorder %v604, 0.7853982
    %vm606 = vcmp.lt.s32.totalorder %v600, 0
    %v607 = vand.u32 %v600, 2139095040
    %v608 = vshrl.u32 %v607, 23
    %v609 = vsub.s32 %v608, 127
    %v610 = vand.u32 2147483647, %v600
    %v611 = vand.u32 %v610, 8388607
    %v612 = vor.u32 %v611, 8388608
    %v613 = vsub.s32 0, %v612
    %v614 = vadd.s32 %v609, 1
    %vm615 = vcmp.gt.s32.totalorder %v614, 0
    %v616 = vsel %vm615, %v614, 0
    %v617 = vshrl.u32 %v616, 5
    %v618 = vand.u32 %v616, 31
    %v619 = vsub.s32 32, %v618
    %v620 = vshrl.u32 683565275, %v619
    %v621 = vshll.u32 683565275, %v618
    %v622 = vshrl.u32 2475754826, %v619
    %v623 = vor.u32 %v621, %v622
    %v624 = vshll.u32 2475754826, %v618
    %v625 = vshrl.u32 2131351028, %v619
    %v626 = vor.u32 %v624, %v625
    %v627 = vshll.u32 2131351028, %v618
    %v628 = vshrl.u32 2102212464, %v619
    %v629 = vor.u32 %v627, %v628
    %v630 = vshll.u32 2102212464, %v618
    %v631 = vshrl.u32 920167782, %v619
    %v632 = vor.u32 %v630, %v631
    %v633 = vshll.u32 920167782, %v618
    %v634 = vshrl.u32 1326507024, %v619
    %v635 = vor.u32 %v633, %v634
    %vm636 = vcmp.lt.s32.totalorder %v617, 1
    %vm637 = vcmp.lt.s32.totalorder %v617, 2
    %vm638 = vcmp.lt.s32.totalorder %v617, 3
    %vm639 = vcmp.lt.s32.totalorder %v617, 4
    %v640 = vsel %vm636, %v620, %v623
    %v641 = vsel %vm639, %v629, 2102212464
    %v642 = vsel %vm638, %v626, %v641
    %v643 = vsel %vm637, %v640, %v642
    %v644 = vsel %vm636, %v623, %v626
    %v645 = vsel %vm639, %v632, 920167782
    %v646 = vsel %vm638, %v629, %v645
    %v647 = vsel %vm637, %v644, %v646
    %v648 = vsel %vm636, %v626, %v629
    %v649 = vsel %vm639, %v635, 1326507024
    %v650 = vsel %vm638, %v632, %v649
    %v651 = vsel %vm637, %v648, %v650
    %v652 = vshll.u32 %v612, 8
    %v653 = vand.u32 %v652, 65535
    %v654 = vshrl.u32 %v652, 16
    %v655 = vand.u32 %v651, 65535
    %v656 = vshrl.u32 %v651, 16
    %v657 = vmul.u32 %v653, %v655
    %v658 = vmul.u32 %v653, %v656
    %v659 = vmul.u32 %v654, %v655
    %v660 = vmul.u32 %v654, %v656
    %v661 = vshll.u32 %v658, 16
    %v662 = vshrl.u32 %v658, 16
    %v663 = vshll.u32 %v659, 16
    %v664 = vshrl.u32 %v659, 16
    %vm665 = vc.u32 %v657, %v661
    %v666 = vsel %vm665, 1, 0
    %v667 = vadd.s32 %v657, %v661
    %v668 = vadd.s32 %v660, %v666
    %vm669 = vc.u32 %v667, %v663
    %v670 = vsel %vm669, 1, 0
    %v671 = vadd.s32 %v667, %v663
    %v672 = vadd.s32 %v668, %v670
    %v673 = vadd.s32 %v672, %v662
    %v674 = vadd.s32 %v673, %v664
    %v675 = vand.u32 %v652, 65535
    %v676 = vshrl.u32 %v652, 16
    %v677 = vand.u32 %v647, 65535
    %v678 = vshrl.u32 %v647, 16
    %v679 = vmul.u32 %v675, %v677
    %v680 = vmul.u32 %v675, %v678
    %v681 = vmul.u32 %v676, %v677
    %v682 = vmul.u32 %v676, %v678
    %v683 = vshll.u32 %v680, 16
    %v684 = vshrl.u32 %v680, 16
    %v685 = vshll.u32 %v681, 16
    %v686 = vshrl.u32 %v681, 16
    %vm687 = vc.u32 %v679, %v683
    %v688 = vsel %vm687, 1, 0
    %v689 = vadd.s32 %v679, %v683
    %v690 = vadd.s32 %v682, %v688
    %vm691 = vc.u32 %v689, %v685
    %v692 = vsel %vm691, 1, 0
    %v693 = vadd.s32 %v689, %v685
    %v694 = vadd.s32 %v690, %v692
    %v695 = vadd.s32 %v694, %v684
    %v696 = vadd.s32 %v695, %v686
    %v697 = vmul.u32 %v652, %v643
    %v698 = vadd.s32 %v674, %v693
    %vm699 = vc.u32 %v674, %v693
    %v700 = vadd.s32 %v696, 1
    %v701 = vsel %vm699, %v700, %v696
    %v702 = vadd.s32 %v697, %v701
    %v703 = vadd.s32 %v702, 536870912
    %v704 = vshrl.u32 %v703, 30
    %v705 = vshll.u32 %v704, 30
    %v706 = vsub.s32 %v702, %v705
    %vm707 = vcmp.lt.s32.totalorder %v706, 0
    %v708 = vsub.s32 0, %v706
    %v709 = vsel %vm707, %v708, %v706
    %v710 = vclz %v709
    %v711 = vsub.s32 %v710, 2
    %vm712 = vcmp.gt.s32.totalorder 0, %v711
    %v713 = vsel %vm712, 0, %v711
    %v714 = vsub.s32 32, %v713
    %v715 = vshll.u32 %v706, %v713
    %v716 = vshrl.u32 %v698, %v714
    %v717 = vor.u32 %v715, %v716
    %v718 = vsub.s32 4294967266, %v713
    %v719 = vadd.s32 %v718, 127
    %v720 = vshll.u32 %v719, 23
    %v721 = vor.u32 4788187, %v720
    %v722 = vand.u32 2147483647, %v721
    %v724 = vcvt.s32.f32 %v717
    %v725 = vmul.f32 %v724, %v722
    %v726 = vxor.u32 %v725, 2147483648
    %v727 = vsel %vm606, %v726, %v725
    %v728 = vsub.s32 4, %v704
    %v729 = vsel %vm606, %v728, %v704
    %v730 = vsel %vm605, %v600, %v727
    %v731 = vsel %vm605, 0, %v729
    %v732 = vmul.f32 %v730, %v730
    %v733 = vmul.f32 %v732, -0.001358992
    %v734 = vadd.f32 %v733, 0.041655596
    %v735 = vmul.f32 %v732, %v734
    %v736 = vadd.f32 %v735, -0.4999988
    %v737 = vmul.f32 %v732, %v736
    %v738 = vadd.f32 1.0, %v737
    %v739 = vmul.f32 %v730, %v730
    %v740 = vmul.f32 %v739, -0.00019511016
    %v741 = vadd.f32 %v740, 0.008332121
    %v742 = vmul.f32 %v739, %v741
    %v743 = vadd.f32 %v742, -0.16666654
    %v744 = vmul.f32 %v739, %v743
    %v745 = vadd.f32 %v744, 1.0
    %v746 = vmul.f32 %v745, %v730
    %vm747 = vweird.f32 %v600
    %v748 = vand.u32 %v731, 3
    %vm749 = vcmp.lt.s32.totalorder %v748, 2
    %vm750 = vcmp.eq.s32.totalorder %v748, 0
    %v751 = vxor.u32 %v746, 2147483648
    %v752 = vsel %vm750, %v738, %v751
    %vm753 = vcmp.eq.s32.totalorder %v748, 2
    %v754 = vxor.u32 %v738, 2147483648
    %v755 = vsel %vm753, %v754, %v746
    %v756 = vsel %vm749, %v752, %v755
    %v757 = vsel %vm747, nan, %v756
    %v758 = vmul.f32 %v603, %v757
    %v759 = vand.u32 2147483647, %v600
    %vm760 = vcmp.le.f32.partialorder %v759, 0.7853982
    %vm761 = vcmp.lt.s32.totalorder %v600, 0
    %v762 = vand.u32 %v600, 2139095040
    %v763 = vshrl.u32 %v762, 23
    %v764 = vsub.s32 %v763, 127
    %v765 = vand.u32 2147483647, %v600
    %v766 = vand.u32 %v765, 8388607
    %v767 = vor.u32 %v766, 8388608
    %v768 = vsub.s32 0, %v767
    %v769 = vadd.s32 %v764, 1
    %vm770 = vcmp.gt.s32.totalorder %v769, 0
    %v771 = vsel %vm770, %v769, 0
    %v772 = vshrl.u32 %v771, 5
    %v773 = vand.u32 %v771, 31
    %v774 = vsub.s32 32, %v773
    %v775 = vshrl.u32 683565275, %v774
    %v776 = vshll.u32 683565275, %v773
    %v777 = vshrl.u32 2475754826, %v774
    %v778 = vor.u32 %v776, %v777
    %v779 = vshll.u32 2475754826, %v773
    %v780 = vshrl.u32 2131351028, %v774
    %v781 = vor.u32 %v779, %v780
    %v782 = vshll.u32 2131351028, %v773
    %v783 = vshrl.u32 2102212464, %v774
    %v784 = vor.u32 %v782, %v783
    %v785 = vshll.u32 2102212464, %v773
    %v786 = vshrl.u32 920167782, %v774
    %v787 = vor.u32 %v785, %v786
    %v788 = vshll.u32 920167782, %v773
    %v789 = vshrl.u32 1326507024, %v774
    %v790 = vor.u32 %v788, %v789
    %vm791 = vcmp.lt.s32.totalorder %v772, 1
    %vm792 = vcmp.lt.s32.totalorder %v772, 2
    %vm793 = vcmp.lt.s32.totalorder %v772, 3
    %vm794 = vcmp.lt.s32.totalorder %v772, 4
    %v795 = vsel %vm791, %v775, %v778
    %v796 = vsel %vm794, %v784, 2102212464
    %v797 = vsel %vm793, %v781, %v796
    %v798 = vsel %vm792, %v795, %v797
    %v799 = vsel %vm791, %v778, %v781
    %v800 = vsel %vm794, %v787, 920167782
    %v801 = vsel %vm793, %v784, %v800
    %v802 = vsel %vm792, %v799, %v801
    %v803 = vsel %vm791, %v781, %v784
    %v804 = vsel %vm794, %v790, 1326507024
    %v805 = vsel %vm793, %v787, %v804
    %v806 = vsel %vm792, %v803, %v805
    %v807 = vshll.u32 %v767, 8
    %v808 = vand.u32 %v807, 65535
    %v809 = vshrl.u32 %v807, 16
    %v810 = vand.u32 %v806, 65535
    %v811 = vshrl.u32 %v806, 16
    %v812 = vmul.u32 %v808, %v810
    %v813 = vmul.u32 %v808, %v811
    %v814 = vmul.u32 %v809, %v810
    %v815 = vmul.u32 %v809, %v811
    %v816 = vshll.u32 %v813, 16
    %v817 = vshrl.u32 %v813, 16
    %v818 = vshll.u32 %v814, 16
    %v819 = vshrl.u32 %v814, 16
    %vm820 = vc.u32 %v812, %v816
    %v821 = vsel %vm820, 1, 0
    %v822 = vadd.s32 %v812, %v816
    %v823 = vadd.s32 %v815, %v821
    %vm824 = vc.u32 %v822, %v818
    %v825 = vsel %vm824, 1, 0
    %v826 = vadd.s32 %v822, %v818
    %v827 = vadd.s32 %v823, %v825
    %v828 = vadd.s32 %v827, %v817
    %v829 = vadd.s32 %v828, %v819
    %v830 = vand.u32 %v807, 65535
    %v831 = vshrl.u32 %v807, 16
    %v832 = vand.u32 %v802, 65535
    %v833 = vshrl.u32 %v802, 16
    %v834 = vmul.u32 %v830, %v832
    %v835 = vmul.u32 %v830, %v833
    %v836 = vmul.u32 %v831, %v832
    %v837 = vmul.u32 %v831, %v833
    %v838 = vshll.u32 %v835, 16
    %v839 = vshrl.u32 %v835, 16
    %v840 = vshll.u32 %v836, 16
    %v841 = vshrl.u32 %v836, 16
    %vm842 = vc.u32 %v834, %v838
    %v843 = vsel %vm842, 1, 0
    %v844 = vadd.s32 %v834, %v838
    %v845 = vadd.s32 %v837, %v843
    %vm846 = vc.u32 %v844, %v840
    %v847 = vsel %vm846, 1, 0
    %v848 = vadd.s32 %v844, %v840
    %v849 = vadd.s32 %v845, %v847
    %v850 = vadd.s32 %v849, %v839
    %v851 = vadd.s32 %v850, %v841
    %v852 = vmul.u32 %v807, %v798
    %v853 = vadd.s32 %v829, %v848
    %vm854 = vc.u32 %v829, %v848
    %v855 = vadd.s32 %v851, 1
    %v856 = vsel %vm854, %v855, %v851
    %v857 = vadd.s32 %v852, %v856
    %v858 = vadd.s32 %v857, 536870912
    %v859 = vshrl.u32 %v858, 30
    %v860 = vshll.u32 %v859, 30
    %v861 = vsub.s32 %v857, %v860
    %vm862 = vcmp.lt.s32.totalorder %v861, 0
    %v863 = vsub.s32 0, %v861
    %v864 = vsel %vm862, %v863, %v861
    %v865 = vclz %v864
    %v866 = vsub.s32 %v865, 2
    %vm867 = vcmp.gt.s32.totalorder 0, %v866
    %v868 = vsel %vm867, 0, %v866
    %v869 = vsub.s32 32, %v868
    %v870 = vshll.u32 %v861, %v868
    %v871 = vshrl.u32 %v853, %v869
    %v872 = vor.u32 %v870, %v871
    %v873 = vsub.s32 4294967266, %v868
    %v874 = vadd.s32 %v873, 127
    %v875 = vshll.u32 %v874, 23
    %v876 = vor.u32 4788187, %v875
    %v877 = vand.u32 2147483647, %v876
    %v879 = vcvt.s32.f32 %v872
    %v880 = vmul.f32 %v879, %v877
    %v881 = vxor.u32 %v880, 2147483648
    %v882 = vsel %vm761, %v881, %v880
    %v883 = vsub.s32 4, %v859
    %v884 = vsel %vm761, %v883, %v859
    %v885 = vsel %vm760, %v600, %v882
    %v886 = vsel %vm760, 0, %v884
    %v887 = vmul.f32 %v885, %v885
    %v888 = vmul.f32 %v887, -0.001358992
    %v889 = vadd.f32 %v888, 0.041655596
    %v890 = vmul.f32 %v887, %v889
    %v891 = vadd.f32 %v890, -0.4999988
    %v892 = vmul.f32 %v887, %v891
    %v893 = vadd.f32 1.0, %v892
    %v894 = vmul.f32 %v885, %v885
    %v895 = vmul.f32 %v894, -0.00019511016
    %v896 = vadd.f32 %v895, 0.008332121
    %v897 = vmul.f32 %v894, %v896
    %v898 = vadd.f32 %v897, -0.16666654
    %v899 = vmul.f32 %v894, %v898
    %v900 = vadd.f32 %v899, 1.0
    %v901 = vmul.f32 %v900, %v885
    %vm902 = vweird.f32 %v600
    %v903 = vadd.s32 %v886, 3
    %v904 = vand.u32 %v903, 3
    %vm905 = vcmp.lt.s32.totalorder %v904, 2
    %vm906 = vcmp.eq.s32.totalorder %v904, 0
    %v907 = vxor.u32 %v901, 2147483648
    %v908 = vsel %vm906, %v893, %v907
    %vm909 = vcmp.eq.s32.totalorder %v904, 2
    %v910 = vxor.u32 %v893, 2147483648
    %v911 = vsel %vm909, %v910, %v901
    %v912 = vsel %vm905, %v908, %v911
    %v913 = vsel %vm902, nan, %v912
    %v914 = vmul.f32 %v603, %v913
    %v916 = vsel %vm464, %v758, 0
    %918 = vmatpush.msra.mxu0 0.0
    %919 = vmatpush.msra.mxu0 0.0
    %920 = vmatpush.msra.mxu0 0.0
    %921 = vmatpush.msra.mxu0 0.0
    %922 = vmatpush.msra.mxu0 0.0
    %923 = vmatpush.msra.mxu0 0.0
    %924 = vmatpush.msra.mxu0 0.0
    %925 = vmatpush.msra.mxu0 0.0
    %926 = vmatpush.msra.mxu0 0.0
    %927 = vmatpush.msra.mxu0 0.0
    %928 = vmatpush.msra.mxu0 0.0
    %929 = vmatpush.msra.mxu0 0.0
    %930 = vmatpush.msra.mxu0 0.0
    %931 = vmatpush.msra.mxu0 %v70
    %932 = vmatpush.msra.mxu0 %v69
    %933 = vmatpush.msra.mxu0 %v68
    %934 = vmatmul.f32.gmra.mxu0 %v916
    %v935 = vpop.f32.mrf.mxu0
    %v936 = vadd.f32 0.0, %v935
    %937 = vdwg.mxu0
    %v939 = vsel %vm464, %v914, 0
    %941 = vmatpush.msra.mxu0 0.0
    %942 = vmatpush.msra.mxu0 0.0
    %943 = vmatpush.msra.mxu0 0.0
    %944 = vmatpush.msra.mxu0 0.0
    %945 = vmatpush.msra.mxu0 0.0
    %946 = vmatpush.msra.mxu0 0.0
    %947 = vmatpush.msra.mxu0 0.0
    %948 = vmatpush.msra.mxu0 0.0
    %949 = vmatpush.msra.mxu0 0.0
    %950 = vmatpush.msra.mxu0 0.0
    %951 = vmatpush.msra.mxu0 0.0
    %952 = vmatpush.msra.mxu0 0.0
    %953 = vmatpush.msra.mxu0 0.0
    %954 = vmatpush.msra.mxu0 %v70
    %955 = vmatpush.msra.mxu0 %v69
    %956 = vmatpush.msra.mxu0 %v68
    %957 = vmatmul.f32.gmra.mxu0 %v939
    %v958 = vpop.f32.mrf.mxu0
    %v959 = vadd.f32 0.0, %v958
    %960 = vdwg.mxu0
    %961 = vmatpush.msra.mxu0 0.0
    %962 = vmatpush.msra.mxu0 0.0
    %963 = vmatpush.msra.mxu0 0.0
    %964 = vmatpush.msra.mxu0 0.0
    %965 = vmatpush.msra.mxu0 0.0
    %966 = vmatpush.msra.mxu0 0.0
    %967 = vmatpush.msra.mxu0 0.0
    %968 = vmatpush.msra.mxu0 0.0
    %969 = vmatpush.msra.mxu0 0.0
    %970 = vmatpush.msra.mxu0 0.0
    %971 = vmatpush.msra.mxu0 0.0
    %972 = vmatpush.msra.mxu0 0.0
    %973 = vmatpush.msra.mxu0 0.0
    %974 = vmatpush.msra.mxu0 0.0
    %975 = vmatpush.msra.mxu0 0.0
    %976 = vmatpush.msra.mxu0 %v71
    %977 = vmatmul.f32.gmra.mxu0 %v536
    %v978 = vpop.f32.mrf.mxu0
    %v979 = vadd.f32 0.0, %v978
    %980 = vdwg.mxu0
    %v981 = vmul.f32 %v936, %v533
    %v982 = vmul.f32 %v959, %v979
    %v983 = vadd.f32 %v981, %v982
    %985 = vrot.lane.b32.xlu0 %v983, 8
    %v986 = vpop.permute.xlu0 %985
    %vm988 = vcmask 130112
    %989 = vst.msk [vmem:[#allocation3] sm:$0xff] %vm988, %v986
    %v990 = vsel %vm76, %v983, 0
    %992 = vmatpush.msra.mxu0 0.0
    %993 = vmatpush.msra.mxu0 0.0
    %994 = vmatpush.msra.mxu0 0.0
    %995 = vmatpush.msra.mxu0 0.0
    %996 = vmatpush.msra.mxu0 0.0
    %997 = vmatpush.msra.mxu0 0.0
    %998 = vmatpush.msra.mxu0 0.0
    %999 = vmatpush.msra.mxu0 0.0
    %1000 = vmatpush.msra.mxu0 0.0
    %1001 = vmatpush.msra.mxu0 0.0
    %1002 = vmatpush.msra.mxu0 0.0
    %1003 = vmatpush.msra.mxu0 0.0
    %1004 = vmatpush.msra.mxu0 0.0
    %1005 = vmatpush.msra.mxu0 0.0
    %1006 = vmatpush.msra.mxu0 0.0
    %1007 = vmatpush.msra.mxu0 %v40
    %1008 = vmatmul.f32.gmra.mxu0 %v990
    %v1009 = vpop.f32.mrf.mxu0
    %v1010 = vadd.f32 %v74, %v1009
    %1011 = vdwg.mxu0
    %v1012 = vtanh.pop %v1010
    %v1014 = vsel %vm104, %v1012, 0
    %1016 = vmatpush.msra.mxu0 0.0
    %1017 = vmatpush.msra.mxu0 0.0
    %1018 = vmatpush.msra.mxu0 0.0
    %1019 = vmatpush.msra.mxu0 0.0
    %1020 = vmatpush.msra.mxu0 %v53
    %1021 = vmatpush.msra.mxu0 %v52
    %1022 = vmatpush.msra.mxu0 %v51
    %1023 = vmatpush.msra.mxu0 %v50
    %1024 = vmatpush.msra.mxu0 %v49
    %1025 = vmatpush.msra.mxu0 %v48
    %1026 = vmatpush.msra.mxu0 %v47
    %1027 = vmatpush.msra.mxu0 %v46
    %1028 = vmatpush.msra.mxu0 %v45
    %1029 = vmatpush.msra.mxu0 %v44
    %1030 = vmatpush.msra.mxu0 %v43
    %1031 = vmatpush.msra.mxu0 %v42
    %1032 = vmatmul.f32.gmra.mxu0 %v1014
    %v1033 = vpop.f32.mrf.mxu0
    %v1034 = vadd.f32 %v102, %v1033
    %1035 = vdwg.mxu0
    %1036 = vmatpush.msra.mxu0 0.0
    %1037 = vmatpush.msra.mxu0 0.0
    %1038 = vmatpush.msra.mxu0 0.0
    %1039 = vmatpush.msra.mxu0 0.0
    %1040 = vmatpush.msra.mxu0 %v66
    %1041 = vmatpush.msra.mxu0 %v65
    %1042 = vmatpush.msra.mxu0 %v64
    %1043 = vmatpush.msra.mxu0 %v63
    %1044 = vmatpush.msra.mxu0 %v62
    %1045 = vmatpush.msra.mxu0 %v61
    %1046 = vmatpush.msra.mxu0 %v60
    %1047 = vmatpush.msra.mxu0 %v59
    %1048 = vmatpush.msra.mxu0 %v58
    %1049 = vmatpush.msra.mxu0 %v57
    %1050 = vmatpush.msra.mxu0 %v56
    %1051 = vmatpush.msra.mxu0 %v55
    %1052 = vmatmul.f32.gmra.mxu0 %v1014
    %v1053 = vpop.f32.mrf.mxu0
    %v1054 = vadd.f32 %v129, %v1053
    %1055 = vdwg.mxu0
    %v1056 = vmul.f32 %v1034, 1.442695
    %v1057 = vpow.pop %v1056
    %v1058 = vand.u32 2147483647, %v1054
    %vm1059 = vcmp.le.f32.partialorder %v1058, 0.7853982
    %vm1060 = vcmp.lt.s32.totalorder %v1054, 0
    %v1061 = vand.u32 %v1054, 2139095040
    %v1062 = vshrl.u32 %v1061, 23
    %v1063 = vsub.s32 %v1062, 127
    %v1064 = vand.u32 2147483647, %v1054
    %v1065 = vand.u32 %v1064, 8388607
    %v1066 = vor.u32 %v1065, 8388608
    %v1067 = vsub.s32 0, %v1066
    %v1068 = vadd.s32 %v1063, 1
    %vm1069 = vcmp.gt.s32.totalorder %v1068, 0
    %v1070 = vsel %vm1069, %v1068, 0
    %v1071 = vshrl.u32 %v1070, 5
    %v1072 = vand.u32 %v1070, 31
    %v1073 = vsub.s32 32, %v1072
    %v1074 = vshrl.u32 683565275, %v1073
    %v1075 = vshll.u32 683565275, %v1072
    %v1076 = vshrl.u32 2475754826, %v1073
    %v1077 = vor.u32 %v1075, %v1076
    %v1078 = vshll.u32 2475754826, %v1072
    %v1079 = vshrl.u32 2131351028, %v1073
    %v1080 = vor.u32 %v1078, %v1079
    %v1081 = vshll.u32 2131351028, %v1072
    %v1082 = vshrl.u32 2102212464, %v1073
    %v1083 = vor.u32 %v1081, %v1082
    %v1084 = vshll.u32 2102212464, %v1072
    %v1085 = vshrl.u32 920167782, %v1073
    %v1086 = vor.u32 %v1084, %v1085
    %v1087 = vshll.u32 920167782, %v1072
    %v1088 = vshrl.u32 1326507024, %v1073
    %v1089 = vor.u32 %v1087, %v1088
    %vm1090 = vcmp.lt.s32.totalorder %v1071, 1
    %vm1091 = vcmp.lt.s32.totalorder %v1071, 2
    %vm1092 = vcmp.lt.s32.totalorder %v1071, 3
    %vm1093 = vcmp.lt.s32.totalorder %v1071, 4
    %v1094 = vsel %vm1090, %v1074, %v1077
    %v1095 = vsel %vm1093, %v1083, 2102212464
    %v1096 = vsel %vm1092, %v1080, %v1095
    %v1097 = vsel %vm1091, %v1094, %v1096
    %v1098 = vsel %vm1090, %v1077, %v1080
    %v1099 = vsel %vm1093, %v1086, 920167782
    %v1100 = vsel %vm1092, %v1083, %v1099
    %v1101 = vsel %vm1091, %v1098, %v1100
    %v1102 = vsel %vm1090, %v1080, %v1083
    %v1103 = vsel %vm1093, %v1089, 1326507024
    %v1104 = vsel %vm1092, %v1086, %v1103
    %v1105 = vsel %vm1091, %v1102, %v1104
    %v1106 = vshll.u32 %v1066, 8
    %v1107 = vand.u32 %v1106, 65535
    %v1108 = vshrl.u32 %v1106, 16
    %v1109 = vand.u32 %v1105, 65535
    %v1110 = vshrl.u32 %v1105, 16
    %v1111 = vmul.u32 %v1107, %v1109
    %v1112 = vmul.u32 %v1107, %v1110
    %v1113 = vmul.u32 %v1108, %v1109
    %v1114 = vmul.u32 %v1108, %v1110
    %v1115 = vshll.u32 %v1112, 16
    %v1116 = vshrl.u32 %v1112, 16
    %v1117 = vshll.u32 %v1113, 16
    %v1118 = vshrl.u32 %v1113, 16
    %vm1119 = vc.u32 %v1111, %v1115
    %v1120 = vsel %vm1119, 1, 0
    %v1121 = vadd.s32 %v1111, %v1115
    %v1122 = vadd.s32 %v1114, %v1120
    %vm1123 = vc.u32 %v1121, %v1117
    %v1124 = vsel %vm1123, 1, 0
    %v1125 = vadd.s32 %v1121, %v1117
    %v1126 = vadd.s32 %v1122, %v1124
    %v1127 = vadd.s32 %v1126, %v1116
    %v1128 = vadd.s32 %v1127, %v1118
    %v1129 = vand.u32 %v1106, 65535
    %v1130 = vshrl.u32 %v1106, 16
    %v1131 = vand.u32 %v1101, 65535
    %v1132 = vshrl.u32 %v1101, 16
    %v1133 = vmul.u32 %v1129, %v1131
    %v1134 = vmul.u32 %v1129, %v1132
    %v1135 = vmul.u32 %v1130, %v1131
    %v1136 = vmul.u32 %v1130, %v1132
    %v1137 = vshll.u32 %v1134, 16
    %v1138 = vshrl.u32 %v1134, 16
    %v1139 = vshll.u32 %v1135, 16
    %v1140 = vshrl.u32 %v1135, 16
    %vm1141 = vc.u32 %v1133, %v1137
    %v1142 = vsel %vm1141, 1, 0
    %v1143 = vadd.s32 %v1133, %v1137
    %v1144 = vadd.s32 %v1136, %v1142
    %vm1145 = vc.u32 %v1143, %v1139
    %v1146 = vsel %vm1145, 1, 0
    %v1147 = vadd.s32 %v1143, %v1139
    %v1148 = vadd.s32 %v1144, %v1146
    %v1149 = vadd.s32 %v1148, %v1138
    %v1150 = vadd.s32 %v1149, %v1140
    %v1151 = vmul.u32 %v1106, %v1097
    %v1152 = vadd.s32 %v1128, %v1147
    %vm1153 = vc.u32 %v1128, %v1147
    %v1154 = vadd.s32 %v1150, 1
    %v1155 = vsel %vm1153, %v1154, %v1150
    %v1156 = vadd.s32 %v1151, %v1155
    %v1157 = vadd.s32 %v1156, 536870912
    %v1158 = vshrl.u32 %v1157, 30
    %v1159 = vshll.u32 %v1158, 30
    %v1160 = vsub.s32 %v1156, %v1159
    %vm1161 = vcmp.lt.s32.totalorder %v1160, 0
    %v1162 = vsub.s32 0, %v1160
    %v1163 = vsel %vm1161, %v1162, %v1160
    %v1164 = vclz %v1163
    %v1165 = vsub.s32 %v1164, 2
    %vm1166 = vcmp.gt.s32.totalorder 0, %v1165
    %v1167 = vsel %vm1166, 0, %v1165
    %v1168 = vsub.s32 32, %v1167
    %v1169 = vshll.u32 %v1160, %v1167
    %v1170 = vshrl.u32 %v1152, %v1168
    %v1171 = vor.u32 %v1169, %v1170
    %v1172 = vsub.s32 4294967266, %v1167
    %v1173 = vadd.s32 %v1172, 127
    %v1174 = vshll.u32 %v1173, 23
    %v1175 = vor.u32 4788187, %v1174
    %v1176 = vand.u32 2147483647, %v1175
    %v1178 = vcvt.s32.f32 %v1171
    %v1179 = vmul.f32 %v1178, %v1176
    %v1180 = vxor.u32 %v1179, 2147483648
    %v1181 = vsel %vm1060, %v1180, %v1179
    %v1182 = vsub.s32 4, %v1158
    %v1183 = vsel %vm1060, %v1182, %v1158
    %v1184 = vsel %vm1059, %v1054, %v1181
    %v1185 = vsel %vm1059, 0, %v1183
    %v1186 = vmul.f32 %v1184, %v1184
    %v1187 = vmul.f32 %v1186, -0.001358992
    %v1188 = vadd.f32 %v1187, 0.041655596
    %v1189 = vmul.f32 %v1186, %v1188
    %v1190 = vadd.f32 %v1189, -0.4999988
    %v1191 = vmul.f32 %v1186, %v1190
    %v1192 = vadd.f32 1.0, %v1191
    %v1193 = vmul.f32 %v1184, %v1184
    %v1194 = vmul.f32 %v1193, -0.00019511016
    %v1195 = vadd.f32 %v1194, 0.008332121
    %v1196 = vmul.f32 %v1193, %v1195
    %v1197 = vadd.f32 %v1196, -0.16666654
    %v1198 = vmul.f32 %v1193, %v1197
    %v1199 = vadd.f32 %v1198, 1.0
    %v1200 = vmul.f32 %v1199, %v1184
    %vm1201 = vweird.f32 %v1054
    %v1202 = vand.u32 %v1185, 3
    %vm1203 = vcmp.lt.s32.totalorder %v1202, 2
    %vm1204 = vcmp.eq.s32.totalorder %v1202, 0
    %v1205 = vxor.u32 %v1200, 2147483648
    %v1206 = vsel %vm1204, %v1192, %v1205
    %vm1207 = vcmp.eq.s32.totalorder %v1202, 2
    %v1208 = vxor.u32 %v1192, 2147483648
    %v1209 = vsel %vm1207, %v1208, %v1200
    %v1210 = vsel %vm1203, %v1206, %v1209
    %v1211 = vsel %vm1201, nan, %v1210
    %v1212 = vmul.f32 %v1057, %v1211
    %v1213 = vand.u32 2147483647, %v1054
    %vm1214 = vcmp.le.f32.partialorder %v1213, 0.7853982
    %vm1215 = vcmp.lt.s32.totalorder %v1054, 0
    %v1216 = vand.u32 %v1054, 2139095040
    %v1217 = vshrl.u32 %v1216, 23
    %v1218 = vsub.s32 %v1217, 127
    %v1219 = vand.u32 2147483647, %v1054
    %v1220 = vand.u32 %v1219, 8388607
    %v1221 = vor.u32 %v1220, 8388608
    %v1222 = vsub.s32 0, %v1221
    %v1223 = vadd.s32 %v1218, 1
    %vm1224 = vcmp.gt.s32.totalorder %v1223, 0
    %v1225 = vsel %vm1224, %v1223, 0
    %v1226 = vshrl.u32 %v1225, 5
    %v1227 = vand.u32 %v1225, 31
    %v1228 = vsub.s32 32, %v1227
    %v1229 = vshrl.u32 683565275, %v1228
    %v1230 = vshll.u32 683565275, %v1227
    %v1231 = vshrl.u32 2475754826, %v1228
    %v1232 = vor.u32 %v1230, %v1231
    %v1233 = vshll.u32 2475754826, %v1227
    %v1234 = vshrl.u32 2131351028, %v1228
    %v1235 = vor.u32 %v1233, %v1234
    %v1236 = vshll.u32 2131351028, %v1227
    %v1237 = vshrl.u32 2102212464, %v1228
    %v1238 = vor.u32 %v1236, %v1237
    %v1239 = vshll.u32 2102212464, %v1227
    %v1240 = vshrl.u32 920167782, %v1228
    %v1241 = vor.u32 %v1239, %v1240
    %v1242 = vshll.u32 920167782, %v1227
    %v1243 = vshrl.u32 1326507024, %v1228
    %v1244 = vor.u32 %v1242, %v1243
    %vm1245 = vcmp.lt.s32.totalorder %v1226, 1
    %vm1246 = vcmp.lt.s32.totalorder %v1226, 2
    %vm1247 = vcmp.lt.s32.totalorder %v1226, 3
    %vm1248 = vcmp.lt.s32.totalorder %v1226, 4
    %v1249 = vsel %vm1245, %v1229, %v1232
    %v1250 = vsel %vm1248, %v1238, 2102212464
    %v1251 = vsel %vm1247, %v1235, %v1250
    %v1252 = vsel %vm1246, %v1249, %v1251
    %v1253 = vsel %vm1245, %v1232, %v1235
    %v1254 = vsel %vm1248, %v1241, 920167782
    %v1255 = vsel %vm1247, %v1238, %v1254
    %v1256 = vsel %vm1246, %v1253, %v1255
    %v1257 = vsel %vm1245, %v1235, %v1238
    %v1258 = vsel %vm1248, %v1244, 1326507024
    %v1259 = vsel %vm1247, %v1241, %v1258
    %v1260 = vsel %vm1246, %v1257, %v1259
    %v1261 = vshll.u32 %v1221, 8
    %v1262 = vand.u32 %v1261, 65535
    %v1263 = vshrl.u32 %v1261, 16
    %v1264 = vand.u32 %v1260, 65535
    %v1265 = vshrl.u32 %v1260, 16
    %v1266 = vmul.u32 %v1262, %v1264
    %v1267 = vmul.u32 %v1262, %v1265
    %v1268 = vmul.u32 %v1263, %v1264
    %v1269 = vmul.u32 %v1263, %v1265
    %v1270 = vshll.u32 %v1267, 16
    %v1271 = vshrl.u32 %v1267, 16
    %v1272 = vshll.u32 %v1268, 16
    %v1273 = vshrl.u32 %v1268, 16
    %vm1274 = vc.u32 %v1266, %v1270
    %v1275 = vsel %vm1274, 1, 0
    %v1276 = vadd.s32 %v1266, %v1270
    %v1277 = vadd.s32 %v1269, %v1275
    %vm1278 = vc.u32 %v1276, %v1272
    %v1279 = vsel %vm1278, 1, 0
    %v1280 = vadd.s32 %v1276, %v1272
    %v1281 = vadd.s32 %v1277, %v1279
    %v1282 = vadd.s32 %v1281, %v1271
    %v1283 = vadd.s32 %v1282, %v1273
    %v1284 = vand.u32 %v1261, 65535
    %v1285 = vshrl.u32 %v1261, 16
    %v1286 = vand.u32 %v1256, 65535
    %v1287 = vshrl.u32 %v1256, 16
    %v1288 = vmul.u32 %v1284, %v1286
    %v1289 = vmul.u32 %v1284, %v1287
    %v1290 = vmul.u32 %v1285, %v1286
    %v1291 = vmul.u32 %v1285, %v1287
    %v1292 = vshll.u32 %v1289, 16
    %v1293 = vshrl.u32 %v1289, 16
    %v1294 = vshll.u32 %v1290, 16
    %v1295 = vshrl.u32 %v1290, 16
    %vm1296 = vc.u32 %v1288, %v1292
    %v1297 = vsel %vm1296, 1, 0
    %v1298 = vadd.s32 %v1288, %v1292
    %v1299 = vadd.s32 %v1291, %v1297
    %vm1300 = vc.u32 %v1298, %v1294
    %v1301 = vsel %vm1300, 1, 0
    %v1302 = vadd.s32 %v1298, %v1294
    %v1303 = vadd.s32 %v1299, %v1301
    %v1304 = vadd.s32 %v1303, %v1293
    %v1305 = vadd.s32 %v1304, %v1295
    %v1306 = vmul.u32 %v1261, %v1252
    %v1307 = vadd.s32 %v1283, %v1302
    %vm1308 = vc.u32 %v1283, %v1302
    %v1309 = vadd.s32 %v1305, 1
    %v1310 = vsel %vm1308, %v1309, %v1305
    %v1311 = vadd.s32 %v1306, %v1310
    %v1312 = vadd.s32 %v1311, 536870912
    %v1313 = vshrl.u32 %v1312, 30
    %v1314 = vshll.u32 %v1313, 30
    %v1315 = vsub.s32 %v1311, %v1314
    %vm1316 = vcmp.lt.s32.totalorder %v1315, 0
    %v1317 = vsub.s32 0, %v1315
    %v1318 = vsel %vm1316, %v1317, %v1315
    %v1319 = vclz %v1318
    %v1320 = vsub.s32 %v1319, 2
    %vm1321 = vcmp.gt.s32.totalorder 0, %v1320
    %v1322 = vsel %vm1321, 0, %v1320
    %v1323 = vsub.s32 32, %v1322
    %v1324 = vshll.u32 %v1315, %v1322
    %v1325 = vshrl.u32 %v1307, %v1323
    %v1326 = vor.u32 %v1324, %v1325
    %v1327 = vsub.s32 4294967266, %v1322
    %v1328 = vadd.s32 %v1327, 127
    %v1329 = vshll.u32 %v1328, 23
    %v1330 = vor.u32 4788187, %v1329
    %v1331 = vand.u32 2147483647, %v1330
    %v1333 = vcvt.s32.f32 %v1326
    %v1334 = vmul.f32 %v1333, %v1331
    %v1335 = vxor.u32 %v1334, 2147483648
    %v1336 = vsel %vm1215, %v1335, %v1334
    %v1337 = vsub.s32 4, %v1313
    %v1338 = vsel %vm1215, %v1337, %v1313
    %v1339 = vsel %vm1214, %v1054, %v1336
    %v1340 = vsel %vm1214, 0, %v1338
    %v1341 = vmul.f32 %v1339, %v1339
    %v1342 = vmul.f32 %v1341, -0.001358992
    %v1343 = vadd.f32 %v1342, 0.041655596
    %v1344 = vmul.f32 %v1341, %v1343
    %v1345 = vadd.f32 %v1344, -0.4999988
    %v1346 = vmul.f32 %v1341, %v1345
    %v1347 = vadd.f32 1.0, %v1346
    %v1348 = vmul.f32 %v1339, %v1339
    %v1349 = vmul.f32 %v1348, -0.00019511016
    %v1350 = vadd.f32 %v1349, 0.008332121
    %v1351 = vmul.f32 %v1348, %v1350
    %v1352 = vadd.f32 %v1351, -0.16666654
    %v1353 = vmul.f32 %v1348, %v1352
    %v1354 = vadd.f32 %v1353, 1.0
    %v1355 = vmul.f32 %v1354, %v1339
    %vm1356 = vweird.f32 %v1054
    %v1357 = vadd.s32 %v1340, 3
    %v1358 = vand.u32 %v1357, 3
    %vm1359 = vcmp.lt.s32.totalorder %v1358, 2
    %vm1360 = vcmp.eq.s32.totalorder %v1358, 0
    %v1361 = vxor.u32 %v1355, 2147483648
    %v1362 = vsel %vm1360, %v1347, %v1361
    %vm1363 = vcmp.eq.s32.totalorder %v1358, 2
    %v1364 = vxor.u32 %v1347, 2147483648
    %v1365 = vsel %vm1363, %v1364, %v1355
    %v1366 = vsel %vm1359, %v1362, %v1365
    %v1367 = vsel %vm1356, nan, %v1366
    %v1368 = vmul.f32 %v1057, %v1367
    %v1370 = vsel %vm464, %v1212, 0
    %1372 = vmatpush.msra.mxu0 0.0
    %1373 = vmatpush.msra.mxu0 0.0
    %1374 = vmatpush.msra.mxu0 0.0
    %1375 = vmatpush.msra.mxu0 0.0
    %1376 = vmatpush.msra.mxu0 0.0
    %1377 = vmatpush.msra.mxu0 0.0
    %1378 = vmatpush.msra.mxu0 0.0
    %1379 = vmatpush.msra.mxu0 0.0
    %1380 = vmatpush.msra.mxu0 0.0
    %1381 = vmatpush.msra.mxu0 0.0
    %1382 = vmatpush.msra.mxu0 0.0
    %1383 = vmatpush.msra.mxu0 0.0
    %1384 = vmatpush.msra.mxu0 0.0
    %1385 = vmatpush.msra.mxu0 %v70
    %1386 = vmatpush.msra.mxu0 %v69
    %1387 = vmatpush.msra.mxu0 %v68
    %1388 = vmatmul.f32.gmra.mxu0 %v1370
    %v1389 = vpop.f32.mrf.mxu0
    %v1390 = vadd.f32 0.0, %v1389
    %1391 = vdwg.mxu0
    %v1393 = vsel %vm464, %v1368, 0
    %1395 = vmatpush.msra.mxu0 0.0
    %1396 = vmatpush.msra.mxu0 0.0
    %1397 = vmatpush.msra.mxu0 0.0
    %1398 = vmatpush.msra.mxu0 0.0
    %1399 = vmatpush.msra.mxu0 0.0
    %1400 = vmatpush.msra.mxu0 0.0
    %1401 = vmatpush.msra.mxu0 0.0
    %1402 = vmatpush.msra.mxu0 0.0
    %1403 = vmatpush.msra.mxu0 0.0
    %1404 = vmatpush.msra.mxu0 0.0
    %1405 = vmatpush.msra.mxu0 0.0
    %1406 = vmatpush.msra.mxu0 0.0
    %1407 = vmatpush.msra.mxu0 0.0
    %1408 = vmatpush.msra.mxu0 %v70
    %1409 = vmatpush.msra.mxu0 %v69
    %1410 = vmatpush.msra.mxu0 %v68
    %1411 = vmatmul.f32.gmra.mxu0 %v1393
    %v1412 = vpop.f32.mrf.mxu0
    %v1413 = vadd.f32 0.0, %v1412
    %1414 = vdwg.mxu0
    %1415 = vmatpush.msra.mxu0 0.0
    %1416 = vmatpush.msra.mxu0 0.0
    %1417 = vmatpush.msra.mxu0 0.0
    %1418 = vmatpush.msra.mxu0 0.0
    %1419 = vmatpush.msra.mxu0 0.0
    %1420 = vmatpush.msra.mxu0 0.0
    %1421 = vmatpush.msra.mxu0 0.0
    %1422 = vmatpush.msra.mxu0 0.0
    %1423 = vmatpush.msra.mxu0 0.0
    %1424 = vmatpush.msra.mxu0 0.0
    %1425 = vmatpush.msra.mxu0 0.0
    %1426 = vmatpush.msra.mxu0 0.0
    %1427 = vmatpush.msra.mxu0 0.0
    %1428 = vmatpush.msra.mxu0 0.0
    %1429 = vmatpush.msra.mxu0 0.0
    %1430 = vmatpush.msra.mxu0 %v71
    %1431 = vmatmul.f32.gmra.mxu0 %v990
    %v1432 = vpop.f32.mrf.mxu0
    %v1433 = vadd.f32 0.0, %v1432
    %1434 = vdwg.mxu0
    %v1435 = vmul.f32 %v1390, %v983
    %v1436 = vmul.f32 %v1413, %v1433
    %v1437 = vadd.f32 %v1435, %v1436
    %1439 = vrot.lane.b32.xlu0 %v1437, 16
    %v1440 = vpop.permute.xlu0 %1439
    %vm1442 = vcmask 195712
    %1443 = vst.msk [vmem:[#allocation3] sm:$0xff] %vm1442, %v1440
    %v1444 = vsel %vm76, %v1437, 0
    %1446 = vmatpush.msra.mxu0 0.0
    %1447 = vmatpush.msra.mxu0 0.0
    %1448 = vmatpush.msra.mxu0 0.0
    %1449 = vmatpush.msra.mxu0 0.0
    %1450 = vmatpush.msra.mxu0 0.0
    %1451 = vmatpush.msra.mxu0 0.0
    %1452 = vmatpush.msra.mxu0 0.0
    %1453 = vmatpush.msra.mxu0 0.0
    %1454 = vmatpush.msra.mxu0 0.0
    %1455 = vmatpush.msra.mxu0 0.0
    %1456 = vmatpush.msra.mxu0 0.0
    %1457 = vmatpush.msra.mxu0 0.0
    %1458 = vmatpush.msra.mxu0 0.0
    %1459 = vmatpush.msra.mxu0 0.0
    %1460 = vmatpush.msra.mxu0 0.0
    %1461 = vmatpush.msra.mxu0 %v40
    %1462 = vmatmul.f32.gmra.mxu0 %v1444
    %v1463 = vpop.f32.mrf.mxu0
    %v1464 = vadd.f32 %v74, %v1463
    %1465 = vdwg.mxu0
    %v1466 = vtanh.pop %v1464
    %v1468 = vsel %vm104, %v1466, 0
    %1470 = vmatpush.msra.mxu0 0.0
    %1471 = vmatpush.msra.mxu0 0.0
    %1472 = vmatpush.msra.mxu0 0.0
    %1473 = vmatpush.msra.mxu0 0.0
    %1474 = vmatpush.msra.mxu0 %v53
    %1475 = vmatpush.msra.mxu0 %v52
    %1476 = vmatpush.msra.mxu0 %v51
    %1477 = vmatpush.msra.mxu0 %v50
    %1478 = vmatpush.msra.mxu0 %v49
    %1479 = vmatpush.msra.mxu0 %v48
    %1480 = vmatpush.msra.mxu0 %v47
    %1481 = vmatpush.msra.mxu0 %v46
    %1482 = vmatpush.msra.mxu0 %v45
    %1483 = vmatpush.msra.mxu0 %v44
    %1484 = vmatpush.msra.mxu0 %v43
    %1485 = vmatpush.msra.mxu0 %v42
    %1486 = vmatmul.f32.gmra.mxu0 %v1468
    %v1487 = vpop.f32.mrf.mxu0
    %v1488 = vadd.f32 %v102, %v1487
    %1489 = vdwg.mxu0
    %1490 = vmatpush.msra.mxu0 0.0
    %1491 = vmatpush.msra.mxu0 0.0
    %1492 = vmatpush.msra.mxu0 0.0
    %1493 = vmatpush.msra.mxu0 0.0
    %1494 = vmatpush.msra.mxu0 %v66
    %1495 = vmatpush.msra.mxu0 %v65
    %1496 = vmatpush.msra.mxu0 %v64
    %1497 = vmatpush.msra.mxu0 %v63
    %1498 = vmatpush.msra.mxu0 %v62
    %1499 = vmatpush.msra.mxu0 %v61
    %1500 = vmatpush.msra.mxu0 %v60
    %1501 = vmatpush.msra.mxu0 %v59
    %1502 = vmatpush.msra.mxu0 %v58
    %1503 = vmatpush.msra.mxu0 %v57
    %1504 = vmatpush.msra.mxu0 %v56
    %1505 = vmatpush.msra.mxu0 %v55
    %1506 = vmatmul.f32.gmra.mxu0 %v1468
    %v1507 = vpop.f32.mrf.mxu0
    %v1508 = vadd.f32 %v129, %v1507
    %1509 = vdwg.mxu0
    %v1510 = vmul.f32 %v1488, 1.442695
    %v1511 = vpow.pop %v1510
    %v1512 = vand.u32 2147483647, %v1508
    %vm1513 = vcmp.le.f32.partialorder %v1512, 0.7853982
    %vm1514 = vcmp.lt.s32.totalorder %v1508, 0
    %v1515 = vand.u32 %v1508, 2139095040
    %v1516 = vshrl.u32 %v1515, 23
    %v1517 = vsub.s32 %v1516, 127
    %v1518 = vand.u32 2147483647, %v1508
    %v1519 = vand.u32 %v1518, 8388607
    %v1520 = vor.u32 %v1519, 8388608
    %v1521 = vsub.s32 0, %v1520
    %v1522 = vadd.s32 %v1517, 1
    %vm1523 = vcmp.gt.s32.totalorder %v1522, 0
    %v1524 = vsel %vm1523, %v1522, 0
    %v1525 = vshrl.u32 %v1524, 5
    %v1526 = vand.u32 %v1524, 31
    %v1527 = vsub.s32 32, %v1526
    %v1528 = vshrl.u32 683565275, %v1527
    %v1529 = vshll.u32 683565275, %v1526
    %v1530 = vshrl.u32 2475754826, %v1527
    %v1531 = vor.u32 %v1529, %v1530
    %v1532 = vshll.u32 2475754826, %v1526
    %v1533 = vshrl.u32 2131351028, %v1527
    %v1534 = vor.u32 %v1532, %v1533
    %v1535 = vshll.u32 2131351028, %v1526
    %v1536 = vshrl.u32 2102212464, %v1527
    %v1537 = vor.u32 %v1535, %v1536
    %v1538 = vshll.u32 2102212464, %v1526
    %v1539 = vshrl.u32 920167782, %v1527
    %v1540 = vor.u32 %v1538, %v1539
    %v1541 = vshll.u32 920167782, %v1526
    %v1542 = vshrl.u32 1326507024, %v1527
    %v1543 = vor.u32 %v1541, %v1542
    %vm1544 = vcmp.lt.s32.totalorder %v1525, 1
    %vm1545 = vcmp.lt.s32.totalorder %v1525, 2
    %vm1546 = vcmp.lt.s32.totalorder %v1525, 3
    %vm1547 = vcmp.lt.s32.totalorder %v1525, 4
    %v1548 = vsel %vm1544, %v1528, %v1531
    %v1549 = vsel %vm1547, %v1537, 2102212464
    %v1550 = vsel %vm1546, %v1534, %v1549
    %v1551 = vsel %vm1545, %v1548, %v1550
    %v1552 = vsel %vm1544, %v1531, %v1534
    %v1553 = vsel %vm1547, %v1540, 920167782
    %v1554 = vsel %vm1546, %v1537, %v1553
    %v1555 = vsel %vm1545, %v1552, %v1554
    %v1556 = vsel %vm1544, %v1534, %v1537
    %v1557 = vsel %vm1547, %v1543, 1326507024
    %v1558 = vsel %vm1546, %v1540, %v1557
    %v1559 = vsel %vm1545, %v1556, %v1558
    %v1560 = vshll.u32 %v1520, 8
    %v1561 = vand.u32 %v1560, 65535
    %v1562 = vshrl.u32 %v1560, 16
    %v1563 = vand.u32 %v1559, 65535
    %v1564 = vshrl.u32 %v1559, 16
    %v1565 = vmul.u32 %v1561, %v1563
    %v1566 = vmul.u32 %v1561, %v1564
    %v1567 = vmul.u32 %v1562, %v1563
    %v1568 = vmul.u32 %v1562, %v1564
    %v1569 = vshll.u32 %v1566, 16
    %v1570 = vshrl.u32 %v1566, 16
    %v1571 = vshll.u32 %v1567, 16
    %v1572 = vshrl.u32 %v1567, 16
    %vm1573 = vc.u32 %v1565, %v1569
    %v1574 = vsel %vm1573, 1, 0
    %v1575 = vadd.s32 %v1565, %v1569
    %v1576 = vadd.s32 %v1568, %v1574
    %vm1577 = vc.u32 %v1575, %v1571
    %v1578 = vsel %vm1577, 1, 0
    %v1579 = vadd.s32 %v1575, %v1571
    %v1580 = vadd.s32 %v1576, %v1578
    %v1581 = vadd.s32 %v1580, %v1570
    %v1582 = vadd.s32 %v1581, %v1572
    %v1583 = vand.u32 %v1560, 65535
    %v1584 = vshrl.u32 %v1560, 16
    %v1585 = vand.u32 %v1555, 65535
    %v1586 = vshrl.u32 %v1555, 16
    %v1587 = vmul.u32 %v1583, %v1585
    %v1588 = vmul.u32 %v1583, %v1586
    %v1589 = vmul.u32 %v1584, %v1585
    %v1590 = vmul.u32 %v1584, %v1586
    %v1591 = vshll.u32 %v1588, 16
    %v1592 = vshrl.u32 %v1588, 16
    %v1593 = vshll.u32 %v1589, 16
    %v1594 = vshrl.u32 %v1589, 16
    %vm1595 = vc.u32 %v1587, %v1591
    %v1596 = vsel %vm1595, 1, 0
    %v1597 = vadd.s32 %v1587, %v1591
    %v1598 = vadd.s32 %v1590, %v1596
    %vm1599 = vc.u32 %v1597, %v1593
    %v1600 = vsel %vm1599, 1, 0
    %v1601 = vadd.s32 %v1597, %v1593
    %v1602 = vadd.s32 %v1598, %v1600
    %v1603 = vadd.s32 %v1602, %v1592
    %v1604 = vadd.s32 %v1603, %v1594
    %v1605 = vmul.u32 %v1560, %v1551
    %v1606 = vadd.s32 %v1582, %v1601
    %vm1607 = vc.u32 %v1582, %v1601
    %v1608 = vadd.s32 %v1604, 1
    %v1609 = vsel %vm1607, %v1608, %v1604
    %v1610 = vadd.s32 %v1605, %v1609
    %v1611 = vadd.s32 %v1610, 536870912
    %v1612 = vshrl.u32 %v1611, 30
    %v1613 = vshll.u32 %v1612, 30
    %v1614 = vsub.s32 %v1610, %v1613
    %vm1615 = vcmp.lt.s32.totalorder %v1614, 0
    %v1616 = vsub.s32 0, %v1614
    %v1617 = vsel %vm1615, %v1616, %v1614
    %v1618 = vclz %v1617
    %v1619 = vsub.s32 %v1618, 2
    %vm1620 = vcmp.gt.s32.totalorder 0, %v1619
    %v1621 = vsel %vm1620, 0, %v1619
    %v1622 = vsub.s32 32, %v1621
    %v1623 = vshll.u32 %v1614, %v1621
    %v1624 = vshrl.u32 %v1606, %v1622
    %v1625 = vor.u32 %v1623, %v1624
    %v1626 = vsub.s32 4294967266, %v1621
    %v1627 = vadd.s32 %v1626, 127
    %v1628 = vshll.u32 %v1627, 23
    %v1629 = vor.u32 4788187, %v1628
    %v1630 = vand.u32 2147483647, %v1629
    %v1632 = vcvt.s32.f32 %v1625
    %v1633 = vmul.f32 %v1632, %v1630
    %v1634 = vxor.u32 %v1633, 2147483648
    %v1635 = vsel %vm1514, %v1634, %v1633
    %v1636 = vsub.s32 4, %v1612
    %v1637 = vsel %vm1514, %v1636, %v1612
    %v1638 = vsel %vm1513, %v1508, %v1635
    %v1639 = vsel %vm1513, 0, %v1637
    %v1640 = vmul.f32 %v1638, %v1638
    %v1641 = vmul.f32 %v1640, -0.001358992
    %v1642 = vadd.f32 %v1641, 0.041655596
    %v1643 = vmul.f32 %v1640, %v1642
    %v1644 = vadd.f32 %v1643, -0.4999988
    %v1645 = vmul.f32 %v1640, %v1644
    %v1646 = vadd.f32 1.0, %v1645
    %v1647 = vmul.f32 %v1638, %v1638
    %v1648 = vmul.f32 %v1647, -0.00019511016
    %v1649 = vadd.f32 %v1648, 0.008332121
    %v1650 = vmul.f32 %v1647, %v1649
    %v1651 = vadd.f32 %v1650, -0.16666654
    %v1652 = vmul.f32 %v1647, %v1651
    %v1653 = vadd.f32 %v1652, 1.0
    %v1654 = vmul.f32 %v1653, %v1638
    %vm1655 = vweird.f32 %v1508
    %v1656 = vand.u32 %v1639, 3
    %vm1657 = vcmp.lt.s32.totalorder %v1656, 2
    %vm1658 = vcmp.eq.s32.totalorder %v1656, 0
    %v1659 = vxor.u32 %v1654, 2147483648
    %v1660 = vsel %vm1658, %v1646, %v1659
    %vm1661 = vcmp.eq.s32.totalorder %v1656, 2
    %v1662 = vxor.u32 %v1646, 2147483648
    %v1663 = vsel %vm1661, %v1662, %v1654
    %v1664 = vsel %vm1657, %v1660, %v1663
    %v1665 = vsel %vm1655, nan, %v1664
    %v1666 = vmul.f32 %v1511, %v1665
    %v1667 = vand.u32 2147483647, %v1508
    %vm1668 = vcmp.le.f32.partialorder %v1667, 0.7853982
    %vm1669 = vcmp.lt.s32.totalorder %v1508, 0
    %v1670 = vand.u32 %v1508, 2139095040
    %v1671 = vshrl.u32 %v1670, 23
    %v1672 = vsub.s32 %v1671, 127
    %v1673 = vand.u32 2147483647, %v1508
    %v1674 = vand.u32 %v1673, 8388607
    %v1675 = vor.u32 %v1674, 8388608
    %v1676 = vsub.s32 0, %v1675
    %v1677 = vadd.s32 %v1672, 1
    %vm1678 = vcmp.gt.s32.totalorder %v1677, 0
    %v1679 = vsel %vm1678, %v1677, 0
    %v1680 = vshrl.u32 %v1679, 5
    %v1681 = vand.u32 %v1679, 31
    %v1682 = vsub.s32 32, %v1681
    %v1683 = vshrl.u32 683565275, %v1682
    %v1684 = vshll.u32 683565275, %v1681
    %v1685 = vshrl.u32 2475754826, %v1682
    %v1686 = vor.u32 %v1684, %v1685
    %v1687 = vshll.u32 2475754826, %v1681
    %v1688 = vshrl.u32 2131351028, %v1682
    %v1689 = vor.u32 %v1687, %v1688
    %v1690 = vshll.u32 2131351028, %v1681
    %v1691 = vshrl.u32 2102212464, %v1682
    %v1692 = vor.u32 %v1690, %v1691
    %v1693 = vshll.u32 2102212464, %v1681
    %v1694 = vshrl.u32 920167782, %v1682
    %v1695 = vor.u32 %v1693, %v1694
    %v1696 = vshll.u32 920167782, %v1681
    %v1697 = vshrl.u32 1326507024, %v1682
    %v1698 = vor.u32 %v1696, %v1697
    %vm1699 = vcmp.lt.s32.totalorder %v1680, 1
    %vm1700 = vcmp.lt.s32.totalorder %v1680, 2
    %vm1701 = vcmp.lt.s32.totalorder %v1680, 3
    %vm1702 = vcmp.lt.s32.totalorder %v1680, 4
    %v1703 = vsel %vm1699, %v1683, %v1686
    %v1704 = vsel %vm1702, %v1692, 2102212464
    %v1705 = vsel %vm1701, %v1689, %v1704
    %v1706 = vsel %vm1700, %v1703, %v1705
    %v1707 = vsel %vm1699, %v1686, %v1689
    %v1708 = vsel %vm1702, %v1695, 920167782
    %v1709 = vsel %vm1701, %v1692, %v1708
    %v1710 = vsel %vm1700, %v1707, %v1709
    %v1711 = vsel %vm1699, %v1689, %v1692
    %v1712 = vsel %vm1702, %v1698, 1326507024
    %v1713 = vsel %vm1701, %v1695, %v1712
    %v1714 = vsel %vm1700, %v1711, %v1713
    %v1715 = vshll.u32 %v1675, 8
    %v1716 = vand.u32 %v1715, 65535
    %v1717 = vshrl.u32 %v1715, 16
    %v1718 = vand.u32 %v1714, 65535
    %v1719 = vshrl.u32 %v1714, 16
    %v1720 = vmul.u32 %v1716, %v1718
    %v1721 = vmul.u32 %v1716, %v1719
    %v1722 = vmul.u32 %v1717, %v1718
    %v1723 = vmul.u32 %v1717, %v1719
    %v1724 = vshll.u32 %v1721, 16
    %v1725 = vshrl.u32 %v1721, 16
    %v1726 = vshll.u32 %v1722, 16
    %v1727 = vshrl.u32 %v1722, 16
    %vm1728 = vc.u32 %v1720, %v1724
    %v1729 = vsel %vm1728, 1, 0
    %v1730 = vadd.s32 %v1720, %v1724
    %v1731 = vadd.s32 %v1723, %v1729
    %vm1732 = vc.u32 %v1730, %v1726
    %v1733 = vsel %vm1732, 1, 0
    %v1734 = vadd.s32 %v1730, %v1726
    %v1735 = vadd.s32 %v1731, %v1733
    %v1736 = vadd.s32 %v1735, %v1725
    %v1737 = vadd.s32 %v1736, %v1727
    %v1738 = vand.u32 %v1715, 65535
    %v1739 = vshrl.u32 %v1715, 16
    %v1740 = vand.u32 %v1710, 65535
    %v1741 = vshrl.u32 %v1710, 16
    %v1742 = vmul.u32 %v1738, %v1740
    %v1743 = vmul.u32 %v1738, %v1741
    %v1744 = vmul.u32 %v1739, %v1740
    %v1745 = vmul.u32 %v1739, %v1741
    %v1746 = vshll.u32 %v1743, 16
    %v1747 = vshrl.u32 %v1743, 16
    %v1748 = vshll.u32 %v1744, 16
    %v1749 = vshrl.u32 %v1744, 16
    %vm1750 = vc.u32 %v1742, %v1746
    %v1751 = vsel %vm1750, 1, 0
    %v1752 = vadd.s32 %v1742, %v1746
    %v1753 = vadd.s32 %v1745, %v1751
    %vm1754 = vc.u32 %v1752, %v1748
    %v1755 = vsel %vm1754, 1, 0
    %v1756 = vadd.s32 %v1752, %v1748
    %v1757 = vadd.s32 %v1753, %v1755
    %v1758 = vadd.s32 %v1757, %v1747
    %v1759 = vadd.s32 %v1758, %v1749
    %v1760 = vmul.u32 %v1715, %v1706
    %v1761 = vadd.s32 %v1737, %v1756
    %vm1762 = vc.u32 %v1737, %v1756
    %v1763 = vadd.s32 %v1759, 1
    %v1764 = vsel %vm1762, %v1763, %v1759
    %v1765 = vadd.s32 %v1760, %v1764
    %v1766 = vadd.s32 %v1765, 536870912
    %v1767 = vshrl.u32 %v1766, 30
    %v1768 = vshll.u32 %v1767, 30
    %v1769 = vsub.s32 %v1765, %v1768
    %vm1770 = vcmp.lt.s32.totalorder %v1769, 0
    %v1771 = vsub.s32 0, %v1769
    %v1772 = vsel %vm1770, %v1771, %v1769
    %v1773 = vclz %v1772
    %v1774 = vsub.s32 %v1773, 2
    %vm1775 = vcmp.gt.s32.totalorder 0, %v1774
    %v1776 = vsel %vm1775, 0, %v1774
    %v1777 = vsub.s32 32, %v1776
    %v1778 = vshll.u32 %v1769, %v1776
    %v1779 = vshrl.u32 %v1761, %v1777
    %v1780 = vor.u32 %v1778, %v1779
    %v1781 = vsub.s32 4294967266, %v1776
    %v1782 = vadd.s32 %v1781, 127
    %v1783 = vshll.u32 %v1782, 23
    %v1784 = vor.u32 4788187, %v1783
    %v1785 = vand.u32 2147483647, %v1784
    %v1787 = vcvt.s32.f32 %v1780
    %v1788 = vmul.f32 %v1787, %v1785
    %v1789 = vxor.u32 %v1788, 2147483648
    %v1790 = vsel %vm1669, %v1789, %v1788
    %v1791 = vsub.s32 4, %v1767
    %v1792 = vsel %vm1669, %v1791, %v1767
    %v1793 = vsel %vm1668, %v1508, %v1790
    %v1794 = vsel %vm1668, 0, %v1792
    %v1795 = vmul.f32 %v1793, %v1793
    %v1796 = vmul.f32 %v1795, -0.001358992
    %v1797 = vadd.f32 %v1796, 0.041655596
    %v1798 = vmul.f32 %v1795, %v1797
    %v1799 = vadd.f32 %v1798, -0.4999988
    %v1800 = vmul.f32 %v1795, %v1799
    %v1801 = vadd.f32 1.0, %v1800
    %v1802 = vmul.f32 %v1793, %v1793
    %v1803 = vmul.f32 %v1802, -0.00019511016
    %v1804 = vadd.f32 %v1803, 0.008332121
    %v1805 = vmul.f32 %v1802, %v1804
    %v1806 = vadd.f32 %v1805, -0.16666654
    %v1807 = vmul.f32 %v1802, %v1806
    %v1808 = vadd.f32 %v1807, 1.0
    %v1809 = vmul.f32 %v1808, %v1793
    %vm1810 = vweird.f32 %v1508
    %v1811 = vadd.s32 %v1794, 3
    %v1812 = vand.u32 %v1811, 3
    %vm1813 = vcmp.lt.s32.totalorder %v1812, 2
    %vm1814 = vcmp.eq.s32.totalorder %v1812, 0
    %v1815 = vxor.u32 %v1809, 2147483648
    %v1816 = vsel %vm1814, %v1801, %v1815
    %vm1817 = vcmp.eq.s32.totalorder %v1812, 2
    %v1818 = vxor.u32 %v1801, 2147483648
    %v1819 = vsel %vm1817, %v1818, %v1809
    %v1820 = vsel %vm1813, %v1816, %v1819
    %v1821 = vsel %vm1810, nan, %v1820
    %v1822 = vmul.f32 %v1511, %v1821
    %v1824 = vsel %vm464, %v1666, 0
    %1826 = vmatpush.msra.mxu0 0.0
    %1827 = vmatpush.msra.mxu0 0.0
    %1828 = vmatpush.msra.mxu0 0.0
    %1829 = vmatpush.msra.mxu0 0.0
    %1830 = vmatpush.msra.mxu0 0.0
    %1831 = vmatpush.msra.mxu0 0.0
    %1832 = vmatpush.msra.mxu0 0.0
    %1833 = vmatpush.msra.mxu0 0.0
    %1834 = vmatpush.msra.mxu0 0.0
    %1835 = vmatpush.msra.mxu0 0.0
    %1836 = vmatpush.msra.mxu0 0.0
    %1837 = vmatpush.msra.mxu0 0.0
    %1838 = vmatpush.msra.mxu0 0.0
    %1839 = vmatpush.msra.mxu0 %v70
    %1840 = vmatpush.msra.mxu0 %v69
    %1841 = vmatpush.msra.mxu0 %v68
    %1842 = vmatmul.f32.gmra.mxu0 %v1824
    %v1843 = vpop.f32.mrf.mxu0
    %v1844 = vadd.f32 0.0, %v1843
    %1845 = vdwg.mxu0
    %v1847 = vsel %vm464, %v1822, 0
    %1849 = vmatpush.msra.mxu0 0.0
    %1850 = vmatpush.msra.mxu0 0.0
    %1851 = vmatpush.msra.mxu0 0.0
    %1852 = vmatpush.msra.mxu0 0.0
    %1853 = vmatpush.msra.mxu0 0.0
    %1854 = vmatpush.msra.mxu0 0.0
    %1855 = vmatpush.msra.mxu0 0.0
    %1856 = vmatpush.msra.mxu0 0.0
    %1857 = vmatpush.msra.mxu0 0.0
    %1858 = vmatpush.msra.mxu0 0.0
    %1859 = vmatpush.msra.mxu0 0.0
    %1860 = vmatpush.msra.mxu0 0.0
    %1861 = vmatpush.msra.mxu0 0.0
    %1862 = vmatpush.msra.mxu0 %v70
    %1863 = vmatpush.msra.mxu0 %v69
    %1864 = vmatpush.msra.mxu0 %v68
    %1865 = vmatmul.f32.gmra.mxu0 %v1847
    %v1866 = vpop.f32.mrf.mxu0
    %v1867 = vadd.f32 0.0, %v1866
    %1868 = vdwg.mxu0
    %1869 = vmatpush.msra.mxu0 0.0
    %1870 = vmatpush.msra.mxu0 0.0
    %1871 = vmatpush.msra.mxu0 0.0
    %1872 = vmatpush.msra.mxu0 0.0
    %1873 = vmatpush.msra.mxu0 0.0
    %1874 = vmatpush.msra.mxu0 0.0
    %1875 = vmatpush.msra.mxu0 0.0
    %1876 = vmatpush.msra.mxu0 0.0
    %1877 = vmatpush.msra.mxu0 0.0
    %1878 = vmatpush.msra.mxu0 0.0
    %1879 = vmatpush.msra.mxu0 0.0
    %1880 = vmatpush.msra.mxu0 0.0
    %1881 = vmatpush.msra.mxu0 0.0
    %1882 = vmatpush.msra.mxu0 0.0
    %1883 = vmatpush.msra.mxu0 0.0
    %1884 = vmatpush.msra.mxu0 %v71
    %1885 = vmatmul.f32.gmra.mxu0 %v1444
    %v1886 = vpop.f32.mrf.mxu0
    %v1887 = vadd.f32 0.0, %v1886
    %1888 = vdwg.mxu0
    %v1889 = vmul.f32 %v1844, %v1437
    %v1890 = vmul.f32 %v1867, %v1887
    %v1891 = vadd.f32 %v1889, %v1890
    %1893 = vrot.lane.b32.xlu0 %v1891, 24
    %v1894 = vpop.permute.xlu0 %1893
    %vm1896 = vcmask 261312
    %1897 = vst.msk [vmem:[#allocation3] sm:$0xff] %vm1896, %v1894
    %v1898 = vsel %vm76, %v1891, 0
    %1900 = vmatpush.msra.mxu0 0.0
    %1901 = vmatpush.msra.mxu0 0.0
    %1902 = vmatpush.msra.mxu0 0.0
    %1903 = vmatpush.msra.mxu0 0.0
    %1904 = vmatpush.msra.mxu0 0.0
    %1905 = vmatpush.msra.mxu0 0.0
    %1906 = vmatpush.msra.mxu0 0.0
    %1907 = vmatpush.msra.mxu0 0.0
    %1908 = vmatpush.msra.mxu0 0.0
    %1909 = vmatpush.msra.mxu0 0.0
    %1910 = vmatpush.msra.mxu0 0.0
    %1911 = vmatpush.msra.mxu0 0.0
    %1912 = vmatpush.msra.mxu0 0.0
    %1913 = vmatpush.msra.mxu0 0.0
    %1914 = vmatpush.msra.mxu0 0.0
    %1915 = vmatpush.msra.mxu0 %v40
    %1916 = vmatmul.f32.gmra.mxu0 %v1898
    %v1917 = vpop.f32.mrf.mxu0
    %v1918 = vadd.f32 %v74, %v1917
    %1919 = vdwg.mxu0
    %v1920 = vtanh.pop %v1918
    %v1922 = vsel %vm104, %v1920, 0
    %1924 = vmatpush.msra.mxu0 0.0
    %1925 = vmatpush.msra.mxu0 0.0
    %1926 = vmatpush.msra.mxu0 0.0
    %1927 = vmatpush.msra.mxu0 0.0
    %1928 = vmatpush.msra.mxu0 %v53
    %1929 = vmatpush.msra.mxu0 %v52
    %1930 = vmatpush.msra.mxu0 %v51
    %1931 = vmatpush.msra.mxu0 %v50
    %1932 = vmatpush.msra.mxu0 %v49
    %1933 = vmatpush.msra.mxu0 %v48
    %1934 = vmatpush.msra.mxu0 %v47
    %1935 = vmatpush.msra.mxu0 %v46
    %1936 = vmatpush.msra.mxu0 %v45
    %1937 = vmatpush.msra.mxu0 %v44
    %1938 = vmatpush.msra.mxu0 %v43
    %1939 = vmatpush.msra.mxu0 %v42
    %1940 = vmatmul.f32.gmra.mxu0 %v1922
    %v1941 = vpop.f32.mrf.mxu0
    %v1942 = vadd.f32 %v102, %v1941
    %1943 = vdwg.mxu0
    %1944 = vmatpush.msra.mxu0 0.0
    %1945 = vmatpush.msra.mxu0 0.0
    %1946 = vmatpush.msra.mxu0 0.0
    %1947 = vmatpush.msra.mxu0 0.0
    %1948 = vmatpush.msra.mxu0 %v66
    %1949 = vmatpush.msra.mxu0 %v65
    %1950 = vmatpush.msra.mxu0 %v64
    %1951 = vmatpush.msra.mxu0 %v63
    %1952 = vmatpush.msra.mxu0 %v62
    %1953 = vmatpush.msra.mxu0 %v61
    %1954 = vmatpush.msra.mxu0 %v60
    %1955 = vmatpush.msra.mxu0 %v59
    %1956 = vmatpush.msra.mxu0 %v58
    %1957 = vmatpush.msra.mxu0 %v57
    %1958 = vmatpush.msra.mxu0 %v56
    %1959 = vmatpush.msra.mxu0 %v55
    %1960 = vmatmul.f32.gmra.mxu0 %v1922
    %v1961 = vpop.f32.mrf.mxu0
    %v1962 = vadd.f32 %v129, %v1961
    %1963 = vdwg.mxu0
    %v1964 = vmul.f32 %v1942, 1.442695
    %v1965 = vpow.pop %v1964
    %v1966 = vand.u32 2147483647, %v1962
    %vm1967 = vcmp.le.f32.partialorder %v1966, 0.7853982
    %vm1968 = vcmp.lt.s32.totalorder %v1962, 0
    %v1969 = vand.u32 %v1962, 2139095040
    %v1970 = vshrl.u32 %v1969, 23
    %v1971 = vsub.s32 %v1970, 127
    %v1972 = vand.u32 2147483647, %v1962
    %v1973 = vand.u32 %v1972, 8388607
    %v1974 = vor.u32 %v1973, 8388608
    %v1975 = vsub.s32 0, %v1974
    %v1976 = vadd.s32 %v1971, 1
    %vm1977 = vcmp.gt.s32.totalorder %v1976, 0
    %v1978 = vsel %vm1977, %v1976, 0
    %v1979 = vshrl.u32 %v1978, 5
    %v1980 = vand.u32 %v1978, 31
    %v1981 = vsub.s32 32, %v1980
    %v1982 = vshrl.u32 683565275, %v1981
    %v1983 = vshll.u32 683565275, %v1980
    %v1984 = vshrl.u32 2475754826, %v1981
    %v1985 = vor.u32 %v1983, %v1984
    %v1986 = vshll.u32 2475754826, %v1980
    %v1987 = vshrl.u32 2131351028, %v1981
    %v1988 = vor.u32 %v1986, %v1987
    %v1989 = vshll.u32 2131351028, %v1980
    %v1990 = vshrl.u32 2102212464, %v1981
    %v1991 = vor.u32 %v1989, %v1990
    %v1992 = vshll.u32 2102212464, %v1980
    %v1993 = vshrl.u32 920167782, %v1981
    %v1994 = vor.u32 %v1992, %v1993
    %v1995 = vshll.u32 920167782, %v1980
    %v1996 = vshrl.u32 1326507024, %v1981
    %v1997 = vor.u32 %v1995, %v1996
    %vm1998 = vcmp.lt.s32.totalorder %v1979, 1
    %vm1999 = vcmp.lt.s32.totalorder %v1979, 2
    %vm2000 = vcmp.lt.s32.totalorder %v1979, 3
    %vm2001 = vcmp.lt.s32.totalorder %v1979, 4
    %v2002 = vsel %vm1998, %v1982, %v1985
    %v2003 = vsel %vm2001, %v1991, 2102212464
    %v2004 = vsel %vm2000, %v1988, %v2003
    %v2005 = vsel %vm1999, %v2002, %v2004
    %v2006 = vsel %vm1998, %v1985, %v1988
    %v2007 = vsel %vm2001, %v1994, 920167782
    %v2008 = vsel %vm2000, %v1991, %v2007
    %v2009 = vsel %vm1999, %v2006, %v2008
    %v2010 = vsel %vm1998, %v1988, %v1991
    %v2011 = vsel %vm2001, %v1997, 1326507024
    %v2012 = vsel %vm2000, %v1994, %v2011
    %v2013 = vsel %vm1999, %v2010, %v2012
    %v2014 = vshll.u32 %v1974, 8
    %v2015 = vand.u32 %v2014, 65535
    %v2016 = vshrl.u32 %v2014, 16
    %v2017 = vand.u32 %v2013, 65535
    %v2018 = vshrl.u32 %v2013, 16
    %v2019 = vmul.u32 %v2015, %v2017
    %v2020 = vmul.u32 %v2015, %v2018
    %v2021 = vmul.u32 %v2016, %v2017
    %v2022 = vmul.u32 %v2016, %v2018
    %v2023 = vshll.u32 %v2020, 16
    %v2024 = vshrl.u32 %v2020, 16
    %v2025 = vshll.u32 %v2021, 16
    %v2026 = vshrl.u32 %v2021, 16
    %vm2027 = vc.u32 %v2019, %v2023
    %v2028 = vsel %vm2027, 1, 0
    %v2029 = vadd.s32 %v2019, %v2023
    %v2030 = vadd.s32 %v2022, %v2028
    %vm2031 = vc.u32 %v2029, %v2025
    %v2032 = vsel %vm2031, 1, 0
    %v2033 = vadd.s32 %v2029, %v2025
    %v2034 = vadd.s32 %v2030, %v2032
    %v2035 = vadd.s32 %v2034, %v2024
    %v2036 = vadd.s32 %v2035, %v2026
    %v2037 = vand.u32 %v2014, 65535
    %v2038 = vshrl.u32 %v2014, 16
    %v2039 = vand.u32 %v2009, 65535
    %v2040 = vshrl.u32 %v2009, 16
    %v2041 = vmul.u32 %v2037, %v2039
    %v2042 = vmul.u32 %v2037, %v2040
    %v2043 = vmul.u32 %v2038, %v2039
    %v2044 = vmul.u32 %v2038, %v2040
    %v2045 = vshll.u32 %v2042, 16
    %v2046 = vshrl.u32 %v2042, 16
    %v2047 = vshll.u32 %v2043, 16
    %v2048 = vshrl.u32 %v2043, 16
    %vm2049 = vc.u32 %v2041, %v2045
    %v2050 = vsel %vm2049, 1, 0
    %v2051 = vadd.s32 %v2041, %v2045
    %v2052 = vadd.s32 %v2044, %v2050
    %vm2053 = vc.u32 %v2051, %v2047
    %v2054 = vsel %vm2053, 1, 0
    %v2055 = vadd.s32 %v2051, %v2047
    %v2056 = vadd.s32 %v2052, %v2054
    %v2057 = vadd.s32 %v2056, %v2046
    %v2058 = vadd.s32 %v2057, %v2048
    %v2059 = vmul.u32 %v2014, %v2005
    %v2060 = vadd.s32 %v2036, %v2055
    %vm2061 = vc.u32 %v2036, %v2055
    %v2062 = vadd.s32 %v2058, 1
    %v2063 = vsel %vm2061, %v2062, %v2058
    %v2064 = vadd.s32 %v2059, %v2063
    %v2065 = vadd.s32 %v2064, 536870912
    %v2066 = vshrl.u32 %v2065, 30
    %v2067 = vshll.u32 %v2066, 30
    %v2068 = vsub.s32 %v2064, %v2067
    %vm2069 = vcmp.lt.s32.totalorder %v2068, 0
    %v2070 = vsub.s32 0, %v2068
    %v2071 = vsel %vm2069, %v2070, %v2068
    %v2072 = vclz %v2071
    %v2073 = vsub.s32 %v2072, 2
    %vm2074 = vcmp.gt.s32.totalorder 0, %v2073
    %v2075 = vsel %vm2074, 0, %v2073
    %v2076 = vsub.s32 32, %v2075
    %v2077 = vshll.u32 %v2068, %v2075
    %v2078 = vshrl.u32 %v2060, %v2076
    %v2079 = vor.u32 %v2077, %v2078
    %v2080 = vsub.s32 4294967266, %v2075
    %v2081 = vadd.s32 %v2080, 127
    %v2082 = vshll.u32 %v2081, 23
    %v2083 = vor.u32 4788187, %v2082
    %v2084 = vand.u32 2147483647, %v2083
    %v2086 = vcvt.s32.f32 %v2079
    %v2087 = vmul.f32 %v2086, %v2084
    %v2088 = vxor.u32 %v2087, 2147483648
    %v2089 = vsel %vm1968, %v2088, %v2087
    %v2090 = vsub.s32 4, %v2066
    %v2091 = vsel %vm1968, %v2090, %v2066
    %v2092 = vsel %vm1967, %v1962, %v2089
    %v2093 = vsel %vm1967, 0, %v2091
    %v2094 = vmul.f32 %v2092, %v2092
    %v2095 = vmul.f32 %v2094, -0.001358992
    %v2096 = vadd.f32 %v2095, 0.041655596
    %v2097 = vmul.f32 %v2094, %v2096
    %v2098 = vadd.f32 %v2097, -0.4999988
    %v2099 = vmul.f32 %v2094, %v2098
    %v2100 = vadd.f32 1.0, %v2099
    %v2101 = vmul.f32 %v2092, %v2092
    %v2102 = vmul.f32 %v2101, -0.00019511016
    %v2103 = vadd.f32 %v2102, 0.008332121
    %v2104 = vmul.f32 %v2101, %v2103
    %v2105 = vadd.f32 %v2104, -0.16666654
    %v2106 = vmul.f32 %v2101, %v2105
    %v2107 = vadd.f32 %v2106, 1.0
    %v2108 = vmul.f32 %v2107, %v2092
    %vm2109 = vweird.f32 %v1962
    %v2110 = vand.u32 %v2093, 3
    %vm2111 = vcmp.lt.s32.totalorder %v2110, 2
    %vm2112 = vcmp.eq.s32.totalorder %v2110, 0
    %v2113 = vxor.u32 %v2108, 2147483648
    %v2114 = vsel %vm2112, %v2100, %v2113
    %vm2115 = vcmp.eq.s32.totalorder %v2110, 2
    %v2116 = vxor.u32 %v2100, 2147483648
    %v2117 = vsel %vm2115, %v2116, %v2108
    %v2118 = vsel %vm2111, %v2114, %v2117
    %v2119 = vsel %vm2109, nan, %v2118
    %v2120 = vmul.f32 %v1965, %v2119
    %v2121 = vand.u32 2147483647, %v1962
    %vm2122 = vcmp.le.f32.partialorder %v2121, 0.7853982
    %vm2123 = vcmp.lt.s32.totalorder %v1962, 0
    %v2124 = vand.u32 %v1962, 2139095040
    %v2125 = vshrl.u32 %v2124, 23
    %v2126 = vsub.s32 %v2125, 127
    %v2127 = vand.u32 2147483647, %v1962
    %v2128 = vand.u32 %v2127, 8388607
    %v2129 = vor.u32 %v2128, 8388608
    %v2130 = vsub.s32 0, %v2129
    %v2131 = vadd.s32 %v2126, 1
    %vm2132 = vcmp.gt.s32.totalorder %v2131, 0
    %v2133 = vsel %vm2132, %v2131, 0
    %v2134 = vshrl.u32 %v2133, 5
    %v2135 = vand.u32 %v2133, 31
    %v2136 = vsub.s32 32, %v2135
    %v2137 = vshrl.u32 683565275, %v2136
    %v2138 = vshll.u32 683565275, %v2135
    %v2139 = vshrl.u32 2475754826, %v2136
    %v2140 = vor.u32 %v2138, %v2139
    %v2141 = vshll.u32 2475754826, %v2135
    %v2142 = vshrl.u32 2131351028, %v2136
    %v2143 = vor.u32 %v2141, %v2142
    %v2144 = vshll.u32 2131351028, %v2135
    %v2145 = vshrl.u32 2102212464, %v2136
    %v2146 = vor.u32 %v2144, %v2145
    %v2147 = vshll.u32 2102212464, %v2135
    %v2148 = vshrl.u32 920167782, %v2136
    %v2149 = vor.u32 %v2147, %v2148
    %v2150 = vshll.u32 920167782, %v2135
    %v2151 = vshrl.u32 1326507024, %v2136
    %v2152 = vor.u32 %v2150, %v2151
    %vm2153 = vcmp.lt.s32.totalorder %v2134, 1
    %vm2154 = vcmp.lt.s32.totalorder %v2134, 2
    %vm2155 = vcmp.lt.s32.totalorder %v2134, 3
    %vm2156 = vcmp.lt.s32.totalorder %v2134, 4
    %v2157 = vsel %vm2153, %v2137, %v2140
    %v2158 = vsel %vm2156, %v2146, 2102212464
    %v2159 = vsel %vm2155, %v2143, %v2158
    %v2160 = vsel %vm2154, %v2157, %v2159
    %v2161 = vsel %vm2153, %v2140, %v2143
    %v2162 = vsel %vm2156, %v2149, 920167782
    %v2163 = vsel %vm2155, %v2146, %v2162
    %v2164 = vsel %vm2154, %v2161, %v2163
    %v2165 = vsel %vm2153, %v2143, %v2146
    %v2166 = vsel %vm2156, %v2152, 1326507024
    %v2167 = vsel %vm2155, %v2149, %v2166
    %v2168 = vsel %vm2154, %v2165, %v2167
    %v2169 = vshll.u32 %v2129, 8
    %v2170 = vand.u32 %v2169, 65535
    %v2171 = vshrl.u32 %v2169, 16
    %v2172 = vand.u32 %v2168, 65535
    %v2173 = vshrl.u32 %v2168, 16
    %v2174 = vmul.u32 %v2170, %v2172
    %v2175 = vmul.u32 %v2170, %v2173
    %v2176 = vmul.u32 %v2171, %v2172
    %v2177 = vmul.u32 %v2171, %v2173
    %v2178 = vshll.u32 %v2175, 16
    %v2179 = vshrl.u32 %v2175, 16
    %v2180 = vshll.u32 %v2176, 16
    %v2181 = vshrl.u32 %v2176, 16
    %vm2182 = vc.u32 %v2174, %v2178
    %v2183 = vsel %vm2182, 1, 0
    %v2184 = vadd.s32 %v2174, %v2178
    %v2185 = vadd.s32 %v2177, %v2183
    %vm2186 = vc.u32 %v2184, %v2180
    %v2187 = vsel %vm2186, 1, 0
    %v2188 = vadd.s32 %v2184, %v2180
    %v2189 = vadd.s32 %v2185, %v2187
    %v2190 = vadd.s32 %v2189, %v2179
    %v2191 = vadd.s32 %v2190, %v2181
    %v2192 = vand.u32 %v2169, 65535
    %v2193 = vshrl.u32 %v2169, 16
    %v2194 = vand.u32 %v2164, 65535
    %v2195 = vshrl.u32 %v2164, 16
    %v2196 = vmul.u32 %v2192, %v2194
    %v2197 = vmul.u32 %v2192, %v2195
    %v2198 = vmul.u32 %v2193, %v2194
    %v2199 = vmul.u32 %v2193, %v2195
    %v2200 = vshll.u32 %v2197, 16
    %v2201 = vshrl.u32 %v2197, 16
    %v2202 = vshll.u32 %v2198, 16
    %v2203 = vshrl.u32 %v2198, 16
    %vm2204 = vc.u32 %v2196, %v2200
    %v2205 = vsel %vm2204, 1, 0
    %v2206 = vadd.s32 %v2196, %v2200
    %v2207 = vadd.s32 %v2199, %v2205
    %vm2208 = vc.u32 %v2206, %v2202
    %v2209 = vsel %vm2208, 1, 0
    %v2210 = vadd.s32 %v2206, %v2202
    %v2211 = vadd.s32 %v2207, %v2209
    %v2212 = vadd.s32 %v2211, %v2201
    %v2213 = vadd.s32 %v2212, %v2203
    %v2214 = vmul.u32 %v2169, %v2160
    %v2215 = vadd.s32 %v2191, %v2210
    %vm2216 = vc.u32 %v2191, %v2210
    %v2217 = vadd.s32 %v2213, 1
    %v2218 = vsel %vm2216, %v2217, %v2213
    %v2219 = vadd.s32 %v2214, %v2218
    %v2220 = vadd.s32 %v2219, 536870912
    %v2221 = vshrl.u32 %v2220, 30
    %v2222 = vshll.u32 %v2221, 30
    %v2223 = vsub.s32 %v2219, %v2222
    %vm2224 = vcmp.lt.s32.totalorder %v2223, 0
    %v2225 = vsub.s32 0, %v2223
    %v2226 = vsel %vm2224, %v2225, %v2223
    %v2227 = vclz %v2226
    %v2228 = vsub.s32 %v2227, 2
    %vm2229 = vcmp.gt.s32.totalorder 0, %v2228
    %v2230 = vsel %vm2229, 0, %v2228
    %v2231 = vsub.s32 32, %v2230
    %v2232 = vshll.u32 %v2223, %v2230
    %v2233 = vshrl.u32 %v2215, %v2231
    %v2234 = vor.u32 %v2232, %v2233
    %v2235 = vsub.s32 4294967266, %v2230
    %v2236 = vadd.s32 %v2235, 127
    %v2237 = vshll.u32 %v2236, 23
    %v2238 = vor.u32 4788187, %v2237
    %v2239 = vand.u32 2147483647, %v2238
    %v2241 = vcvt.s32.f32 %v2234
    %v2242 = vmul.f32 %v2241, %v2239
    %v2243 = vxor.u32 %v2242, 2147483648
    %v2244 = vsel %vm2123, %v2243, %v2242
    %v2245 = vsub.s32 4, %v2221
    %v2246 = vsel %vm2123, %v2245, %v2221
    %v2247 = vsel %vm2122, %v1962, %v2244
    %v2248 = vsel %vm2122, 0, %v2246
    %v2249 = vmul.f32 %v2247, %v2247
    %v2250 = vmul.f32 %v2249, -0.001358992
    %v2251 = vadd.f32 %v2250, 0.041655596
    %v2252 = vmul.f32 %v2249, %v2251
    %v2253 = vadd.f32 %v2252, -0.4999988
    %v2254 = vmul.f32 %v2249, %v2253
    %v2255 = vadd.f32 1.0, %v2254
    %v2256 = vmul.f32 %v2247, %v2247
    %v2257 = vmul.f32 %v2256, -0.00019511016
    %v2258 = vadd.f32 %v2257, 0.008332121
    %v2259 = vmul.f32 %v2256, %v2258
    %v2260 = vadd.f32 %v2259, -0.16666654
    %v2261 = vmul.f32 %v2256, %v2260
    %v2262 = vadd.f32 %v2261, 1.0
    %v2263 = vmul.f32 %v2262, %v2247
    %vm2264 = vweird.f32 %v1962
    %v2265 = vadd.s32 %v2248, 3
    %v2266 = vand.u32 %v2265, 3
    %vm2267 = vcmp.lt.s32.totalorder %v2266, 2
    %vm2268 = vcmp.eq.s32.totalorder %v2266, 0
    %v2269 = vxor.u32 %v2263, 2147483648
    %v2270 = vsel %vm2268, %v2255, %v2269
    %vm2271 = vcmp.eq.s32.totalorder %v2266, 2
    %v2272 = vxor.u32 %v2255, 2147483648
    %v2273 = vsel %vm2271, %v2272, %v2263
    %v2274 = vsel %vm2267, %v2270, %v2273
    %v2275 = vsel %vm2264, nan, %v2274
    %v2276 = vmul.f32 %v1965, %v2275
    %v2278 = vsel %vm464, %v2120, 0
    %2280 = vmatpush.msra.mxu0 0.0
    %2281 = vmatpush.msra.mxu0 0.0
    %2282 = vmatpush.msra.mxu0 0.0
    %2283 = vmatpush.msra.mxu0 0.0
    %2284 = vmatpush.msra.mxu0 0.0
    %2285 = vmatpush.msra.mxu0 0.0
    %2286 = vmatpush.msra.mxu0 0.0
    %2287 = vmatpush.msra.mxu0 0.0
    %2288 = vmatpush.msra.mxu0 0.0
    %2289 = vmatpush.msra.mxu0 0.0
    %2290 = vmatpush.msra.mxu0 0.0
    %2291 = vmatpush.msra.mxu0 0.0
    %2292 = vmatpush.msra.mxu0 0.0
    %2293 = vmatpush.msra.mxu0 %v70
    %2294 = vmatpush.msra.mxu0 %v69
    %2295 = vmatpush.msra.mxu0 %v68
    %2296 = vmatmul.f32.gmra.mxu0 %v2278
    %v2297 = vpop.f32.mrf.mxu0
    %v2298 = vadd.f32 0.0, %v2297
    %2299 = vdwg.mxu0
    %v2301 = vsel %vm464, %v2276, 0
    %2303 = vmatpush.msra.mxu0 0.0
    %2304 = vmatpush.msra.mxu0 0.0
    %2305 = vmatpush.msra.mxu0 0.0
    %2306 = vmatpush.msra.mxu0 0.0
    %2307 = vmatpush.msra.mxu0 0.0
    %2308 = vmatpush.msra.mxu0 0.0
    %2309 = vmatpush.msra.mxu0 0.0
    %2310 = vmatpush.msra.mxu0 0.0
    %2311 = vmatpush.msra.mxu0 0.0
    %2312 = vmatpush.msra.mxu0 0.0
    %2313 = vmatpush.msra.mxu0 0.0
    %2314 = vmatpush.msra.mxu0 0.0
    %2315 = vmatpush.msra.mxu0 0.0
    %2316 = vmatpush.msra.mxu0 %v70
    %2317 = vmatpush.msra.mxu0 %v69
    %2318 = vmatpush.msra.mxu0 %v68
    %2319 = vmatmul.f32.gmra.mxu0 %v2301
    %v2320 = vpop.f32.mrf.mxu0
    %v2321 = vadd.f32 0.0, %v2320
    %2322 = vdwg.mxu0
    %2323 = vmatpush.msra.mxu0 0.0
    %2324 = vmatpush.msra.mxu0 0.0
    %2325 = vmatpush.msra.mxu0 0.0
    %2326 = vmatpush.msra.mxu0 0.0
    %2327 = vmatpush.msra.mxu0 0.0
    %2328 = vmatpush.msra.mxu0 0.0
    %2329 = vmatpush.msra.mxu0 0.0
    %2330 = vmatpush.msra.mxu0 0.0
    %2331 = vmatpush.msra.mxu0 0.0
    %2332 = vmatpush.msra.mxu0 0.0
    %2333 = vmatpush.msra.mxu0 0.0
    %2334 = vmatpush.msra.mxu0 0.0
    %2335 = vmatpush.msra.mxu0 0.0
    %2336 = vmatpush.msra.mxu0 0.0
    %2337 = vmatpush.msra.mxu0 0.0
    %2338 = vmatpush.msra.mxu0 %v71
    %2339 = vmatmul.f32.gmra.mxu0 %v1898
    %v2340 = vpop.f32.mrf.mxu0
    %v2341 = vadd.f32 0.0, %v2340
    %2342 = vdwg.mxu0
    %v2343 = vmul.f32 %v2298, %v1891
    %v2344 = vmul.f32 %v2321, %v2341
    %v2345 = vadd.f32 %v2343, %v2344
    %2347 = vrot.lane.b32.xlu0 %v2345, 32
    %v2348 = vpop.permute.xlu0 %2347
    %vm2350 = vcmask 326912
    %2351 = vst.msk [vmem:[#allocation3] sm:$0xff] %vm2350, %v2348
    %v2352 = vsel %vm76, %v2345, 0
    %2354 = vmatpush.msra.mxu0 0.0
    %2355 = vmatpush.msra.mxu0 0.0
    %2356 = vmatpush.msra.mxu0 0.0
    %2357 = vmatpush.msra.mxu0 0.0
    %2358 = vmatpush.msra.mxu0 0.0
    %2359 = vmatpush.msra.mxu0 0.0
    %2360 = vmatpush.msra.mxu0 0.0
    %2361 = vmatpush.msra.mxu0 0.0
    %2362 = vmatpush.msra.mxu0 0.0
    %2363 = vmatpush.msra.mxu0 0.0
    %2364 = vmatpush.msra.mxu0 0.0
    %2365 = vmatpush.msra.mxu0 0.0
    %2366 = vmatpush.msra.mxu0 0.0
    %2367 = vmatpush.msra.mxu0 0.0
    %2368 = vmatpush.msra.mxu0 0.0
    %2369 = vmatpush.msra.mxu0 %v40
    %2370 = vmatmul.f32.gmra.mxu0 %v2352
    %v2371 = vpop.f32.mrf.mxu0
    %v2372 = vadd.f32 %v74, %v2371
    %2373 = vdwg.mxu0
    %v2374 = vtanh.pop %v2372
    %v2376 = vsel %vm104, %v2374, 0
    %2378 = vmatpush.msra.mxu0 0.0
    %2379 = vmatpush.msra.mxu0 0.0
    %2380 = vmatpush.msra.mxu0 0.0
    %2381 = vmatpush.msra.mxu0 0.0
    %2382 = vmatpush.msra.mxu0 %v53
    %2383 = vmatpush.msra.mxu0 %v52
    %2384 = vmatpush.msra.mxu0 %v51
    %2385 = vmatpush.msra.mxu0 %v50
    %2386 = vmatpush.msra.mxu0 %v49
    %2387 = vmatpush.msra.mxu0 %v48
    %2388 = vmatpush.msra.mxu0 %v47
    %2389 = vmatpush.msra.mxu0 %v46
    %2390 = vmatpush.msra.mxu0 %v45
    %2391 = vmatpush.msra.mxu0 %v44
    %2392 = vmatpush.msra.mxu0 %v43
    %2393 = vmatpush.msra.mxu0 %v42
    %2394 = vmatmul.f32.gmra.mxu0 %v2376
    %v2395 = vpop.f32.mrf.mxu0
    %v2396 = vadd.f32 %v102, %v2395
    %2397 = vdwg.mxu0
    %2398 = vmatpush.msra.mxu0 0.0
    %2399 = vmatpush.msra.mxu0 0.0
    %2400 = vmatpush.msra.mxu0 0.0
    %2401 = vmatpush.msra.mxu0 0.0
    %2402 = vmatpush.msra.mxu0 %v66
    %2403 = vmatpush.msra.mxu0 %v65
    %2404 = vmatpush.msra.mxu0 %v64
    %2405 = vmatpush.msra.mxu0 %v63
    %2406 = vmatpush.msra.mxu0 %v62
    %2407 = vmatpush.msra.mxu0 %v61
    %2408 = vmatpush.msra.mxu0 %v60
    %2409 = vmatpush.msra.mxu0 %v59
    %2410 = vmatpush.msra.mxu0 %v58
    %2411 = vmatpush.msra.mxu0 %v57
    %2412 = vmatpush.msra.mxu0 %v56
    %2413 = vmatpush.msra.mxu0 %v55
    %2414 = vmatmul.f32.gmra.mxu0 %v2376
    %v2415 = vpop.f32.mrf.mxu0
    %v2416 = vadd.f32 %v129, %v2415
    %2417 = vdwg.mxu0
    %v2418 = vmul.f32 %v2396, 1.442695
    %v2419 = vpow.pop %v2418
    %v2420 = vand.u32 2147483647, %v2416
    %vm2421 = vcmp.le.f32.partialorder %v2420, 0.7853982
    %vm2422 = vcmp.lt.s32.totalorder %v2416, 0
    %v2423 = vand.u32 %v2416, 2139095040
    %v2424 = vshrl.u32 %v2423, 23
    %v2425 = vsub.s32 %v2424, 127
    %v2426 = vand.u32 2147483647, %v2416
    %v2427 = vand.u32 %v2426, 8388607
    %v2428 = vor.u32 %v2427, 8388608
    %v2429 = vsub.s32 0, %v2428
    %v2430 = vadd.s32 %v2425, 1
    %vm2431 = vcmp.gt.s32.totalorder %v2430, 0
    %v2432 = vsel %vm2431, %v2430, 0
    %v2433 = vshrl.u32 %v2432, 5
    %v2434 = vand.u32 %v2432, 31
    %v2435 = vsub.s32 32, %v2434
    %v2436 = vshrl.u32 683565275, %v2435
    %v2437 = vshll.u32 683565275, %v2434
    %v2438 = vshrl.u32 2475754826, %v2435
    %v2439 = vor.u32 %v2437, %v2438
    %v2440 = vshll.u32 2475754826, %v2434
    %v2441 = vshrl.u32 2131351028, %v2435
    %v2442 = vor.u32 %v2440, %v2441
    %v2443 = vshll.u32 2131351028, %v2434
    %v2444 = vshrl.u32 2102212464, %v2435
    %v2445 = vor.u32 %v2443, %v2444
    %v2446 = vshll.u32 2102212464, %v2434
    %v2447 = vshrl.u32 920167782, %v2435
    %v2448 = vor.u32 %v2446, %v2447
    %v2449 = vshll.u32 920167782, %v2434
    %v2450 = vshrl.u32 1326507024, %v2435
    %v2451 = vor.u32 %v2449, %v2450
    %vm2452 = vcmp.lt.s32.totalorder %v2433, 1
    %vm2453 = vcmp.lt.s32.totalorder %v2433, 2
    %vm2454 = vcmp.lt.s32.totalorder %v2433, 3
    %vm2455 = vcmp.lt.s32.totalorder %v2433, 4
    %v2456 = vsel %vm2452, %v2436, %v2439
    %v2457 = vsel %vm2455, %v2445, 2102212464
    %v2458 = vsel %vm2454, %v2442, %v2457
    %v2459 = vsel %vm2453, %v2456, %v2458
    %v2460 = vsel %vm2452, %v2439, %v2442
    %v2461 = vsel %vm2455, %v2448, 920167782
    %v2462 = vsel %vm2454, %v2445, %v2461
    %v2463 = vsel %vm2453, %v2460, %v2462
    %v2464 = vsel %vm2452, %v2442, %v2445
    %v2465 = vsel %vm2455, %v2451, 1326507024
    %v2466 = vsel %vm2454, %v2448, %v2465
    %v2467 = vsel %vm2453, %v2464, %v2466
    %v2468 = vshll.u32 %v2428, 8
    %v2469 = vand.u32 %v2468, 65535
    %v2470 = vshrl.u32 %v2468, 16
    %v2471 = vand.u32 %v2467, 65535
    %v2472 = vshrl.u32 %v2467, 16
    %v2473 = vmul.u32 %v2469, %v2471
    %v2474 = vmul.u32 %v2469, %v2472
    %v2475 = vmul.u32 %v2470, %v2471
    %v2476 = vmul.u32 %v2470, %v2472
    %v2477 = vshll.u32 %v2474, 16
    %v2478 = vshrl.u32 %v2474, 16
    %v2479 = vshll.u32 %v2475, 16
    %v2480 = vshrl.u32 %v2475, 16
    %vm2481 = vc.u32 %v2473, %v2477
    %v2482 = vsel %vm2481, 1, 0
    %v2483 = vadd.s32 %v2473, %v2477
    %v2484 = vadd.s32 %v2476, %v2482
    %vm2485 = vc.u32 %v2483, %v2479
    %v2486 = vsel %vm2485, 1, 0
    %v2487 = vadd.s32 %v2483, %v2479
    %v2488 = vadd.s32 %v2484, %v2486
    %v2489 = vadd.s32 %v2488, %v2478
    %v2490 = vadd.s32 %v2489, %v2480
    %v2491 = vand.u32 %v2468, 65535
    %v2492 = vshrl.u32 %v2468, 16
    %v2493 = vand.u32 %v2463, 65535
    %v2494 = vshrl.u32 %v2463, 16
    %v2495 = vmul.u32 %v2491, %v2493
    %v2496 = vmul.u32 %v2491, %v2494
    %v2497 = vmul.u32 %v2492, %v2493
    %v2498 = vmul.u32 %v2492, %v2494
    %v2499 = vshll.u32 %v2496, 16
    %v2500 = vshrl.u32 %v2496, 16
    %v2501 = vshll.u32 %v2497, 16
    %v2502 = vshrl.u32 %v2497, 16
    %vm2503 = vc.u32 %v2495, %v2499
    %v2504 = vsel %vm2503, 1, 0
    %v2505 = vadd.s32 %v2495, %v2499
    %v2506 = vadd.s32 %v2498, %v2504
    %vm2507 = vc.u32 %v2505, %v2501
    %v2508 = vsel %vm2507, 1, 0
    %v2509 = vadd.s32 %v2505, %v2501
    %v2510 = vadd.s32 %v2506, %v2508
    %v2511 = vadd.s32 %v2510, %v2500
    %v2512 = vadd.s32 %v2511, %v2502
    %v2513 = vmul.u32 %v2468, %v2459
    %v2514 = vadd.s32 %v2490, %v2509
    %vm2515 = vc.u32 %v2490, %v2509
    %v2516 = vadd.s32 %v2512, 1
    %v2517 = vsel %vm2515, %v2516, %v2512
    %v2518 = vadd.s32 %v2513, %v2517
    %v2519 = vadd.s32 %v2518, 536870912
    %v2520 = vshrl.u32 %v2519, 30
    %v2521 = vshll.u32 %v2520, 30
    %v2522 = vsub.s32 %v2518, %v2521
    %vm2523 = vcmp.lt.s32.totalorder %v2522, 0
    %v2524 = vsub.s32 0, %v2522
    %v2525 = vsel %vm2523, %v2524, %v2522
    %v2526 = vclz %v2525
    %v2527 = vsub.s32 %v2526, 2
    %vm2528 = vcmp.gt.s32.totalorder 0, %v2527
    %v2529 = vsel %vm2528, 0, %v2527
    %v2530 = vsub.s32 32, %v2529
    %v2531 = vshll.u32 %v2522, %v2529
    %v2532 = vshrl.u32 %v2514, %v2530
    %v2533 = vor.u32 %v2531, %v2532
    %v2534 = vsub.s32 4294967266, %v2529
    %v2535 = vadd.s32 %v2534, 127
    %v2536 = vshll.u32 %v2535, 23
    %v2537 = vor.u32 4788187, %v2536
    %v2538 = vand.u32 2147483647, %v2537
    %v2540 = vcvt.s32.f32 %v2533
    %v2541 = vmul.f32 %v2540, %v2538
    %v2542 = vxor.u32 %v2541, 2147483648
    %v2543 = vsel %vm2422, %v2542, %v2541
    %v2544 = vsub.s32 4, %v2520
    %v2545 = vsel %vm2422, %v2544, %v2520
    %v2546 = vsel %vm2421, %v2416, %v2543
    %v2547 = vsel %vm2421, 0, %v2545
    %v2548 = vmul.f32 %v2546, %v2546
    %v2549 = vmul.f32 %v2548, -0.001358992
    %v2550 = vadd.f32 %v2549, 0.041655596
    %v2551 = vmul.f32 %v2548, %v2550
    %v2552 = vadd.f32 %v2551, -0.4999988
    %v2553 = vmul.f32 %v2548, %v2552
    %v2554 = vadd.f32 1.0, %v2553
    %v2555 = vmul.f32 %v2546, %v2546
    %v2556 = vmul.f32 %v2555, -0.00019511016
    %v2557 = vadd.f32 %v2556, 0.008332121
    %v2558 = vmul.f32 %v2555, %v2557
    %v2559 = vadd.f32 %v2558, -0.16666654
    %v2560 = vmul.f32 %v2555, %v2559
    %v2561 = vadd.f32 %v2560, 1.0
    %v2562 = vmul.f32 %v2561, %v2546
    %vm2563 = vweird.f32 %v2416
    %v2564 = vand.u32 %v2547, 3
    %vm2565 = vcmp.lt.s32.totalorder %v2564, 2
    %vm2566 = vcmp.eq.s32.totalorder %v2564, 0
    %v2567 = vxor.u32 %v2562, 2147483648
    %v2568 = vsel %vm2566, %v2554, %v2567
    %vm2569 = vcmp.eq.s32.totalorder %v2564, 2
    %v2570 = vxor.u32 %v2554, 2147483648
    %v2571 = vsel %vm2569, %v2570, %v2562
    %v2572 = vsel %vm2565, %v2568, %v2571
    %v2573 = vsel %vm2563, nan, %v2572
    %v2574 = vmul.f32 %v2419, %v2573
    %v2575 = vand.u32 2147483647, %v2416
    %vm2576 = vcmp.le.f32.partialorder %v2575, 0.7853982
    %vm2577 = vcmp.lt.s32.totalorder %v2416, 0
    %v2578 = vand.u32 %v2416, 2139095040
    %v2579 = vshrl.u32 %v2578, 23
    %v2580 = vsub.s32 %v2579, 127
    %v2581 = vand.u32 2147483647, %v2416
    %v2582 = vand.u32 %v2581, 8388607
    %v2583 = vor.u32 %v2582, 8388608
    %v2584 = vsub.s32 0, %v2583
    %v2585 = vadd.s32 %v2580, 1
    %vm2586 = vcmp.gt.s32.totalorder %v2585, 0
    %v2587 = vsel %vm2586, %v2585, 0
    %v2588 = vshrl.u32 %v2587, 5
    %v2589 = vand.u32 %v2587, 31
    %v2590 = vsub.s32 32, %v2589
    %v2591 = vshrl.u32 683565275, %v2590
    %v2592 = vshll.u32 683565275, %v2589
    %v2593 = vshrl.u32 2475754826, %v2590
    %v2594 = vor.u32 %v2592, %v2593
    %v2595 = vshll.u32 2475754826, %v2589
    %v2596 = vshrl.u32 2131351028, %v2590
    %v2597 = vor.u32 %v2595, %v2596
    %v2598 = vshll.u32 2131351028, %v2589
    %v2599 = vshrl.u32 2102212464, %v2590
    %v2600 = vor.u32 %v2598, %v2599
    %v2601 = vshll.u32 2102212464, %v2589
    %v2602 = vshrl.u32 920167782, %v2590
    %v2603 = vor.u32 %v2601, %v2602
    %v2604 = vshll.u32 920167782, %v2589
    %v2605 = vshrl.u32 1326507024, %v2590
    %v2606 = vor.u32 %v2604, %v2605
    %vm2607 = vcmp.lt.s32.totalorder %v2588, 1
    %vm2608 = vcmp.lt.s32.totalorder %v2588, 2
    %vm2609 = vcmp.lt.s32.totalorder %v2588, 3
    %vm2610 = vcmp.lt.s32.totalorder %v2588, 4
    %v2611 = vsel %vm2607, %v2591, %v2594
    %v2612 = vsel %vm2610, %v2600, 2102212464
    %v2613 = vsel %vm2609, %v2597, %v2612
    %v2614 = vsel %vm2608, %v2611, %v2613
    %v2615 = vsel %vm2607, %v2594, %v2597
    %v2616 = vsel %vm2610, %v2603, 920167782
    %v2617 = vsel %vm2609, %v2600, %v2616
    %v2618 = vsel %vm2608, %v2615, %v2617
    %v2619 = vsel %vm2607, %v2597, %v2600
    %v2620 = vsel %vm2610, %v2606, 1326507024
    %v2621 = vsel %vm2609, %v2603, %v2620
    %v2622 = vsel %vm2608, %v2619, %v2621
    %v2623 = vshll.u32 %v2583, 8
    %v2624 = vand.u32 %v2623, 65535
    %v2625 = vshrl.u32 %v2623, 16
    %v2626 = vand.u32 %v2622, 65535
    %v2627 = vshrl.u32 %v2622, 16
    %v2628 = vmul.u32 %v2624, %v2626
    %v2629 = vmul.u32 %v2624, %v2627
    %v2630 = vmul.u32 %v2625, %v2626
    %v2631 = vmul.u32 %v2625, %v2627
    %v2632 = vshll.u32 %v2629, 16
    %v2633 = vshrl.u32 %v2629, 16
    %v2634 = vshll.u32 %v2630, 16
    %v2635 = vshrl.u32 %v2630, 16
    %vm2636 = vc.u32 %v2628, %v2632
    %v2637 = vsel %vm2636, 1, 0
    %v2638 = vadd.s32 %v2628, %v2632
    %v2639 = vadd.s32 %v2631, %v2637
    %vm2640 = vc.u32 %v2638, %v2634
    %v2641 = vsel %vm2640, 1, 0
    %v2642 = vadd.s32 %v2638, %v2634
    %v2643 = vadd.s32 %v2639, %v2641
    %v2644 = vadd.s32 %v2643, %v2633
    %v2645 = vadd.s32 %v2644, %v2635
    %v2646 = vand.u32 %v2623, 65535
    %v2647 = vshrl.u32 %v2623, 16
    %v2648 = vand.u32 %v2618, 65535
    %v2649 = vshrl.u32 %v2618, 16
    %v2650 = vmul.u32 %v2646, %v2648
    %v2651 = vmul.u32 %v2646, %v2649
    %v2652 = vmul.u32 %v2647, %v2648
    %v2653 = vmul.u32 %v2647, %v2649
    %v2654 = vshll.u32 %v2651, 16
    %v2655 = vshrl.u32 %v2651, 16
    %v2656 = vshll.u32 %v2652, 16
    %v2657 = vshrl.u32 %v2652, 16
    %vm2658 = vc.u32 %v2650, %v2654
    %v2659 = vsel %vm2658, 1, 0
    %v2660 = vadd.s32 %v2650, %v2654
    %v2661 = vadd.s32 %v2653, %v2659
    %vm2662 = vc.u32 %v2660, %v2656
    %v2663 = vsel %vm2662, 1, 0
    %v2664 = vadd.s32 %v2660, %v2656
    %v2665 = vadd.s32 %v2661, %v2663
    %v2666 = vadd.s32 %v2665, %v2655
    %v2667 = vadd.s32 %v2666, %v2657
    %v2668 = vmul.u32 %v2623, %v2614
    %v2669 = vadd.s32 %v2645, %v2664
    %vm2670 = vc.u32 %v2645, %v2664
    %v2671 = vadd.s32 %v2667, 1
    %v2672 = vsel %vm2670, %v2671, %v2667
    %v2673 = vadd.s32 %v2668, %v2672
    %v2674 = vadd.s32 %v2673, 536870912
    %v2675 = vshrl.u32 %v2674, 30
    %v2676 = vshll.u32 %v2675, 30
    %v2677 = vsub.s32 %v2673, %v2676
    %vm2678 = vcmp.lt.s32.totalorder %v2677, 0
    %v2679 = vsub.s32 0, %v2677
    %v2680 = vsel %vm2678, %v2679, %v2677
    %v2681 = vclz %v2680
    %v2682 = vsub.s32 %v2681, 2
    %vm2683 = vcmp.gt.s32.totalorder 0, %v2682
    %v2684 = vsel %vm2683, 0, %v2682
    %v2685 = vsub.s32 32, %v2684
    %v2686 = vshll.u32 %v2677, %v2684
    %v2687 = vshrl.u32 %v2669, %v2685
    %v2688 = vor.u32 %v2686, %v2687
    %v2689 = vsub.s32 4294967266, %v2684
    %v2690 = vadd.s32 %v2689, 127
    %v2691 = vshll.u32 %v2690, 23
    %v2692 = vor.u32 4788187, %v2691
    %v2693 = vand.u32 2147483647, %v2692
    %v2695 = vcvt.s32.f32 %v2688
    %v2696 = vmul.f32 %v2695, %v2693
    %v2697 = vxor.u32 %v2696, 2147483648
    %v2698 = vsel %vm2577, %v2697, %v2696
    %v2699 = vsub.s32 4, %v2675
    %v2700 = vsel %vm2577, %v2699, %v2675
    %v2701 = vsel %vm2576, %v2416, %v2698
    %v2702 = vsel %vm2576, 0, %v2700
    %v2703 = vmul.f32 %v2701, %v2701
    %v2704 = vmul.f32 %v2703, -0.001358992
    %v2705 = vadd.f32 %v2704, 0.041655596
    %v2706 = vmul.f32 %v2703, %v2705
    %v2707 = vadd.f32 %v2706, -0.4999988
    %v2708 = vmul.f32 %v2703, %v2707
    %v2709 = vadd.f32 1.0, %v2708
    %v2710 = vmul.f32 %v2701, %v2701
    %v2711 = vmul.f32 %v2710, -0.00019511016
    %v2712 = vadd.f32 %v2711, 0.008332121
    %v2713 = vmul.f32 %v2710, %v2712
    %v2714 = vadd.f32 %v2713, -0.16666654
    %v2715 = vmul.f32 %v2710, %v2714
    %v2716 = vadd.f32 %v2715, 1.0
    %v2717 = vmul.f32 %v2716, %v2701
    %vm2718 = vweird.f32 %v2416
    %v2719 = vadd.s32 %v2702, 3
    %v2720 = vand.u32 %v2719, 3
    %vm2721 = vcmp.lt.s32.totalorder %v2720, 2
    %vm2722 = vcmp.eq.s32.totalorder %v2720, 0
    %v2723 = vxor.u32 %v2717, 2147483648
    %v2724 = vsel %vm2722, %v2709, %v2723
    %vm2725 = vcmp.eq.s32.totalorder %v2720, 2
    %v2726 = vxor.u32 %v2709, 2147483648
    %v2727 = vsel %vm2725, %v2726, %v2717
    %v2728 = vsel %vm2721, %v2724, %v2727
    %v2729 = vsel %vm2718, nan, %v2728
    %v2730 = vmul.f32 %v2419, %v2729
    %v2732 = vsel %vm464, %v2574, 0
    %2734 = vmatpush.msra.mxu0 0.0
    %2735 = vmatpush.msra.mxu0 0.0
    %2736 = vmatpush.msra.mxu0 0.0
    %2737 = vmatpush.msra.mxu0 0.0
    %2738 = vmatpush.msra.mxu0 0.0
    %2739 = vmatpush.msra.mxu0 0.0
    %2740 = vmatpush.msra.mxu0 0.0
    %2741 = vmatpush.msra.mxu0 0.0
    %2742 = vmatpush.msra.mxu0 0.0
    %2743 = vmatpush.msra.mxu0 0.0
    %2744 = vmatpush.msra.mxu0 0.0
    %2745 = vmatpush.msra.mxu0 0.0
    %2746 = vmatpush.msra.mxu0 0.0
    %2747 = vmatpush.msra.mxu0 %v70
    %2748 = vmatpush.msra.mxu0 %v69
    %2749 = vmatpush.msra.mxu0 %v68
    %2750 = vmatmul.f32.gmra.mxu0 %v2732
    %v2751 = vpop.f32.mrf.mxu0
    %v2752 = vadd.f32 0.0, %v2751
    %2753 = vdwg.mxu0
    %v2755 = vsel %vm464, %v2730, 0
    %2757 = vmatpush.msra.mxu0 0.0
    %2758 = vmatpush.msra.mxu0 0.0
    %2759 = vmatpush.msra.mxu0 0.0
    %2760 = vmatpush.msra.mxu0 0.0
    %2761 = vmatpush.msra.mxu0 0.0
    %2762 = vmatpush.msra.mxu0 0.0
    %2763 = vmatpush.msra.mxu0 0.0
    %2764 = vmatpush.msra.mxu0 0.0
    %2765 = vmatpush.msra.mxu0 0.0
    %2766 = vmatpush.msra.mxu0 0.0
    %2767 = vmatpush.msra.mxu0 0.0
    %2768 = vmatpush.msra.mxu0 0.0
    %2769 = vmatpush.msra.mxu0 0.0
    %2770 = vmatpush.msra.mxu0 %v70
    %2771 = vmatpush.msra.mxu0 %v69
    %2772 = vmatpush.msra.mxu0 %v68
    %2773 = vmatmul.f32.gmra.mxu0 %v2755
    %v2774 = vpop.f32.mrf.mxu0
    %v2775 = vadd.f32 0.0, %v2774
    %2776 = vdwg.mxu0
    %2777 = vmatpush.msra.mxu0 0.0
    %2778 = vmatpush.msra.mxu0 0.0
    %2779 = vmatpush.msra.mxu0 0.0
    %2780 = vmatpush.msra.mxu0 0.0
    %2781 = vmatpush.msra.mxu0 0.0
    %2782 = vmatpush.msra.mxu0 0.0
    %2783 = vmatpush.msra.mxu0 0.0
    %2784 = vmatpush.msra.mxu0 0.0
    %2785 = vmatpush.msra.mxu0 0.0
    %2786 = vmatpush.msra.mxu0 0.0
    %2787 = vmatpush.msra.mxu0 0.0
    %2788 = vmatpush.msra.mxu0 0.0
    %2789 = vmatpush.msra.mxu0 0.0
    %2790 = vmatpush.msra.mxu0 0.0
    %2791 = vmatpush.msra.mxu0 0.0
    %2792 = vmatpush.msra.mxu0 %v71
    %2793 = vmatmul.f32.gmra.mxu0 %v2352
    %v2794 = vpop.f32.mrf.mxu0
    %v2795 = vadd.f32 0.0, %v2794
    %2796 = vdwg.mxu0
    %v2797 = vmul.f32 %v2752, %v2345
    %v2798 = vmul.f32 %v2775, %v2795
    %v2799 = vadd.f32 %v2797, %v2798
    %2801 = vrot.lane.b32.xlu0 %v2799, 40
    %v2802 = vpop.permute.xlu0 %2801
    %vm2804 = vcmask 392512
    %2805 = vst.msk [vmem:[#allocation3] sm:$0xff] %vm2804, %v2802
    %v2806 = vsel %vm76, %v2799, 0
    %2808 = vmatpush.msra.mxu0 0.0
    %2809 = vmatpush.msra.mxu0 0.0
    %2810 = vmatpush.msra.mxu0 0.0
    %2811 = vmatpush.msra.mxu0 0.0
    %2812 = vmatpush.msra.mxu0 0.0
    %2813 = vmatpush.msra.mxu0 0.0
    %2814 = vmatpush.msra.mxu0 0.0
    %2815 = vmatpush.msra.mxu0 0.0
    %2816 = vmatpush.msra.mxu0 0.0
    %2817 = vmatpush.msra.mxu0 0.0
    %2818 = vmatpush.msra.mxu0 0.0
    %2819 = vmatpush.msra.mxu0 0.0
    %2820 = vmatpush.msra.mxu0 0.0
    %2821 = vmatpush.msra.mxu0 0.0
    %2822 = vmatpush.msra.mxu0 0.0
    %2823 = vmatpush.msra.mxu0 %v40
    %2824 = vmatmul.f32.gmra.mxu0 %v2806
    %v2825 = vpop.f32.mrf.mxu0
    %v2826 = vadd.f32 %v74, %v2825
    %2827 = vdwg.mxu0
    %v2828 = vtanh.pop %v2826
    %v2830 = vsel %vm104, %v2828, 0
    %2832 = vmatpush.msra.mxu0 0.0
    %2833 = vmatpush.msra.mxu0 0.0
    %2834 = vmatpush.msra.mxu0 0.0
    %2835 = vmatpush.msra.mxu0 0.0
    %2836 = vmatpush.msra.mxu0 %v53
    %2837 = vmatpush.msra.mxu0 %v52
    %2838 = vmatpush.msra.mxu0 %v51
    %2839 = vmatpush.msra.mxu0 %v50
    %2840 = vmatpush.msra.mxu0 %v49
    %2841 = vmatpush.msra.mxu0 %v48
    %2842 = vmatpush.msra.mxu0 %v47
    %2843 = vmatpush.msra.mxu0 %v46
    %2844 = vmatpush.msra.mxu0 %v45
    %2845 = vmatpush.msra.mxu0 %v44
    %2846 = vmatpush.msra.mxu0 %v43
    %2847 = vmatpush.msra.mxu0 %v42
    %2848 = vmatmul.f32.gmra.mxu0 %v2830
    %v2849 = vpop.f32.mrf.mxu0
    %v2850 = vadd.f32 %v102, %v2849
    %2851 = vdwg.mxu0
    %2852 = vmatpush.msra.mxu0 0.0
    %2853 = vmatpush.msra.mxu0 0.0
    %2854 = vmatpush.msra.mxu0 0.0
    %2855 = vmatpush.msra.mxu0 0.0
    %2856 = vmatpush.msra.mxu0 %v66
    %2857 = vmatpush.msra.mxu0 %v65
    %2858 = vmatpush.msra.mxu0 %v64
    %2859 = vmatpush.msra.mxu0 %v63
    %2860 = vmatpush.msra.mxu0 %v62
    %2861 = vmatpush.msra.mxu0 %v61
    %2862 = vmatpush.msra.mxu0 %v60
    %2863 = vmatpush.msra.mxu0 %v59
    %2864 = vmatpush.msra.mxu0 %v58
    %2865 = vmatpush.msra.mxu0 %v57
    %2866 = vmatpush.msra.mxu0 %v56
    %2867 = vmatpush.msra.mxu0 %v55
    %2868 = vmatmul.f32.gmra.mxu0 %v2830
    %v2869 = vpop.f32.mrf.mxu0
    %v2870 = vadd.f32 %v129, %v2869
    %2871 = vdwg.mxu0
    %v2872 = vmul.f32 %v2850, 1.442695
    %v2873 = vpow.pop %v2872
    %v2874 = vand.u32 2147483647, %v2870
    %vm2875 = vcmp.le.f32.partialorder %v2874, 0.7853982
    %vm2876 = vcmp.lt.s32.totalorder %v2870, 0
    %v2877 = vand.u32 %v2870, 2139095040
    %v2878 = vshrl.u32 %v2877, 23
    %v2879 = vsub.s32 %v2878, 127
    %v2880 = vand.u32 2147483647, %v2870
    %v2881 = vand.u32 %v2880, 8388607
    %v2882 = vor.u32 %v2881, 8388608
    %v2883 = vsub.s32 0, %v2882
    %v2884 = vadd.s32 %v2879, 1
    %vm2885 = vcmp.gt.s32.totalorder %v2884, 0
    %v2886 = vsel %vm2885, %v2884, 0
    %v2887 = vshrl.u32 %v2886, 5
    %v2888 = vand.u32 %v2886, 31
    %v2889 = vsub.s32 32, %v2888
    %v2890 = vshrl.u32 683565275, %v2889
    %v2891 = vshll.u32 683565275, %v2888
    %v2892 = vshrl.u32 2475754826, %v2889
    %v2893 = vor.u32 %v2891, %v2892
    %v2894 = vshll.u32 2475754826, %v2888
    %v2895 = vshrl.u32 2131351028, %v2889
    %v2896 = vor.u32 %v2894, %v2895
    %v2897 = vshll.u32 2131351028, %v2888
    %v2898 = vshrl.u32 2102212464, %v2889
    %v2899 = vor.u32 %v2897, %v2898
    %v2900 = vshll.u32 2102212464, %v2888
    %v2901 = vshrl.u32 920167782, %v2889
    %v2902 = vor.u32 %v2900, %v2901
    %v2903 = vshll.u32 920167782, %v2888
    %v2904 = vshrl.u32 1326507024, %v2889
    %v2905 = vor.u32 %v2903, %v2904
    %vm2906 = vcmp.lt.s32.totalorder %v2887, 1
    %vm2907 = vcmp.lt.s32.totalorder %v2887, 2
    %vm2908 = vcmp.lt.s32.totalorder %v2887, 3
    %vm2909 = vcmp.lt.s32.totalorder %v2887, 4
    %v2910 = vsel %vm2906, %v2890, %v2893
    %v2911 = vsel %vm2909, %v2899, 2102212464
    %v2912 = vsel %vm2908, %v2896, %v2911
    %v2913 = vsel %vm2907, %v2910, %v2912
    %v2914 = vsel %vm2906, %v2893, %v2896
    %v2915 = vsel %vm2909, %v2902, 920167782
    %v2916 = vsel %vm2908, %v2899, %v2915
    %v2917 = vsel %vm2907, %v2914, %v2916
    %v2918 = vsel %vm2906, %v2896, %v2899
    %v2919 = vsel %vm2909, %v2905, 1326507024
    %v2920 = vsel %vm2908, %v2902, %v2919
    %v2921 = vsel %vm2907, %v2918, %v2920
    %v2922 = vshll.u32 %v2882, 8
    %v2923 = vand.u32 %v2922, 65535
    %v2924 = vshrl.u32 %v2922, 16
    %v2925 = vand.u32 %v2921, 65535
    %v2926 = vshrl.u32 %v2921, 16
    %v2927 = vmul.u32 %v2923, %v2925
    %v2928 = vmul.u32 %v2923, %v2926
    %v2929 = vmul.u32 %v2924, %v2925
    %v2930 = vmul.u32 %v2924, %v2926
    %v2931 = vshll.u32 %v2928, 16
    %v2932 = vshrl.u32 %v2928, 16
    %v2933 = vshll.u32 %v2929, 16
    %v2934 = vshrl.u32 %v2929, 16
    %vm2935 = vc.u32 %v2927, %v2931
    %v2936 = vsel %vm2935, 1, 0
    %v2937 = vadd.s32 %v2927, %v2931
    %v2938 = vadd.s32 %v2930, %v2936
    %vm2939 = vc.u32 %v2937, %v2933
    %v2940 = vsel %vm2939, 1, 0
    %v2941 = vadd.s32 %v2937, %v2933
    %v2942 = vadd.s32 %v2938, %v2940
    %v2943 = vadd.s32 %v2942, %v2932
    %v2944 = vadd.s32 %v2943, %v2934
    %v2945 = vand.u32 %v2922, 65535
    %v2946 = vshrl.u32 %v2922, 16
    %v2947 = vand.u32 %v2917, 65535
    %v2948 = vshrl.u32 %v2917, 16
    %v2949 = vmul.u32 %v2945, %v2947
    %v2950 = vmul.u32 %v2945, %v2948
    %v2951 = vmul.u32 %v2946, %v2947
    %v2952 = vmul.u32 %v2946, %v2948
    %v2953 = vshll.u32 %v2950, 16
    %v2954 = vshrl.u32 %v2950, 16
    %v2955 = vshll.u32 %v2951, 16
    %v2956 = vshrl.u32 %v2951, 16
    %vm2957 = vc.u32 %v2949, %v2953
    %v2958 = vsel %vm2957, 1, 0
    %v2959 = vadd.s32 %v2949, %v2953
    %v2960 = vadd.s32 %v2952, %v2958
    %vm2961 = vc.u32 %v2959, %v2955
    %v2962 = vsel %vm2961, 1, 0
    %v2963 = vadd.s32 %v2959, %v2955
    %v2964 = vadd.s32 %v2960, %v2962
    %v2965 = vadd.s32 %v2964, %v2954
    %v2966 = vadd.s32 %v2965, %v2956
    %v2967 = vmul.u32 %v2922, %v2913
    %v2968 = vadd.s32 %v2944, %v2963
    %vm2969 = vc.u32 %v2944, %v2963
    %v2970 = vadd.s32 %v2966, 1
    %v2971 = vsel %vm2969, %v2970, %v2966
    %v2972 = vadd.s32 %v2967, %v2971
    %v2973 = vadd.s32 %v2972, 536870912
    %v2974 = vshrl.u32 %v2973, 30
    %v2975 = vshll.u32 %v2974, 30
    %v2976 = vsub.s32 %v2972, %v2975
    %vm2977 = vcmp.lt.s32.totalorder %v2976, 0
    %v2978 = vsub.s32 0, %v2976
    %v2979 = vsel %vm2977, %v2978, %v2976
    %v2980 = vclz %v2979
    %v2981 = vsub.s32 %v2980, 2
    %vm2982 = vcmp.gt.s32.totalorder 0, %v2981
    %v2983 = vsel %vm2982, 0, %v2981
    %v2984 = vsub.s32 32, %v2983
    %v2985 = vshll.u32 %v2976, %v2983
    %v2986 = vshrl.u32 %v2968, %v2984
    %v2987 = vor.u32 %v2985, %v2986
    %v2988 = vsub.s32 4294967266, %v2983
    %v2989 = vadd.s32 %v2988, 127
    %v2990 = vshll.u32 %v2989, 23
    %v2991 = vor.u32 4788187, %v2990
    %v2992 = vand.u32 2147483647, %v2991
    %v2994 = vcvt.s32.f32 %v2987
    %v2995 = vmul.f32 %v2994, %v2992
    %v2996 = vxor.u32 %v2995, 2147483648
    %v2997 = vsel %vm2876, %v2996, %v2995
    %v2998 = vsub.s32 4, %v2974
    %v2999 = vsel %vm2876, %v2998, %v2974
    %v3000 = vsel %vm2875, %v2870, %v2997
    %v3001 = vsel %vm2875, 0, %v2999
    %v3002 = vmul.f32 %v3000, %v3000
    %v3003 = vmul.f32 %v3002, -0.001358992
    %v3004 = vadd.f32 %v3003, 0.041655596
    %v3005 = vmul.f32 %v3002, %v3004
    %v3006 = vadd.f32 %v3005, -0.4999988
    %v3007 = vmul.f32 %v3002, %v3006
    %v3008 = vadd.f32 1.0, %v3007
    %v3009 = vmul.f32 %v3000, %v3000
    %v3010 = vmul.f32 %v3009, -0.00019511016
    %v3011 = vadd.f32 %v3010, 0.008332121
    %v3012 = vmul.f32 %v3009, %v3011
    %v3013 = vadd.f32 %v3012, -0.16666654
    %v3014 = vmul.f32 %v3009, %v3013
    %v3015 = vadd.f32 %v3014, 1.0
    %v3016 = vmul.f32 %v3015, %v3000
    %vm3017 = vweird.f32 %v2870
    %v3018 = vand.u32 %v3001, 3
    %vm3019 = vcmp.lt.s32.totalorder %v3018, 2
    %vm3020 = vcmp.eq.s32.totalorder %v3018, 0
    %v3021 = vxor.u32 %v3016, 2147483648
    %v3022 = vsel %vm3020, %v3008, %v3021
    %vm3023 = vcmp.eq.s32.totalorder %v3018, 2
    %v3024 = vxor.u32 %v3008, 2147483648
    %v3025 = vsel %vm3023, %v3024, %v3016
    %v3026 = vsel %vm3019, %v3022, %v3025
    %v3027 = vsel %vm3017, nan, %v3026
    %v3028 = vmul.f32 %v2873, %v3027
    %v3029 = vand.u32 2147483647, %v2870
    %vm3030 = vcmp.le.f32.partialorder %v3029, 0.7853982
    %vm3031 = vcmp.lt.s32.totalorder %v2870, 0
    %v3032 = vand.u32 %v2870, 2139095040
    %v3033 = vshrl.u32 %v3032, 23
    %v3034 = vsub.s32 %v3033, 127
    %v3035 = vand.u32 2147483647, %v2870
    %v3036 = vand.u32 %v3035, 8388607
    %v3037 = vor.u32 %v3036, 8388608
    %v3038 = vsub.s32 0, %v3037
    %v3039 = vadd.s32 %v3034, 1
    %vm3040 = vcmp.gt.s32.totalorder %v3039, 0
    %v3041 = vsel %vm3040, %v3039, 0
    %v3042 = vshrl.u32 %v3041, 5
    %v3043 = vand.u32 %v3041, 31
    %v3044 = vsub.s32 32, %v3043
    %v3045 = vshrl.u32 683565275, %v3044
    %v3046 = vshll.u32 683565275, %v3043
    %v3047 = vshrl.u32 2475754826, %v3044
    %v3048 = vor.u32 %v3046, %v3047
    %v3049 = vshll.u32 2475754826, %v3043
    %v3050 = vshrl.u32 2131351028, %v3044
    %v3051 = vor.u32 %v3049, %v3050
    %v3052 = vshll.u32 2131351028, %v3043
    %v3053 = vshrl.u32 2102212464, %v3044
    %v3054 = vor.u32 %v3052, %v3053
    %v3055 = vshll.u32 2102212464, %v3043
    %v3056 = vshrl.u32 920167782, %v3044
    %v3057 = vor.u32 %v3055, %v3056
    %v3058 = vshll.u32 920167782, %v3043
    %v3059 = vshrl.u32 1326507024, %v3044
    %v3060 = vor.u32 %v3058, %v3059
    %vm3061 = vcmp.lt.s32.totalorder %v3042, 1
    %vm3062 = vcmp.lt.s32.totalorder %v3042, 2
    %vm3063 = vcmp.lt.s32.totalorder %v3042, 3
    %vm3064 = vcmp.lt.s32.totalorder %v3042, 4
    %v3065 = vsel %vm3061, %v3045, %v3048
    %v3066 = vsel %vm3064, %v3054, 2102212464
    %v3067 = vsel %vm3063, %v3051, %v3066
    %v3068 = vsel %vm3062, %v3065, %v3067
    %v3069 = vsel %vm3061, %v3048, %v3051
    %v3070 = vsel %vm3064, %v3057, 920167782
    %v3071 = vsel %vm3063, %v3054, %v3070
    %v3072 = vsel %vm3062, %v3069, %v3071
    %v3073 = vsel %vm3061, %v3051, %v3054
    %v3074 = vsel %vm3064, %v3060, 1326507024
    %v3075 = vsel %vm3063, %v3057, %v3074
    %v3076 = vsel %vm3062, %v3073, %v3075
    %v3077 = vshll.u32 %v3037, 8
    %v3078 = vand.u32 %v3077, 65535
    %v3079 = vshrl.u32 %v3077, 16
    %v3080 = vand.u32 %v3076, 65535
    %v3081 = vshrl.u32 %v3076, 16
    %v3082 = vmul.u32 %v3078, %v3080
    %v3083 = vmul.u32 %v3078, %v3081
    %v3084 = vmul.u32 %v3079, %v3080
    %v3085 = vmul.u32 %v3079, %v3081
    %v3086 = vshll.u32 %v3083, 16
    %v3087 = vshrl.u32 %v3083, 16
    %v3088 = vshll.u32 %v3084, 16
    %v3089 = vshrl.u32 %v3084, 16
    %vm3090 = vc.u32 %v3082, %v3086
    %v3091 = vsel %vm3090, 1, 0
    %v3092 = vadd.s32 %v3082, %v3086
    %v3093 = vadd.s32 %v3085, %v3091
    %vm3094 = vc.u32 %v3092, %v3088
    %v3095 = vsel %vm3094, 1, 0
    %v3096 = vadd.s32 %v3092, %v3088
    %v3097 = vadd.s32 %v3093, %v3095
    %v3098 = vadd.s32 %v3097, %v3087
    %v3099 = vadd.s32 %v3098, %v3089
    %v3100 = vand.u32 %v3077, 65535
    %v3101 = vshrl.u32 %v3077, 16
    %v3102 = vand.u32 %v3072, 65535
    %v3103 = vshrl.u32 %v3072, 16
    %v3104 = vmul.u32 %v3100, %v3102
    %v3105 = vmul.u32 %v3100, %v3103
    %v3106 = vmul.u32 %v3101, %v3102
    %v3107 = vmul.u32 %v3101, %v3103
    %v3108 = vshll.u32 %v3105, 16
    %v3109 = vshrl.u32 %v3105, 16
    %v3110 = vshll.u32 %v3106, 16
    %v3111 = vshrl.u32 %v3106, 16
    %vm3112 = vc.u32 %v3104, %v3108
    %v3113 = vsel %vm3112, 1, 0
    %v3114 = vadd.s32 %v3104, %v3108
    %v3115 = vadd.s32 %v3107, %v3113
    %vm3116 = vc.u32 %v3114, %v3110
    %v3117 = vsel %vm3116, 1, 0
    %v3118 = vadd.s32 %v3114, %v3110
    %v3119 = vadd.s32 %v3115, %v3117
    %v3120 = vadd.s32 %v3119, %v3109
    %v3121 = vadd.s32 %v3120, %v3111
    %v3122 = vmul.u32 %v3077, %v3068
    %v3123 = vadd.s32 %v3099, %v3118
    %vm3124 = vc.u32 %v3099, %v3118
    %v3125 = vadd.s32 %v3121, 1
    %v3126 = vsel %vm3124, %v3125, %v3121
    %v3127 = vadd.s32 %v3122, %v3126
    %v3128 = vadd.s32 %v3127, 536870912
    %v3129 = vshrl.u32 %v3128, 30
    %v3130 = vshll.u32 %v3129, 30
    %v3131 = vsub.s32 %v3127, %v3130
    %vm3132 = vcmp.lt.s32.totalorder %v3131, 0
    %v3133 = vsub.s32 0, %v3131
    %v3134 = vsel %vm3132, %v3133, %v3131
    %v3135 = vclz %v3134
    %v3136 = vsub.s32 %v3135, 2
    %vm3137 = vcmp.gt.s32.totalorder 0, %v3136
    %v3138 = vsel %vm3137, 0, %v3136
    %v3139 = vsub.s32 32, %v3138
    %v3140 = vshll.u32 %v3131, %v3138
    %v3141 = vshrl.u32 %v3123, %v3139
    %v3142 = vor.u32 %v3140, %v3141
    %v3143 = vsub.s32 4294967266, %v3138
    %v3144 = vadd.s32 %v3143, 127
    %v3145 = vshll.u32 %v3144, 23
    %v3146 = vor.u32 4788187, %v3145
    %v3147 = vand.u32 2147483647, %v3146
    %v3149 = vcvt.s32.f32 %v3142
    %v3150 = vmul.f32 %v3149, %v3147
    %v3151 = vxor.u32 %v3150, 2147483648
    %v3152 = vsel %vm3031, %v3151, %v3150
    %v3153 = vsub.s32 4, %v3129
    %v3154 = vsel %vm3031, %v3153, %v3129
    %v3155 = vsel %vm3030, %v2870, %v3152
    %v3156 = vsel %vm3030, 0, %v3154
    %v3157 = vmul.f32 %v3155, %v3155
    %v3158 = vmul.f32 %v3157, -0.001358992
    %v3159 = vadd.f32 %v3158, 0.041655596
    %v3160 = vmul.f32 %v3157, %v3159
    %v3161 = vadd.f32 %v3160, -0.4999988
    %v3162 = vmul.f32 %v3157, %v3161
    %v3163 = vadd.f32 1.0, %v3162
    %v3164 = vmul.f32 %v3155, %v3155
    %v3165 = vmul.f32 %v3164, -0.00019511016
    %v3166 = vadd.f32 %v3165, 0.008332121
    %v3167 = vmul.f32 %v3164, %v3166
    %v3168 = vadd.f32 %v3167, -0.16666654
    %v3169 = vmul.f32 %v3164, %v3168
    %v3170 = vadd.f32 %v3169, 1.0
    %v3171 = vmul.f32 %v3170, %v3155
    %vm3172 = vweird.f32 %v2870
    %v3173 = vadd.s32 %v3156, 3
    %v3174 = vand.u32 %v3173, 3
    %vm3175 = vcmp.lt.s32.totalorder %v3174, 2
    %vm3176 = vcmp.eq.s32.totalorder %v3174, 0
    %v3177 = vxor.u32 %v3171, 2147483648
    %v3178 = vsel %vm3176, %v3163, %v3177
    %vm3179 = vcmp.eq.s32.totalorder %v3174, 2
    %v3180 = vxor.u32 %v3163, 2147483648
    %v3181 = vsel %vm3179, %v3180, %v3171
    %v3182 = vsel %vm3175, %v3178, %v3181
    %v3183 = vsel %vm3172, nan, %v3182
    %v3184 = vmul.f32 %v2873, %v3183
    %v3186 = vsel %vm464, %v3028, 0
    %3188 = vmatpush.msra.mxu0 0.0
    %3189 = vmatpush.msra.mxu0 0.0
    %3190 = vmatpush.msra.mxu0 0.0
    %3191 = vmatpush.msra.mxu0 0.0
    %3192 = vmatpush.msra.mxu0 0.0
    %3193 = vmatpush.msra.mxu0 0.0
    %3194 = vmatpush.msra.mxu0 0.0
    %3195 = vmatpush.msra.mxu0 0.0
    %3196 = vmatpush.msra.mxu0 0.0
    %3197 = vmatpush.msra.mxu0 0.0
    %3198 = vmatpush.msra.mxu0 0.0
    %3199 = vmatpush.msra.mxu0 0.0
    %3200 = vmatpush.msra.mxu0 0.0
    %3201 = vmatpush.msra.mxu0 %v70
    %3202 = vmatpush.msra.mxu0 %v69
    %3203 = vmatpush.msra.mxu0 %v68
    %3204 = vmatmul.f32.gmra.mxu0 %v3186
    %v3205 = vpop.f32.mrf.mxu0
    %v3206 = vadd.f32 0.0, %v3205
    %3207 = vdwg.mxu0
    %v3209 = vsel %vm464, %v3184, 0
    %3211 = vmatpush.msra.mxu0 0.0
    %3212 = vmatpush.msra.mxu0 0.0
    %3213 = vmatpush.msra.mxu0 0.0
    %3214 = vmatpush.msra.mxu0 0.0
    %3215 = vmatpush.msra.mxu0 0.0
    %3216 = vmatpush.msra.mxu0 0.0
    %3217 = vmatpush.msra.mxu0 0.0
    %3218 = vmatpush.msra.mxu0 0.0
    %3219 = vmatpush.msra.mxu0 0.0
    %3220 = vmatpush.msra.mxu0 0.0
    %3221 = vmatpush.msra.mxu0 0.0
    %3222 = vmatpush.msra.mxu0 0.0
    %3223 = vmatpush.msra.mxu0 0.0
    %3224 = vmatpush.msra.mxu0 %v70
    %3225 = vmatpush.msra.mxu0 %v69
    %3226 = vmatpush.msra.mxu0 %v68
    %3227 = vmatmul.f32.gmra.mxu0 %v3209
    %v3228 = vpop.f32.mrf.mxu0
    %v3229 = vadd.f32 0.0, %v3228
    %3230 = vdwg.mxu0
    %3231 = vmatpush.msra.mxu0 0.0
    %3232 = vmatpush.msra.mxu0 0.0
    %3233 = vmatpush.msra.mxu0 0.0
    %3234 = vmatpush.msra.mxu0 0.0
    %3235 = vmatpush.msra.mxu0 0.0
    %3236 = vmatpush.msra.mxu0 0.0
    %3237 = vmatpush.msra.mxu0 0.0
    %3238 = vmatpush.msra.mxu0 0.0
    %3239 = vmatpush.msra.mxu0 0.0
    %3240 = vmatpush.msra.mxu0 0.0
    %3241 = vmatpush.msra.mxu0 0.0
    %3242 = vmatpush.msra.mxu0 0.0
    %3243 = vmatpush.msra.mxu0 0.0
    %3244 = vmatpush.msra.mxu0 0.0
    %3245 = vmatpush.msra.mxu0 0.0
    %3246 = vmatpush.msra.mxu0 %v71
    %3247 = vmatmul.f32.gmra.mxu0 %v2806
    %v3248 = vpop.f32.mrf.mxu0
    %v3249 = vadd.f32 0.0, %v3248
    %3250 = vdwg.mxu0
    %v3251 = vmul.f32 %v3206, %v2799
    %v3252 = vmul.f32 %v3229, %v3249
    %v3253 = vadd.f32 %v3251, %v3252
    %3255 = vrot.lane.b32.xlu0 %v3253, 48
    %v3256 = vpop.permute.xlu0 %3255
    %vm3258 = vcmask 458112
    %3259 = vst.msk [vmem:[#allocation3] sm:$0xff] %vm3258, %v3256
    %v3260 = vsel %vm76, %v3253, 0
    %3262 = vmatpush.msra.mxu0 0.0
    %3263 = vmatpush.msra.mxu0 0.0
    %3264 = vmatpush.msra.mxu0 0.0
    %3265 = vmatpush.msra.mxu0 0.0
    %3266 = vmatpush.msra.mxu0 0.0
    %3267 = vmatpush.msra.mxu0 0.0
    %3268 = vmatpush.msra.mxu0 0.0
    %3269 = vmatpush.msra.mxu0 0.0
    %3270 = vmatpush.msra.mxu0 0.0
    %3271 = vmatpush.msra.mxu0 0.0
    %3272 = vmatpush.msra.mxu0 0.0
    %3273 = vmatpush.msra.mxu0 0.0
    %3274 = vmatpush.msra.mxu0 0.0
    %3275 = vmatpush.msra.mxu0 0.0
    %3276 = vmatpush.msra.mxu0 0.0
    %3277 = vmatpush.msra.mxu0 %v40
    %3278 = vmatmul.f32.gmra.mxu0 %v3260
    %v3279 = vpop.f32.mrf.mxu0
    %v3280 = vadd.f32 %v74, %v3279
    %3281 = vdwg.mxu0
    %v3282 = vtanh.pop %v3280
    %v3284 = vsel %vm104, %v3282, 0
    %3286 = vmatpush.msra.mxu0 0.0
    %3287 = vmatpush.msra.mxu0 0.0
    %3288 = vmatpush.msra.mxu0 0.0
    %3289 = vmatpush.msra.mxu0 0.0
    %3290 = vmatpush.msra.mxu0 %v53
    %3291 = vmatpush.msra.mxu0 %v52
    %3292 = vmatpush.msra.mxu0 %v51
    %3293 = vmatpush.msra.mxu0 %v50
    %3294 = vmatpush.msra.mxu0 %v49
    %3295 = vmatpush.msra.mxu0 %v48
    %3296 = vmatpush.msra.mxu0 %v47
    %3297 = vmatpush.msra.mxu0 %v46
    %3298 = vmatpush.msra.mxu0 %v45
    %3299 = vmatpush.msra.mxu0 %v44
    %3300 = vmatpush.msra.mxu0 %v43
    %3301 = vmatpush.msra.mxu0 %v42
    %3302 = vmatmul.f32.gmra.mxu0 %v3284
    %v3303 = vpop.f32.mrf.mxu0
    %v3304 = vadd.f32 %v102, %v3303
    %3305 = vdwg.mxu0
    %3306 = vmatpush.msra.mxu0 0.0
    %3307 = vmatpush.msra.mxu0 0.0
    %3308 = vmatpush.msra.mxu0 0.0
    %3309 = vmatpush.msra.mxu0 0.0
    %3310 = vmatpush.msra.mxu0 %v66
    %3311 = vmatpush.msra.mxu0 %v65
    %3312 = vmatpush.msra.mxu0 %v64
    %3313 = vmatpush.msra.mxu0 %v63
    %3314 = vmatpush.msra.mxu0 %v62
    %3315 = vmatpush.msra.mxu0 %v61
    %3316 = vmatpush.msra.mxu0 %v60
    %3317 = vmatpush.msra.mxu0 %v59
    %3318 = vmatpush.msra.mxu0 %v58
    %3319 = vmatpush.msra.mxu0 %v57
    %3320 = vmatpush.msra.mxu0 %v56
    %3321 = vmatpush.msra.mxu0 %v55
    %3322 = vmatmul.f32.gmra.mxu0 %v3284
    %v3323 = vpop.f32.mrf.mxu0
    %v3324 = vadd.f32 %v129, %v3323
    %3325 = vdwg.mxu0
    %v3326 = vmul.f32 %v3304, 1.442695
    %v3327 = vpow.pop %v3326
    %v3328 = vand.u32 2147483647, %v3324
    %vm3329 = vcmp.le.f32.partialorder %v3328, 0.7853982
    %vm3330 = vcmp.lt.s32.totalorder %v3324, 0
    %v3331 = vand.u32 %v3324, 2139095040
    %v3332 = vshrl.u32 %v3331, 23
    %v3333 = vsub.s32 %v3332, 127
    %v3334 = vand.u32 2147483647, %v3324
    %v3335 = vand.u32 %v3334, 8388607
    %v3336 = vor.u32 %v3335, 8388608
    %v3337 = vsub.s32 0, %v3336
    %v3338 = vadd.s32 %v3333, 1
    %vm3339 = vcmp.gt.s32.totalorder %v3338, 0
    %v3340 = vsel %vm3339, %v3338, 0
    %v3341 = vshrl.u32 %v3340, 5
    %v3342 = vand.u32 %v3340, 31
    %v3343 = vsub.s32 32, %v3342
    %v3344 = vshrl.u32 683565275, %v3343
    %v3345 = vshll.u32 683565275, %v3342
    %v3346 = vshrl.u32 2475754826, %v3343
    %v3347 = vor.u32 %v3345, %v3346
    %v3348 = vshll.u32 2475754826, %v3342
    %v3349 = vshrl.u32 2131351028, %v3343
    %v3350 = vor.u32 %v3348, %v3349
    %v3351 = vshll.u32 2131351028, %v3342
    %v3352 = vshrl.u32 2102212464, %v3343
    %v3353 = vor.u32 %v3351, %v3352
    %v3354 = vshll.u32 2102212464, %v3342
    %v3355 = vshrl.u32 920167782, %v3343
    %v3356 = vor.u32 %v3354, %v3355
    %v3357 = vshll.u32 920167782, %v3342
    %v3358 = vshrl.u32 1326507024, %v3343
    %v3359 = vor.u32 %v3357, %v3358
    %vm3360 = vcmp.lt.s32.totalorder %v3341, 1
    %vm3361 = vcmp.lt.s32.totalorder %v3341, 2
    %vm3362 = vcmp.lt.s32.totalorder %v3341, 3
    %vm3363 = vcmp.lt.s32.totalorder %v3341, 4
    %v3364 = vsel %vm3360, %v3344, %v3347
    %v3365 = vsel %vm3363, %v3353, 2102212464
    %v3366 = vsel %vm3362, %v3350, %v3365
    %v3367 = vsel %vm3361, %v3364, %v3366
    %v3368 = vsel %vm3360, %v3347, %v3350
    %v3369 = vsel %vm3363, %v3356, 920167782
    %v3370 = vsel %vm3362, %v3353, %v3369
    %v3371 = vsel %vm3361, %v3368, %v3370
    %v3372 = vsel %vm3360, %v3350, %v3353
    %v3373 = vsel %vm3363, %v3359, 1326507024
    %v3374 = vsel %vm3362, %v3356, %v3373
    %v3375 = vsel %vm3361, %v3372, %v3374
    %v3376 = vshll.u32 %v3336, 8
    %v3377 = vand.u32 %v3376, 65535
    %v3378 = vshrl.u32 %v3376, 16
    %v3379 = vand.u32 %v3375, 65535
    %v3380 = vshrl.u32 %v3375, 16
    %v3381 = vmul.u32 %v3377, %v3379
    %v3382 = vmul.u32 %v3377, %v3380
    %v3383 = vmul.u32 %v3378, %v3379
    %v3384 = vmul.u32 %v3378, %v3380
    %v3385 = vshll.u32 %v3382, 16
    %v3386 = vshrl.u32 %v3382, 16
    %v3387 = vshll.u32 %v3383, 16
    %v3388 = vshrl.u32 %v3383, 16
    %vm3389 = vc.u32 %v3381, %v3385
    %v3390 = vsel %vm3389, 1, 0
    %v3391 = vadd.s32 %v3381, %v3385
    %v3392 = vadd.s32 %v3384, %v3390
    %vm3393 = vc.u32 %v3391, %v3387
    %v3394 = vsel %vm3393, 1, 0
    %v3395 = vadd.s32 %v3391, %v3387
    %v3396 = vadd.s32 %v3392, %v3394
    %v3397 = vadd.s32 %v3396, %v3386
    %v3398 = vadd.s32 %v3397, %v3388
    %v3399 = vand.u32 %v3376, 65535
    %v3400 = vshrl.u32 %v3376, 16
    %v3401 = vand.u32 %v3371, 65535
    %v3402 = vshrl.u32 %v3371, 16
    %v3403 = vmul.u32 %v3399, %v3401
    %v3404 = vmul.u32 %v3399, %v3402
    %v3405 = vmul.u32 %v3400, %v3401
    %v3406 = vmul.u32 %v3400, %v3402
    %v3407 = vshll.u32 %v3404, 16
    %v3408 = vshrl.u32 %v3404, 16
    %v3409 = vshll.u32 %v3405, 16
    %v3410 = vshrl.u32 %v3405, 16
    %vm3411 = vc.u32 %v3403, %v3407
    %v3412 = vsel %vm3411, 1, 0
    %v3413 = vadd.s32 %v3403, %v3407
    %v3414 = vadd.s32 %v3406, %v3412
    %vm3415 = vc.u32 %v3413, %v3409
    %v3416 = vsel %vm3415, 1, 0
    %v3417 = vadd.s32 %v3413, %v3409
    %v3418 = vadd.s32 %v3414, %v3416
    %v3419 = vadd.s32 %v3418, %v3408
    %v3420 = vadd.s32 %v3419, %v3410
    %v3421 = vmul.u32 %v3376, %v3367
    %v3422 = vadd.s32 %v3398, %v3417
    %vm3423 = vc.u32 %v3398, %v3417
    %v3424 = vadd.s32 %v3420, 1
    %v3425 = vsel %vm3423, %v3424, %v3420
    %v3426 = vadd.s32 %v3421, %v3425
    %v3427 = vadd.s32 %v3426, 536870912
    %v3428 = vshrl.u32 %v3427, 30
    %v3429 = vshll.u32 %v3428, 30
    %v3430 = vsub.s32 %v3426, %v3429
    %vm3431 = vcmp.lt.s32.totalorder %v3430, 0
    %v3432 = vsub.s32 0, %v3430
    %v3433 = vsel %vm3431, %v3432, %v3430
    %v3434 = vclz %v3433
    %v3435 = vsub.s32 %v3434, 2
    %vm3436 = vcmp.gt.s32.totalorder 0, %v3435
    %v3437 = vsel %vm3436, 0, %v3435
    %v3438 = vsub.s32 32, %v3437
    %v3439 = vshll.u32 %v3430, %v3437
    %v3440 = vshrl.u32 %v3422, %v3438
    %v3441 = vor.u32 %v3439, %v3440
    %v3442 = vsub.s32 4294967266, %v3437
    %v3443 = vadd.s32 %v3442, 127
    %v3444 = vshll.u32 %v3443, 23
    %v3445 = vor.u32 4788187, %v3444
    %v3446 = vand.u32 2147483647, %v3445
    %v3448 = vcvt.s32.f32 %v3441
    %v3449 = vmul.f32 %v3448, %v3446
    %v3450 = vxor.u32 %v3449, 2147483648
    %v3451 = vsel %vm3330, %v3450, %v3449
    %v3452 = vsub.s32 4, %v3428
    %v3453 = vsel %vm3330, %v3452, %v3428
    %v3454 = vsel %vm3329, %v3324, %v3451
    %v3455 = vsel %vm3329, 0, %v3453
    %v3456 = vmul.f32 %v3454, %v3454
    %v3457 = vmul.f32 %v3456, -0.001358992
    %v3458 = vadd.f32 %v3457, 0.041655596
    %v3459 = vmul.f32 %v3456, %v3458
    %v3460 = vadd.f32 %v3459, -0.4999988
    %v3461 = vmul.f32 %v3456, %v3460
    %v3462 = vadd.f32 1.0, %v3461
    %v3463 = vmul.f32 %v3454, %v3454
    %v3464 = vmul.f32 %v3463, -0.00019511016
    %v3465 = vadd.f32 %v3464, 0.008332121
    %v3466 = vmul.f32 %v3463, %v3465
    %v3467 = vadd.f32 %v3466, -0.16666654
    %v3468 = vmul.f32 %v3463, %v3467
    %v3469 = vadd.f32 %v3468, 1.0
    %v3470 = vmul.f32 %v3469, %v3454
    %vm3471 = vweird.f32 %v3324
    %v3472 = vand.u32 %v3455, 3
    %vm3473 = vcmp.lt.s32.totalorder %v3472, 2
    %vm3474 = vcmp.eq.s32.totalorder %v3472, 0
    %v3475 = vxor.u32 %v3470, 2147483648
    %v3476 = vsel %vm3474, %v3462, %v3475
    %vm3477 = vcmp.eq.s32.totalorder %v3472, 2
    %v3478 = vxor.u32 %v3462, 2147483648
    %v3479 = vsel %vm3477, %v3478, %v3470
    %v3480 = vsel %vm3473, %v3476, %v3479
    %v3481 = vsel %vm3471, nan, %v3480
    %v3482 = vmul.f32 %v3327, %v3481
    %v3483 = vand.u32 2147483647, %v3324
    %vm3484 = vcmp.le.f32.partialorder %v3483, 0.7853982
    %vm3485 = vcmp.lt.s32.totalorder %v3324, 0
    %v3486 = vand.u32 %v3324, 2139095040
    %v3487 = vshrl.u32 %v3486, 23
    %v3488 = vsub.s32 %v3487, 127
    %v3489 = vand.u32 2147483647, %v3324
    %v3490 = vand.u32 %v3489, 8388607
    %v3491 = vor.u32 %v3490, 8388608
    %v3492 = vsub.s32 0, %v3491
    %v3493 = vadd.s32 %v3488, 1
    %vm3494 = vcmp.gt.s32.totalorder %v3493, 0
    %v3495 = vsel %vm3494, %v3493, 0
    %v3496 = vshrl.u32 %v3495, 5
    %v3497 = vand.u32 %v3495, 31
    %v3498 = vsub.s32 32, %v3497
    %v3499 = vshrl.u32 683565275, %v3498
    %v3500 = vshll.u32 683565275, %v3497
    %v3501 = vshrl.u32 2475754826, %v3498
    %v3502 = vor.u32 %v3500, %v3501
    %v3503 = vshll.u32 2475754826, %v3497
    %v3504 = vshrl.u32 2131351028, %v3498
    %v3505 = vor.u32 %v3503, %v3504
    %v3506 = vshll.u32 2131351028, %v3497
    %v3507 = vshrl.u32 2102212464, %v3498
    %v3508 = vor.u32 %v3506, %v3507
    %v3509 = vshll.u32 2102212464, %v3497
    %v3510 = vshrl.u32 920167782, %v3498
    %v3511 = vor.u32 %v3509, %v3510
    %v3512 = vshll.u32 920167782, %v3497
    %v3513 = vshrl.u32 1326507024, %v3498
    %v3514 = vor.u32 %v3512, %v3513
    %vm3515 = vcmp.lt.s32.totalorder %v3496, 1
    %vm3516 = vcmp.lt.s32.totalorder %v3496, 2
    %vm3517 = vcmp.lt.s32.totalorder %v3496, 3
    %vm3518 = vcmp.lt.s32.totalorder %v3496, 4
    %v3519 = vsel %vm3515, %v3499, %v3502
    %v3520 = vsel %vm3518, %v3508, 2102212464
    %v3521 = vsel %vm3517, %v3505, %v3520
    %v3522 = vsel %vm3516, %v3519, %v3521
    %v3523 = vsel %vm3515, %v3502, %v3505
    %v3524 = vsel %vm3518, %v3511, 920167782
    %v3525 = vsel %vm3517, %v3508, %v3524
    %v3526 = vsel %vm3516, %v3523, %v3525
    %v3527 = vsel %vm3515, %v3505, %v3508
    %v3528 = vsel %vm3518, %v3514, 1326507024
    %v3529 = vsel %vm3517, %v3511, %v3528
    %v3530 = vsel %vm3516, %v3527, %v3529
    %v3531 = vshll.u32 %v3491, 8
    %v3532 = vand.u32 %v3531, 65535
    %v3533 = vshrl.u32 %v3531, 16
    %v3534 = vand.u32 %v3530, 65535
    %v3535 = vshrl.u32 %v3530, 16
    %v3536 = vmul.u32 %v3532, %v3534
    %v3537 = vmul.u32 %v3532, %v3535
    %v3538 = vmul.u32 %v3533, %v3534
    %v3539 = vmul.u32 %v3533, %v3535
    %v3540 = vshll.u32 %v3537, 16
    %v3541 = vshrl.u32 %v3537, 16
    %v3542 = vshll.u32 %v3538, 16
    %v3543 = vshrl.u32 %v3538, 16
    %vm3544 = vc.u32 %v3536, %v3540
    %v3545 = vsel %vm3544, 1, 0
    %v3546 = vadd.s32 %v3536, %v3540
    %v3547 = vadd.s32 %v3539, %v3545
    %vm3548 = vc.u32 %v3546, %v3542
    %v3549 = vsel %vm3548, 1, 0
    %v3550 = vadd.s32 %v3546, %v3542
    %v3551 = vadd.s32 %v3547, %v3549
    %v3552 = vadd.s32 %v3551, %v3541
    %v3553 = vadd.s32 %v3552, %v3543
    %v3554 = vand.u32 %v3531, 65535
    %v3555 = vshrl.u32 %v3531, 16
    %v3556 = vand.u32 %v3526, 65535
    %v3557 = vshrl.u32 %v3526, 16
    %v3558 = vmul.u32 %v3554, %v3556
    %v3559 = vmul.u32 %v3554, %v3557
    %v3560 = vmul.u32 %v3555, %v3556
    %v3561 = vmul.u32 %v3555, %v3557
    %v3562 = vshll.u32 %v3559, 16
    %v3563 = vshrl.u32 %v3559, 16
    %v3564 = vshll.u32 %v3560, 16
    %v3565 = vshrl.u32 %v3560, 16
    %vm3566 = vc.u32 %v3558, %v3562
    %v3567 = vsel %vm3566, 1, 0
    %v3568 = vadd.s32 %v3558, %v3562
    %v3569 = vadd.s32 %v3561, %v3567
    %vm3570 = vc.u32 %v3568, %v3564
    %v3571 = vsel %vm3570, 1, 0
    %v3572 = vadd.s32 %v3568, %v3564
    %v3573 = vadd.s32 %v3569, %v3571
    %v3574 = vadd.s32 %v3573, %v3563
    %v3575 = vadd.s32 %v3574, %v3565
    %v3576 = vmul.u32 %v3531, %v3522
    %v3577 = vadd.s32 %v3553, %v3572
    %vm3578 = vc.u32 %v3553, %v3572
    %v3579 = vadd.s32 %v3575, 1
    %v3580 = vsel %vm3578, %v3579, %v3575
    %v3581 = vadd.s32 %v3576, %v3580
    %v3582 = vadd.s32 %v3581, 536870912
    %v3583 = vshrl.u32 %v3582, 30
    %v3584 = vshll.u32 %v3583, 30
    %v3585 = vsub.s32 %v3581, %v3584
    %vm3586 = vcmp.lt.s32.totalorder %v3585, 0
    %v3587 = vsub.s32 0, %v3585
    %v3588 = vsel %vm3586, %v3587, %v3585
    %v3589 = vclz %v3588
    %v3590 = vsub.s32 %v3589, 2
    %vm3591 = vcmp.gt.s32.totalorder 0, %v3590
    %v3592 = vsel %vm3591, 0, %v3590
    %v3593 = vsub.s32 32, %v3592
    %v3594 = vshll.u32 %v3585, %v3592
    %v3595 = vshrl.u32 %v3577, %v3593
    %v3596 = vor.u32 %v3594, %v3595
    %v3597 = vsub.s32 4294967266, %v3592
    %v3598 = vadd.s32 %v3597, 127
    %v3599 = vshll.u32 %v3598, 23
    %v3600 = vor.u32 4788187, %v3599
    %v3601 = vand.u32 2147483647, %v3600
    %v3603 = vcvt.s32.f32 %v3596
    %v3604 = vmul.f32 %v3603, %v3601
    %v3605 = vxor.u32 %v3604, 2147483648
    %v3606 = vsel %vm3485, %v3605, %v3604
    %v3607 = vsub.s32 4, %v3583
    %v3608 = vsel %vm3485, %v3607, %v3583
    %v3609 = vsel %vm3484, %v3324, %v3606
    %v3610 = vsel %vm3484, 0, %v3608
    %v3611 = vmul.f32 %v3609, %v3609
    %v3612 = vmul.f32 %v3611, -0.001358992
    %v3613 = vadd.f32 %v3612, 0.041655596
    %v3614 = vmul.f32 %v3611, %v3613
    %v3615 = vadd.f32 %v3614, -0.4999988
    %v3616 = vmul.f32 %v3611, %v3615
    %v3617 = vadd.f32 1.0, %v3616
    %v3618 = vmul.f32 %v3609, %v3609
    %v3619 = vmul.f32 %v3618, -0.00019511016
    %v3620 = vadd.f32 %v3619, 0.008332121
    %v3621 = vmul.f32 %v3618, %v3620
    %v3622 = vadd.f32 %v3621, -0.16666654
    %v3623 = vmul.f32 %v3618, %v3622
    %v3624 = vadd.f32 %v3623, 1.0
    %v3625 = vmul.f32 %v3624, %v3609
    %vm3626 = vweird.f32 %v3324
    %v3627 = vadd.s32 %v3610, 3
    %v3628 = vand.u32 %v3627, 3
    %vm3629 = vcmp.lt.s32.totalorder %v3628, 2
    %vm3630 = vcmp.eq.s32.totalorder %v3628, 0
    %v3631 = vxor.u32 %v3625, 2147483648
    %v3632 = vsel %vm3630, %v3617, %v3631
    %vm3633 = vcmp.eq.s32.totalorder %v3628, 2
    %v3634 = vxor.u32 %v3617, 2147483648
    %v3635 = vsel %vm3633, %v3634, %v3625
    %v3636 = vsel %vm3629, %v3632, %v3635
    %v3637 = vsel %vm3626, nan, %v3636
    %v3638 = vmul.f32 %v3327, %v3637
    %v3640 = vsel %vm464, %v3482, 0
    %3642 = vmatpush.msra.mxu0 0.0
    %3643 = vmatpush.msra.mxu0 0.0
    %3644 = vmatpush.msra.mxu0 0.0
    %3645 = vmatpush.msra.mxu0 0.0
    %3646 = vmatpush.msra.mxu0 0.0
    %3647 = vmatpush.msra.mxu0 0.0
    %3648 = vmatpush.msra.mxu0 0.0
    %3649 = vmatpush.msra.mxu0 0.0
    %3650 = vmatpush.msra.mxu0 0.0
    %3651 = vmatpush.msra.mxu0 0.0
    %3652 = vmatpush.msra.mxu0 0.0
    %3653 = vmatpush.msra.mxu0 0.0
    %3654 = vmatpush.msra.mxu0 0.0
    %3655 = vmatpush.msra.mxu0 %v70
    %3656 = vmatpush.msra.mxu0 %v69
    %3657 = vmatpush.msra.mxu0 %v68
    %3658 = vmatmul.f32.gmra.mxu0 %v3640
    %v3659 = vpop.f32.mrf.mxu0
    %v3660 = vadd.f32 0.0, %v3659
    %3661 = vdwg.mxu0
    %v3663 = vsel %vm464, %v3638, 0
    %3665 = vmatpush.msra.mxu0 0.0
    %3666 = vmatpush.msra.mxu0 0.0
    %3667 = vmatpush.msra.mxu0 0.0
    %3668 = vmatpush.msra.mxu0 0.0
    %3669 = vmatpush.msra.mxu0 0.0
    %3670 = vmatpush.msra.mxu0 0.0
    %3671 = vmatpush.msra.mxu0 0.0
    %3672 = vmatpush.msra.mxu0 0.0
    %3673 = vmatpush.msra.mxu0 0.0
    %3674 = vmatpush.msra.mxu0 0.0
    %3675 = vmatpush.msra.mxu0 0.0
    %3676 = vmatpush.msra.mxu0 0.0
    %3677 = vmatpush.msra.mxu0 0.0
    %3678 = vmatpush.msra.mxu0 %v70
    %3679 = vmatpush.msra.mxu0 %v69
    %3680 = vmatpush.msra.mxu0 %v68
    %3681 = vmatmul.f32.gmra.mxu0 %v3663
    %v3682 = vpop.f32.mrf.mxu0
    %v3683 = vadd.f32 0.0, %v3682
    %3684 = vdwg.mxu0
    %3685 = vmatpush.msra.mxu0 0.0
    %3686 = vmatpush.msra.mxu0 0.0
    %3687 = vmatpush.msra.mxu0 0.0
    %3688 = vmatpush.msra.mxu0 0.0
    %3689 = vmatpush.msra.mxu0 0.0
    %3690 = vmatpush.msra.mxu0 0.0
    %3691 = vmatpush.msra.mxu0 0.0
    %3692 = vmatpush.msra.mxu0 0.0
    %3693 = vmatpush.msra.mxu0 0.0
    %3694 = vmatpush.msra.mxu0 0.0
    %3695 = vmatpush.msra.mxu0 0.0
    %3696 = vmatpush.msra.mxu0 0.0
    %3697 = vmatpush.msra.mxu0 0.0
    %3698 = vmatpush.msra.mxu0 0.0
    %3699 = vmatpush.msra.mxu0 0.0
    %3700 = vmatpush.msra.mxu0 %v71
    %3701 = vmatmul.f32.gmra.mxu0 %v3260
    %v3702 = vpop.f32.mrf.mxu0
    %v3703 = vadd.f32 0.0, %v3702
    %3704 = vdwg.mxu0
    %v3705 = vmul.f32 %v3660, %v3253
    %v3706 = vmul.f32 %v3683, %v3703
    %v3707 = vadd.f32 %v3705, %v3706
    %3709 = vrot.lane.b32.xlu0 %v3707, 56
    %v3710 = vpop.permute.xlu0 %3709
    %vm3712 = vcmask 523712
    %3713 = vst.msk [vmem:[#allocation3] sm:$0xff] %vm3712, %v3710
    %v3714 = vsel %vm76, %v3707, 0
    %3716 = vmatpush.msra.mxu0 0.0
    %3717 = vmatpush.msra.mxu0 0.0
    %3718 = vmatpush.msra.mxu0 0.0
    %3719 = vmatpush.msra.mxu0 0.0
    %3720 = vmatpush.msra.mxu0 0.0
    %3721 = vmatpush.msra.mxu0 0.0
    %3722 = vmatpush.msra.mxu0 0.0
    %3723 = vmatpush.msra.mxu0 0.0
    %3724 = vmatpush.msra.mxu0 0.0
    %3725 = vmatpush.msra.mxu0 0.0
    %3726 = vmatpush.msra.mxu0 0.0
    %3727 = vmatpush.msra.mxu0 0.0
    %3728 = vmatpush.msra.mxu0 0.0
    %3729 = vmatpush.msra.mxu0 0.0
    %3730 = vmatpush.msra.mxu0 0.0
    %3731 = vmatpush.msra.mxu0 %v40
    %3732 = vmatmul.f32.gmra.mxu0 %v3714
    %v3733 = vpop.f32.mrf.mxu0
    %v3734 = vadd.f32 %v74, %v3733
    %3735 = vdwg.mxu0
    %v3736 = vtanh.pop %v3734
    %v3738 = vsel %vm104, %v3736, 0
    %3740 = vmatpush.msra.mxu0 0.0
    %3741 = vmatpush.msra.mxu0 0.0
    %3742 = vmatpush.msra.mxu0 0.0
    %3743 = vmatpush.msra.mxu0 0.0
    %3744 = vmatpush.msra.mxu0 %v53
    %3745 = vmatpush.msra.mxu0 %v52
    %3746 = vmatpush.msra.mxu0 %v51
    %3747 = vmatpush.msra.mxu0 %v50
    %3748 = vmatpush.msra.mxu0 %v49
    %3749 = vmatpush.msra.mxu0 %v48
    %3750 = vmatpush.msra.mxu0 %v47
    %3751 = vmatpush.msra.mxu0 %v46
    %3752 = vmatpush.msra.mxu0 %v45
    %3753 = vmatpush.msra.mxu0 %v44
    %3754 = vmatpush.msra.mxu0 %v43
    %3755 = vmatpush.msra.mxu0 %v42
    %3756 = vmatmul.f32.gmra.mxu0 %v3738
    %v3757 = vpop.f32.mrf.mxu0
    %v3758 = vadd.f32 %v102, %v3757
    %3759 = vdwg.mxu0
    %3760 = vmatpush.msra.mxu0 0.0
    %3761 = vmatpush.msra.mxu0 0.0
    %3762 = vmatpush.msra.mxu0 0.0
    %3763 = vmatpush.msra.mxu0 0.0
    %3764 = vmatpush.msra.mxu0 %v66
    %3765 = vmatpush.msra.mxu0 %v65
    %3766 = vmatpush.msra.mxu0 %v64
    %3767 = vmatpush.msra.mxu0 %v63
    %3768 = vmatpush.msra.mxu0 %v62
    %3769 = vmatpush.msra.mxu0 %v61
    %3770 = vmatpush.msra.mxu0 %v60
    %3771 = vmatpush.msra.mxu0 %v59
    %3772 = vmatpush.msra.mxu0 %v58
    %3773 = vmatpush.msra.mxu0 %v57
    %3774 = vmatpush.msra.mxu0 %v56
    %3775 = vmatpush.msra.mxu0 %v55
    %3776 = vmatmul.f32.gmra.mxu0 %v3738
    %v3777 = vpop.f32.mrf.mxu0
    %v3778 = vadd.f32 %v129, %v3777
    %3779 = vdwg.mxu0
    %v3780 = vmul.f32 %v3758, 1.442695
    %v3781 = vpow.pop %v3780
    %v3782 = vand.u32 2147483647, %v3778
    %vm3783 = vcmp.le.f32.partialorder %v3782, 0.7853982
    %vm3784 = vcmp.lt.s32.totalorder %v3778, 0
    %v3785 = vand.u32 %v3778, 2139095040
    %v3786 = vshrl.u32 %v3785, 23
    %v3787 = vsub.s32 %v3786, 127
    %v3788 = vand.u32 2147483647, %v3778
    %v3789 = vand.u32 %v3788, 8388607
    %v3790 = vor.u32 %v3789, 8388608
    %v3791 = vsub.s32 0, %v3790
    %v3792 = vadd.s32 %v3787, 1
    %vm3793 = vcmp.gt.s32.totalorder %v3792, 0
    %v3794 = vsel %vm3793, %v3792, 0
    %v3795 = vshrl.u32 %v3794, 5
    %v3796 = vand.u32 %v3794, 31
    %v3797 = vsub.s32 32, %v3796
    %v3798 = vshrl.u32 683565275, %v3797
    %v3799 = vshll.u32 683565275, %v3796
    %v3800 = vshrl.u32 2475754826, %v3797
    %v3801 = vor.u32 %v3799, %v3800
    %v3802 = vshll.u32 2475754826, %v3796
    %v3803 = vshrl.u32 2131351028, %v3797
    %v3804 = vor.u32 %v3802, %v3803
    %v3805 = vshll.u32 2131351028, %v3796
    %v3806 = vshrl.u32 2102212464, %v3797
    %v3807 = vor.u32 %v3805, %v3806
    %v3808 = vshll.u32 2102212464, %v3796
    %v3809 = vshrl.u32 920167782, %v3797
    %v3810 = vor.u32 %v3808, %v3809
    %v3811 = vshll.u32 920167782, %v3796
    %v3812 = vshrl.u32 1326507024, %v3797
    %v3813 = vor.u32 %v3811, %v3812
    %vm3814 = vcmp.lt.s32.totalorder %v3795, 1
    %vm3815 = vcmp.lt.s32.totalorder %v3795, 2
    %vm3816 = vcmp.lt.s32.totalorder %v3795, 3
    %vm3817 = vcmp.lt.s32.totalorder %v3795, 4
    %v3818 = vsel %vm3814, %v3798, %v3801
    %v3819 = vsel %vm3817, %v3807, 2102212464
    %v3820 = vsel %vm3816, %v3804, %v3819
    %v3821 = vsel %vm3815, %v3818, %v3820
    %v3822 = vsel %vm3814, %v3801, %v3804
    %v3823 = vsel %vm3817, %v3810, 920167782
    %v3824 = vsel %vm3816, %v3807, %v3823
    %v3825 = vsel %vm3815, %v3822, %v3824
    %v3826 = vsel %vm3814, %v3804, %v3807
    %v3827 = vsel %vm3817, %v3813, 1326507024
    %v3828 = vsel %vm3816, %v3810, %v3827
    %v3829 = vsel %vm3815, %v3826, %v3828
    %v3830 = vshll.u32 %v3790, 8
    %v3831 = vand.u32 %v3830, 65535
    %v3832 = vshrl.u32 %v3830, 16
    %v3833 = vand.u32 %v3829, 65535
    %v3834 = vshrl.u32 %v3829, 16
    %v3835 = vmul.u32 %v3831, %v3833
    %v3836 = vmul.u32 %v3831, %v3834
    %v3837 = vmul.u32 %v3832, %v3833
    %v3838 = vmul.u32 %v3832, %v3834
    %v3839 = vshll.u32 %v3836, 16
    %v3840 = vshrl.u32 %v3836, 16
    %v3841 = vshll.u32 %v3837, 16
    %v3842 = vshrl.u32 %v3837, 16
    %vm3843 = vc.u32 %v3835, %v3839
    %v3844 = vsel %vm3843, 1, 0
    %v3845 = vadd.s32 %v3835, %v3839
    %v3846 = vadd.s32 %v3838, %v3844
    %vm3847 = vc.u32 %v3845, %v3841
    %v3848 = vsel %vm3847, 1, 0
    %v3849 = vadd.s32 %v3845, %v3841
    %v3850 = vadd.s32 %v3846, %v3848
    %v3851 = vadd.s32 %v3850, %v3840
    %v3852 = vadd.s32 %v3851, %v3842
    %v3853 = vand.u32 %v3830, 65535
    %v3854 = vshrl.u32 %v3830, 16
    %v3855 = vand.u32 %v3825, 65535
    %v3856 = vshrl.u32 %v3825, 16
    %v3857 = vmul.u32 %v3853, %v3855
    %v3858 = vmul.u32 %v3853, %v3856
    %v3859 = vmul.u32 %v3854, %v3855
    %v3860 = vmul.u32 %v3854, %v3856
    %v3861 = vshll.u32 %v3858, 16
    %v3862 = vshrl.u32 %v3858, 16
    %v3863 = vshll.u32 %v3859, 16
    %v3864 = vshrl.u32 %v3859, 16
    %vm3865 = vc.u32 %v3857, %v3861
    %v3866 = vsel %vm3865, 1, 0
    %v3867 = vadd.s32 %v3857, %v3861
    %v3868 = vadd.s32 %v3860, %v3866
    %vm3869 = vc.u32 %v3867, %v3863
    %v3870 = vsel %vm3869, 1, 0
    %v3871 = vadd.s32 %v3867, %v3863
    %v3872 = vadd.s32 %v3868, %v3870
    %v3873 = vadd.s32 %v3872, %v3862
    %v3874 = vadd.s32 %v3873, %v3864
    %v3875 = vmul.u32 %v3830, %v3821
    %v3876 = vadd.s32 %v3852, %v3871
    %vm3877 = vc.u32 %v3852, %v3871
    %v3878 = vadd.s32 %v3874, 1
    %v3879 = vsel %vm3877, %v3878, %v3874
    %v3880 = vadd.s32 %v3875, %v3879
    %v3881 = vadd.s32 %v3880, 536870912
    %v3882 = vshrl.u32 %v3881, 30
    %v3883 = vshll.u32 %v3882, 30
    %v3884 = vsub.s32 %v3880, %v3883
    %vm3885 = vcmp.lt.s32.totalorder %v3884, 0
    %v3886 = vsub.s32 0, %v3884
    %v3887 = vsel %vm3885, %v3886, %v3884
    %v3888 = vclz %v3887
    %v3889 = vsub.s32 %v3888, 2
    %vm3890 = vcmp.gt.s32.totalorder 0, %v3889
    %v3891 = vsel %vm3890, 0, %v3889
    %v3892 = vsub.s32 32, %v3891
    %v3893 = vshll.u32 %v3884, %v3891
    %v3894 = vshrl.u32 %v3876, %v3892
    %v3895 = vor.u32 %v3893, %v3894
    %v3896 = vsub.s32 4294967266, %v3891
    %v3897 = vadd.s32 %v3896, 127
    %v3898 = vshll.u32 %v3897, 23
    %v3899 = vor.u32 4788187, %v3898
    %v3900 = vand.u32 2147483647, %v3899
    %v3902 = vcvt.s32.f32 %v3895
    %v3903 = vmul.f32 %v3902, %v3900
    %v3904 = vxor.u32 %v3903, 2147483648
    %v3905 = vsel %vm3784, %v3904, %v3903
    %v3906 = vsub.s32 4, %v3882
    %v3907 = vsel %vm3784, %v3906, %v3882
    %v3908 = vsel %vm3783, %v3778, %v3905
    %v3909 = vsel %vm3783, 0, %v3907
    %v3910 = vmul.f32 %v3908, %v3908
    %v3911 = vmul.f32 %v3910, -0.001358992
    %v3912 = vadd.f32 %v3911, 0.041655596
    %v3913 = vmul.f32 %v3910, %v3912
    %v3914 = vadd.f32 %v3913, -0.4999988
    %v3915 = vmul.f32 %v3910, %v3914
    %v3916 = vadd.f32 1.0, %v3915
    %v3917 = vmul.f32 %v3908, %v3908
    %v3918 = vmul.f32 %v3917, -0.00019511016
    %v3919 = vadd.f32 %v3918, 0.008332121
    %v3920 = vmul.f32 %v3917, %v3919
    %v3921 = vadd.f32 %v3920, -0.16666654
    %v3922 = vmul.f32 %v3917, %v3921
    %v3923 = vadd.f32 %v3922, 1.0
    %v3924 = vmul.f32 %v3923, %v3908
    %vm3925 = vweird.f32 %v3778
    %v3926 = vand.u32 %v3909, 3
    %vm3927 = vcmp.lt.s32.totalorder %v3926, 2
    %vm3928 = vcmp.eq.s32.totalorder %v3926, 0
    %v3929 = vxor.u32 %v3924, 2147483648
    %v3930 = vsel %vm3928, %v3916, %v3929
    %vm3931 = vcmp.eq.s32.totalorder %v3926, 2
    %v3932 = vxor.u32 %v3916, 2147483648
    %v3933 = vsel %vm3931, %v3932, %v3924
    %v3934 = vsel %vm3927, %v3930, %v3933
    %v3935 = vsel %vm3925, nan, %v3934
    %v3936 = vmul.f32 %v3781, %v3935
    %v3937 = vand.u32 2147483647, %v3778
    %vm3938 = vcmp.le.f32.partialorder %v3937, 0.7853982
    %vm3939 = vcmp.lt.s32.totalorder %v3778, 0
    %v3940 = vand.u32 %v3778, 2139095040
    %v3941 = vshrl.u32 %v3940, 23
    %v3942 = vsub.s32 %v3941, 127
    %v3943 = vand.u32 2147483647, %v3778
    %v3944 = vand.u32 %v3943, 8388607
    %v3945 = vor.u32 %v3944, 8388608
    %v3946 = vsub.s32 0, %v3945
    %v3947 = vadd.s32 %v3942, 1
    %vm3948 = vcmp.gt.s32.totalorder %v3947, 0
    %v3949 = vsel %vm3948, %v3947, 0
    %v3950 = vshrl.u32 %v3949, 5
    %v3951 = vand.u32 %v3949, 31
    %v3952 = vsub.s32 32, %v3951
    %v3953 = vshrl.u32 683565275, %v3952
    %v3954 = vshll.u32 683565275, %v3951
    %v3955 = vshrl.u32 2475754826, %v3952
    %v3956 = vor.u32 %v3954, %v3955
    %v3957 = vshll.u32 2475754826, %v3951
    %v3958 = vshrl.u32 2131351028, %v3952
    %v3959 = vor.u32 %v3957, %v3958
    %v3960 = vshll.u32 2131351028, %v3951
    %v3961 = vshrl.u32 2102212464, %v3952
    %v3962 = vor.u32 %v3960, %v3961
    %v3963 = vshll.u32 2102212464, %v3951
    %v3964 = vshrl.u32 920167782, %v3952
    %v3965 = vor.u32 %v3963, %v3964
    %v3966 = vshll.u32 920167782, %v3951
    %v3967 = vshrl.u32 1326507024, %v3952
    %v3968 = vor.u32 %v3966, %v3967
    %vm3969 = vcmp.lt.s32.totalorder %v3950, 1
    %vm3970 = vcmp.lt.s32.totalorder %v3950, 2
    %vm3971 = vcmp.lt.s32.totalorder %v3950, 3
    %vm3972 = vcmp.lt.s32.totalorder %v3950, 4
    %v3973 = vsel %vm3969, %v3953, %v3956
    %v3974 = vsel %vm3972, %v3962, 2102212464
    %v3975 = vsel %vm3971, %v3959, %v3974
    %v3976 = vsel %vm3970, %v3973, %v3975
    %v3977 = vsel %vm3969, %v3956, %v3959
    %v3978 = vsel %vm3972, %v3965, 920167782
    %v3979 = vsel %vm3971, %v3962, %v3978
    %v3980 = vsel %vm3970, %v3977, %v3979
    %v3981 = vsel %vm3969, %v3959, %v3962
    %v3982 = vsel %vm3972, %v3968, 1326507024
    %v3983 = vsel %vm3971, %v3965, %v3982
    %v3984 = vsel %vm3970, %v3981, %v3983
    %v3985 = vshll.u32 %v3945, 8
    %v3986 = vand.u32 %v3985, 65535
    %v3987 = vshrl.u32 %v3985, 16
    %v3988 = vand.u32 %v3984, 65535
    %v3989 = vshrl.u32 %v3984, 16
    %v3990 = vmul.u32 %v3986, %v3988
    %v3991 = vmul.u32 %v3986, %v3989
    %v3992 = vmul.u32 %v3987, %v3988
    %v3993 = vmul.u32 %v3987, %v3989
    %v3994 = vshll.u32 %v3991, 16
    %v3995 = vshrl.u32 %v3991, 16
    %v3996 = vshll.u32 %v3992, 16
    %v3997 = vshrl.u32 %v3992, 16
    %vm3998 = vc.u32 %v3990, %v3994
    %v3999 = vsel %vm3998, 1, 0
    %v4000 = vadd.s32 %v3990, %v3994
    %v4001 = vadd.s32 %v3993, %v3999
    %vm4002 = vc.u32 %v4000, %v3996
    %v4003 = vsel %vm4002, 1, 0
    %v4004 = vadd.s32 %v4000, %v3996
    %v4005 = vadd.s32 %v4001, %v4003
    %v4006 = vadd.s32 %v4005, %v3995
    %v4007 = vadd.s32 %v4006, %v3997
    %v4008 = vand.u32 %v3985, 65535
    %v4009 = vshrl.u32 %v3985, 16
    %v4010 = vand.u32 %v3980, 65535
    %v4011 = vshrl.u32 %v3980, 16
    %v4012 = vmul.u32 %v4008, %v4010
    %v4013 = vmul.u32 %v4008, %v4011
    %v4014 = vmul.u32 %v4009, %v4010
    %v4015 = vmul.u32 %v4009, %v4011
    %v4016 = vshll.u32 %v4013, 16
    %v4017 = vshrl.u32 %v4013, 16
    %v4018 = vshll.u32 %v4014, 16
    %v4019 = vshrl.u32 %v4014, 16
    %vm4020 = vc.u32 %v4012, %v4016
    %v4021 = vsel %vm4020, 1, 0
    %v4022 = vadd.s32 %v4012, %v4016
    %v4023 = vadd.s32 %v4015, %v4021
    %vm4024 = vc.u32 %v4022, %v4018
    %v4025 = vsel %vm4024, 1, 0
    %v4026 = vadd.s32 %v4022, %v4018
    %v4027 = vadd.s32 %v4023, %v4025
    %v4028 = vadd.s32 %v4027, %v4017
    %v4029 = vadd.s32 %v4028, %v4019
    %v4030 = vmul.u32 %v3985, %v3976
    %v4031 = vadd.s32 %v4007, %v4026
    %vm4032 = vc.u32 %v4007, %v4026
    %v4033 = vadd.s32 %v4029, 1
    %v4034 = vsel %vm4032, %v4033, %v4029
    %v4035 = vadd.s32 %v4030, %v4034
    %v4036 = vadd.s32 %v4035, 536870912
    %v4037 = vshrl.u32 %v4036, 30
    %v4038 = vshll.u32 %v4037, 30
    %v4039 = vsub.s32 %v4035, %v4038
    %vm4040 = vcmp.lt.s32.totalorder %v4039, 0
    %v4041 = vsub.s32 0, %v4039
    %v4042 = vsel %vm4040, %v4041, %v4039
    %v4043 = vclz %v4042
    %v4044 = vsub.s32 %v4043, 2
    %vm4045 = vcmp.gt.s32.totalorder 0, %v4044
    %v4046 = vsel %vm4045, 0, %v4044
    %v4047 = vsub.s32 32, %v4046
    %v4048 = vshll.u32 %v4039, %v4046
    %v4049 = vshrl.u32 %v4031, %v4047
    %v4050 = vor.u32 %v4048, %v4049
    %v4051 = vsub.s32 4294967266, %v4046
    %v4052 = vadd.s32 %v4051, 127
    %v4053 = vshll.u32 %v4052, 23
    %v4054 = vor.u32 4788187, %v4053
    %v4055 = vand.u32 2147483647, %v4054
    %v4057 = vcvt.s32.f32 %v4050
    %v4058 = vmul.f32 %v4057, %v4055
    %v4059 = vxor.u32 %v4058, 2147483648
    %v4060 = vsel %vm3939, %v4059, %v4058
    %v4061 = vsub.s32 4, %v4037
    %v4062 = vsel %vm3939, %v4061, %v4037
    %v4063 = vsel %vm3938, %v3778, %v4060
    %v4064 = vsel %vm3938, 0, %v4062
    %v4065 = vmul.f32 %v4063, %v4063
    %v4066 = vmul.f32 %v4065, -0.001358992
    %v4067 = vadd.f32 %v4066, 0.041655596
    %v4068 = vmul.f32 %v4065, %v4067
    %v4069 = vadd.f32 %v4068, -0.4999988
    %v4070 = vmul.f32 %v4065, %v4069
    %v4071 = vadd.f32 1.0, %v4070
    %v4072 = vmul.f32 %v4063, %v4063
    %v4073 = vmul.f32 %v4072, -0.00019511016
    %v4074 = vadd.f32 %v4073, 0.008332121
    %v4075 = vmul.f32 %v4072, %v4074
    %v4076 = vadd.f32 %v4075, -0.16666654
    %v4077 = vmul.f32 %v4072, %v4076
    %v4078 = vadd.f32 %v4077, 1.0
    %v4079 = vmul.f32 %v4078, %v4063
    %vm4080 = vweird.f32 %v3778
    %v4081 = vadd.s32 %v4064, 3
    %v4082 = vand.u32 %v4081, 3
    %vm4083 = vcmp.lt.s32.totalorder %v4082, 2
    %vm4084 = vcmp.eq.s32.totalorder %v4082, 0
    %v4085 = vxor.u32 %v4079, 2147483648
    %v4086 = vsel %vm4084, %v4071, %v4085
    %vm4087 = vcmp.eq.s32.totalorder %v4082, 2
    %v4088 = vxor.u32 %v4071, 2147483648
    %v4089 = vsel %vm4087, %v4088, %v4079
    %v4090 = vsel %vm4083, %v4086, %v4089
    %v4091 = vsel %vm4080, nan, %v4090
    %v4092 = vmul.f32 %v3781, %v4091
    %v4094 = vsel %vm464, %v3936, 0
    %4096 = vmatpush.msra.mxu0 0.0
    %4097 = vmatpush.msra.mxu0 0.0
    %4098 = vmatpush.msra.mxu0 0.0
    %4099 = vmatpush.msra.mxu0 0.0
    %4100 = vmatpush.msra.mxu0 0.0
    %4101 = vmatpush.msra.mxu0 0.0
    %4102 = vmatpush.msra.mxu0 0.0
    %4103 = vmatpush.msra.mxu0 0.0
    %4104 = vmatpush.msra.mxu0 0.0
    %4105 = vmatpush.msra.mxu0 0.0
    %4106 = vmatpush.msra.mxu0 0.0
    %4107 = vmatpush.msra.mxu0 0.0
    %4108 = vmatpush.msra.mxu0 0.0
    %4109 = vmatpush.msra.mxu0 %v70
    %4110 = vmatpush.msra.mxu0 %v69
    %4111 = vmatpush.msra.mxu0 %v68
    %4112 = vmatmul.f32.gmra.mxu0 %v4094
    %v4113 = vpop.f32.mrf.mxu0
    %v4114 = vadd.f32 0.0, %v4113
    %4115 = vdwg.mxu0
    %v4117 = vsel %vm464, %v4092, 0
    %4119 = vmatpush.msra.mxu0 0.0
    %4120 = vmatpush.msra.mxu0 0.0
    %4121 = vmatpush.msra.mxu0 0.0
    %4122 = vmatpush.msra.mxu0 0.0
    %4123 = vmatpush.msra.mxu0 0.0
    %4124 = vmatpush.msra.mxu0 0.0
    %4125 = vmatpush.msra.mxu0 0.0
    %4126 = vmatpush.msra.mxu0 0.0
    %4127 = vmatpush.msra.mxu0 0.0
    %4128 = vmatpush.msra.mxu0 0.0
    %4129 = vmatpush.msra.mxu0 0.0
    %4130 = vmatpush.msra.mxu0 0.0
    %4131 = vmatpush.msra.mxu0 0.0
    %4132 = vmatpush.msra.mxu0 %v70
    %4133 = vmatpush.msra.mxu0 %v69
    %4134 = vmatpush.msra.mxu0 %v68
    %4135 = vmatmul.f32.gmra.mxu0 %v4117
    %v4136 = vpop.f32.mrf.mxu0
    %v4137 = vadd.f32 0.0, %v4136
    %4138 = vdwg.mxu0
    %4139 = vmatpush.msra.mxu0 0.0
    %4140 = vmatpush.msra.mxu0 0.0
    %4141 = vmatpush.msra.mxu0 0.0
    %4142 = vmatpush.msra.mxu0 0.0
    %4143 = vmatpush.msra.mxu0 0.0
    %4144 = vmatpush.msra.mxu0 0.0
    %4145 = vmatpush.msra.mxu0 0.0
    %4146 = vmatpush.msra.mxu0 0.0
    %4147 = vmatpush.msra.mxu0 0.0
    %4148 = vmatpush.msra.mxu0 0.0
    %4149 = vmatpush.msra.mxu0 0.0
    %4150 = vmatpush.msra.mxu0 0.0
    %4151 = vmatpush.msra.mxu0 0.0
    %4152 = vmatpush.msra.mxu0 0.0
    %4153 = vmatpush.msra.mxu0 0.0
    %4154 = vmatpush.msra.mxu0 %v71
    %4155 = vmatmul.f32.gmra.mxu0 %v3714
    %v4156 = vpop.f32.mrf.mxu0
    %v4157 = vadd.f32 0.0, %v4156
    %4158 = vdwg.mxu0
    %v4159 = vmul.f32 %v4114, %v3707
    %v4160 = vmul.f32 %v4137, %v4157
    %v4161 = vadd.f32 %v4159, %v4160
    %4163 = vrot.lane.b32.xlu0 %v4161, 64
    %v4164 = vpop.permute.xlu0 %4163
    %vm4166 = vcmask 589312
    %4167 = vst.msk [vmem:[#allocation3] sm:$0xff] %vm4166, %v4164
    %v4168 = vsel %vm76, %v4161, 0
    %4170 = vmatpush.msra.mxu0 0.0
    %4171 = vmatpush.msra.mxu0 0.0
    %4172 = vmatpush.msra.mxu0 0.0
    %4173 = vmatpush.msra.mxu0 0.0
    %4174 = vmatpush.msra.mxu0 0.0
    %4175 = vmatpush.msra.mxu0 0.0
    %4176 = vmatpush.msra.mxu0 0.0
    %4177 = vmatpush.msra.mxu0 0.0
    %4178 = vmatpush.msra.mxu0 0.0
    %4179 = vmatpush.msra.mxu0 0.0
    %4180 = vmatpush.msra.mxu0 0.0
    %4181 = vmatpush.msra.mxu0 0.0
    %4182 = vmatpush.msra.mxu0 0.0
    %4183 = vmatpush.msra.mxu0 0.0
    %4184 = vmatpush.msra.mxu0 0.0
    %4185 = vmatpush.msra.mxu0 %v40
    %4186 = vmatmul.f32.gmra.mxu0 %v4168
    %v4187 = vpop.f32.mrf.mxu0
    %v4188 = vadd.f32 %v74, %v4187
    %4189 = vdwg.mxu0
    %v4190 = vtanh.pop %v4188
    %v4192 = vsel %vm104, %v4190, 0
    %4194 = vmatpush.msra.mxu0 0.0
    %4195 = vmatpush.msra.mxu0 0.0
    %4196 = vmatpush.msra.mxu0 0.0
    %4197 = vmatpush.msra.mxu0 0.0
    %4198 = vmatpush.msra.mxu0 %v53
    %4199 = vmatpush.msra.mxu0 %v52
    %4200 = vmatpush.msra.mxu0 %v51
    %4201 = vmatpush.msra.mxu0 %v50
    %4202 = vmatpush.msra.mxu0 %v49
    %4203 = vmatpush.msra.mxu0 %v48
    %4204 = vmatpush.msra.mxu0 %v47
    %4205 = vmatpush.msra.mxu0 %v46
    %4206 = vmatpush.msra.mxu0 %v45
    %4207 = vmatpush.msra.mxu0 %v44
    %4208 = vmatpush.msra.mxu0 %v43
    %4209 = vmatpush.msra.mxu0 %v42
    %4210 = vmatmul.f32.gmra.mxu0 %v4192
    %v4211 = vpop.f32.mrf.mxu0
    %v4212 = vadd.f32 %v102, %v4211
    %4213 = vdwg.mxu0
    %4214 = vmatpush.msra.mxu0 0.0
    %4215 = vmatpush.msra.mxu0 0.0
    %4216 = vmatpush.msra.mxu0 0.0
    %4217 = vmatpush.msra.mxu0 0.0
    %4218 = vmatpush.msra.mxu0 %v66
    %4219 = vmatpush.msra.mxu0 %v65
    %4220 = vmatpush.msra.mxu0 %v64
    %4221 = vmatpush.msra.mxu0 %v63
    %4222 = vmatpush.msra.mxu0 %v62
    %4223 = vmatpush.msra.mxu0 %v61
    %4224 = vmatpush.msra.mxu0 %v60
    %4225 = vmatpush.msra.mxu0 %v59
    %4226 = vmatpush.msra.mxu0 %v58
    %4227 = vmatpush.msra.mxu0 %v57
    %4228 = vmatpush.msra.mxu0 %v56
    %4229 = vmatpush.msra.mxu0 %v55
    %4230 = vmatmul.f32.gmra.mxu0 %v4192
    %v4231 = vpop.f32.mrf.mxu0
    %v4232 = vadd.f32 %v129, %v4231
    %4233 = vdwg.mxu0
    %v4234 = vmul.f32 %v4212, 1.442695
    %v4235 = vpow.pop %v4234
    %v4236 = vand.u32 2147483647, %v4232
    %vm4237 = vcmp.le.f32.partialorder %v4236, 0.7853982
    %vm4238 = vcmp.lt.s32.totalorder %v4232, 0
    %v4239 = vand.u32 %v4232, 2139095040
    %v4240 = vshrl.u32 %v4239, 23
    %v4241 = vsub.s32 %v4240, 127
    %v4242 = vand.u32 2147483647, %v4232
    %v4243 = vand.u32 %v4242, 8388607
    %v4244 = vor.u32 %v4243, 8388608
    %v4245 = vsub.s32 0, %v4244
    %v4246 = vadd.s32 %v4241, 1
    %vm4247 = vcmp.gt.s32.totalorder %v4246, 0
    %v4248 = vsel %vm4247, %v4246, 0
    %v4249 = vshrl.u32 %v4248, 5
    %v4250 = vand.u32 %v4248, 31
    %v4251 = vsub.s32 32, %v4250
    %v4252 = vshrl.u32 683565275, %v4251
    %v4253 = vshll.u32 683565275, %v4250
    %v4254 = vshrl.u32 2475754826, %v4251
    %v4255 = vor.u32 %v4253, %v4254
    %v4256 = vshll.u32 2475754826, %v4250
    %v4257 = vshrl.u32 2131351028, %v4251
    %v4258 = vor.u32 %v4256, %v4257
    %v4259 = vshll.u32 2131351028, %v4250
    %v4260 = vshrl.u32 2102212464, %v4251
    %v4261 = vor.u32 %v4259, %v4260
    %v4262 = vshll.u32 2102212464, %v4250
    %v4263 = vshrl.u32 920167782, %v4251
    %v4264 = vor.u32 %v4262, %v4263
    %v4265 = vshll.u32 920167782, %v4250
    %v4266 = vshrl.u32 1326507024, %v4251
    %v4267 = vor.u32 %v4265, %v4266
    %vm4268 = vcmp.lt.s32.totalorder %v4249, 1
    %vm4269 = vcmp.lt.s32.totalorder %v4249, 2
    %vm4270 = vcmp.lt.s32.totalorder %v4249, 3
    %vm4271 = vcmp.lt.s32.totalorder %v4249, 4
    %v4272 = vsel %vm4268, %v4252, %v4255
    %v4273 = vsel %vm4271, %v4261, 2102212464
    %v4274 = vsel %vm4270, %v4258, %v4273
    %v4275 = vsel %vm4269, %v4272, %v4274
    %v4276 = vsel %vm4268, %v4255, %v4258
    %v4277 = vsel %vm4271, %v4264, 920167782
    %v4278 = vsel %vm4270, %v4261, %v4277
    %v4279 = vsel %vm4269, %v4276, %v4278
    %v4280 = vsel %vm4268, %v4258, %v4261
    %v4281 = vsel %vm4271, %v4267, 1326507024
    %v4282 = vsel %vm4270, %v4264, %v4281
    %v4283 = vsel %vm4269, %v4280, %v4282
    %v4284 = vshll.u32 %v4244, 8
    %v4285 = vand.u32 %v4284, 65535
    %v4286 = vshrl.u32 %v4284, 16
    %v4287 = vand.u32 %v4283, 65535
    %v4288 = vshrl.u32 %v4283, 16
    %v4289 = vmul.u32 %v4285, %v4287
    %v4290 = vmul.u32 %v4285, %v4288
    %v4291 = vmul.u32 %v4286, %v4287
    %v4292 = vmul.u32 %v4286, %v4288
    %v4293 = vshll.u32 %v4290, 16
    %v4294 = vshrl.u32 %v4290, 16
    %v4295 = vshll.u32 %v4291, 16
    %v4296 = vshrl.u32 %v4291, 16
    %vm4297 = vc.u32 %v4289, %v4293
    %v4298 = vsel %vm4297, 1, 0
    %v4299 = vadd.s32 %v4289, %v4293
    %v4300 = vadd.s32 %v4292, %v4298
    %vm4301 = vc.u32 %v4299, %v4295
    %v4302 = vsel %vm4301, 1, 0
    %v4303 = vadd.s32 %v4299, %v4295
    %v4304 = vadd.s32 %v4300, %v4302
    %v4305 = vadd.s32 %v4304, %v4294
    %v4306 = vadd.s32 %v4305, %v4296
    %v4307 = vand.u32 %v4284, 65535
    %v4308 = vshrl.u32 %v4284, 16
    %v4309 = vand.u32 %v4279, 65535
    %v4310 = vshrl.u32 %v4279, 16
    %v4311 = vmul.u32 %v4307, %v4309
    %v4312 = vmul.u32 %v4307, %v4310
    %v4313 = vmul.u32 %v4308, %v4309
    %v4314 = vmul.u32 %v4308, %v4310
    %v4315 = vshll.u32 %v4312, 16
    %v4316 = vshrl.u32 %v4312, 16
    %v4317 = vshll.u32 %v4313, 16
    %v4318 = vshrl.u32 %v4313, 16
    %vm4319 = vc.u32 %v4311, %v4315
    %v4320 = vsel %vm4319, 1, 0
    %v4321 = vadd.s32 %v4311, %v4315
    %v4322 = vadd.s32 %v4314, %v4320
    %vm4323 = vc.u32 %v4321, %v4317
    %v4324 = vsel %vm4323, 1, 0
    %v4325 = vadd.s32 %v4321, %v4317
    %v4326 = vadd.s32 %v4322, %v4324
    %v4327 = vadd.s32 %v4326, %v4316
    %v4328 = vadd.s32 %v4327, %v4318
    %v4329 = vmul.u32 %v4284, %v4275
    %v4330 = vadd.s32 %v4306, %v4325
    %vm4331 = vc.u32 %v4306, %v4325
    %v4332 = vadd.s32 %v4328, 1
    %v4333 = vsel %vm4331, %v4332, %v4328
    %v4334 = vadd.s32 %v4329, %v4333
    %v4335 = vadd.s32 %v4334, 536870912
    %v4336 = vshrl.u32 %v4335, 30
    %v4337 = vshll.u32 %v4336, 30
    %v4338 = vsub.s32 %v4334, %v4337
    %vm4339 = vcmp.lt.s32.totalorder %v4338, 0
    %v4340 = vsub.s32 0, %v4338
    %v4341 = vsel %vm4339, %v4340, %v4338
    %v4342 = vclz %v4341
    %v4343 = vsub.s32 %v4342, 2
    %vm4344 = vcmp.gt.s32.totalorder 0, %v4343
    %v4345 = vsel %vm4344, 0, %v4343
    %v4346 = vsub.s32 32, %v4345
    %v4347 = vshll.u32 %v4338, %v4345
    %v4348 = vshrl.u32 %v4330, %v4346
    %v4349 = vor.u32 %v4347, %v4348
    %v4350 = vsub.s32 4294967266, %v4345
    %v4351 = vadd.s32 %v4350, 127
    %v4352 = vshll.u32 %v4351, 23
    %v4353 = vor.u32 4788187, %v4352
    %v4354 = vand.u32 2147483647, %v4353
    %v4356 = vcvt.s32.f32 %v4349
    %v4357 = vmul.f32 %v4356, %v4354
    %v4358 = vxor.u32 %v4357, 2147483648
    %v4359 = vsel %vm4238, %v4358, %v4357
    %v4360 = vsub.s32 4, %v4336
    %v4361 = vsel %vm4238, %v4360, %v4336
    %v4362 = vsel %vm4237, %v4232, %v4359
    %v4363 = vsel %vm4237, 0, %v4361
    %v4364 = vmul.f32 %v4362, %v4362
    %v4365 = vmul.f32 %v4364, -0.001358992
    %v4366 = vadd.f32 %v4365, 0.041655596
    %v4367 = vmul.f32 %v4364, %v4366
    %v4368 = vadd.f32 %v4367, -0.4999988
    %v4369 = vmul.f32 %v4364, %v4368
    %v4370 = vadd.f32 1.0, %v4369
    %v4371 = vmul.f32 %v4362, %v4362
    %v4372 = vmul.f32 %v4371, -0.00019511016
    %v4373 = vadd.f32 %v4372, 0.008332121
    %v4374 = vmul.f32 %v4371, %v4373
    %v4375 = vadd.f32 %v4374, -0.16666654
    %v4376 = vmul.f32 %v4371, %v4375
    %v4377 = vadd.f32 %v4376, 1.0
    %v4378 = vmul.f32 %v4377, %v4362
    %vm4379 = vweird.f32 %v4232
    %v4380 = vand.u32 %v4363, 3
    %vm4381 = vcmp.lt.s32.totalorder %v4380, 2
    %vm4382 = vcmp.eq.s32.totalorder %v4380, 0
    %v4383 = vxor.u32 %v4378, 2147483648
    %v4384 = vsel %vm4382, %v4370, %v4383
    %vm4385 = vcmp.eq.s32.totalorder %v4380, 2
    %v4386 = vxor.u32 %v4370, 2147483648
    %v4387 = vsel %vm4385, %v4386, %v4378
    %v4388 = vsel %vm4381, %v4384, %v4387
    %v4389 = vsel %vm4379, nan, %v4388
    %v4390 = vmul.f32 %v4235, %v4389
    %v4391 = vand.u32 2147483647, %v4232
    %vm4392 = vcmp.le.f32.partialorder %v4391, 0.7853982
    %vm4393 = vcmp.lt.s32.totalorder %v4232, 0
    %v4394 = vand.u32 %v4232, 2139095040
    %v4395 = vshrl.u32 %v4394, 23
    %v4396 = vsub.s32 %v4395, 127
    %v4397 = vand.u32 2147483647, %v4232
    %v4398 = vand.u32 %v4397, 8388607
    %v4399 = vor.u32 %v4398, 8388608
    %v4400 = vsub.s32 0, %v4399
    %v4401 = vadd.s32 %v4396, 1
    %vm4402 = vcmp.gt.s32.totalorder %v4401, 0
    %v4403 = vsel %vm4402, %v4401, 0
    %v4404 = vshrl.u32 %v4403, 5
    %v4405 = vand.u32 %v4403, 31
    %v4406 = vsub.s32 32, %v4405
    %v4407 = vshrl.u32 683565275, %v4406
    %v4408 = vshll.u32 683565275, %v4405
    %v4409 = vshrl.u32 2475754826, %v4406
    %v4410 = vor.u32 %v4408, %v4409
    %v4411 = vshll.u32 2475754826, %v4405
    %v4412 = vshrl.u32 2131351028, %v4406
    %v4413 = vor.u32 %v4411, %v4412
    %v4414 = vshll.u32 2131351028, %v4405
    %v4415 = vshrl.u32 2102212464, %v4406
    %v4416 = vor.u32 %v4414, %v4415
    %v4417 = vshll.u32 2102212464, %v4405
    %v4418 = vshrl.u32 920167782, %v4406
    %v4419 = vor.u32 %v4417, %v4418
    %v4420 = vshll.u32 920167782, %v4405
    %v4421 = vshrl.u32 1326507024, %v4406
    %v4422 = vor.u32 %v4420, %v4421
    %vm4423 = vcmp.lt.s32.totalorder %v4404, 1
    %vm4424 = vcmp.lt.s32.totalorder %v4404, 2
    %vm4425 = vcmp.lt.s32.totalorder %v4404, 3
    %vm4426 = vcmp.lt.s32.totalorder %v4404, 4
    %v4427 = vsel %vm4423, %v4407, %v4410
    %v4428 = vsel %vm4426, %v4416, 2102212464
    %v4429 = vsel %vm4425, %v4413, %v4428
    %v4430 = vsel %vm4424, %v4427, %v4429
    %v4431 = vsel %vm4423, %v4410, %v4413
    %v4432 = vsel %vm4426, %v4419, 920167782
    %v4433 = vsel %vm4425, %v4416, %v4432
    %v4434 = vsel %vm4424, %v4431, %v4433
    %v4435 = vsel %vm4423, %v4413, %v4416
    %v4436 = vsel %vm4426, %v4422, 1326507024
    %v4437 = vsel %vm4425, %v4419, %v4436
    %v4438 = vsel %vm4424, %v4435, %v4437
    %v4439 = vshll.u32 %v4399, 8
    %v4440 = vand.u32 %v4439, 65535
    %v4441 = vshrl.u32 %v4439, 16
    %v4442 = vand.u32 %v4438, 65535
    %v4443 = vshrl.u32 %v4438, 16
    %v4444 = vmul.u32 %v4440, %v4442
    %v4445 = vmul.u32 %v4440, %v4443
    %v4446 = vmul.u32 %v4441, %v4442
    %v4447 = vmul.u32 %v4441, %v4443
    %v4448 = vshll.u32 %v4445, 16
    %v4449 = vshrl.u32 %v4445, 16
    %v4450 = vshll.u32 %v4446, 16
    %v4451 = vshrl.u32 %v4446, 16
    %vm4452 = vc.u32 %v4444, %v4448
    %v4453 = vsel %vm4452, 1, 0
    %v4454 = vadd.s32 %v4444, %v4448
    %v4455 = vadd.s32 %v4447, %v4453
    %vm4456 = vc.u32 %v4454, %v4450
    %v4457 = vsel %vm4456, 1, 0
    %v4458 = vadd.s32 %v4454, %v4450
    %v4459 = vadd.s32 %v4455, %v4457
    %v4460 = vadd.s32 %v4459, %v4449
    %v4461 = vadd.s32 %v4460, %v4451
    %v4462 = vand.u32 %v4439, 65535
    %v4463 = vshrl.u32 %v4439, 16
    %v4464 = vand.u32 %v4434, 65535
    %v4465 = vshrl.u32 %v4434, 16
    %v4466 = vmul.u32 %v4462, %v4464
    %v4467 = vmul.u32 %v4462, %v4465
    %v4468 = vmul.u32 %v4463, %v4464
    %v4469 = vmul.u32 %v4463, %v4465
    %v4470 = vshll.u32 %v4467, 16
    %v4471 = vshrl.u32 %v4467, 16
    %v4472 = vshll.u32 %v4468, 16
    %v4473 = vshrl.u32 %v4468, 16
    %vm4474 = vc.u32 %v4466, %v4470
    %v4475 = vsel %vm4474, 1, 0
    %v4476 = vadd.s32 %v4466, %v4470
    %v4477 = vadd.s32 %v4469, %v4475
    %vm4478 = vc.u32 %v4476, %v4472
    %v4479 = vsel %vm4478, 1, 0
    %v4480 = vadd.s32 %v4476, %v4472
    %v4481 = vadd.s32 %v4477, %v4479
    %v4482 = vadd.s32 %v4481, %v4471
    %v4483 = vadd.s32 %v4482, %v4473
    %v4484 = vmul.u32 %v4439, %v4430
    %v4485 = vadd.s32 %v4461, %v4480
    %vm4486 = vc.u32 %v4461, %v4480
    %v4487 = vadd.s32 %v4483, 1
    %v4488 = vsel %vm4486, %v4487, %v4483
    %v4489 = vadd.s32 %v4484, %v4488
    %v4490 = vadd.s32 %v4489, 536870912
    %v4491 = vshrl.u32 %v4490, 30
    %v4492 = vshll.u32 %v4491, 30
    %v4493 = vsub.s32 %v4489, %v4492
    %vm4494 = vcmp.lt.s32.totalorder %v4493, 0
    %v4495 = vsub.s32 0, %v4493
    %v4496 = vsel %vm4494, %v4495, %v4493
    %v4497 = vclz %v4496
    %v4498 = vsub.s32 %v4497, 2
    %vm4499 = vcmp.gt.s32.totalorder 0, %v4498
    %v4500 = vsel %vm4499, 0, %v4498
    %v4501 = vsub.s32 32, %v4500
    %v4502 = vshll.u32 %v4493, %v4500
    %v4503 = vshrl.u32 %v4485, %v4501
    %v4504 = vor.u32 %v4502, %v4503
    %v4505 = vsub.s32 4294967266, %v4500
    %v4506 = vadd.s32 %v4505, 127
    %v4507 = vshll.u32 %v4506, 23
    %v4508 = vor.u32 4788187, %v4507
    %v4509 = vand.u32 2147483647, %v4508
    %v4511 = vcvt.s32.f32 %v4504
    %v4512 = vmul.f32 %v4511, %v4509
    %v4513 = vxor.u32 %v4512, 2147483648
    %v4514 = vsel %vm4393, %v4513, %v4512
    %v4515 = vsub.s32 4, %v4491
    %v4516 = vsel %vm4393, %v4515, %v4491
    %v4517 = vsel %vm4392, %v4232, %v4514
    %v4518 = vsel %vm4392, 0, %v4516
    %v4519 = vmul.f32 %v4517, %v4517
    %v4520 = vmul.f32 %v4519, -0.001358992
    %v4521 = vadd.f32 %v4520, 0.041655596
    %v4522 = vmul.f32 %v4519, %v4521
    %v4523 = vadd.f32 %v4522, -0.4999988
    %v4524 = vmul.f32 %v4519, %v4523
    %v4525 = vadd.f32 1.0, %v4524
    %v4526 = vmul.f32 %v4517, %v4517
    %v4527 = vmul.f32 %v4526, -0.00019511016
    %v4528 = vadd.f32 %v4527, 0.008332121
    %v4529 = vmul.f32 %v4526, %v4528
    %v4530 = vadd.f32 %v4529, -0.16666654
    %v4531 = vmul.f32 %v4526, %v4530
    %v4532 = vadd.f32 %v4531, 1.0
    %v4533 = vmul.f32 %v4532, %v4517
    %vm4534 = vweird.f32 %v4232
    %v4535 = vadd.s32 %v4518, 3
    %v4536 = vand.u32 %v4535, 3
    %vm4537 = vcmp.lt.s32.totalorder %v4536, 2
    %vm4538 = vcmp.eq.s32.totalorder %v4536, 0
    %v4539 = vxor.u32 %v4533, 2147483648
    %v4540 = vsel %vm4538, %v4525, %v4539
    %vm4541 = vcmp.eq.s32.totalorder %v4536, 2
    %v4542 = vxor.u32 %v4525, 2147483648
    %v4543 = vsel %vm4541, %v4542, %v4533
    %v4544 = vsel %vm4537, %v4540, %v4543
    %v4545 = vsel %vm4534, nan, %v4544
    %v4546 = vmul.f32 %v4235, %v4545
    %v4548 = vsel %vm464, %v4390, 0
    %4550 = vmatpush.msra.mxu0 0.0
    %4551 = vmatpush.msra.mxu0 0.0
    %4552 = vmatpush.msra.mxu0 0.0
    %4553 = vmatpush.msra.mxu0 0.0
    %4554 = vmatpush.msra.mxu0 0.0
    %4555 = vmatpush.msra.mxu0 0.0
    %4556 = vmatpush.msra.mxu0 0.0
    %4557 = vmatpush.msra.mxu0 0.0
    %4558 = vmatpush.msra.mxu0 0.0
    %4559 = vmatpush.msra.mxu0 0.0
    %4560 = vmatpush.msra.mxu0 0.0
    %4561 = vmatpush.msra.mxu0 0.0
    %4562 = vmatpush.msra.mxu0 0.0
    %4563 = vmatpush.msra.mxu0 %v70
    %4564 = vmatpush.msra.mxu0 %v69
    %4565 = vmatpush.msra.mxu0 %v68
    %4566 = vmatmul.f32.gmra.mxu0 %v4548
    %v4567 = vpop.f32.mrf.mxu0
    %v4568 = vadd.f32 0.0, %v4567
    %4569 = vdwg.mxu0
    %v4571 = vsel %vm464, %v4546, 0
    %4573 = vmatpush.msra.mxu0 0.0
    %4574 = vmatpush.msra.mxu0 0.0
    %4575 = vmatpush.msra.mxu0 0.0
    %4576 = vmatpush.msra.mxu0 0.0
    %4577 = vmatpush.msra.mxu0 0.0
    %4578 = vmatpush.msra.mxu0 0.0
    %4579 = vmatpush.msra.mxu0 0.0
    %4580 = vmatpush.msra.mxu0 0.0
    %4581 = vmatpush.msra.mxu0 0.0
    %4582 = vmatpush.msra.mxu0 0.0
    %4583 = vmatpush.msra.mxu0 0.0
    %4584 = vmatpush.msra.mxu0 0.0
    %4585 = vmatpush.msra.mxu0 0.0
    %4586 = vmatpush.msra.mxu0 %v70
    %4587 = vmatpush.msra.mxu0 %v69
    %4588 = vmatpush.msra.mxu0 %v68
    %4589 = vmatmul.f32.gmra.mxu0 %v4571
    %v4590 = vpop.f32.mrf.mxu0
    %v4591 = vadd.f32 0.0, %v4590
    %4592 = vdwg.mxu0
    %4593 = vmatpush.msra.mxu0 0.0
    %4594 = vmatpush.msra.mxu0 0.0
    %4595 = vmatpush.msra.mxu0 0.0
    %4596 = vmatpush.msra.mxu0 0.0
    %4597 = vmatpush.msra.mxu0 0.0
    %4598 = vmatpush.msra.mxu0 0.0
    %4599 = vmatpush.msra.mxu0 0.0
    %4600 = vmatpush.msra.mxu0 0.0
    %4601 = vmatpush.msra.mxu0 0.0
    %4602 = vmatpush.msra.mxu0 0.0
    %4603 = vmatpush.msra.mxu0 0.0
    %4604 = vmatpush.msra.mxu0 0.0
    %4605 = vmatpush.msra.mxu0 0.0
    %4606 = vmatpush.msra.mxu0 0.0
    %4607 = vmatpush.msra.mxu0 0.0
    %4608 = vmatpush.msra.mxu0 %v71
    %4609 = vmatmul.f32.gmra.mxu0 %v4168
    %v4610 = vpop.f32.mrf.mxu0
    %v4611 = vadd.f32 0.0, %v4610
    %4612 = vdwg.mxu0
    %v4613 = vmul.f32 %v4568, %v4161
    %v4614 = vmul.f32 %v4591, %v4611
    %v4615 = vadd.f32 %v4613, %v4614
    %4617 = vrot.lane.b32.xlu0 %v4615, 72
    %v4618 = vpop.permute.xlu0 %4617
    %vm4620 = vcmask 654912
    %4621 = vst.msk [vmem:[#allocation3] sm:$0xff] %vm4620, %v4618
    %v4622 = vsel %vm76, %v4615, 0
    %4624 = vmatpush.msra.mxu0 0.0
    %4625 = vmatpush.msra.mxu0 0.0
    %4626 = vmatpush.msra.mxu0 0.0
    %4627 = vmatpush.msra.mxu0 0.0
    %4628 = vmatpush.msra.mxu0 0.0
    %4629 = vmatpush.msra.mxu0 0.0
    %4630 = vmatpush.msra.mxu0 0.0
    %4631 = vmatpush.msra.mxu0 0.0
    %4632 = vmatpush.msra.mxu0 0.0
    %4633 = vmatpush.msra.mxu0 0.0
    %4634 = vmatpush.msra.mxu0 0.0
    %4635 = vmatpush.msra.mxu0 0.0
    %4636 = vmatpush.msra.mxu0 0.0
    %4637 = vmatpush.msra.mxu0 0.0
    %4638 = vmatpush.msra.mxu0 0.0
    %4639 = vmatpush.msra.mxu0 %v40
    %4640 = vmatmul.f32.gmra.mxu0 %v4622
    %v4641 = vpop.f32.mrf.mxu0
    %v4642 = vadd.f32 %v74, %v4641
    %4643 = vdwg.mxu0
    %v4644 = vtanh.pop %v4642
    %v4646 = vsel %vm104, %v4644, 0
    %4648 = vmatpush.msra.mxu0 0.0
    %4649 = vmatpush.msra.mxu0 0.0
    %4650 = vmatpush.msra.mxu0 0.0
    %4651 = vmatpush.msra.mxu0 0.0
    %4652 = vmatpush.msra.mxu0 %v53
    %4653 = vmatpush.msra.mxu0 %v52
    %4654 = vmatpush.msra.mxu0 %v51
    %4655 = vmatpush.msra.mxu0 %v50
    %4656 = vmatpush.msra.mxu0 %v49
    %4657 = vmatpush.msra.mxu0 %v48
    %4658 = vmatpush.msra.mxu0 %v47
    %4659 = vmatpush.msra.mxu0 %v46
    %4660 = vmatpush.msra.mxu0 %v45
    %4661 = vmatpush.msra.mxu0 %v44
    %4662 = vmatpush.msra.mxu0 %v43
    %4663 = vmatpush.msra.mxu0 %v42
    %4664 = vmatmul.f32.gmra.mxu0 %v4646
    %v4665 = vpop.f32.mrf.mxu0
    %v4666 = vadd.f32 %v102, %v4665
    %4667 = vdwg.mxu0
    %4668 = vmatpush.msra.mxu0 0.0
    %4669 = vmatpush.msra.mxu0 0.0
    %4670 = vmatpush.msra.mxu0 0.0
    %4671 = vmatpush.msra.mxu0 0.0
    %4672 = vmatpush.msra.mxu0 %v66
    %4673 = vmatpush.msra.mxu0 %v65
    %4674 = vmatpush.msra.mxu0 %v64
    %4675 = vmatpush.msra.mxu0 %v63
    %4676 = vmatpush.msra.mxu0 %v62
    %4677 = vmatpush.msra.mxu0 %v61
    %4678 = vmatpush.msra.mxu0 %v60
    %4679 = vmatpush.msra.mxu0 %v59
    %4680 = vmatpush.msra.mxu0 %v58
    %4681 = vmatpush.msra.mxu0 %v57
    %4682 = vmatpush.msra.mxu0 %v56
    %4683 = vmatpush.msra.mxu0 %v55
    %4684 = vmatmul.f32.gmra.mxu0 %v4646
    %v4685 = vpop.f32.mrf.mxu0
    %v4686 = vadd.f32 %v129, %v4685
    %4687 = vdwg.mxu0
    %v4688 = vmul.f32 %v4666, 1.442695
    %v4689 = vpow.pop %v4688
    %v4690 = vand.u32 2147483647, %v4686
    %vm4691 = vcmp.le.f32.partialorder %v4690, 0.7853982
    %vm4692 = vcmp.lt.s32.totalorder %v4686, 0
    %v4693 = vand.u32 %v4686, 2139095040
    %v4694 = vshrl.u32 %v4693, 23
    %v4695 = vsub.s32 %v4694, 127
    %v4696 = vand.u32 2147483647, %v4686
    %v4697 = vand.u32 %v4696, 8388607
    %v4698 = vor.u32 %v4697, 8388608
    %v4699 = vsub.s32 0, %v4698
    %v4700 = vadd.s32 %v4695, 1
    %vm4701 = vcmp.gt.s32.totalorder %v4700, 0
    %v4702 = vsel %vm4701, %v4700, 0
    %v4703 = vshrl.u32 %v4702, 5
    %v4704 = vand.u32 %v4702, 31
    %v4705 = vsub.s32 32, %v4704
    %v4706 = vshrl.u32 683565275, %v4705
    %v4707 = vshll.u32 683565275, %v4704
    %v4708 = vshrl.u32 2475754826, %v4705
    %v4709 = vor.u32 %v4707, %v4708
    %v4710 = vshll.u32 2475754826, %v4704
    %v4711 = vshrl.u32 2131351028, %v4705
    %v4712 = vor.u32 %v4710, %v4711
    %v4713 = vshll.u32 2131351028, %v4704
    %v4714 = vshrl.u32 2102212464, %v4705
    %v4715 = vor.u32 %v4713, %v4714
    %v4716 = vshll.u32 2102212464, %v4704
    %v4717 = vshrl.u32 920167782, %v4705
    %v4718 = vor.u32 %v4716, %v4717
    %v4719 = vshll.u32 920167782, %v4704
    %v4720 = vshrl.u32 1326507024, %v4705
    %v4721 = vor.u32 %v4719, %v4720
    %vm4722 = vcmp.lt.s32.totalorder %v4703, 1
    %vm4723 = vcmp.lt.s32.totalorder %v4703, 2
    %vm4724 = vcmp.lt.s32.totalorder %v4703, 3
    %vm4725 = vcmp.lt.s32.totalorder %v4703, 4
    %v4726 = vsel %vm4722, %v4706, %v4709
    %v4727 = vsel %vm4725, %v4715, 2102212464
    %v4728 = vsel %vm4724, %v4712, %v4727
    %v4729 = vsel %vm4723, %v4726, %v4728
    %v4730 = vsel %vm4722, %v4709, %v4712
    %v4731 = vsel %vm4725, %v4718, 920167782
    %v4732 = vsel %vm4724, %v4715, %v4731
    %v4733 = vsel %vm4723, %v4730, %v4732
    %v4734 = vsel %vm4722, %v4712, %v4715
    %v4735 = vsel %vm4725, %v4721, 1326507024
    %v4736 = vsel %vm4724, %v4718, %v4735
    %v4737 = vsel %vm4723, %v4734, %v4736
    %v4738 = vshll.u32 %v4698, 8
    %v4739 = vand.u32 %v4738, 65535
    %v4740 = vshrl.u32 %v4738, 16
    %v4741 = vand.u32 %v4737, 65535
    %v4742 = vshrl.u32 %v4737, 16
    %v4743 = vmul.u32 %v4739, %v4741
    %v4744 = vmul.u32 %v4739, %v4742
    %v4745 = vmul.u32 %v4740, %v4741
    %v4746 = vmul.u32 %v4740, %v4742
    %v4747 = vshll.u32 %v4744, 16
    %v4748 = vshrl.u32 %v4744, 16
    %v4749 = vshll.u32 %v4745, 16
    %v4750 = vshrl.u32 %v4745, 16
    %vm4751 = vc.u32 %v4743, %v4747
    %v4752 = vsel %vm4751, 1, 0
    %v4753 = vadd.s32 %v4743, %v4747
    %v4754 = vadd.s32 %v4746, %v4752
    %vm4755 = vc.u32 %v4753, %v4749
    %v4756 = vsel %vm4755, 1, 0
    %v4757 = vadd.s32 %v4753, %v4749
    %v4758 = vadd.s32 %v4754, %v4756
    %v4759 = vadd.s32 %v4758, %v4748
    %v4760 = vadd.s32 %v4759, %v4750
    %v4761 = vand.u32 %v4738, 65535
    %v4762 = vshrl.u32 %v4738, 16
    %v4763 = vand.u32 %v4733, 65535
    %v4764 = vshrl.u32 %v4733, 16
    %v4765 = vmul.u32 %v4761, %v4763
    %v4766 = vmul.u32 %v4761, %v4764
    %v4767 = vmul.u32 %v4762, %v4763
    %v4768 = vmul.u32 %v4762, %v4764
    %v4769 = vshll.u32 %v4766, 16
    %v4770 = vshrl.u32 %v4766, 16
    %v4771 = vshll.u32 %v4767, 16
    %v4772 = vshrl.u32 %v4767, 16
    %vm4773 = vc.u32 %v4765, %v4769
    %v4774 = vsel %vm4773, 1, 0
    %v4775 = vadd.s32 %v4765, %v4769
    %v4776 = vadd.s32 %v4768, %v4774
    %vm4777 = vc.u32 %v4775, %v4771
    %v4778 = vsel %vm4777, 1, 0
    %v4779 = vadd.s32 %v4775, %v4771
    %v4780 = vadd.s32 %v4776, %v4778
    %v4781 = vadd.s32 %v4780, %v4770
    %v4782 = vadd.s32 %v4781, %v4772
    %v4783 = vmul.u32 %v4738, %v4729
    %v4784 = vadd.s32 %v4760, %v4779
    %vm4785 = vc.u32 %v4760, %v4779
    %v4786 = vadd.s32 %v4782, 1
    %v4787 = vsel %vm4785, %v4786, %v4782
    %v4788 = vadd.s32 %v4783, %v4787
    %v4789 = vadd.s32 %v4788, 536870912
    %v4790 = vshrl.u32 %v4789, 30
    %v4791 = vshll.u32 %v4790, 30
    %v4792 = vsub.s32 %v4788, %v4791
    %vm4793 = vcmp.lt.s32.totalorder %v4792, 0
    %v4794 = vsub.s32 0, %v4792
    %v4795 = vsel %vm4793, %v4794, %v4792
    %v4796 = vclz %v4795
    %v4797 = vsub.s32 %v4796, 2
    %vm4798 = vcmp.gt.s32.totalorder 0, %v4797
    %v4799 = vsel %vm4798, 0, %v4797
    %v4800 = vsub.s32 32, %v4799
    %v4801 = vshll.u32 %v4792, %v4799
    %v4802 = vshrl.u32 %v4784, %v4800
    %v4803 = vor.u32 %v4801, %v4802
    %v4804 = vsub.s32 4294967266, %v4799
    %v4805 = vadd.s32 %v4804, 127
    %v4806 = vshll.u32 %v4805, 23
    %v4807 = vor.u32 4788187, %v4806
    %v4808 = vand.u32 2147483647, %v4807
    %v4810 = vcvt.s32.f32 %v4803
    %v4811 = vmul.f32 %v4810, %v4808
    %v4812 = vxor.u32 %v4811, 2147483648
    %v4813 = vsel %vm4692, %v4812, %v4811
    %v4814 = vsub.s32 4, %v4790
    %v4815 = vsel %vm4692, %v4814, %v4790
    %v4816 = vsel %vm4691, %v4686, %v4813
    %v4817 = vsel %vm4691, 0, %v4815
    %v4818 = vmul.f32 %v4816, %v4816
    %v4819 = vmul.f32 %v4818, -0.001358992
    %v4820 = vadd.f32 %v4819, 0.041655596
    %v4821 = vmul.f32 %v4818, %v4820
    %v4822 = vadd.f32 %v4821, -0.4999988
    %v4823 = vmul.f32 %v4818, %v4822
    %v4824 = vadd.f32 1.0, %v4823
    %v4825 = vmul.f32 %v4816, %v4816
    %v4826 = vmul.f32 %v4825, -0.00019511016
    %v4827 = vadd.f32 %v4826, 0.008332121
    %v4828 = vmul.f32 %v4825, %v4827
    %v4829 = vadd.f32 %v4828, -0.16666654
    %v4830 = vmul.f32 %v4825, %v4829
    %v4831 = vadd.f32 %v4830, 1.0
    %v4832 = vmul.f32 %v4831, %v4816
    %vm4833 = vweird.f32 %v4686
    %v4834 = vand.u32 %v4817, 3
    %vm4835 = vcmp.lt.s32.totalorder %v4834, 2
    %vm4836 = vcmp.eq.s32.totalorder %v4834, 0
    %v4837 = vxor.u32 %v4832, 2147483648
    %v4838 = vsel %vm4836, %v4824, %v4837
    %vm4839 = vcmp.eq.s32.totalorder %v4834, 2
    %v4840 = vxor.u32 %v4824, 2147483648
    %v4841 = vsel %vm4839, %v4840, %v4832
    %v4842 = vsel %vm4835, %v4838, %v4841
    %v4843 = vsel %vm4833, nan, %v4842
    %v4844 = vmul.f32 %v4689, %v4843
    %v4845 = vand.u32 2147483647, %v4686
    %vm4846 = vcmp.le.f32.partialorder %v4845, 0.7853982
    %vm4847 = vcmp.lt.s32.totalorder %v4686, 0
    %v4848 = vand.u32 %v4686, 2139095040
    %v4849 = vshrl.u32 %v4848, 23
    %v4850 = vsub.s32 %v4849, 127
    %v4851 = vand.u32 2147483647, %v4686
    %v4852 = vand.u32 %v4851, 8388607
    %v4853 = vor.u32 %v4852, 8388608
    %v4854 = vsub.s32 0, %v4853
    %v4855 = vadd.s32 %v4850, 1
    %vm4856 = vcmp.gt.s32.totalorder %v4855, 0
    %v4857 = vsel %vm4856, %v4855, 0
    %v4858 = vshrl.u32 %v4857, 5
    %v4859 = vand.u32 %v4857, 31
    %v4860 = vsub.s32 32, %v4859
    %v4861 = vshrl.u32 683565275, %v4860
    %v4862 = vshll.u32 683565275, %v4859
    %v4863 = vshrl.u32 2475754826, %v4860
    %v4864 = vor.u32 %v4862, %v4863
    %v4865 = vshll.u32 2475754826, %v4859
    %v4866 = vshrl.u32 2131351028, %v4860
    %v4867 = vor.u32 %v4865, %v4866
    %v4868 = vshll.u32 2131351028, %v4859
    %v4869 = vshrl.u32 2102212464, %v4860
    %v4870 = vor.u32 %v4868, %v4869
    %v4871 = vshll.u32 2102212464, %v4859
    %v4872 = vshrl.u32 920167782, %v4860
    %v4873 = vor.u32 %v4871, %v4872
    %v4874 = vshll.u32 920167782, %v4859
    %v4875 = vshrl.u32 1326507024, %v4860
    %v4876 = vor.u32 %v4874, %v4875
    %vm4877 = vcmp.lt.s32.totalorder %v4858, 1
    %vm4878 = vcmp.lt.s32.totalorder %v4858, 2
    %vm4879 = vcmp.lt.s32.totalorder %v4858, 3
    %vm4880 = vcmp.lt.s32.totalorder %v4858, 4
    %v4881 = vsel %vm4877, %v4861, %v4864
    %v4882 = vsel %vm4880, %v4870, 2102212464
    %v4883 = vsel %vm4879, %v4867, %v4882
    %v4884 = vsel %vm4878, %v4881, %v4883
    %v4885 = vsel %vm4877, %v4864, %v4867
    %v4886 = vsel %vm4880, %v4873, 920167782
    %v4887 = vsel %vm4879, %v4870, %v4886
    %v4888 = vsel %vm4878, %v4885, %v4887
    %v4889 = vsel %vm4877, %v4867, %v4870
    %v4890 = vsel %vm4880, %v4876, 1326507024
    %v4891 = vsel %vm4879, %v4873, %v4890
    %v4892 = vsel %vm4878, %v4889, %v4891
    %v4893 = vshll.u32 %v4853, 8
    %v4894 = vand.u32 %v4893, 65535
    %v4895 = vshrl.u32 %v4893, 16
    %v4896 = vand.u32 %v4892, 65535
    %v4897 = vshrl.u32 %v4892, 16
    %v4898 = vmul.u32 %v4894, %v4896
    %v4899 = vmul.u32 %v4894, %v4897
    %v4900 = vmul.u32 %v4895, %v4896
    %v4901 = vmul.u32 %v4895, %v4897
    %v4902 = vshll.u32 %v4899, 16
    %v4903 = vshrl.u32 %v4899, 16
    %v4904 = vshll.u32 %v4900, 16
    %v4905 = vshrl.u32 %v4900, 16
    %vm4906 = vc.u32 %v4898, %v4902
    %v4907 = vsel %vm4906, 1, 0
    %v4908 = vadd.s32 %v4898, %v4902
    %v4909 = vadd.s32 %v4901, %v4907
    %vm4910 = vc.u32 %v4908, %v4904
    %v4911 = vsel %vm4910, 1, 0
    %v4912 = vadd.s32 %v4908, %v4904
    %v4913 = vadd.s32 %v4909, %v4911
    %v4914 = vadd.s32 %v4913, %v4903
    %v4915 = vadd.s32 %v4914, %v4905
    %v4916 = vand.u32 %v4893, 65535
    %v4917 = vshrl.u32 %v4893, 16
    %v4918 = vand.u32 %v4888, 65535
    %v4919 = vshrl.u32 %v4888, 16
    %v4920 = vmul.u32 %v4916, %v4918
    %v4921 = vmul.u32 %v4916, %v4919
    %v4922 = vmul.u32 %v4917, %v4918
    %v4923 = vmul.u32 %v4917, %v4919
    %v4924 = vshll.u32 %v4921, 16
    %v4925 = vshrl.u32 %v4921, 16
    %v4926 = vshll.u32 %v4922, 16
    %v4927 = vshrl.u32 %v4922, 16
    %vm4928 = vc.u32 %v4920, %v4924
    %v4929 = vsel %vm4928, 1, 0
    %v4930 = vadd.s32 %v4920, %v4924
    %v4931 = vadd.s32 %v4923, %v4929
    %vm4932 = vc.u32 %v4930, %v4926
    %v4933 = vsel %vm4932, 1, 0
    %v4934 = vadd.s32 %v4930, %v4926
    %v4935 = vadd.s32 %v4931, %v4933
    %v4936 = vadd.s32 %v4935, %v4925
    %v4937 = vadd.s32 %v4936, %v4927
    %v4938 = vmul.u32 %v4893, %v4884
    %v4939 = vadd.s32 %v4915, %v4934
    %vm4940 = vc.u32 %v4915, %v4934
    %v4941 = vadd.s32 %v4937, 1
    %v4942 = vsel %vm4940, %v4941, %v4937
    %v4943 = vadd.s32 %v4938, %v4942
    %v4944 = vadd.s32 %v4943, 536870912
    %v4945 = vshrl.u32 %v4944, 30
    %v4946 = vshll.u32 %v4945, 30
    %v4947 = vsub.s32 %v4943, %v4946
    %vm4948 = vcmp.lt.s32.totalorder %v4947, 0
    %v4949 = vsub.s32 0, %v4947
    %v4950 = vsel %vm4948, %v4949, %v4947
    %v4951 = vclz %v4950
    %v4952 = vsub.s32 %v4951, 2
    %vm4953 = vcmp.gt.s32.totalorder 0, %v4952
    %v4954 = vsel %vm4953, 0, %v4952
    %v4955 = vsub.s32 32, %v4954
    %v4956 = vshll.u32 %v4947, %v4954
    %v4957 = vshrl.u32 %v4939, %v4955
    %v4958 = vor.u32 %v4956, %v4957
    %v4959 = vsub.s32 4294967266, %v4954
    %v4960 = vadd.s32 %v4959, 127
    %v4961 = vshll.u32 %v4960, 23
    %v4962 = vor.u32 4788187, %v4961
    %v4963 = vand.u32 2147483647, %v4962
    %v4965 = vcvt.s32.f32 %v4958
    %v4966 = vmul.f32 %v4965, %v4963
    %v4967 = vxor.u32 %v4966, 2147483648
    %v4968 = vsel %vm4847, %v4967, %v4966
    %v4969 = vsub.s32 4, %v4945
    %v4970 = vsel %vm4847, %v4969, %v4945
    %v4971 = vsel %vm4846, %v4686, %v4968
    %v4972 = vsel %vm4846, 0, %v4970
    %v4973 = vmul.f32 %v4971, %v4971
    %v4974 = vmul.f32 %v4973, -0.001358992
    %v4975 = vadd.f32 %v4974, 0.041655596
    %v4976 = vmul.f32 %v4973, %v4975
    %v4977 = vadd.f32 %v4976, -0.4999988
    %v4978 = vmul.f32 %v4973, %v4977
    %v4979 = vadd.f32 1.0, %v4978
    %v4980 = vmul.f32 %v4971, %v4971
    %v4981 = vmul.f32 %v4980, -0.00019511016
    %v4982 = vadd.f32 %v4981, 0.008332121
    %v4983 = vmul.f32 %v4980, %v4982
    %v4984 = vadd.f32 %v4983, -0.16666654
    %v4985 = vmul.f32 %v4980, %v4984
    %v4986 = vadd.f32 %v4985, 1.0
    %v4987 = vmul.f32 %v4986, %v4971
    %vm4988 = vweird.f32 %v4686
    %v4989 = vadd.s32 %v4972, 3
    %v4990 = vand.u32 %v4989, 3
    %vm4991 = vcmp.lt.s32.totalorder %v4990, 2
    %vm4992 = vcmp.eq.s32.totalorder %v4990, 0
    %v4993 = vxor.u32 %v4987, 2147483648
    %v4994 = vsel %vm4992, %v4979, %v4993
    %vm4995 = vcmp.eq.s32.totalorder %v4990, 2
    %v4996 = vxor.u32 %v4979, 2147483648
    %v4997 = vsel %vm4995, %v4996, %v4987
    %v4998 = vsel %vm4991, %v4994, %v4997
    %v4999 = vsel %vm4988, nan, %v4998
    %v5000 = vmul.f32 %v4689, %v4999
    %v5002 = vsel %vm464, %v4844, 0
    %5004 = vmatpush.msra.mxu0 0.0
    %5005 = vmatpush.msra.mxu0 0.0
    %5006 = vmatpush.msra.mxu0 0.0
    %5007 = vmatpush.msra.mxu0 0.0
    %5008 = vmatpush.msra.mxu0 0.0
    %5009 = vmatpush.msra.mxu0 0.0
    %5010 = vmatpush.msra.mxu0 0.0
    %5011 = vmatpush.msra.mxu0 0.0
    %5012 = vmatpush.msra.mxu0 0.0
    %5013 = vmatpush.msra.mxu0 0.0
    %5014 = vmatpush.msra.mxu0 0.0
    %5015 = vmatpush.msra.mxu0 0.0
    %5016 = vmatpush.msra.mxu0 0.0
    %5017 = vmatpush.msra.mxu0 %v70
    %5018 = vmatpush.msra.mxu0 %v69
    %5019 = vmatpush.msra.mxu0 %v68
    %5020 = vmatmul.f32.gmra.mxu0 %v5002
    %v5021 = vpop.f32.mrf.mxu0
    %v5022 = vadd.f32 0.0, %v5021
    %5023 = vdwg.mxu0
    %v5025 = vsel %vm464, %v5000, 0
    %5027 = vmatpush.msra.mxu0 0.0
    %5028 = vmatpush.msra.mxu0 0.0
    %5029 = vmatpush.msra.mxu0 0.0
    %5030 = vmatpush.msra.mxu0 0.0
    %5031 = vmatpush.msra.mxu0 0.0
    %5032 = vmatpush.msra.mxu0 0.0
    %5033 = vmatpush.msra.mxu0 0.0
    %5034 = vmatpush.msra.mxu0 0.0
    %5035 = vmatpush.msra.mxu0 0.0
    %5036 = vmatpush.msra.mxu0 0.0
    %5037 = vmatpush.msra.mxu0 0.0
    %5038 = vmatpush.msra.mxu0 0.0
    %5039 = vmatpush.msra.mxu0 0.0
    %5040 = vmatpush.msra.mxu0 %v70
    %5041 = vmatpush.msra.mxu0 %v69
    %5042 = vmatpush.msra.mxu0 %v68
    %5043 = vmatmul.f32.gmra.mxu0 %v5025
    %v5044 = vpop.f32.mrf.mxu0
    %v5045 = vadd.f32 0.0, %v5044
    %5046 = vdwg.mxu0
    %5047 = vmatpush.msra.mxu0 0.0
    %5048 = vmatpush.msra.mxu0 0.0
    %5049 = vmatpush.msra.mxu0 0.0
    %5050 = vmatpush.msra.mxu0 0.0
    %5051 = vmatpush.msra.mxu0 0.0
    %5052 = vmatpush.msra.mxu0 0.0
    %5053 = vmatpush.msra.mxu0 0.0
    %5054 = vmatpush.msra.mxu0 0.0
    %5055 = vmatpush.msra.mxu0 0.0
    %5056 = vmatpush.msra.mxu0 0.0
    %5057 = vmatpush.msra.mxu0 0.0
    %5058 = vmatpush.msra.mxu0 0.0
    %5059 = vmatpush.msra.mxu0 0.0
    %5060 = vmatpush.msra.mxu0 0.0
    %5061 = vmatpush.msra.mxu0 0.0
    %5062 = vmatpush.msra.mxu0 %v71
    %5063 = vmatmul.f32.gmra.mxu0 %v4622
    %v5064 = vpop.f32.mrf.mxu0
    %v5065 = vadd.f32 0.0, %v5064
    %5066 = vdwg.mxu0
    %v5067 = vmul.f32 %v5022, %v4615
    %v5068 = vmul.f32 %v5045, %v5065
    %v5069 = vadd.f32 %v5067, %v5068
    %5071 = vrot.lane.b32.xlu0 %v5069, 80
    %v5072 = vpop.permute.xlu0 %5071
    %vm5074 = vcmask 720512
    %5075 = vst.msk [vmem:[#allocation3] sm:$0xff] %vm5074, %v5072
    %v5076 = vsel %vm76, %v5069, 0
    %5078 = vmatpush.msra.mxu0 0.0
    %5079 = vmatpush.msra.mxu0 0.0
    %5080 = vmatpush.msra.mxu0 0.0
    %5081 = vmatpush.msra.mxu0 0.0
    %5082 = vmatpush.msra.mxu0 0.0
    %5083 = vmatpush.msra.mxu0 0.0
    %5084 = vmatpush.msra.mxu0 0.0
    %5085 = vmatpush.msra.mxu0 0.0
    %5086 = vmatpush.msra.mxu0 0.0
    %5087 = vmatpush.msra.mxu0 0.0
    %5088 = vmatpush.msra.mxu0 0.0
    %5089 = vmatpush.msra.mxu0 0.0
    %5090 = vmatpush.msra.mxu0 0.0
    %5091 = vmatpush.msra.mxu0 0.0
    %5092 = vmatpush.msra.mxu0 0.0
    %5093 = vmatpush.msra.mxu0 %v40
    %5094 = vmatmul.f32.gmra.mxu0 %v5076
    %v5095 = vpop.f32.mrf.mxu0
    %v5096 = vadd.f32 %v74, %v5095
    %5097 = vdwg.mxu0
    %v5098 = vtanh.pop %v5096
    %v5100 = vsel %vm104, %v5098, 0
    %5102 = vmatpush.msra.mxu0 0.0
    %5103 = vmatpush.msra.mxu0 0.0
    %5104 = vmatpush.msra.mxu0 0.0
    %5105 = vmatpush.msra.mxu0 0.0
    %5106 = vmatpush.msra.mxu0 %v53
    %5107 = vmatpush.msra.mxu0 %v52
    %5108 = vmatpush.msra.mxu0 %v51
    %5109 = vmatpush.msra.mxu0 %v50
    %5110 = vmatpush.msra.mxu0 %v49
    %5111 = vmatpush.msra.mxu0 %v48
    %5112 = vmatpush.msra.mxu0 %v47
    %5113 = vmatpush.msra.mxu0 %v46
    %5114 = vmatpush.msra.mxu0 %v45
    %5115 = vmatpush.msra.mxu0 %v44
    %5116 = vmatpush.msra.mxu0 %v43
    %5117 = vmatpush.msra.mxu0 %v42
    %5118 = vmatmul.f32.gmra.mxu0 %v5100
    %v5119 = vpop.f32.mrf.mxu0
    %v5120 = vadd.f32 %v102, %v5119
    %5121 = vdwg.mxu0
    %5122 = vmatpush.msra.mxu0 0.0
    %5123 = vmatpush.msra.mxu0 0.0
    %5124 = vmatpush.msra.mxu0 0.0
    %5125 = vmatpush.msra.mxu0 0.0
    %5126 = vmatpush.msra.mxu0 %v66
    %5127 = vmatpush.msra.mxu0 %v65
    %5128 = vmatpush.msra.mxu0 %v64
    %5129 = vmatpush.msra.mxu0 %v63
    %5130 = vmatpush.msra.mxu0 %v62
    %5131 = vmatpush.msra.mxu0 %v61
    %5132 = vmatpush.msra.mxu0 %v60
    %5133 = vmatpush.msra.mxu0 %v59
    %5134 = vmatpush.msra.mxu0 %v58
    %5135 = vmatpush.msra.mxu0 %v57
    %5136 = vmatpush.msra.mxu0 %v56
    %5137 = vmatpush.msra.mxu0 %v55
    %5138 = vmatmul.f32.gmra.mxu0 %v5100
    %v5139 = vpop.f32.mrf.mxu0
    %v5140 = vadd.f32 %v129, %v5139
    %5141 = vdwg.mxu0
    %v5142 = vmul.f32 %v5120, 1.442695
    %v5143 = vpow.pop %v5142
    %v5144 = vand.u32 2147483647, %v5140
    %vm5145 = vcmp.le.f32.partialorder %v5144, 0.7853982
    %vm5146 = vcmp.lt.s32.totalorder %v5140, 0
    %v5147 = vand.u32 %v5140, 2139095040
    %v5148 = vshrl.u32 %v5147, 23
    %v5149 = vsub.s32 %v5148, 127
    %v5150 = vand.u32 2147483647, %v5140
    %v5151 = vand.u32 %v5150, 8388607
    %v5152 = vor.u32 %v5151, 8388608
    %v5153 = vsub.s32 0, %v5152
    %v5154 = vadd.s32 %v5149, 1
    %vm5155 = vcmp.gt.s32.totalorder %v5154, 0
    %v5156 = vsel %vm5155, %v5154, 0
    %v5157 = vshrl.u32 %v5156, 5
    %v5158 = vand.u32 %v5156, 31
    %v5159 = vsub.s32 32, %v5158
    %v5160 = vshrl.u32 683565275, %v5159
    %v5161 = vshll.u32 683565275, %v5158
    %v5162 = vshrl.u32 2475754826, %v5159
    %v5163 = vor.u32 %v5161, %v5162
    %v5164 = vshll.u32 2475754826, %v5158
    %v5165 = vshrl.u32 2131351028, %v5159
    %v5166 = vor.u32 %v5164, %v5165
    %v5167 = vshll.u32 2131351028, %v5158
    %v5168 = vshrl.u32 2102212464, %v5159
    %v5169 = vor.u32 %v5167, %v5168
    %v5170 = vshll.u32 2102212464, %v5158
    %v5171 = vshrl.u32 920167782, %v5159
    %v5172 = vor.u32 %v5170, %v5171
    %v5173 = vshll.u32 920167782, %v5158
    %v5174 = vshrl.u32 1326507024, %v5159
    %v5175 = vor.u32 %v5173, %v5174
    %vm5176 = vcmp.lt.s32.totalorder %v5157, 1
    %vm5177 = vcmp.lt.s32.totalorder %v5157, 2
    %vm5178 = vcmp.lt.s32.totalorder %v5157, 3
    %vm5179 = vcmp.lt.s32.totalorder %v5157, 4
    %v5180 = vsel %vm5176, %v5160, %v5163
    %v5181 = vsel %vm5179, %v5169, 2102212464
    %v5182 = vsel %vm5178, %v5166, %v5181
    %v5183 = vsel %vm5177, %v5180, %v5182
    %v5184 = vsel %vm5176, %v5163, %v5166
    %v5185 = vsel %vm5179, %v5172, 920167782
    %v5186 = vsel %vm5178, %v5169, %v5185
    %v5187 = vsel %vm5177, %v5184, %v5186
    %v5188 = vsel %vm5176, %v5166, %v5169
    %v5189 = vsel %vm5179, %v5175, 1326507024
    %v5190 = vsel %vm5178, %v5172, %v5189
    %v5191 = vsel %vm5177, %v5188, %v5190
    %v5192 = vshll.u32 %v5152, 8
    %v5193 = vand.u32 %v5192, 65535
    %v5194 = vshrl.u32 %v5192, 16
    %v5195 = vand.u32 %v5191, 65535
    %v5196 = vshrl.u32 %v5191, 16
    %v5197 = vmul.u32 %v5193, %v5195
    %v5198 = vmul.u32 %v5193, %v5196
    %v5199 = vmul.u32 %v5194, %v5195
    %v5200 = vmul.u32 %v5194, %v5196
    %v5201 = vshll.u32 %v5198, 16
    %v5202 = vshrl.u32 %v5198, 16
    %v5203 = vshll.u32 %v5199, 16
    %v5204 = vshrl.u32 %v5199, 16
    %vm5205 = vc.u32 %v5197, %v5201
    %v5206 = vsel %vm5205, 1, 0
    %v5207 = vadd.s32 %v5197, %v5201
    %v5208 = vadd.s32 %v5200, %v5206
    %vm5209 = vc.u32 %v5207, %v5203
    %v5210 = vsel %vm5209, 1, 0
    %v5211 = vadd.s32 %v5207, %v5203
    %v5212 = vadd.s32 %v5208, %v5210
    %v5213 = vadd.s32 %v5212, %v5202
    %v5214 = vadd.s32 %v5213, %v5204
    %v5215 = vand.u32 %v5192, 65535
    %v5216 = vshrl.u32 %v5192, 16
    %v5217 = vand.u32 %v5187, 65535
    %v5218 = vshrl.u32 %v5187, 16
    %v5219 = vmul.u32 %v5215, %v5217
    %v5220 = vmul.u32 %v5215, %v5218
    %v5221 = vmul.u32 %v5216, %v5217
    %v5222 = vmul.u32 %v5216, %v5218
    %v5223 = vshll.u32 %v5220, 16
    %v5224 = vshrl.u32 %v5220, 16
    %v5225 = vshll.u32 %v5221, 16
    %v5226 = vshrl.u32 %v5221, 16
    %vm5227 = vc.u32 %v5219, %v5223
    %v5228 = vsel %vm5227, 1, 0
    %v5229 = vadd.s32 %v5219, %v5223
    %v5230 = vadd.s32 %v5222, %v5228
    %vm5231 = vc.u32 %v5229, %v5225
    %v5232 = vsel %vm5231, 1, 0
    %v5233 = vadd.s32 %v5229, %v5225
    %v5234 = vadd.s32 %v5230, %v5232
    %v5235 = vadd.s32 %v5234, %v5224
    %v5236 = vadd.s32 %v5235, %v5226
    %v5237 = vmul.u32 %v5192, %v5183
    %v5238 = vadd.s32 %v5214, %v5233
    %vm5239 = vc.u32 %v5214, %v5233
    %v5240 = vadd.s32 %v5236, 1
    %v5241 = vsel %vm5239, %v5240, %v5236
    %v5242 = vadd.s32 %v5237, %v5241
    %v5243 = vadd.s32 %v5242, 536870912
    %v5244 = vshrl.u32 %v5243, 30
    %v5245 = vshll.u32 %v5244, 30
    %v5246 = vsub.s32 %v5242, %v5245
    %vm5247 = vcmp.lt.s32.totalorder %v5246, 0
    %v5248 = vsub.s32 0, %v5246
    %v5249 = vsel %vm5247, %v5248, %v5246
    %v5250 = vclz %v5249
    %v5251 = vsub.s32 %v5250, 2
    %vm5252 = vcmp.gt.s32.totalorder 0, %v5251
    %v5253 = vsel %vm5252, 0, %v5251
    %v5254 = vsub.s32 32, %v5253
    %v5255 = vshll.u32 %v5246, %v5253
    %v5256 = vshrl.u32 %v5238, %v5254
    %v5257 = vor.u32 %v5255, %v5256
    %v5258 = vsub.s32 4294967266, %v5253
    %v5259 = vadd.s32 %v5258, 127
    %v5260 = vshll.u32 %v5259, 23
    %v5261 = vor.u32 4788187, %v5260
    %v5262 = vand.u32 2147483647, %v5261
    %v5264 = vcvt.s32.f32 %v5257
    %v5265 = vmul.f32 %v5264, %v5262
    %v5266 = vxor.u32 %v5265, 2147483648
    %v5267 = vsel %vm5146, %v5266, %v5265
    %v5268 = vsub.s32 4, %v5244
    %v5269 = vsel %vm5146, %v5268, %v5244
    %v5270 = vsel %vm5145, %v5140, %v5267
    %v5271 = vsel %vm5145, 0, %v5269
    %v5272 = vmul.f32 %v5270, %v5270
    %v5273 = vmul.f32 %v5272, -0.001358992
    %v5274 = vadd.f32 %v5273, 0.041655596
    %v5275 = vmul.f32 %v5272, %v5274
    %v5276 = vadd.f32 %v5275, -0.4999988
    %v5277 = vmul.f32 %v5272, %v5276
    %v5278 = vadd.f32 1.0, %v5277
    %v5279 = vmul.f32 %v5270, %v5270
    %v5280 = vmul.f32 %v5279, -0.00019511016
    %v5281 = vadd.f32 %v5280, 0.008332121
    %v5282 = vmul.f32 %v5279, %v5281
    %v5283 = vadd.f32 %v5282, -0.16666654
    %v5284 = vmul.f32 %v5279, %v5283
    %v5285 = vadd.f32 %v5284, 1.0
    %v5286 = vmul.f32 %v5285, %v5270
    %vm5287 = vweird.f32 %v5140
    %v5288 = vand.u32 %v5271, 3
    %vm5289 = vcmp.lt.s32.totalorder %v5288, 2
    %vm5290 = vcmp.eq.s32.totalorder %v5288, 0
    %v5291 = vxor.u32 %v5286, 2147483648
    %v5292 = vsel %vm5290, %v5278, %v5291
    %vm5293 = vcmp.eq.s32.totalorder %v5288, 2
    %v5294 = vxor.u32 %v5278, 2147483648
    %v5295 = vsel %vm5293, %v5294, %v5286
    %v5296 = vsel %vm5289, %v5292, %v5295
    %v5297 = vsel %vm5287, nan, %v5296
    %v5298 = vmul.f32 %v5143, %v5297
    %v5299 = vand.u32 2147483647, %v5140
    %vm5300 = vcmp.le.f32.partialorder %v5299, 0.7853982
    %vm5301 = vcmp.lt.s32.totalorder %v5140, 0
    %v5302 = vand.u32 %v5140, 2139095040
    %v5303 = vshrl.u32 %v5302, 23
    %v5304 = vsub.s32 %v5303, 127
    %v5305 = vand.u32 2147483647, %v5140
    %v5306 = vand.u32 %v5305, 8388607
    %v5307 = vor.u32 %v5306, 8388608
    %v5308 = vsub.s32 0, %v5307
    %v5309 = vadd.s32 %v5304, 1
    %vm5310 = vcmp.gt.s32.totalorder %v5309, 0
    %v5311 = vsel %vm5310, %v5309, 0
    %v5312 = vshrl.u32 %v5311, 5
    %v5313 = vand.u32 %v5311, 31
    %v5314 = vsub.s32 32, %v5313
    %v5315 = vshrl.u32 683565275, %v5314
    %v5316 = vshll.u32 683565275, %v5313
    %v5317 = vshrl.u32 2475754826, %v5314
    %v5318 = vor.u32 %v5316, %v5317
    %v5319 = vshll.u32 2475754826, %v5313
    %v5320 = vshrl.u32 2131351028, %v5314
    %v5321 = vor.u32 %v5319, %v5320
    %v5322 = vshll.u32 2131351028, %v5313
    %v5323 = vshrl.u32 2102212464, %v5314
    %v5324 = vor.u32 %v5322, %v5323
    %v5325 = vshll.u32 2102212464, %v5313
    %v5326 = vshrl.u32 920167782, %v5314
    %v5327 = vor.u32 %v5325, %v5326
    %v5328 = vshll.u32 920167782, %v5313
    %v5329 = vshrl.u32 1326507024, %v5314
    %v5330 = vor.u32 %v5328, %v5329
    %vm5331 = vcmp.lt.s32.totalorder %v5312, 1
    %vm5332 = vcmp.lt.s32.totalorder %v5312, 2
    %vm5333 = vcmp.lt.s32.totalorder %v5312, 3
    %vm5334 = vcmp.lt.s32.totalorder %v5312, 4
    %v5335 = vsel %vm5331, %v5315, %v5318
    %v5336 = vsel %vm5334, %v5324, 2102212464
    %v5337 = vsel %vm5333, %v5321, %v5336
    %v5338 = vsel %vm5332, %v5335, %v5337
    %v5339 = vsel %vm5331, %v5318, %v5321
    %v5340 = vsel %vm5334, %v5327, 920167782
    %v5341 = vsel %vm5333, %v5324, %v5340
    %v5342 = vsel %vm5332, %v5339, %v5341
    %v5343 = vsel %vm5331, %v5321, %v5324
    %v5344 = vsel %vm5334, %v5330, 1326507024
    %v5345 = vsel %vm5333, %v5327, %v5344
    %v5346 = vsel %vm5332, %v5343, %v5345
    %v5347 = vshll.u32 %v5307, 8
    %v5348 = vand.u32 %v5347, 65535
    %v5349 = vshrl.u32 %v5347, 16
    %v5350 = vand.u32 %v5346, 65535
    %v5351 = vshrl.u32 %v5346, 16
    %v5352 = vmul.u32 %v5348, %v5350
    %v5353 = vmul.u32 %v5348, %v5351
    %v5354 = vmul.u32 %v5349, %v5350
    %v5355 = vmul.u32 %v5349, %v5351
    %v5356 = vshll.u32 %v5353, 16
    %v5357 = vshrl.u32 %v5353, 16
    %v5358 = vshll.u32 %v5354, 16
    %v5359 = vshrl.u32 %v5354, 16
    %vm5360 = vc.u32 %v5352, %v5356
    %v5361 = vsel %vm5360, 1, 0
    %v5362 = vadd.s32 %v5352, %v5356
    %v5363 = vadd.s32 %v5355, %v5361
    %vm5364 = vc.u32 %v5362, %v5358
    %v5365 = vsel %vm5364, 1, 0
    %v5366 = vadd.s32 %v5362, %v5358
    %v5367 = vadd.s32 %v5363, %v5365
    %v5368 = vadd.s32 %v5367, %v5357
    %v5369 = vadd.s32 %v5368, %v5359
    %v5370 = vand.u32 %v5347, 65535
    %v5371 = vshrl.u32 %v5347, 16
    %v5372 = vand.u32 %v5342, 65535
    %v5373 = vshrl.u32 %v5342, 16
    %v5374 = vmul.u32 %v5370, %v5372
    %v5375 = vmul.u32 %v5370, %v5373
    %v5376 = vmul.u32 %v5371, %v5372
    %v5377 = vmul.u32 %v5371, %v5373
    %v5378 = vshll.u32 %v5375, 16
    %v5379 = vshrl.u32 %v5375, 16
    %v5380 = vshll.u32 %v5376, 16
    %v5381 = vshrl.u32 %v5376, 16
    %vm5382 = vc.u32 %v5374, %v5378
    %v5383 = vsel %vm5382, 1, 0
    %v5384 = vadd.s32 %v5374, %v5378
    %v5385 = vadd.s32 %v5377, %v5383
    %vm5386 = vc.u32 %v5384, %v5380
    %v5387 = vsel %vm5386, 1, 0
    %v5388 = vadd.s32 %v5384, %v5380
    %v5389 = vadd.s32 %v5385, %v5387
    %v5390 = vadd.s32 %v5389, %v5379
    %v5391 = vadd.s32 %v5390, %v5381
    %v5392 = vmul.u32 %v5347, %v5338
    %v5393 = vadd.s32 %v5369, %v5388
    %vm5394 = vc.u32 %v5369, %v5388
    %v5395 = vadd.s32 %v5391, 1
    %v5396 = vsel %vm5394, %v5395, %v5391
    %v5397 = vadd.s32 %v5392, %v5396
    %v5398 = vadd.s32 %v5397, 536870912
    %v5399 = vshrl.u32 %v5398, 30
    %v5400 = vshll.u32 %v5399, 30
    %v5401 = vsub.s32 %v5397, %v5400
    %vm5402 = vcmp.lt.s32.totalorder %v5401, 0
    %v5403 = vsub.s32 0, %v5401
    %v5404 = vsel %vm5402, %v5403, %v5401
    %v5405 = vclz %v5404
    %v5406 = vsub.s32 %v5405, 2
    %vm5407 = vcmp.gt.s32.totalorder 0, %v5406
    %v5408 = vsel %vm5407, 0, %v5406
    %v5409 = vsub.s32 32, %v5408
    %v5410 = vshll.u32 %v5401, %v5408
    %v5411 = vshrl.u32 %v5393, %v5409
    %v5412 = vor.u32 %v5410, %v5411
    %v5413 = vsub.s32 4294967266, %v5408
    %v5414 = vadd.s32 %v5413, 127
    %v5415 = vshll.u32 %v5414, 23
    %v5416 = vor.u32 4788187, %v5415
    %v5417 = vand.u32 2147483647, %v5416
    %v5419 = vcvt.s32.f32 %v5412
    %v5420 = vmul.f32 %v5419, %v5417
    %v5421 = vxor.u32 %v5420, 2147483648
    %v5422 = vsel %vm5301, %v5421, %v5420
    %v5423 = vsub.s32 4, %v5399
    %v5424 = vsel %vm5301, %v5423, %v5399
    %v5425 = vsel %vm5300, %v5140, %v5422
    %v5426 = vsel %vm5300, 0, %v5424
    %v5427 = vmul.f32 %v5425, %v5425
    %v5428 = vmul.f32 %v5427, -0.001358992
    %v5429 = vadd.f32 %v5428, 0.041655596
    %v5430 = vmul.f32 %v5427, %v5429
    %v5431 = vadd.f32 %v5430, -0.4999988
    %v5432 = vmul.f32 %v5427, %v5431
    %v5433 = vadd.f32 1.0, %v5432
    %v5434 = vmul.f32 %v5425, %v5425
    %v5435 = vmul.f32 %v5434, -0.00019511016
    %v5436 = vadd.f32 %v5435, 0.008332121
    %v5437 = vmul.f32 %v5434, %v5436
    %v5438 = vadd.f32 %v5437, -0.16666654
    %v5439 = vmul.f32 %v5434, %v5438
    %v5440 = vadd.f32 %v5439, 1.0
    %v5441 = vmul.f32 %v5440, %v5425
    %vm5442 = vweird.f32 %v5140
    %v5443 = vadd.s32 %v5426, 3
    %v5444 = vand.u32 %v5443, 3
    %vm5445 = vcmp.lt.s32.totalorder %v5444, 2
    %vm5446 = vcmp.eq.s32.totalorder %v5444, 0
    %v5447 = vxor.u32 %v5441, 2147483648
    %v5448 = vsel %vm5446, %v5433, %v5447
    %vm5449 = vcmp.eq.s32.totalorder %v5444, 2
    %v5450 = vxor.u32 %v5433, 2147483648
    %v5451 = vsel %vm5449, %v5450, %v5441
    %v5452 = vsel %vm5445, %v5448, %v5451
    %v5453 = vsel %vm5442, nan, %v5452
    %v5454 = vmul.f32 %v5143, %v5453
    %v5456 = vsel %vm464, %v5298, 0
    %5458 = vmatpush.msra.mxu0 0.0
    %5459 = vmatpush.msra.mxu0 0.0
    %5460 = vmatpush.msra.mxu0 0.0
    %5461 = vmatpush.msra.mxu0 0.0
    %5462 = vmatpush.msra.mxu0 0.0
    %5463 = vmatpush.msra.mxu0 0.0
    %5464 = vmatpush.msra.mxu0 0.0
    %5465 = vmatpush.msra.mxu0 0.0
    %5466 = vmatpush.msra.mxu0 0.0
    %5467 = vmatpush.msra.mxu0 0.0
    %5468 = vmatpush.msra.mxu0 0.0
    %5469 = vmatpush.msra.mxu0 0.0
    %5470 = vmatpush.msra.mxu0 0.0
    %5471 = vmatpush.msra.mxu0 %v70
    %5472 = vmatpush.msra.mxu0 %v69
    %5473 = vmatpush.msra.mxu0 %v68
    %5474 = vmatmul.f32.gmra.mxu0 %v5456
    %v5475 = vpop.f32.mrf.mxu0
    %v5476 = vadd.f32 0.0, %v5475
    %5477 = vdwg.mxu0
    %v5479 = vsel %vm464, %v5454, 0
    %5481 = vmatpush.msra.mxu0 0.0
    %5482 = vmatpush.msra.mxu0 0.0
    %5483 = vmatpush.msra.mxu0 0.0
    %5484 = vmatpush.msra.mxu0 0.0
    %5485 = vmatpush.msra.mxu0 0.0
    %5486 = vmatpush.msra.mxu0 0.0
    %5487 = vmatpush.msra.mxu0 0.0
    %5488 = vmatpush.msra.mxu0 0.0
    %5489 = vmatpush.msra.mxu0 0.0
    %5490 = vmatpush.msra.mxu0 0.0
    %5491 = vmatpush.msra.mxu0 0.0
    %5492 = vmatpush.msra.mxu0 0.0
    %5493 = vmatpush.msra.mxu0 0.0
    %5494 = vmatpush.msra.mxu0 %v70
    %5495 = vmatpush.msra.mxu0 %v69
    %5496 = vmatpush.msra.mxu0 %v68
    %5497 = vmatmul.f32.gmra.mxu0 %v5479
    %v5498 = vpop.f32.mrf.mxu0
    %v5499 = vadd.f32 0.0, %v5498
    %5500 = vdwg.mxu0
    %5501 = vmatpush.msra.mxu0 0.0
    %5502 = vmatpush.msra.mxu0 0.0
    %5503 = vmatpush.msra.mxu0 0.0
    %5504 = vmatpush.msra.mxu0 0.0
    %5505 = vmatpush.msra.mxu0 0.0
    %5506 = vmatpush.msra.mxu0 0.0
    %5507 = vmatpush.msra.mxu0 0.0
    %5508 = vmatpush.msra.mxu0 0.0
    %5509 = vmatpush.msra.mxu0 0.0
    %5510 = vmatpush.msra.mxu0 0.0
    %5511 = vmatpush.msra.mxu0 0.0
    %5512 = vmatpush.msra.mxu0 0.0
    %5513 = vmatpush.msra.mxu0 0.0
    %5514 = vmatpush.msra.mxu0 0.0
    %5515 = vmatpush.msra.mxu0 0.0
    %5516 = vmatpush.msra.mxu0 %v71
    %5517 = vmatmul.f32.gmra.mxu0 %v5076
    %v5518 = vpop.f32.mrf.mxu0
    %v5519 = vadd.f32 0.0, %v5518
    %5520 = vdwg.mxu0
    %v5521 = vmul.f32 %v5476, %v5069
    %v5522 = vmul.f32 %v5499, %v5519
    %v5523 = vadd.f32 %v5521, %v5522
    %5525 = vrot.lane.b32.xlu0 %v5523, 88
    %v5526 = vpop.permute.xlu0 %5525
    %vm5528 = vcmask 786112
    %5529 = vst.msk [vmem:[#allocation3] sm:$0xff] %vm5528, %v5526
    %v5530 = vsel %vm76, %v5523, 0
    %5532 = vmatpush.msra.mxu0 0.0
    %5533 = vmatpush.msra.mxu0 0.0
    %5534 = vmatpush.msra.mxu0 0.0
    %5535 = vmatpush.msra.mxu0 0.0
    %5536 = vmatpush.msra.mxu0 0.0
    %5537 = vmatpush.msra.mxu0 0.0
    %5538 = vmatpush.msra.mxu0 0.0
    %5539 = vmatpush.msra.mxu0 0.0
    %5540 = vmatpush.msra.mxu0 0.0
    %5541 = vmatpush.msra.mxu0 0.0
    %5542 = vmatpush.msra.mxu0 0.0
    %5543 = vmatpush.msra.mxu0 0.0
    %5544 = vmatpush.msra.mxu0 0.0
    %5545 = vmatpush.msra.mxu0 0.0
    %5546 = vmatpush.msra.mxu0 0.0
    %5547 = vmatpush.msra.mxu0 %v40
    %5548 = vmatmul.f32.gmra.mxu0 %v5530
    %v5549 = vpop.f32.mrf.mxu0
    %v5550 = vadd.f32 %v74, %v5549
    %5551 = vdwg.mxu0
    %v5552 = vtanh.pop %v5550
    %v5554 = vsel %vm104, %v5552, 0
    %5556 = vmatpush.msra.mxu0 0.0
    %5557 = vmatpush.msra.mxu0 0.0
    %5558 = vmatpush.msra.mxu0 0.0
    %5559 = vmatpush.msra.mxu0 0.0
    %5560 = vmatpush.msra.mxu0 %v53
    %5561 = vmatpush.msra.mxu0 %v52
    %5562 = vmatpush.msra.mxu0 %v51
    %5563 = vmatpush.msra.mxu0 %v50
    %5564 = vmatpush.msra.mxu0 %v49
    %5565 = vmatpush.msra.mxu0 %v48
    %5566 = vmatpush.msra.mxu0 %v47
    %5567 = vmatpush.msra.mxu0 %v46
    %5568 = vmatpush.msra.mxu0 %v45
    %5569 = vmatpush.msra.mxu0 %v44
    %5570 = vmatpush.msra.mxu0 %v43
    %5571 = vmatpush.msra.mxu0 %v42
    %5572 = vmatmul.f32.gmra.mxu0 %v5554
    %v5573 = vpop.f32.mrf.mxu0
    %v5574 = vadd.f32 %v102, %v5573
    %5575 = vdwg.mxu0
    %5576 = vmatpush.msra.mxu0 0.0
    %5577 = vmatpush.msra.mxu0 0.0
    %5578 = vmatpush.msra.mxu0 0.0
    %5579 = vmatpush.msra.mxu0 0.0
    %5580 = vmatpush.msra.mxu0 %v66
    %5581 = vmatpush.msra.mxu0 %v65
    %5582 = vmatpush.msra.mxu0 %v64
    %5583 = vmatpush.msra.mxu0 %v63
    %5584 = vmatpush.msra.mxu0 %v62
    %5585 = vmatpush.msra.mxu0 %v61
    %5586 = vmatpush.msra.mxu0 %v60
    %5587 = vmatpush.msra.mxu0 %v59
    %5588 = vmatpush.msra.mxu0 %v58
    %5589 = vmatpush.msra.mxu0 %v57
    %5590 = vmatpush.msra.mxu0 %v56
    %5591 = vmatpush.msra.mxu0 %v55
    %5592 = vmatmul.f32.gmra.mxu0 %v5554
    %v5593 = vpop.f32.mrf.mxu0
    %v5594 = vadd.f32 %v129, %v5593
    %5595 = vdwg.mxu0
    %v5596 = vmul.f32 %v5574, 1.442695
    %v5597 = vpow.pop %v5596
    %v5598 = vand.u32 2147483647, %v5594
    %vm5599 = vcmp.le.f32.partialorder %v5598, 0.7853982
    %vm5600 = vcmp.lt.s32.totalorder %v5594, 0
    %v5601 = vand.u32 %v5594, 2139095040
    %v5602 = vshrl.u32 %v5601, 23
    %v5603 = vsub.s32 %v5602, 127
    %v5604 = vand.u32 2147483647, %v5594
    %v5605 = vand.u32 %v5604, 8388607
    %v5606 = vor.u32 %v5605, 8388608
    %v5607 = vsub.s32 0, %v5606
    %v5608 = vadd.s32 %v5603, 1
    %vm5609 = vcmp.gt.s32.totalorder %v5608, 0
    %v5610 = vsel %vm5609, %v5608, 0
    %v5611 = vshrl.u32 %v5610, 5
    %v5612 = vand.u32 %v5610, 31
    %v5613 = vsub.s32 32, %v5612
    %v5614 = vshrl.u32 683565275, %v5613
    %v5615 = vshll.u32 683565275, %v5612
    %v5616 = vshrl.u32 2475754826, %v5613
    %v5617 = vor.u32 %v5615, %v5616
    %v5618 = vshll.u32 2475754826, %v5612
    %v5619 = vshrl.u32 2131351028, %v5613
    %v5620 = vor.u32 %v5618, %v5619
    %v5621 = vshll.u32 2131351028, %v5612
    %v5622 = vshrl.u32 2102212464, %v5613
    %v5623 = vor.u32 %v5621, %v5622
    %v5624 = vshll.u32 2102212464, %v5612
    %v5625 = vshrl.u32 920167782, %v5613
    %v5626 = vor.u32 %v5624, %v5625
    %v5627 = vshll.u32 920167782, %v5612
    %v5628 = vshrl.u32 1326507024, %v5613
    %v5629 = vor.u32 %v5627, %v5628
    %vm5630 = vcmp.lt.s32.totalorder %v5611, 1
    %vm5631 = vcmp.lt.s32.totalorder %v5611, 2
    %vm5632 = vcmp.lt.s32.totalorder %v5611, 3
    %vm5633 = vcmp.lt.s32.totalorder %v5611, 4
    %v5634 = vsel %vm5630, %v5614, %v5617
    %v5635 = vsel %vm5633, %v5623, 2102212464
    %v5636 = vsel %vm5632, %v5620, %v5635
    %v5637 = vsel %vm5631, %v5634, %v5636
    %v5638 = vsel %vm5630, %v5617, %v5620
    %v5639 = vsel %vm5633, %v5626, 920167782
    %v5640 = vsel %vm5632, %v5623, %v5639
    %v5641 = vsel %vm5631, %v5638, %v5640
    %v5642 = vsel %vm5630, %v5620, %v5623
    %v5643 = vsel %vm5633, %v5629, 1326507024
    %v5644 = vsel %vm5632, %v5626, %v5643
    %v5645 = vsel %vm5631, %v5642, %v5644
    %v5646 = vshll.u32 %v5606, 8
    %v5647 = vand.u32 %v5646, 65535
    %v5648 = vshrl.u32 %v5646, 16
    %v5649 = vand.u32 %v5645, 65535
    %v5650 = vshrl.u32 %v5645, 16
    %v5651 = vmul.u32 %v5647, %v5649
    %v5652 = vmul.u32 %v5647, %v5650
    %v5653 = vmul.u32 %v5648, %v5649
    %v5654 = vmul.u32 %v5648, %v5650
    %v5655 = vshll.u32 %v5652, 16
    %v5656 = vshrl.u32 %v5652, 16
    %v5657 = vshll.u32 %v5653, 16
    %v5658 = vshrl.u32 %v5653, 16
    %vm5659 = vc.u32 %v5651, %v5655
    %v5660 = vsel %vm5659, 1, 0
    %v5661 = vadd.s32 %v5651, %v5655
    %v5662 = vadd.s32 %v5654, %v5660
    %vm5663 = vc.u32 %v5661, %v5657
    %v5664 = vsel %vm5663, 1, 0
    %v5665 = vadd.s32 %v5661, %v5657
    %v5666 = vadd.s32 %v5662, %v5664
    %v5667 = vadd.s32 %v5666, %v5656
    %v5668 = vadd.s32 %v5667, %v5658
    %v5669 = vand.u32 %v5646, 65535
    %v5670 = vshrl.u32 %v5646, 16
    %v5671 = vand.u32 %v5641, 65535
    %v5672 = vshrl.u32 %v5641, 16
    %v5673 = vmul.u32 %v5669, %v5671
    %v5674 = vmul.u32 %v5669, %v5672
    %v5675 = vmul.u32 %v5670, %v5671
    %v5676 = vmul.u32 %v5670, %v5672
    %v5677 = vshll.u32 %v5674, 16
    %v5678 = vshrl.u32 %v5674, 16
    %v5679 = vshll.u32 %v5675, 16
    %v5680 = vshrl.u32 %v5675, 16
    %vm5681 = vc.u32 %v5673, %v5677
    %v5682 = vsel %vm5681, 1, 0
    %v5683 = vadd.s32 %v5673, %v5677
    %v5684 = vadd.s32 %v5676, %v5682
    %vm5685 = vc.u32 %v5683, %v5679
    %v5686 = vsel %vm5685, 1, 0
    %v5687 = vadd.s32 %v5683, %v5679
    %v5688 = vadd.s32 %v5684, %v5686
    %v5689 = vadd.s32 %v5688, %v5678
    %v5690 = vadd.s32 %v5689, %v5680
    %v5691 = vmul.u32 %v5646, %v5637
    %v5692 = vadd.s32 %v5668, %v5687
    %vm5693 = vc.u32 %v5668, %v5687
    %v5694 = vadd.s32 %v5690, 1
    %v5695 = vsel %vm5693, %v5694, %v5690
    %v5696 = vadd.s32 %v5691, %v5695
    %v5697 = vadd.s32 %v5696, 536870912
    %v5698 = vshrl.u32 %v5697, 30
    %v5699 = vshll.u32 %v5698, 30
    %v5700 = vsub.s32 %v5696, %v5699
    %vm5701 = vcmp.lt.s32.totalorder %v5700, 0
    %v5702 = vsub.s32 0, %v5700
    %v5703 = vsel %vm5701, %v5702, %v5700
    %v5704 = vclz %v5703
    %v5705 = vsub.s32 %v5704, 2
    %vm5706 = vcmp.gt.s32.totalorder 0, %v5705
    %v5707 = vsel %vm5706, 0, %v5705
    %v5708 = vsub.s32 32, %v5707
    %v5709 = vshll.u32 %v5700, %v5707
    %v5710 = vshrl.u32 %v5692, %v5708
    %v5711 = vor.u32 %v5709, %v5710
    %v5712 = vsub.s32 4294967266, %v5707
    %v5713 = vadd.s32 %v5712, 127
    %v5714 = vshll.u32 %v5713, 23
    %v5715 = vor.u32 4788187, %v5714
    %v5716 = vand.u32 2147483647, %v5715
    %v5718 = vcvt.s32.f32 %v5711
    %v5719 = vmul.f32 %v5718, %v5716
    %v5720 = vxor.u32 %v5719, 2147483648
    %v5721 = vsel %vm5600, %v5720, %v5719
    %v5722 = vsub.s32 4, %v5698
    %v5723 = vsel %vm5600, %v5722, %v5698
    %v5724 = vsel %vm5599, %v5594, %v5721
    %v5725 = vsel %vm5599, 0, %v5723
    %v5726 = vmul.f32 %v5724, %v5724
    %v5727 = vmul.f32 %v5726, -0.001358992
    %v5728 = vadd.f32 %v5727, 0.041655596
    %v5729 = vmul.f32 %v5726, %v5728
    %v5730 = vadd.f32 %v5729, -0.4999988
    %v5731 = vmul.f32 %v5726, %v5730
    %v5732 = vadd.f32 1.0, %v5731
    %v5733 = vmul.f32 %v5724, %v5724
    %v5734 = vmul.f32 %v5733, -0.00019511016
    %v5735 = vadd.f32 %v5734, 0.008332121
    %v5736 = vmul.f32 %v5733, %v5735
    %v5737 = vadd.f32 %v5736, -0.16666654
    %v5738 = vmul.f32 %v5733, %v5737
    %v5739 = vadd.f32 %v5738, 1.0
    %v5740 = vmul.f32 %v5739, %v5724
    %vm5741 = vweird.f32 %v5594
    %v5742 = vand.u32 %v5725, 3
    %vm5743 = vcmp.lt.s32.totalorder %v5742, 2
    %vm5744 = vcmp.eq.s32.totalorder %v5742, 0
    %v5745 = vxor.u32 %v5740, 2147483648
    %v5746 = vsel %vm5744, %v5732, %v5745
    %vm5747 = vcmp.eq.s32.totalorder %v5742, 2
    %v5748 = vxor.u32 %v5732, 2147483648
    %v5749 = vsel %vm5747, %v5748, %v5740
    %v5750 = vsel %vm5743, %v5746, %v5749
    %v5751 = vsel %vm5741, nan, %v5750
    %v5752 = vmul.f32 %v5597, %v5751
    %v5753 = vand.u32 2147483647, %v5594
    %vm5754 = vcmp.le.f32.partialorder %v5753, 0.7853982
    %vm5755 = vcmp.lt.s32.totalorder %v5594, 0
    %v5756 = vand.u32 %v5594, 2139095040
    %v5757 = vshrl.u32 %v5756, 23
    %v5758 = vsub.s32 %v5757, 127
    %v5759 = vand.u32 2147483647, %v5594
    %v5760 = vand.u32 %v5759, 8388607
    %v5761 = vor.u32 %v5760, 8388608
    %v5762 = vsub.s32 0, %v5761
    %v5763 = vadd.s32 %v5758, 1
    %vm5764 = vcmp.gt.s32.totalorder %v5763, 0
    %v5765 = vsel %vm5764, %v5763, 0
    %v5766 = vshrl.u32 %v5765, 5
    %v5767 = vand.u32 %v5765, 31
    %v5768 = vsub.s32 32, %v5767
    %v5769 = vshrl.u32 683565275, %v5768
    %v5770 = vshll.u32 683565275, %v5767
    %v5771 = vshrl.u32 2475754826, %v5768
    %v5772 = vor.u32 %v5770, %v5771
    %v5773 = vshll.u32 2475754826, %v5767
    %v5774 = vshrl.u32 2131351028, %v5768
    %v5775 = vor.u32 %v5773, %v5774
    %v5776 = vshll.u32 2131351028, %v5767
    %v5777 = vshrl.u32 2102212464, %v5768
    %v5778 = vor.u32 %v5776, %v5777
    %v5779 = vshll.u32 2102212464, %v5767
    %v5780 = vshrl.u32 920167782, %v5768
    %v5781 = vor.u32 %v5779, %v5780
    %v5782 = vshll.u32 920167782, %v5767
    %v5783 = vshrl.u32 1326507024, %v5768
    %v5784 = vor.u32 %v5782, %v5783
    %vm5785 = vcmp.lt.s32.totalorder %v5766, 1
    %vm5786 = vcmp.lt.s32.totalorder %v5766, 2
    %vm5787 = vcmp.lt.s32.totalorder %v5766, 3
    %vm5788 = vcmp.lt.s32.totalorder %v5766, 4
    %v5789 = vsel %vm5785, %v5769, %v5772
    %v5790 = vsel %vm5788, %v5778, 2102212464
    %v5791 = vsel %vm5787, %v5775, %v5790
    %v5792 = vsel %vm5786, %v5789, %v5791
    %v5793 = vsel %vm5785, %v5772, %v5775
    %v5794 = vsel %vm5788, %v5781, 920167782
    %v5795 = vsel %vm5787, %v5778, %v5794
    %v5796 = vsel %vm5786, %v5793, %v5795
    %v5797 = vsel %vm5785, %v5775, %v5778
    %v5798 = vsel %vm5788, %v5784, 1326507024
    %v5799 = vsel %vm5787, %v5781, %v5798
    %v5800 = vsel %vm5786, %v5797, %v5799
    %v5801 = vshll.u32 %v5761, 8
    %v5802 = vand.u32 %v5801, 65535
    %v5803 = vshrl.u32 %v5801, 16
    %v5804 = vand.u32 %v5800, 65535
    %v5805 = vshrl.u32 %v5800, 16
    %v5806 = vmul.u32 %v5802, %v5804
    %v5807 = vmul.u32 %v5802, %v5805
    %v5808 = vmul.u32 %v5803, %v5804
    %v5809 = vmul.u32 %v5803, %v5805
    %v5810 = vshll.u32 %v5807, 16
    %v5811 = vshrl.u32 %v5807, 16
    %v5812 = vshll.u32 %v5808, 16
    %v5813 = vshrl.u32 %v5808, 16
    %vm5814 = vc.u32 %v5806, %v5810
    %v5815 = vsel %vm5814, 1, 0
    %v5816 = vadd.s32 %v5806, %v5810
    %v5817 = vadd.s32 %v5809, %v5815
    %vm5818 = vc.u32 %v5816, %v5812
    %v5819 = vsel %vm5818, 1, 0
    %v5820 = vadd.s32 %v5816, %v5812
    %v5821 = vadd.s32 %v5817, %v5819
    %v5822 = vadd.s32 %v5821, %v5811
    %v5823 = vadd.s32 %v5822, %v5813
    %v5824 = vand.u32 %v5801, 65535
    %v5825 = vshrl.u32 %v5801, 16
    %v5826 = vand.u32 %v5796, 65535
    %v5827 = vshrl.u32 %v5796, 16
    %v5828 = vmul.u32 %v5824, %v5826
    %v5829 = vmul.u32 %v5824, %v5827
    %v5830 = vmul.u32 %v5825, %v5826
    %v5831 = vmul.u32 %v5825, %v5827
    %v5832 = vshll.u32 %v5829, 16
    %v5833 = vshrl.u32 %v5829, 16
    %v5834 = vshll.u32 %v5830, 16
    %v5835 = vshrl.u32 %v5830, 16
    %vm5836 = vc.u32 %v5828, %v5832
    %v5837 = vsel %vm5836, 1, 0
    %v5838 = vadd.s32 %v5828, %v5832
    %v5839 = vadd.s32 %v5831, %v5837
    %vm5840 = vc.u32 %v5838, %v5834
    %v5841 = vsel %vm5840, 1, 0
    %v5842 = vadd.s32 %v5838, %v5834
    %v5843 = vadd.s32 %v5839, %v5841
    %v5844 = vadd.s32 %v5843, %v5833
    %v5845 = vadd.s32 %v5844, %v5835
    %v5846 = vmul.u32 %v5801, %v5792
    %v5847 = vadd.s32 %v5823, %v5842
    %vm5848 = vc.u32 %v5823, %v5842
    %v5849 = vadd.s32 %v5845, 1
    %v5850 = vsel %vm5848, %v5849, %v5845
    %v5851 = vadd.s32 %v5846, %v5850
    %v5852 = vadd.s32 %v5851, 536870912
    %v5853 = vshrl.u32 %v5852, 30
    %v5854 = vshll.u32 %v5853, 30
    %v5855 = vsub.s32 %v5851, %v5854
    %vm5856 = vcmp.lt.s32.totalorder %v5855, 0
    %v5857 = vsub.s32 0, %v5855
    %v5858 = vsel %vm5856, %v5857, %v5855
    %v5859 = vclz %v5858
    %v5860 = vsub.s32 %v5859, 2
    %vm5861 = vcmp.gt.s32.totalorder 0, %v5860
    %v5862 = vsel %vm5861, 0, %v5860
    %v5863 = vsub.s32 32, %v5862
    %v5864 = vshll.u32 %v5855, %v5862
    %v5865 = vshrl.u32 %v5847, %v5863
    %v5866 = vor.u32 %v5864, %v5865
    %v5867 = vsub.s32 4294967266, %v5862
    %v5868 = vadd.s32 %v5867, 127
    %v5869 = vshll.u32 %v5868, 23
    %v5870 = vor.u32 4788187, %v5869
    %v5871 = vand.u32 2147483647, %v5870
    %v5873 = vcvt.s32.f32 %v5866
    %v5874 = vmul.f32 %v5873, %v5871
    %v5875 = vxor.u32 %v5874, 2147483648
    %v5876 = vsel %vm5755, %v5875, %v5874
    %v5877 = vsub.s32 4, %v5853
    %v5878 = vsel %vm5755, %v5877, %v5853
    %v5879 = vsel %vm5754, %v5594, %v5876
    %v5880 = vsel %vm5754, 0, %v5878
    %v5881 = vmul.f32 %v5879, %v5879
    %v5882 = vmul.f32 %v5881, -0.001358992
    %v5883 = vadd.f32 %v5882, 0.041655596
    %v5884 = vmul.f32 %v5881, %v5883
    %v5885 = vadd.f32 %v5884, -0.4999988
    %v5886 = vmul.f32 %v5881, %v5885
    %v5887 = vadd.f32 1.0, %v5886
    %v5888 = vmul.f32 %v5879, %v5879
    %v5889 = vmul.f32 %v5888, -0.00019511016
    %v5890 = vadd.f32 %v5889, 0.008332121
    %v5891 = vmul.f32 %v5888, %v5890
    %v5892 = vadd.f32 %v5891, -0.16666654
    %v5893 = vmul.f32 %v5888, %v5892
    %v5894 = vadd.f32 %v5893, 1.0
    %v5895 = vmul.f32 %v5894, %v5879
    %vm5896 = vweird.f32 %v5594
    %v5897 = vadd.s32 %v5880, 3
    %v5898 = vand.u32 %v5897, 3
    %vm5899 = vcmp.lt.s32.totalorder %v5898, 2
    %vm5900 = vcmp.eq.s32.totalorder %v5898, 0
    %v5901 = vxor.u32 %v5895, 2147483648
    %v5902 = vsel %vm5900, %v5887, %v5901
    %vm5903 = vcmp.eq.s32.totalorder %v5898, 2
    %v5904 = vxor.u32 %v5887, 2147483648
    %v5905 = vsel %vm5903, %v5904, %v5895
    %v5906 = vsel %vm5899, %v5902, %v5905
    %v5907 = vsel %vm5896, nan, %v5906
    %v5908 = vmul.f32 %v5597, %v5907
    %v5910 = vsel %vm464, %v5752, 0
    %5912 = vmatpush.msra.mxu0 0.0
    %5913 = vmatpush.msra.mxu0 0.0
    %5914 = vmatpush.msra.mxu0 0.0
    %5915 = vmatpush.msra.mxu0 0.0
    %5916 = vmatpush.msra.mxu0 0.0
    %5917 = vmatpush.msra.mxu0 0.0
    %5918 = vmatpush.msra.mxu0 0.0
    %5919 = vmatpush.msra.mxu0 0.0
    %5920 = vmatpush.msra.mxu0 0.0
    %5921 = vmatpush.msra.mxu0 0.0
    %5922 = vmatpush.msra.mxu0 0.0
    %5923 = vmatpush.msra.mxu0 0.0
    %5924 = vmatpush.msra.mxu0 0.0
    %5925 = vmatpush.msra.mxu0 %v70
    %5926 = vmatpush.msra.mxu0 %v69
    %5927 = vmatpush.msra.mxu0 %v68
    %5928 = vmatmul.f32.gmra.mxu0 %v5910
    %v5929 = vpop.f32.mrf.mxu0
    %v5930 = vadd.f32 0.0, %v5929
    %5931 = vdwg.mxu0
    %v5933 = vsel %vm464, %v5908, 0
    %5935 = vmatpush.msra.mxu0 0.0
    %5936 = vmatpush.msra.mxu0 0.0
    %5937 = vmatpush.msra.mxu0 0.0
    %5938 = vmatpush.msra.mxu0 0.0
    %5939 = vmatpush.msra.mxu0 0.0
    %5940 = vmatpush.msra.mxu0 0.0
    %5941 = vmatpush.msra.mxu0 0.0
    %5942 = vmatpush.msra.mxu0 0.0
    %5943 = vmatpush.msra.mxu0 0.0
    %5944 = vmatpush.msra.mxu0 0.0
    %5945 = vmatpush.msra.mxu0 0.0
    %5946 = vmatpush.msra.mxu0 0.0
    %5947 = vmatpush.msra.mxu0 0.0
    %5948 = vmatpush.msra.mxu0 %v70
    %5949 = vmatpush.msra.mxu0 %v69
    %5950 = vmatpush.msra.mxu0 %v68
    %5951 = vmatmul.f32.gmra.mxu0 %v5933
    %v5952 = vpop.f32.mrf.mxu0
    %v5953 = vadd.f32 0.0, %v5952
    %5954 = vdwg.mxu0
    %5955 = vmatpush.msra.mxu0 0.0
    %5956 = vmatpush.msra.mxu0 0.0
    %5957 = vmatpush.msra.mxu0 0.0
    %5958 = vmatpush.msra.mxu0 0.0
    %5959 = vmatpush.msra.mxu0 0.0
    %5960 = vmatpush.msra.mxu0 0.0
    %5961 = vmatpush.msra.mxu0 0.0
    %5962 = vmatpush.msra.mxu0 0.0
    %5963 = vmatpush.msra.mxu0 0.0
    %5964 = vmatpush.msra.mxu0 0.0
    %5965 = vmatpush.msra.mxu0 0.0
    %5966 = vmatpush.msra.mxu0 0.0
    %5967 = vmatpush.msra.mxu0 0.0
    %5968 = vmatpush.msra.mxu0 0.0
    %5969 = vmatpush.msra.mxu0 0.0
    %5970 = vmatpush.msra.mxu0 %v71
    %5971 = vmatmul.f32.gmra.mxu0 %v5530
    %v5972 = vpop.f32.mrf.mxu0
    %v5973 = vadd.f32 0.0, %v5972
    %5974 = vdwg.mxu0
    %v5975 = vmul.f32 %v5930, %v5523
    %v5976 = vmul.f32 %v5953, %v5973
    %v5977 = vadd.f32 %v5975, %v5976
    %5979 = vrot.lane.b32.xlu0 %v5977, 96
    %v5980 = vpop.permute.xlu0 %5979
    %vm5982 = vcmask 851712
    %5983 = vst.msk [vmem:[#allocation3] sm:$0xff] %vm5982, %v5980
    %v5984 = vsel %vm76, %v5977, 0
    %5986 = vmatpush.msra.mxu0 0.0
    %5987 = vmatpush.msra.mxu0 0.0
    %5988 = vmatpush.msra.mxu0 0.0
    %5989 = vmatpush.msra.mxu0 0.0
    %5990 = vmatpush.msra.mxu0 0.0
    %5991 = vmatpush.msra.mxu0 0.0
    %5992 = vmatpush.msra.mxu0 0.0
    %5993 = vmatpush.msra.mxu0 0.0
    %5994 = vmatpush.msra.mxu0 0.0
    %5995 = vmatpush.msra.mxu0 0.0
    %5996 = vmatpush.msra.mxu0 0.0
    %5997 = vmatpush.msra.mxu0 0.0
    %5998 = vmatpush.msra.mxu0 0.0
    %5999 = vmatpush.msra.mxu0 0.0
    %6000 = vmatpush.msra.mxu0 0.0
    %6001 = vmatpush.msra.mxu0 %v40
    %6002 = vmatmul.f32.gmra.mxu0 %v5984
    %v6003 = vpop.f32.mrf.mxu0
    %v6004 = vadd.f32 %v74, %v6003
    %6005 = vdwg.mxu0
    %v6006 = vtanh.pop %v6004
    %v6008 = vsel %vm104, %v6006, 0
    %6010 = vmatpush.msra.mxu0 0.0
    %6011 = vmatpush.msra.mxu0 0.0
    %6012 = vmatpush.msra.mxu0 0.0
    %6013 = vmatpush.msra.mxu0 0.0
    %6014 = vmatpush.msra.mxu0 %v53
    %6015 = vmatpush.msra.mxu0 %v52
    %6016 = vmatpush.msra.mxu0 %v51
    %6017 = vmatpush.msra.mxu0 %v50
    %6018 = vmatpush.msra.mxu0 %v49
    %6019 = vmatpush.msra.mxu0 %v48
    %6020 = vmatpush.msra.mxu0 %v47
    %6021 = vmatpush.msra.mxu0 %v46
    %6022 = vmatpush.msra.mxu0 %v45
    %6023 = vmatpush.msra.mxu0 %v44
    %6024 = vmatpush.msra.mxu0 %v43
    %6025 = vmatpush.msra.mxu0 %v42
    %6026 = vmatmul.f32.gmra.mxu0 %v6008
    %v6027 = vpop.f32.mrf.mxu0
    %v6028 = vadd.f32 %v102, %v6027
    %6029 = vdwg.mxu0
    %6030 = vmatpush.msra.mxu0 0.0
    %6031 = vmatpush.msra.mxu0 0.0
    %6032 = vmatpush.msra.mxu0 0.0
    %6033 = vmatpush.msra.mxu0 0.0
    %6034 = vmatpush.msra.mxu0 %v66
    %6035 = vmatpush.msra.mxu0 %v65
    %6036 = vmatpush.msra.mxu0 %v64
    %6037 = vmatpush.msra.mxu0 %v63
    %6038 = vmatpush.msra.mxu0 %v62
    %6039 = vmatpush.msra.mxu0 %v61
    %6040 = vmatpush.msra.mxu0 %v60
    %6041 = vmatpush.msra.mxu0 %v59
    %6042 = vmatpush.msra.mxu0 %v58
    %6043 = vmatpush.msra.mxu0 %v57
    %6044 = vmatpush.msra.mxu0 %v56
    %6045 = vmatpush.msra.mxu0 %v55
    %6046 = vmatmul.f32.gmra.mxu0 %v6008
    %v6047 = vpop.f32.mrf.mxu0
    %v6048 = vadd.f32 %v129, %v6047
    %6049 = vdwg.mxu0
    %v6050 = vmul.f32 %v6028, 1.442695
    %v6051 = vpow.pop %v6050
    %v6052 = vand.u32 2147483647, %v6048
    %vm6053 = vcmp.le.f32.partialorder %v6052, 0.7853982
    %vm6054 = vcmp.lt.s32.totalorder %v6048, 0
    %v6055 = vand.u32 %v6048, 2139095040
    %v6056 = vshrl.u32 %v6055, 23
    %v6057 = vsub.s32 %v6056, 127
    %v6058 = vand.u32 2147483647, %v6048
    %v6059 = vand.u32 %v6058, 8388607
    %v6060 = vor.u32 %v6059, 8388608
    %v6061 = vsub.s32 0, %v6060
    %v6062 = vadd.s32 %v6057, 1
    %vm6063 = vcmp.gt.s32.totalorder %v6062, 0
    %v6064 = vsel %vm6063, %v6062, 0
    %v6065 = vshrl.u32 %v6064, 5
    %v6066 = vand.u32 %v6064, 31
    %v6067 = vsub.s32 32, %v6066
    %v6068 = vshrl.u32 683565275, %v6067
    %v6069 = vshll.u32 683565275, %v6066
    %v6070 = vshrl.u32 2475754826, %v6067
    %v6071 = vor.u32 %v6069, %v6070
    %v6072 = vshll.u32 2475754826, %v6066
    %v6073 = vshrl.u32 2131351028, %v6067
    %v6074 = vor.u32 %v6072, %v6073
    %v6075 = vshll.u32 2131351028, %v6066
    %v6076 = vshrl.u32 2102212464, %v6067
    %v6077 = vor.u32 %v6075, %v6076
    %v6078 = vshll.u32 2102212464, %v6066
    %v6079 = vshrl.u32 920167782, %v6067
    %v6080 = vor.u32 %v6078, %v6079
    %v6081 = vshll.u32 920167782, %v6066
    %v6082 = vshrl.u32 1326507024, %v6067
    %v6083 = vor.u32 %v6081, %v6082
    %vm6084 = vcmp.lt.s32.totalorder %v6065, 1
    %vm6085 = vcmp.lt.s32.totalorder %v6065, 2
    %vm6086 = vcmp.lt.s32.totalorder %v6065, 3
    %vm6087 = vcmp.lt.s32.totalorder %v6065, 4
    %v6088 = vsel %vm6084, %v6068, %v6071
    %v6089 = vsel %vm6087, %v6077, 2102212464
    %v6090 = vsel %vm6086, %v6074, %v6089
    %v6091 = vsel %vm6085, %v6088, %v6090
    %v6092 = vsel %vm6084, %v6071, %v6074
    %v6093 = vsel %vm6087, %v6080, 920167782
    %v6094 = vsel %vm6086, %v6077, %v6093
    %v6095 = vsel %vm6085, %v6092, %v6094
    %v6096 = vsel %vm6084, %v6074, %v6077
    %v6097 = vsel %vm6087, %v6083, 1326507024
    %v6098 = vsel %vm6086, %v6080, %v6097
    %v6099 = vsel %vm6085, %v6096, %v6098
    %v6100 = vshll.u32 %v6060, 8
    %v6101 = vand.u32 %v6100, 65535
    %v6102 = vshrl.u32 %v6100, 16
    %v6103 = vand.u32 %v6099, 65535
    %v6104 = vshrl.u32 %v6099, 16
    %v6105 = vmul.u32 %v6101, %v6103
    %v6106 = vmul.u32 %v6101, %v6104
    %v6107 = vmul.u32 %v6102, %v6103
    %v6108 = vmul.u32 %v6102, %v6104
    %v6109 = vshll.u32 %v6106, 16
    %v6110 = vshrl.u32 %v6106, 16
    %v6111 = vshll.u32 %v6107, 16
    %v6112 = vshrl.u32 %v6107, 16
    %vm6113 = vc.u32 %v6105, %v6109
    %v6114 = vsel %vm6113, 1, 0
    %v6115 = vadd.s32 %v6105, %v6109
    %v6116 = vadd.s32 %v6108, %v6114
    %vm6117 = vc.u32 %v6115, %v6111
    %v6118 = vsel %vm6117, 1, 0
    %v6119 = vadd.s32 %v6115, %v6111
    %v6120 = vadd.s32 %v6116, %v6118
    %v6121 = vadd.s32 %v6120, %v6110
    %v6122 = vadd.s32 %v6121, %v6112
    %v6123 = vand.u32 %v6100, 65535
    %v6124 = vshrl.u32 %v6100, 16
    %v6125 = vand.u32 %v6095, 65535
    %v6126 = vshrl.u32 %v6095, 16
    %v6127 = vmul.u32 %v6123, %v6125
    %v6128 = vmul.u32 %v6123, %v6126
    %v6129 = vmul.u32 %v6124, %v6125
    %v6130 = vmul.u32 %v6124, %v6126
    %v6131 = vshll.u32 %v6128, 16
    %v6132 = vshrl.u32 %v6128, 16
    %v6133 = vshll.u32 %v6129, 16
    %v6134 = vshrl.u32 %v6129, 16
    %vm6135 = vc.u32 %v6127, %v6131
    %v6136 = vsel %vm6135, 1, 0
    %v6137 = vadd.s32 %v6127, %v6131
    %v6138 = vadd.s32 %v6130, %v6136
    %vm6139 = vc.u32 %v6137, %v6133
    %v6140 = vsel %vm6139, 1, 0
    %v6141 = vadd.s32 %v6137, %v6133
    %v6142 = vadd.s32 %v6138, %v6140
    %v6143 = vadd.s32 %v6142, %v6132
    %v6144 = vadd.s32 %v6143, %v6134
    %v6145 = vmul.u32 %v6100, %v6091
    %v6146 = vadd.s32 %v6122, %v6141
    %vm6147 = vc.u32 %v6122, %v6141
    %v6148 = vadd.s32 %v6144, 1
    %v6149 = vsel %vm6147, %v6148, %v6144
    %v6150 = vadd.s32 %v6145, %v6149
    %v6151 = vadd.s32 %v6150, 536870912
    %v6152 = vshrl.u32 %v6151, 30
    %v6153 = vshll.u32 %v6152, 30
    %v6154 = vsub.s32 %v6150, %v6153
    %vm6155 = vcmp.lt.s32.totalorder %v6154, 0
    %v6156 = vsub.s32 0, %v6154
    %v6157 = vsel %vm6155, %v6156, %v6154
    %v6158 = vclz %v6157
    %v6159 = vsub.s32 %v6158, 2
    %vm6160 = vcmp.gt.s32.totalorder 0, %v6159
    %v6161 = vsel %vm6160, 0, %v6159
    %v6162 = vsub.s32 32, %v6161
    %v6163 = vshll.u32 %v6154, %v6161
    %v6164 = vshrl.u32 %v6146, %v6162
    %v6165 = vor.u32 %v6163, %v6164
    %v6166 = vsub.s32 4294967266, %v6161
    %v6167 = vadd.s32 %v6166, 127
    %v6168 = vshll.u32 %v6167, 23
    %v6169 = vor.u32 4788187, %v6168
    %v6170 = vand.u32 2147483647, %v6169
    %v6172 = vcvt.s32.f32 %v6165
    %v6173 = vmul.f32 %v6172, %v6170
    %v6174 = vxor.u32 %v6173, 2147483648
    %v6175 = vsel %vm6054, %v6174, %v6173
    %v6176 = vsub.s32 4, %v6152
    %v6177 = vsel %vm6054, %v6176, %v6152
    %v6178 = vsel %vm6053, %v6048, %v6175
    %v6179 = vsel %vm6053, 0, %v6177
    %v6180 = vmul.f32 %v6178, %v6178
    %v6181 = vmul.f32 %v6180, -0.001358992
    %v6182 = vadd.f32 %v6181, 0.041655596
    %v6183 = vmul.f32 %v6180, %v6182
    %v6184 = vadd.f32 %v6183, -0.4999988
    %v6185 = vmul.f32 %v6180, %v6184
    %v6186 = vadd.f32 1.0, %v6185
    %v6187 = vmul.f32 %v6178, %v6178
    %v6188 = vmul.f32 %v6187, -0.00019511016
    %v6189 = vadd.f32 %v6188, 0.008332121
    %v6190 = vmul.f32 %v6187, %v6189
    %v6191 = vadd.f32 %v6190, -0.16666654
    %v6192 = vmul.f32 %v6187, %v6191
    %v6193 = vadd.f32 %v6192, 1.0
    %v6194 = vmul.f32 %v6193, %v6178
    %vm6195 = vweird.f32 %v6048
    %v6196 = vand.u32 %v6179, 3
    %vm6197 = vcmp.lt.s32.totalorder %v6196, 2
    %vm6198 = vcmp.eq.s32.totalorder %v6196, 0
    %v6199 = vxor.u32 %v6194, 2147483648
    %v6200 = vsel %vm6198, %v6186, %v6199
    %vm6201 = vcmp.eq.s32.totalorder %v6196, 2
    %v6202 = vxor.u32 %v6186, 2147483648
    %v6203 = vsel %vm6201, %v6202, %v6194
    %v6204 = vsel %vm6197, %v6200, %v6203
    %v6205 = vsel %vm6195, nan, %v6204
    %v6206 = vmul.f32 %v6051, %v6205
    %v6207 = vand.u32 2147483647, %v6048
    %vm6208 = vcmp.le.f32.partialorder %v6207, 0.7853982
    %vm6209 = vcmp.lt.s32.totalorder %v6048, 0
    %v6210 = vand.u32 %v6048, 2139095040
    %v6211 = vshrl.u32 %v6210, 23
    %v6212 = vsub.s32 %v6211, 127
    %v6213 = vand.u32 2147483647, %v6048
    %v6214 = vand.u32 %v6213, 8388607
    %v6215 = vor.u32 %v6214, 8388608
    %v6216 = vsub.s32 0, %v6215
    %v6217 = vadd.s32 %v6212, 1
    %vm6218 = vcmp.gt.s32.totalorder %v6217, 0
    %v6219 = vsel %vm6218, %v6217, 0
    %v6220 = vshrl.u32 %v6219, 5
    %v6221 = vand.u32 %v6219, 31
    %v6222 = vsub.s32 32, %v6221
    %v6223 = vshrl.u32 683565275, %v6222
    %v6224 = vshll.u32 683565275, %v6221
    %v6225 = vshrl.u32 2475754826, %v6222
    %v6226 = vor.u32 %v6224, %v6225
    %v6227 = vshll.u32 2475754826, %v6221
    %v6228 = vshrl.u32 2131351028, %v6222
    %v6229 = vor.u32 %v6227, %v6228
    %v6230 = vshll.u32 2131351028, %v6221
    %v6231 = vshrl.u32 2102212464, %v6222
    %v6232 = vor.u32 %v6230, %v6231
    %v6233 = vshll.u32 2102212464, %v6221
    %v6234 = vshrl.u32 920167782, %v6222
    %v6235 = vor.u32 %v6233, %v6234
    %v6236 = vshll.u32 920167782, %v6221
    %v6237 = vshrl.u32 1326507024, %v6222
    %v6238 = vor.u32 %v6236, %v6237
    %vm6239 = vcmp.lt.s32.totalorder %v6220, 1
    %vm6240 = vcmp.lt.s32.totalorder %v6220, 2
    %vm6241 = vcmp.lt.s32.totalorder %v6220, 3
    %vm6242 = vcmp.lt.s32.totalorder %v6220, 4
    %v6243 = vsel %vm6239, %v6223, %v6226
    %v6244 = vsel %vm6242, %v6232, 2102212464
    %v6245 = vsel %vm6241, %v6229, %v6244
    %v6246 = vsel %vm6240, %v6243, %v6245
    %v6247 = vsel %vm6239, %v6226, %v6229
    %v6248 = vsel %vm6242, %v6235, 920167782
    %v6249 = vsel %vm6241, %v6232, %v6248
    %v6250 = vsel %vm6240, %v6247, %v6249
    %v6251 = vsel %vm6239, %v6229, %v6232
    %v6252 = vsel %vm6242, %v6238, 1326507024
    %v6253 = vsel %vm6241, %v6235, %v6252
    %v6254 = vsel %vm6240, %v6251, %v6253
    %v6255 = vshll.u32 %v6215, 8
    %v6256 = vand.u32 %v6255, 65535
    %v6257 = vshrl.u32 %v6255, 16
    %v6258 = vand.u32 %v6254, 65535
    %v6259 = vshrl.u32 %v6254, 16
    %v6260 = vmul.u32 %v6256, %v6258
    %v6261 = vmul.u32 %v6256, %v6259
    %v6262 = vmul.u32 %v6257, %v6258
    %v6263 = vmul.u32 %v6257, %v6259
    %v6264 = vshll.u32 %v6261, 16
    %v6265 = vshrl.u32 %v6261, 16
    %v6266 = vshll.u32 %v6262, 16
    %v6267 = vshrl.u32 %v6262, 16
    %vm6268 = vc.u32 %v6260, %v6264
    %v6269 = vsel %vm6268, 1, 0
    %v6270 = vadd.s32 %v6260, %v6264
    %v6271 = vadd.s32 %v6263, %v6269
    %vm6272 = vc.u32 %v6270, %v6266
    %v6273 = vsel %vm6272, 1, 0
    %v6274 = vadd.s32 %v6270, %v6266
    %v6275 = vadd.s32 %v6271, %v6273
    %v6276 = vadd.s32 %v6275, %v6265
    %v6277 = vadd.s32 %v6276, %v6267
    %v6278 = vand.u32 %v6255, 65535
    %v6279 = vshrl.u32 %v6255, 16
    %v6280 = vand.u32 %v6250, 65535
    %v6281 = vshrl.u32 %v6250, 16
    %v6282 = vmul.u32 %v6278, %v6280
    %v6283 = vmul.u32 %v6278, %v6281
    %v6284 = vmul.u32 %v6279, %v6280
    %v6285 = vmul.u32 %v6279, %v6281
    %v6286 = vshll.u32 %v6283, 16
    %v6287 = vshrl.u32 %v6283, 16
    %v6288 = vshll.u32 %v6284, 16
    %v6289 = vshrl.u32 %v6284, 16
    %vm6290 = vc.u32 %v6282, %v6286
    %v6291 = vsel %vm6290, 1, 0
    %v6292 = vadd.s32 %v6282, %v6286
    %v6293 = vadd.s32 %v6285, %v6291
    %vm6294 = vc.u32 %v6292, %v6288
    %v6295 = vsel %vm6294, 1, 0
    %v6296 = vadd.s32 %v6292, %v6288
    %v6297 = vadd.s32 %v6293, %v6295
    %v6298 = vadd.s32 %v6297, %v6287
    %v6299 = vadd.s32 %v6298, %v6289
    %v6300 = vmul.u32 %v6255, %v6246
    %v6301 = vadd.s32 %v6277, %v6296
    %vm6302 = vc.u32 %v6277, %v6296
    %v6303 = vadd.s32 %v6299, 1
    %v6304 = vsel %vm6302, %v6303, %v6299
    %v6305 = vadd.s32 %v6300, %v6304
    %v6306 = vadd.s32 %v6305, 536870912
    %v6307 = vshrl.u32 %v6306, 30
    %v6308 = vshll.u32 %v6307, 30
    %v6309 = vsub.s32 %v6305, %v6308
    %vm6310 = vcmp.lt.s32.totalorder %v6309, 0
    %v6311 = vsub.s32 0, %v6309
    %v6312 = vsel %vm6310, %v6311, %v6309
    %v6313 = vclz %v6312
    %v6314 = vsub.s32 %v6313, 2
    %vm6315 = vcmp.gt.s32.totalorder 0, %v6314
    %v6316 = vsel %vm6315, 0, %v6314
    %v6317 = vsub.s32 32, %v6316
    %v6318 = vshll.u32 %v6309, %v6316
    %v6319 = vshrl.u32 %v6301, %v6317
    %v6320 = vor.u32 %v6318, %v6319
    %v6321 = vsub.s32 4294967266, %v6316
    %v6322 = vadd.s32 %v6321, 127
    %v6323 = vshll.u32 %v6322, 23
    %v6324 = vor.u32 4788187, %v6323
    %v6325 = vand.u32 2147483647, %v6324
    %v6327 = vcvt.s32.f32 %v6320
    %v6328 = vmul.f32 %v6327, %v6325
    %v6329 = vxor.u32 %v6328, 2147483648
    %v6330 = vsel %vm6209, %v6329, %v6328
    %v6331 = vsub.s32 4, %v6307
    %v6332 = vsel %vm6209, %v6331, %v6307
    %v6333 = vsel %vm6208, %v6048, %v6330
    %v6334 = vsel %vm6208, 0, %v6332
    %v6335 = vmul.f32 %v6333, %v6333
    %v6336 = vmul.f32 %v6335, -0.001358992
    %v6337 = vadd.f32 %v6336, 0.041655596
    %v6338 = vmul.f32 %v6335, %v6337
    %v6339 = vadd.f32 %v6338, -0.4999988
    %v6340 = vmul.f32 %v6335, %v6339
    %v6341 = vadd.f32 1.0, %v6340
    %v6342 = vmul.f32 %v6333, %v6333
    %v6343 = vmul.f32 %v6342, -0.00019511016
    %v6344 = vadd.f32 %v6343, 0.008332121
    %v6345 = vmul.f32 %v6342, %v6344
    %v6346 = vadd.f32 %v6345, -0.16666654
    %v6347 = vmul.f32 %v6342, %v6346
    %v6348 = vadd.f32 %v6347, 1.0
    %v6349 = vmul.f32 %v6348, %v6333
    %vm6350 = vweird.f32 %v6048
    %v6351 = vadd.s32 %v6334, 3
    %v6352 = vand.u32 %v6351, 3
    %vm6353 = vcmp.lt.s32.totalorder %v6352, 2
    %vm6354 = vcmp.eq.s32.totalorder %v6352, 0
    %v6355 = vxor.u32 %v6349, 2147483648
    %v6356 = vsel %vm6354, %v6341, %v6355
    %vm6357 = vcmp.eq.s32.totalorder %v6352, 2
    %v6358 = vxor.u32 %v6341, 2147483648
    %v6359 = vsel %vm6357, %v6358, %v6349
    %v6360 = vsel %vm6353, %v6356, %v6359
    %v6361 = vsel %vm6350, nan, %v6360
    %v6362 = vmul.f32 %v6051, %v6361
    %v6364 = vsel %vm464, %v6206, 0
    %6366 = vmatpush.msra.mxu0 0.0
    %6367 = vmatpush.msra.mxu0 0.0
    %6368 = vmatpush.msra.mxu0 0.0
    %6369 = vmatpush.msra.mxu0 0.0
    %6370 = vmatpush.msra.mxu0 0.0
    %6371 = vmatpush.msra.mxu0 0.0
    %6372 = vmatpush.msra.mxu0 0.0
    %6373 = vmatpush.msra.mxu0 0.0
    %6374 = vmatpush.msra.mxu0 0.0
    %6375 = vmatpush.msra.mxu0 0.0
    %6376 = vmatpush.msra.mxu0 0.0
    %6377 = vmatpush.msra.mxu0 0.0
    %6378 = vmatpush.msra.mxu0 0.0
    %6379 = vmatpush.msra.mxu0 %v70
    %6380 = vmatpush.msra.mxu0 %v69
    %6381 = vmatpush.msra.mxu0 %v68
    %6382 = vmatmul.f32.gmra.mxu0 %v6364
    %v6383 = vpop.f32.mrf.mxu0
    %v6384 = vadd.f32 0.0, %v6383
    %6385 = vdwg.mxu0
    %v6387 = vsel %vm464, %v6362, 0
    %6389 = vmatpush.msra.mxu0 0.0
    %6390 = vmatpush.msra.mxu0 0.0
    %6391 = vmatpush.msra.mxu0 0.0
    %6392 = vmatpush.msra.mxu0 0.0
    %6393 = vmatpush.msra.mxu0 0.0
    %6394 = vmatpush.msra.mxu0 0.0
    %6395 = vmatpush.msra.mxu0 0.0
    %6396 = vmatpush.msra.mxu0 0.0
    %6397 = vmatpush.msra.mxu0 0.0
    %6398 = vmatpush.msra.mxu0 0.0
    %6399 = vmatpush.msra.mxu0 0.0
    %6400 = vmatpush.msra.mxu0 0.0
    %6401 = vmatpush.msra.mxu0 0.0
    %6402 = vmatpush.msra.mxu0 %v70
    %6403 = vmatpush.msra.mxu0 %v69
    %6404 = vmatpush.msra.mxu0 %v68
    %6405 = vmatmul.f32.gmra.mxu0 %v6387
    %v6406 = vpop.f32.mrf.mxu0
    %v6407 = vadd.f32 0.0, %v6406
    %6408 = vdwg.mxu0
    %6409 = vmatpush.msra.mxu0 0.0
    %6410 = vmatpush.msra.mxu0 0.0
    %6411 = vmatpush.msra.mxu0 0.0
    %6412 = vmatpush.msra.mxu0 0.0
    %6413 = vmatpush.msra.mxu0 0.0
    %6414 = vmatpush.msra.mxu0 0.0
    %6415 = vmatpush.msra.mxu0 0.0
    %6416 = vmatpush.msra.mxu0 0.0
    %6417 = vmatpush.msra.mxu0 0.0
    %6418 = vmatpush.msra.mxu0 0.0
    %6419 = vmatpush.msra.mxu0 0.0
    %6420 = vmatpush.msra.mxu0 0.0
    %6421 = vmatpush.msra.mxu0 0.0
    %6422 = vmatpush.msra.mxu0 0.0
    %6423 = vmatpush.msra.mxu0 0.0
    %6424 = vmatpush.msra.mxu0 %v71
    %6425 = vmatmul.f32.gmra.mxu0 %v5984
    %v6426 = vpop.f32.mrf.mxu0
    %v6427 = vadd.f32 0.0, %v6426
    %6428 = vdwg.mxu0
    %v6429 = vmul.f32 %v6384, %v5977
    %v6430 = vmul.f32 %v6407, %v6427
    %v6431 = vadd.f32 %v6429, %v6430
    %6433 = vrot.lane.b32.xlu0 %v6431, 104
    %v6434 = vpop.permute.xlu0 %6433
    %vm6436 = vcmask 917312
    %6437 = vst.msk [vmem:[#allocation3] sm:$0xff] %vm6436, %v6434
    %v6438 = vsel %vm76, %v6431, 0
    %6440 = vmatpush.msra.mxu0 0.0
    %6441 = vmatpush.msra.mxu0 0.0
    %6442 = vmatpush.msra.mxu0 0.0
    %6443 = vmatpush.msra.mxu0 0.0
    %6444 = vmatpush.msra.mxu0 0.0
    %6445 = vmatpush.msra.mxu0 0.0
    %6446 = vmatpush.msra.mxu0 0.0
    %6447 = vmatpush.msra.mxu0 0.0
    %6448 = vmatpush.msra.mxu0 0.0
    %6449 = vmatpush.msra.mxu0 0.0
    %6450 = vmatpush.msra.mxu0 0.0
    %6451 = vmatpush.msra.mxu0 0.0
    %6452 = vmatpush.msra.mxu0 0.0
    %6453 = vmatpush.msra.mxu0 0.0
    %6454 = vmatpush.msra.mxu0 0.0
    %6455 = vmatpush.msra.mxu0 %v40
    %6456 = vmatmul.f32.gmra.mxu0 %v6438
    %v6457 = vpop.f32.mrf.mxu0
    %v6458 = vadd.f32 %v74, %v6457
    %6459 = vdwg.mxu0
    %v6460 = vtanh.pop %v6458
    %v6462 = vsel %vm104, %v6460, 0
    %6464 = vmatpush.msra.mxu0 0.0
    %6465 = vmatpush.msra.mxu0 0.0
    %6466 = vmatpush.msra.mxu0 0.0
    %6467 = vmatpush.msra.mxu0 0.0
    %6468 = vmatpush.msra.mxu0 %v53
    %6469 = vmatpush.msra.mxu0 %v52
    %6470 = vmatpush.msra.mxu0 %v51
    %6471 = vmatpush.msra.mxu0 %v50
    %6472 = vmatpush.msra.mxu0 %v49
    %6473 = vmatpush.msra.mxu0 %v48
    %6474 = vmatpush.msra.mxu0 %v47
    %6475 = vmatpush.msra.mxu0 %v46
    %6476 = vmatpush.msra.mxu0 %v45
    %6477 = vmatpush.msra.mxu0 %v44
    %6478 = vmatpush.msra.mxu0 %v43
    %6479 = vmatpush.msra.mxu0 %v42
    %6480 = vmatmul.f32.gmra.mxu0 %v6462
    %v6481 = vpop.f32.mrf.mxu0
    %v6482 = vadd.f32 %v102, %v6481
    %6483 = vdwg.mxu0
    %6484 = vmatpush.msra.mxu0 0.0
    %6485 = vmatpush.msra.mxu0 0.0
    %6486 = vmatpush.msra.mxu0 0.0
    %6487 = vmatpush.msra.mxu0 0.0
    %6488 = vmatpush.msra.mxu0 %v66
    %6489 = vmatpush.msra.mxu0 %v65
    %6490 = vmatpush.msra.mxu0 %v64
    %6491 = vmatpush.msra.mxu0 %v63
    %6492 = vmatpush.msra.mxu0 %v62
    %6493 = vmatpush.msra.mxu0 %v61
    %6494 = vmatpush.msra.mxu0 %v60
    %6495 = vmatpush.msra.mxu0 %v59
    %6496 = vmatpush.msra.mxu0 %v58
    %6497 = vmatpush.msra.mxu0 %v57
    %6498 = vmatpush.msra.mxu0 %v56
    %6499 = vmatpush.msra.mxu0 %v55
    %6500 = vmatmul.f32.gmra.mxu0 %v6462
    %v6501 = vpop.f32.mrf.mxu0
    %v6502 = vadd.f32 %v129, %v6501
    %6503 = vdwg.mxu0
    %v6504 = vmul.f32 %v6482, 1.442695
    %v6505 = vpow.pop %v6504
    %v6506 = vand.u32 2147483647, %v6502
    %vm6507 = vcmp.le.f32.partialorder %v6506, 0.7853982
    %vm6508 = vcmp.lt.s32.totalorder %v6502, 0
    %v6509 = vand.u32 %v6502, 2139095040
    %v6510 = vshrl.u32 %v6509, 23
    %v6511 = vsub.s32 %v6510, 127
    %v6512 = vand.u32 2147483647, %v6502
    %v6513 = vand.u32 %v6512, 8388607
    %v6514 = vor.u32 %v6513, 8388608
    %v6515 = vsub.s32 0, %v6514
    %v6516 = vadd.s32 %v6511, 1
    %vm6517 = vcmp.gt.s32.totalorder %v6516, 0
    %v6518 = vsel %vm6517, %v6516, 0
    %v6519 = vshrl.u32 %v6518, 5
    %v6520 = vand.u32 %v6518, 31
    %v6521 = vsub.s32 32, %v6520
    %v6522 = vshrl.u32 683565275, %v6521
    %v6523 = vshll.u32 683565275, %v6520
    %v6524 = vshrl.u32 2475754826, %v6521
    %v6525 = vor.u32 %v6523, %v6524
    %v6526 = vshll.u32 2475754826, %v6520
    %v6527 = vshrl.u32 2131351028, %v6521
    %v6528 = vor.u32 %v6526, %v6527
    %v6529 = vshll.u32 2131351028, %v6520
    %v6530 = vshrl.u32 2102212464, %v6521
    %v6531 = vor.u32 %v6529, %v6530
    %v6532 = vshll.u32 2102212464, %v6520
    %v6533 = vshrl.u32 920167782, %v6521
    %v6534 = vor.u32 %v6532, %v6533
    %v6535 = vshll.u32 920167782, %v6520
    %v6536 = vshrl.u32 1326507024, %v6521
    %v6537 = vor.u32 %v6535, %v6536
    %vm6538 = vcmp.lt.s32.totalorder %v6519, 1
    %vm6539 = vcmp.lt.s32.totalorder %v6519, 2
    %vm6540 = vcmp.lt.s32.totalorder %v6519, 3
    %vm6541 = vcmp.lt.s32.totalorder %v6519, 4
    %v6542 = vsel %vm6538, %v6522, %v6525
    %v6543 = vsel %vm6541, %v6531, 2102212464
    %v6544 = vsel %vm6540, %v6528, %v6543
    %v6545 = vsel %vm6539, %v6542, %v6544
    %v6546 = vsel %vm6538, %v6525, %v6528
    %v6547 = vsel %vm6541, %v6534, 920167782
    %v6548 = vsel %vm6540, %v6531, %v6547
    %v6549 = vsel %vm6539, %v6546, %v6548
    %v6550 = vsel %vm6538, %v6528, %v6531
    %v6551 = vsel %vm6541, %v6537, 1326507024
    %v6552 = vsel %vm6540, %v6534, %v6551
    %v6553 = vsel %vm6539, %v6550, %v6552
    %v6554 = vshll.u32 %v6514, 8
    %v6555 = vand.u32 %v6554, 65535
    %v6556 = vshrl.u32 %v6554, 16
    %v6557 = vand.u32 %v6553, 65535
    %v6558 = vshrl.u32 %v6553, 16
    %v6559 = vmul.u32 %v6555, %v6557
    %v6560 = vmul.u32 %v6555, %v6558
    %v6561 = vmul.u32 %v6556, %v6557
    %v6562 = vmul.u32 %v6556, %v6558
    %v6563 = vshll.u32 %v6560, 16
    %v6564 = vshrl.u32 %v6560, 16
    %v6565 = vshll.u32 %v6561, 16
    %v6566 = vshrl.u32 %v6561, 16
    %vm6567 = vc.u32 %v6559, %v6563
    %v6568 = vsel %vm6567, 1, 0
    %v6569 = vadd.s32 %v6559, %v6563
    %v6570 = vadd.s32 %v6562, %v6568
    %vm6571 = vc.u32 %v6569, %v6565
    %v6572 = vsel %vm6571, 1, 0
    %v6573 = vadd.s32 %v6569, %v6565
    %v6574 = vadd.s32 %v6570, %v6572
    %v6575 = vadd.s32 %v6574, %v6564
    %v6576 = vadd.s32 %v6575, %v6566
    %v6577 = vand.u32 %v6554, 65535
    %v6578 = vshrl.u32 %v6554, 16
    %v6579 = vand.u32 %v6549, 65535
    %v6580 = vshrl.u32 %v6549, 16
    %v6581 = vmul.u32 %v6577, %v6579
    %v6582 = vmul.u32 %v6577, %v6580
    %v6583 = vmul.u32 %v6578, %v6579
    %v6584 = vmul.u32 %v6578, %v6580
    %v6585 = vshll.u32 %v6582, 16
    %v6586 = vshrl.u32 %v6582, 16
    %v6587 = vshll.u32 %v6583, 16
    %v6588 = vshrl.u32 %v6583, 16
    %vm6589 = vc.u32 %v6581, %v6585
    %v6590 = vsel %vm6589, 1, 0
    %v6591 = vadd.s32 %v6581, %v6585
    %v6592 = vadd.s32 %v6584, %v6590
    %vm6593 = vc.u32 %v6591, %v6587
    %v6594 = vsel %vm6593, 1, 0
    %v6595 = vadd.s32 %v6591, %v6587
    %v6596 = vadd.s32 %v6592, %v6594
    %v6597 = vadd.s32 %v6596, %v6586
    %v6598 = vadd.s32 %v6597, %v6588
    %v6599 = vmul.u32 %v6554, %v6545
    %v6600 = vadd.s32 %v6576, %v6595
    %vm6601 = vc.u32 %v6576, %v6595
    %v6602 = vadd.s32 %v6598, 1
    %v6603 = vsel %vm6601, %v6602, %v6598
    %v6604 = vadd.s32 %v6599, %v6603
    %v6605 = vadd.s32 %v6604, 536870912
    %v6606 = vshrl.u32 %v6605, 30
    %v6607 = vshll.u32 %v6606, 30
    %v6608 = vsub.s32 %v6604, %v6607
    %vm6609 = vcmp.lt.s32.totalorder %v6608, 0
    %v6610 = vsub.s32 0, %v6608
    %v6611 = vsel %vm6609, %v6610, %v6608
    %v6612 = vclz %v6611
    %v6613 = vsub.s32 %v6612, 2
    %vm6614 = vcmp.gt.s32.totalorder 0, %v6613
    %v6615 = vsel %vm6614, 0, %v6613
    %v6616 = vsub.s32 32, %v6615
    %v6617 = vshll.u32 %v6608, %v6615
    %v6618 = vshrl.u32 %v6600, %v6616
    %v6619 = vor.u32 %v6617, %v6618
    %v6620 = vsub.s32 4294967266, %v6615
    %v6621 = vadd.s32 %v6620, 127
    %v6622 = vshll.u32 %v6621, 23
    %v6623 = vor.u32 4788187, %v6622
    %v6624 = vand.u32 2147483647, %v6623
    %v6626 = vcvt.s32.f32 %v6619
    %v6627 = vmul.f32 %v6626, %v6624
    %v6628 = vxor.u32 %v6627, 2147483648
    %v6629 = vsel %vm6508, %v6628, %v6627
    %v6630 = vsub.s32 4, %v6606
    %v6631 = vsel %vm6508, %v6630, %v6606
    %v6632 = vsel %vm6507, %v6502, %v6629
    %v6633 = vsel %vm6507, 0, %v6631
    %v6634 = vmul.f32 %v6632, %v6632
    %v6635 = vmul.f32 %v6634, -0.001358992
    %v6636 = vadd.f32 %v6635, 0.041655596
    %v6637 = vmul.f32 %v6634, %v6636
    %v6638 = vadd.f32 %v6637, -0.4999988
    %v6639 = vmul.f32 %v6634, %v6638
    %v6640 = vadd.f32 1.0, %v6639
    %v6641 = vmul.f32 %v6632, %v6632
    %v6642 = vmul.f32 %v6641, -0.00019511016
    %v6643 = vadd.f32 %v6642, 0.008332121
    %v6644 = vmul.f32 %v6641, %v6643
    %v6645 = vadd.f32 %v6644, -0.16666654
    %v6646 = vmul.f32 %v6641, %v6645
    %v6647 = vadd.f32 %v6646, 1.0
    %v6648 = vmul.f32 %v6647, %v6632
    %vm6649 = vweird.f32 %v6502
    %v6650 = vand.u32 %v6633, 3
    %vm6651 = vcmp.lt.s32.totalorder %v6650, 2
    %vm6652 = vcmp.eq.s32.totalorder %v6650, 0
    %v6653 = vxor.u32 %v6648, 2147483648
    %v6654 = vsel %vm6652, %v6640, %v6653
    %vm6655 = vcmp.eq.s32.totalorder %v6650, 2
    %v6656 = vxor.u32 %v6640, 2147483648
    %v6657 = vsel %vm6655, %v6656, %v6648
    %v6658 = vsel %vm6651, %v6654, %v6657
    %v6659 = vsel %vm6649, nan, %v6658
    %v6660 = vmul.f32 %v6505, %v6659
    %v6661 = vand.u32 2147483647, %v6502
    %vm6662 = vcmp.le.f32.partialorder %v6661, 0.7853982
    %vm6663 = vcmp.lt.s32.totalorder %v6502, 0
    %v6664 = vand.u32 %v6502, 2139095040
    %v6665 = vshrl.u32 %v6664, 23
    %v6666 = vsub.s32 %v6665, 127
    %v6667 = vand.u32 2147483647, %v6502
    %v6668 = vand.u32 %v6667, 8388607
    %v6669 = vor.u32 %v6668, 8388608
    %v6670 = vsub.s32 0, %v6669
    %v6671 = vadd.s32 %v6666, 1
    %vm6672 = vcmp.gt.s32.totalorder %v6671, 0
    %v6673 = vsel %vm6672, %v6671, 0
    %v6674 = vshrl.u32 %v6673, 5
    %v6675 = vand.u32 %v6673, 31
    %v6676 = vsub.s32 32, %v6675
    %v6677 = vshrl.u32 683565275, %v6676
    %v6678 = vshll.u32 683565275, %v6675
    %v6679 = vshrl.u32 2475754826, %v6676
    %v6680 = vor.u32 %v6678, %v6679
    %v6681 = vshll.u32 2475754826, %v6675
    %v6682 = vshrl.u32 2131351028, %v6676
    %v6683 = vor.u32 %v6681, %v6682
    %v6684 = vshll.u32 2131351028, %v6675
    %v6685 = vshrl.u32 2102212464, %v6676
    %v6686 = vor.u32 %v6684, %v6685
    %v6687 = vshll.u32 2102212464, %v6675
    %v6688 = vshrl.u32 920167782, %v6676
    %v6689 = vor.u32 %v6687, %v6688
    %v6690 = vshll.u32 920167782, %v6675
    %v6691 = vshrl.u32 1326507024, %v6676
    %v6692 = vor.u32 %v6690, %v6691
    %vm6693 = vcmp.lt.s32.totalorder %v6674, 1
    %vm6694 = vcmp.lt.s32.totalorder %v6674, 2
    %vm6695 = vcmp.lt.s32.totalorder %v6674, 3
    %vm6696 = vcmp.lt.s32.totalorder %v6674, 4
    %v6697 = vsel %vm6693, %v6677, %v6680
    %v6698 = vsel %vm6696, %v6686, 2102212464
    %v6699 = vsel %vm6695, %v6683, %v6698
    %v6700 = vsel %vm6694, %v6697, %v6699
    %v6701 = vsel %vm6693, %v6680, %v6683
    %v6702 = vsel %vm6696, %v6689, 920167782
    %v6703 = vsel %vm6695, %v6686, %v6702
    %v6704 = vsel %vm6694, %v6701, %v6703
    %v6705 = vsel %vm6693, %v6683, %v6686
    %v6706 = vsel %vm6696, %v6692, 1326507024
    %v6707 = vsel %vm6695, %v6689, %v6706
    %v6708 = vsel %vm6694, %v6705, %v6707
    %v6709 = vshll.u32 %v6669, 8
    %v6710 = vand.u32 %v6709, 65535
    %v6711 = vshrl.u32 %v6709, 16
    %v6712 = vand.u32 %v6708, 65535
    %v6713 = vshrl.u32 %v6708, 16
    %v6714 = vmul.u32 %v6710, %v6712
    %v6715 = vmul.u32 %v6710, %v6713
    %v6716 = vmul.u32 %v6711, %v6712
    %v6717 = vmul.u32 %v6711, %v6713
    %v6718 = vshll.u32 %v6715, 16
    %v6719 = vshrl.u32 %v6715, 16
    %v6720 = vshll.u32 %v6716, 16
    %v6721 = vshrl.u32 %v6716, 16
    %vm6722 = vc.u32 %v6714, %v6718
    %v6723 = vsel %vm6722, 1, 0
    %v6724 = vadd.s32 %v6714, %v6718
    %v6725 = vadd.s32 %v6717, %v6723
    %vm6726 = vc.u32 %v6724, %v6720
    %v6727 = vsel %vm6726, 1, 0
    %v6728 = vadd.s32 %v6724, %v6720
    %v6729 = vadd.s32 %v6725, %v6727
    %v6730 = vadd.s32 %v6729, %v6719
    %v6731 = vadd.s32 %v6730, %v6721
    %v6732 = vand.u32 %v6709, 65535
    %v6733 = vshrl.u32 %v6709, 16
    %v6734 = vand.u32 %v6704, 65535
    %v6735 = vshrl.u32 %v6704, 16
    %v6736 = vmul.u32 %v6732, %v6734
    %v6737 = vmul.u32 %v6732, %v6735
    %v6738 = vmul.u32 %v6733, %v6734
    %v6739 = vmul.u32 %v6733, %v6735
    %v6740 = vshll.u32 %v6737, 16
    %v6741 = vshrl.u32 %v6737, 16
    %v6742 = vshll.u32 %v6738, 16
    %v6743 = vshrl.u32 %v6738, 16
    %vm6744 = vc.u32 %v6736, %v6740
    %v6745 = vsel %vm6744, 1, 0
    %v6746 = vadd.s32 %v6736, %v6740
    %v6747 = vadd.s32 %v6739, %v6745
    %vm6748 = vc.u32 %v6746, %v6742
    %v6749 = vsel %vm6748, 1, 0
    %v6750 = vadd.s32 %v6746, %v6742
    %v6751 = vadd.s32 %v6747, %v6749
    %v6752 = vadd.s32 %v6751, %v6741
    %v6753 = vadd.s32 %v6752, %v6743
    %v6754 = vmul.u32 %v6709, %v6700
    %v6755 = vadd.s32 %v6731, %v6750
    %vm6756 = vc.u32 %v6731, %v6750
    %v6757 = vadd.s32 %v6753, 1
    %v6758 = vsel %vm6756, %v6757, %v6753
    %v6759 = vadd.s32 %v6754, %v6758
    %v6760 = vadd.s32 %v6759, 536870912
    %v6761 = vshrl.u32 %v6760, 30
    %v6762 = vshll.u32 %v6761, 30
    %v6763 = vsub.s32 %v6759, %v6762
    %vm6764 = vcmp.lt.s32.totalorder %v6763, 0
    %v6765 = vsub.s32 0, %v6763
    %v6766 = vsel %vm6764, %v6765, %v6763
    %v6767 = vclz %v6766
    %v6768 = vsub.s32 %v6767, 2
    %vm6769 = vcmp.gt.s32.totalorder 0, %v6768
    %v6770 = vsel %vm6769, 0, %v6768
    %v6771 = vsub.s32 32, %v6770
    %v6772 = vshll.u32 %v6763, %v6770
    %v6773 = vshrl.u32 %v6755, %v6771
    %v6774 = vor.u32 %v6772, %v6773
    %v6775 = vsub.s32 4294967266, %v6770
    %v6776 = vadd.s32 %v6775, 127
    %v6777 = vshll.u32 %v6776, 23
    %v6778 = vor.u32 4788187, %v6777
    %v6779 = vand.u32 2147483647, %v6778
    %v6781 = vcvt.s32.f32 %v6774
    %v6782 = vmul.f32 %v6781, %v6779
    %v6783 = vxor.u32 %v6782, 2147483648
    %v6784 = vsel %vm6663, %v6783, %v6782
    %v6785 = vsub.s32 4, %v6761
    %v6786 = vsel %vm6663, %v6785, %v6761
    %v6787 = vsel %vm6662, %v6502, %v6784
    %v6788 = vsel %vm6662, 0, %v6786
    %v6789 = vmul.f32 %v6787, %v6787
    %v6790 = vmul.f32 %v6789, -0.001358992
    %v6791 = vadd.f32 %v6790, 0.041655596
    %v6792 = vmul.f32 %v6789, %v6791
    %v6793 = vadd.f32 %v6792, -0.4999988
    %v6794 = vmul.f32 %v6789, %v6793
    %v6795 = vadd.f32 1.0, %v6794
    %v6796 = vmul.f32 %v6787, %v6787
    %v6797 = vmul.f32 %v6796, -0.00019511016
    %v6798 = vadd.f32 %v6797, 0.008332121
    %v6799 = vmul.f32 %v6796, %v6798
    %v6800 = vadd.f32 %v6799, -0.16666654
    %v6801 = vmul.f32 %v6796, %v6800
    %v6802 = vadd.f32 %v6801, 1.0
    %v6803 = vmul.f32 %v6802, %v6787
    %vm6804 = vweird.f32 %v6502
    %v6805 = vadd.s32 %v6788, 3
    %v6806 = vand.u32 %v6805, 3
    %vm6807 = vcmp.lt.s32.totalorder %v6806, 2
    %vm6808 = vcmp.eq.s32.totalorder %v6806, 0
    %v6809 = vxor.u32 %v6803, 2147483648
    %v6810 = vsel %vm6808, %v6795, %v6809
    %vm6811 = vcmp.eq.s32.totalorder %v6806, 2
    %v6812 = vxor.u32 %v6795, 2147483648
    %v6813 = vsel %vm6811, %v6812, %v6803
    %v6814 = vsel %vm6807, %v6810, %v6813
    %v6815 = vsel %vm6804, nan, %v6814
    %v6816 = vmul.f32 %v6505, %v6815
    %v6818 = vsel %vm464, %v6660, 0
    %6820 = vmatpush.msra.mxu0 0.0
    %6821 = vmatpush.msra.mxu0 0.0
    %6822 = vmatpush.msra.mxu0 0.0
    %6823 = vmatpush.msra.mxu0 0.0
    %6824 = vmatpush.msra.mxu0 0.0
    %6825 = vmatpush.msra.mxu0 0.0
    %6826 = vmatpush.msra.mxu0 0.0
    %6827 = vmatpush.msra.mxu0 0.0
    %6828 = vmatpush.msra.mxu0 0.0
    %6829 = vmatpush.msra.mxu0 0.0
    %6830 = vmatpush.msra.mxu0 0.0
    %6831 = vmatpush.msra.mxu0 0.0
    %6832 = vmatpush.msra.mxu0 0.0
    %6833 = vmatpush.msra.mxu0 %v70
    %6834 = vmatpush.msra.mxu0 %v69
    %6835 = vmatpush.msra.mxu0 %v68
    %6836 = vmatmul.f32.gmra.mxu0 %v6818
    %v6837 = vpop.f32.mrf.mxu0
    %v6838 = vadd.f32 0.0, %v6837
    %6839 = vdwg.mxu0
    %v6841 = vsel %vm464, %v6816, 0
    %6843 = vmatpush.msra.mxu0 0.0
    %6844 = vmatpush.msra.mxu0 0.0
    %6845 = vmatpush.msra.mxu0 0.0
    %6846 = vmatpush.msra.mxu0 0.0
    %6847 = vmatpush.msra.mxu0 0.0
    %6848 = vmatpush.msra.mxu0 0.0
    %6849 = vmatpush.msra.mxu0 0.0
    %6850 = vmatpush.msra.mxu0 0.0
    %6851 = vmatpush.msra.mxu0 0.0
    %6852 = vmatpush.msra.mxu0 0.0
    %6853 = vmatpush.msra.mxu0 0.0
    %6854 = vmatpush.msra.mxu0 0.0
    %6855 = vmatpush.msra.mxu0 0.0
    %6856 = vmatpush.msra.mxu0 %v70
    %6857 = vmatpush.msra.mxu0 %v69
    %6858 = vmatpush.msra.mxu0 %v68
    %6859 = vmatmul.f32.gmra.mxu0 %v6841
    %v6860 = vpop.f32.mrf.mxu0
    %v6861 = vadd.f32 0.0, %v6860
    %6862 = vdwg.mxu0
    %6863 = vmatpush.msra.mxu0 0.0
    %6864 = vmatpush.msra.mxu0 0.0
    %6865 = vmatpush.msra.mxu0 0.0
    %6866 = vmatpush.msra.mxu0 0.0
    %6867 = vmatpush.msra.mxu0 0.0
    %6868 = vmatpush.msra.mxu0 0.0
    %6869 = vmatpush.msra.mxu0 0.0
    %6870 = vmatpush.msra.mxu0 0.0
    %6871 = vmatpush.msra.mxu0 0.0
    %6872 = vmatpush.msra.mxu0 0.0
    %6873 = vmatpush.msra.mxu0 0.0
    %6874 = vmatpush.msra.mxu0 0.0
    %6875 = vmatpush.msra.mxu0 0.0
    %6876 = vmatpush.msra.mxu0 0.0
    %6877 = vmatpush.msra.mxu0 0.0
    %6878 = vmatpush.msra.mxu0 %v71
    %6879 = vmatmul.f32.gmra.mxu0 %v6438
    %v6880 = vpop.f32.mrf.mxu0
    %v6881 = vadd.f32 0.0, %v6880
    %6882 = vdwg.mxu0
    %v6883 = vmul.f32 %v6838, %v6431
    %v6884 = vmul.f32 %v6861, %v6881
    %v6885 = vadd.f32 %v6883, %v6884
    %6887 = vrot.lane.b32.xlu0 %v6885, 112
    %v6888 = vpop.permute.xlu0 %6887
    %vm6890 = vcmask 982912
    %6891 = vst.msk [vmem:[#allocation3] sm:$0xff] %vm6890, %v6888
    %v6892 = vsel %vm76, %v6885, 0
    %6894 = vmatpush.msra.mxu0 0.0
    %6895 = vmatpush.msra.mxu0 0.0
    %6896 = vmatpush.msra.mxu0 0.0
    %6897 = vmatpush.msra.mxu0 0.0
    %6898 = vmatpush.msra.mxu0 0.0
    %6899 = vmatpush.msra.mxu0 0.0
    %6900 = vmatpush.msra.mxu0 0.0
    %6901 = vmatpush.msra.mxu0 0.0
    %6902 = vmatpush.msra.mxu0 0.0
    %6903 = vmatpush.msra.mxu0 0.0
    %6904 = vmatpush.msra.mxu0 0.0
    %6905 = vmatpush.msra.mxu0 0.0
    %6906 = vmatpush.msra.mxu0 0.0
    %6907 = vmatpush.msra.mxu0 0.0
    %6908 = vmatpush.msra.mxu0 0.0
    %6909 = vmatpush.msra.mxu0 %v40
    %6910 = vmatmul.f32.gmra.mxu0 %v6892
    %v6911 = vpop.f32.mrf.mxu0
    %v6912 = vadd.f32 %v74, %v6911
    %6913 = vdwg.mxu0
    %v6914 = vtanh.pop %v6912
    %v6916 = vsel %vm104, %v6914, 0
    %6918 = vmatpush.msra.mxu0 0.0
    %6919 = vmatpush.msra.mxu0 0.0
    %6920 = vmatpush.msra.mxu0 0.0
    %6921 = vmatpush.msra.mxu0 0.0
    %6922 = vmatpush.msra.mxu0 %v53
    %6923 = vmatpush.msra.mxu0 %v52
    %6924 = vmatpush.msra.mxu0 %v51
    %6925 = vmatpush.msra.mxu0 %v50
    %6926 = vmatpush.msra.mxu0 %v49
    %6927 = vmatpush.msra.mxu0 %v48
    %6928 = vmatpush.msra.mxu0 %v47
    %6929 = vmatpush.msra.mxu0 %v46
    %6930 = vmatpush.msra.mxu0 %v45
    %6931 = vmatpush.msra.mxu0 %v44
    %6932 = vmatpush.msra.mxu0 %v43
    %6933 = vmatpush.msra.mxu0 %v42
    %6934 = vmatmul.f32.gmra.mxu0 %v6916
    %v6935 = vpop.f32.mrf.mxu0
    %v6936 = vadd.f32 %v102, %v6935
    %6937 = vdwg.mxu0
    %6938 = vmatpush.msra.mxu0 0.0
    %6939 = vmatpush.msra.mxu0 0.0
    %6940 = vmatpush.msra.mxu0 0.0
    %6941 = vmatpush.msra.mxu0 0.0
    %6942 = vmatpush.msra.mxu0 %v66
    %6943 = vmatpush.msra.mxu0 %v65
    %6944 = vmatpush.msra.mxu0 %v64
    %6945 = vmatpush.msra.mxu0 %v63
    %6946 = vmatpush.msra.mxu0 %v62
    %6947 = vmatpush.msra.mxu0 %v61
    %6948 = vmatpush.msra.mxu0 %v60
    %6949 = vmatpush.msra.mxu0 %v59
    %6950 = vmatpush.msra.mxu0 %v58
    %6951 = vmatpush.msra.mxu0 %v57
    %6952 = vmatpush.msra.mxu0 %v56
    %6953 = vmatpush.msra.mxu0 %v55
    %6954 = vmatmul.f32.gmra.mxu0 %v6916
    %v6955 = vpop.f32.mrf.mxu0
    %v6956 = vadd.f32 %v129, %v6955
    %6957 = vdwg.mxu0
    %v6958 = vmul.f32 %v6936, 1.442695
    %v6959 = vpow.pop %v6958
    %v6960 = vand.u32 2147483647, %v6956
    %vm6961 = vcmp.le.f32.partialorder %v6960, 0.7853982
    %vm6962 = vcmp.lt.s32.totalorder %v6956, 0
    %v6963 = vand.u32 %v6956, 2139095040
    %v6964 = vshrl.u32 %v6963, 23
    %v6965 = vsub.s32 %v6964, 127
    %v6966 = vand.u32 2147483647, %v6956
    %v6967 = vand.u32 %v6966, 8388607
    %v6968 = vor.u32 %v6967, 8388608
    %v6969 = vsub.s32 0, %v6968
    %v6970 = vadd.s32 %v6965, 1
    %vm6971 = vcmp.gt.s32.totalorder %v6970, 0
    %v6972 = vsel %vm6971, %v6970, 0
    %v6973 = vshrl.u32 %v6972, 5
    %v6974 = vand.u32 %v6972, 31
    %v6975 = vsub.s32 32, %v6974
    %v6976 = vshrl.u32 683565275, %v6975
    %v6977 = vshll.u32 683565275, %v6974
    %v6978 = vshrl.u32 2475754826, %v6975
    %v6979 = vor.u32 %v6977, %v6978
    %v6980 = vshll.u32 2475754826, %v6974
    %v6981 = vshrl.u32 2131351028, %v6975
    %v6982 = vor.u32 %v6980, %v6981
    %v6983 = vshll.u32 2131351028, %v6974
    %v6984 = vshrl.u32 2102212464, %v6975
    %v6985 = vor.u32 %v6983, %v6984
    %v6986 = vshll.u32 2102212464, %v6974
    %v6987 = vshrl.u32 920167782, %v6975
    %v6988 = vor.u32 %v6986, %v6987
    %v6989 = vshll.u32 920167782, %v6974
    %v6990 = vshrl.u32 1326507024, %v6975
    %v6991 = vor.u32 %v6989, %v6990
    %vm6992 = vcmp.lt.s32.totalorder %v6973, 1
    %vm6993 = vcmp.lt.s32.totalorder %v6973, 2
    %vm6994 = vcmp.lt.s32.totalorder %v6973, 3
    %vm6995 = vcmp.lt.s32.totalorder %v6973, 4
    %v6996 = vsel %vm6992, %v6976, %v6979
    %v6997 = vsel %vm6995, %v6985, 2102212464
    %v6998 = vsel %vm6994, %v6982, %v6997
    %v6999 = vsel %vm6993, %v6996, %v6998
    %v7000 = vsel %vm6992, %v6979, %v6982
    %v7001 = vsel %vm6995, %v6988, 920167782
    %v7002 = vsel %vm6994, %v6985, %v7001
    %v7003 = vsel %vm6993, %v7000, %v7002
    %v7004 = vsel %vm6992, %v6982, %v6985
    %v7005 = vsel %vm6995, %v6991, 1326507024
    %v7006 = vsel %vm6994, %v6988, %v7005
    %v7007 = vsel %vm6993, %v7004, %v7006
    %v7008 = vshll.u32 %v6968, 8
    %v7009 = vand.u32 %v7008, 65535
    %v7010 = vshrl.u32 %v7008, 16
    %v7011 = vand.u32 %v7007, 65535
    %v7012 = vshrl.u32 %v7007, 16
    %v7013 = vmul.u32 %v7009, %v7011
    %v7014 = vmul.u32 %v7009, %v7012
    %v7015 = vmul.u32 %v7010, %v7011
    %v7016 = vmul.u32 %v7010, %v7012
    %v7017 = vshll.u32 %v7014, 16
    %v7018 = vshrl.u32 %v7014, 16
    %v7019 = vshll.u32 %v7015, 16
    %v7020 = vshrl.u32 %v7015, 16
    %vm7021 = vc.u32 %v7013, %v7017
    %v7022 = vsel %vm7021, 1, 0
    %v7023 = vadd.s32 %v7013, %v7017
    %v7024 = vadd.s32 %v7016, %v7022
    %vm7025 = vc.u32 %v7023, %v7019
    %v7026 = vsel %vm7025, 1, 0
    %v7027 = vadd.s32 %v7023, %v7019
    %v7028 = vadd.s32 %v7024, %v7026
    %v7029 = vadd.s32 %v7028, %v7018
    %v7030 = vadd.s32 %v7029, %v7020
    %v7031 = vand.u32 %v7008, 65535
    %v7032 = vshrl.u32 %v7008, 16
    %v7033 = vand.u32 %v7003, 65535
    %v7034 = vshrl.u32 %v7003, 16
    %v7035 = vmul.u32 %v7031, %v7033
    %v7036 = vmul.u32 %v7031, %v7034
    %v7037 = vmul.u32 %v7032, %v7033
    %v7038 = vmul.u32 %v7032, %v7034
    %v7039 = vshll.u32 %v7036, 16
    %v7040 = vshrl.u32 %v7036, 16
    %v7041 = vshll.u32 %v7037, 16
    %v7042 = vshrl.u32 %v7037, 16
    %vm7043 = vc.u32 %v7035, %v7039
    %v7044 = vsel %vm7043, 1, 0
    %v7045 = vadd.s32 %v7035, %v7039
    %v7046 = vadd.s32 %v7038, %v7044
    %vm7047 = vc.u32 %v7045, %v7041
    %v7048 = vsel %vm7047, 1, 0
    %v7049 = vadd.s32 %v7045, %v7041
    %v7050 = vadd.s32 %v7046, %v7048
    %v7051 = vadd.s32 %v7050, %v7040
    %v7052 = vadd.s32 %v7051, %v7042
    %v7053 = vmul.u32 %v7008, %v6999
    %v7054 = vadd.s32 %v7030, %v7049
    %vm7055 = vc.u32 %v7030, %v7049
    %v7056 = vadd.s32 %v7052, 1
    %v7057 = vsel %vm7055, %v7056, %v7052
    %v7058 = vadd.s32 %v7053, %v7057
    %v7059 = vadd.s32 %v7058, 536870912
    %v7060 = vshrl.u32 %v7059, 30
    %v7061 = vshll.u32 %v7060, 30
    %v7062 = vsub.s32 %v7058, %v7061
    %vm7063 = vcmp.lt.s32.totalorder %v7062, 0
    %v7064 = vsub.s32 0, %v7062
    %v7065 = vsel %vm7063, %v7064, %v7062
    %v7066 = vclz %v7065
    %v7067 = vsub.s32 %v7066, 2
    %vm7068 = vcmp.gt.s32.totalorder 0, %v7067
    %v7069 = vsel %vm7068, 0, %v7067
    %v7070 = vsub.s32 32, %v7069
    %v7071 = vshll.u32 %v7062, %v7069
    %v7072 = vshrl.u32 %v7054, %v7070
    %v7073 = vor.u32 %v7071, %v7072
    %v7074 = vsub.s32 4294967266, %v7069
    %v7075 = vadd.s32 %v7074, 127
    %v7076 = vshll.u32 %v7075, 23
    %v7077 = vor.u32 4788187, %v7076
    %v7078 = vand.u32 2147483647, %v7077
    %v7080 = vcvt.s32.f32 %v7073
    %v7081 = vmul.f32 %v7080, %v7078
    %v7082 = vxor.u32 %v7081, 2147483648
    %v7083 = vsel %vm6962, %v7082, %v7081
    %v7084 = vsub.s32 4, %v7060
    %v7085 = vsel %vm6962, %v7084, %v7060
    %v7086 = vsel %vm6961, %v6956, %v7083
    %v7087 = vsel %vm6961, 0, %v7085
    %v7088 = vmul.f32 %v7086, %v7086
    %v7089 = vmul.f32 %v7088, -0.001358992
    %v7090 = vadd.f32 %v7089, 0.041655596
    %v7091 = vmul.f32 %v7088, %v7090
    %v7092 = vadd.f32 %v7091, -0.4999988
    %v7093 = vmul.f32 %v7088, %v7092
    %v7094 = vadd.f32 1.0, %v7093
    %v7095 = vmul.f32 %v7086, %v7086
    %v7096 = vmul.f32 %v7095, -0.00019511016
    %v7097 = vadd.f32 %v7096, 0.008332121
    %v7098 = vmul.f32 %v7095, %v7097
    %v7099 = vadd.f32 %v7098, -0.16666654
    %v7100 = vmul.f32 %v7095, %v7099
    %v7101 = vadd.f32 %v7100, 1.0
    %v7102 = vmul.f32 %v7101, %v7086
    %vm7103 = vweird.f32 %v6956
    %v7104 = vand.u32 %v7087, 3
    %vm7105 = vcmp.lt.s32.totalorder %v7104, 2
    %vm7106 = vcmp.eq.s32.totalorder %v7104, 0
    %v7107 = vxor.u32 %v7102, 2147483648
    %v7108 = vsel %vm7106, %v7094, %v7107
    %vm7109 = vcmp.eq.s32.totalorder %v7104, 2
    %v7110 = vxor.u32 %v7094, 2147483648
    %v7111 = vsel %vm7109, %v7110, %v7102
    %v7112 = vsel %vm7105, %v7108, %v7111
    %v7113 = vsel %vm7103, nan, %v7112
    %v7114 = vmul.f32 %v6959, %v7113
    %v7115 = vand.u32 2147483647, %v6956
    %vm7116 = vcmp.le.f32.partialorder %v7115, 0.7853982
    %vm7117 = vcmp.lt.s32.totalorder %v6956, 0
    %v7118 = vand.u32 %v6956, 2139095040
    %v7119 = vshrl.u32 %v7118, 23
    %v7120 = vsub.s32 %v7119, 127
    %v7121 = vand.u32 2147483647, %v6956
    %v7122 = vand.u32 %v7121, 8388607
    %v7123 = vor.u32 %v7122, 8388608
    %v7124 = vsub.s32 0, %v7123
    %v7125 = vadd.s32 %v7120, 1
    %vm7126 = vcmp.gt.s32.totalorder %v7125, 0
    %v7127 = vsel %vm7126, %v7125, 0
    %v7128 = vshrl.u32 %v7127, 5
    %v7129 = vand.u32 %v7127, 31
    %v7130 = vsub.s32 32, %v7129
    %v7131 = vshrl.u32 683565275, %v7130
    %v7132 = vshll.u32 683565275, %v7129
    %v7133 = vshrl.u32 2475754826, %v7130
    %v7134 = vor.u32 %v7132, %v7133
    %v7135 = vshll.u32 2475754826, %v7129
    %v7136 = vshrl.u32 2131351028, %v7130
    %v7137 = vor.u32 %v7135, %v7136
    %v7138 = vshll.u32 2131351028, %v7129
    %v7139 = vshrl.u32 2102212464, %v7130
    %v7140 = vor.u32 %v7138, %v7139
    %v7141 = vshll.u32 2102212464, %v7129
    %v7142 = vshrl.u32 920167782, %v7130
    %v7143 = vor.u32 %v7141, %v7142
    %v7144 = vshll.u32 920167782, %v7129
    %v7145 = vshrl.u32 1326507024, %v7130
    %v7146 = vor.u32 %v7144, %v7145
    %vm7147 = vcmp.lt.s32.totalorder %v7128, 1
    %vm7148 = vcmp.lt.s32.totalorder %v7128, 2
    %vm7149 = vcmp.lt.s32.totalorder %v7128, 3
    %vm7150 = vcmp.lt.s32.totalorder %v7128, 4
    %v7151 = vsel %vm7147, %v7131, %v7134
    %v7152 = vsel %vm7150, %v7140, 2102212464
    %v7153 = vsel %vm7149, %v7137, %v7152
    %v7154 = vsel %vm7148, %v7151, %v7153
    %v7155 = vsel %vm7147, %v7134, %v7137
    %v7156 = vsel %vm7150, %v7143, 920167782
    %v7157 = vsel %vm7149, %v7140, %v7156
    %v7158 = vsel %vm7148, %v7155, %v7157
    %v7159 = vsel %vm7147, %v7137, %v7140
    %v7160 = vsel %vm7150, %v7146, 1326507024
    %v7161 = vsel %vm7149, %v7143, %v7160
    %v7162 = vsel %vm7148, %v7159, %v7161
    %v7163 = vshll.u32 %v7123, 8
    %v7164 = vand.u32 %v7163, 65535
    %v7165 = vshrl.u32 %v7163, 16
    %v7166 = vand.u32 %v7162, 65535
    %v7167 = vshrl.u32 %v7162, 16
    %v7168 = vmul.u32 %v7164, %v7166
    %v7169 = vmul.u32 %v7164, %v7167
    %v7170 = vmul.u32 %v7165, %v7166
    %v7171 = vmul.u32 %v7165, %v7167
    %v7172 = vshll.u32 %v7169, 16
    %v7173 = vshrl.u32 %v7169, 16
    %v7174 = vshll.u32 %v7170, 16
    %v7175 = vshrl.u32 %v7170, 16
    %vm7176 = vc.u32 %v7168, %v7172
    %v7177 = vsel %vm7176, 1, 0
    %v7178 = vadd.s32 %v7168, %v7172
    %v7179 = vadd.s32 %v7171, %v7177
    %vm7180 = vc.u32 %v7178, %v7174
    %v7181 = vsel %vm7180, 1, 0
    %v7182 = vadd.s32 %v7178, %v7174
    %v7183 = vadd.s32 %v7179, %v7181
    %v7184 = vadd.s32 %v7183, %v7173
    %v7185 = vadd.s32 %v7184, %v7175
    %v7186 = vand.u32 %v7163, 65535
    %v7187 = vshrl.u32 %v7163, 16
    %v7188 = vand.u32 %v7158, 65535
    %v7189 = vshrl.u32 %v7158, 16
    %v7190 = vmul.u32 %v7186, %v7188
    %v7191 = vmul.u32 %v7186, %v7189
    %v7192 = vmul.u32 %v7187, %v7188
    %v7193 = vmul.u32 %v7187, %v7189
    %v7194 = vshll.u32 %v7191, 16
    %v7195 = vshrl.u32 %v7191, 16
    %v7196 = vshll.u32 %v7192, 16
    %v7197 = vshrl.u32 %v7192, 16
    %vm7198 = vc.u32 %v7190, %v7194
    %v7199 = vsel %vm7198, 1, 0
    %v7200 = vadd.s32 %v7190, %v7194
    %v7201 = vadd.s32 %v7193, %v7199
    %vm7202 = vc.u32 %v7200, %v7196
    %v7203 = vsel %vm7202, 1, 0
    %v7204 = vadd.s32 %v7200, %v7196
    %v7205 = vadd.s32 %v7201, %v7203
    %v7206 = vadd.s32 %v7205, %v7195
    %v7207 = vadd.s32 %v7206, %v7197
    %v7208 = vmul.u32 %v7163, %v7154
    %v7209 = vadd.s32 %v7185, %v7204
    %vm7210 = vc.u32 %v7185, %v7204
    %v7211 = vadd.s32 %v7207, 1
    %v7212 = vsel %vm7210, %v7211, %v7207
    %v7213 = vadd.s32 %v7208, %v7212
    %v7214 = vadd.s32 %v7213, 536870912
    %v7215 = vshrl.u32 %v7214, 30
    %v7216 = vshll.u32 %v7215, 30
    %v7217 = vsub.s32 %v7213, %v7216
    %vm7218 = vcmp.lt.s32.totalorder %v7217, 0
    %v7219 = vsub.s32 0, %v7217
    %v7220 = vsel %vm7218, %v7219, %v7217
    %v7221 = vclz %v7220
    %v7222 = vsub.s32 %v7221, 2
    %vm7223 = vcmp.gt.s32.totalorder 0, %v7222
    %v7224 = vsel %vm7223, 0, %v7222
    %v7225 = vsub.s32 32, %v7224
    %v7226 = vshll.u32 %v7217, %v7224
    %v7227 = vshrl.u32 %v7209, %v7225
    %v7228 = vor.u32 %v7226, %v7227
    %v7229 = vsub.s32 4294967266, %v7224
    %v7230 = vadd.s32 %v7229, 127
    %v7231 = vshll.u32 %v7230, 23
    %v7232 = vor.u32 4788187, %v7231
    %v7233 = vand.u32 2147483647, %v7232
    %v7235 = vcvt.s32.f32 %v7228
    %v7236 = vmul.f32 %v7235, %v7233
    %v7237 = vxor.u32 %v7236, 2147483648
    %v7238 = vsel %vm7117, %v7237, %v7236
    %v7239 = vsub.s32 4, %v7215
    %v7240 = vsel %vm7117, %v7239, %v7215
    %v7241 = vsel %vm7116, %v6956, %v7238
    %v7242 = vsel %vm7116, 0, %v7240
    %v7243 = vmul.f32 %v7241, %v7241
    %v7244 = vmul.f32 %v7243, -0.001358992
    %v7245 = vadd.f32 %v7244, 0.041655596
    %v7246 = vmul.f32 %v7243, %v7245
    %v7247 = vadd.f32 %v7246, -0.4999988
    %v7248 = vmul.f32 %v7243, %v7247
    %v7249 = vadd.f32 1.0, %v7248
    %v7250 = vmul.f32 %v7241, %v7241
    %v7251 = vmul.f32 %v7250, -0.00019511016
    %v7252 = vadd.f32 %v7251, 0.008332121
    %v7253 = vmul.f32 %v7250, %v7252
    %v7254 = vadd.f32 %v7253, -0.16666654
    %v7255 = vmul.f32 %v7250, %v7254
    %v7256 = vadd.f32 %v7255, 1.0
    %v7257 = vmul.f32 %v7256, %v7241
    %vm7258 = vweird.f32 %v6956
    %v7259 = vadd.s32 %v7242, 3
    %v7260 = vand.u32 %v7259, 3
    %vm7261 = vcmp.lt.s32.totalorder %v7260, 2
    %vm7262 = vcmp.eq.s32.totalorder %v7260, 0
    %v7263 = vxor.u32 %v7257, 2147483648
    %v7264 = vsel %vm7262, %v7249, %v7263
    %vm7265 = vcmp.eq.s32.totalorder %v7260, 2
    %v7266 = vxor.u32 %v7249, 2147483648
    %v7267 = vsel %vm7265, %v7266, %v7257
    %v7268 = vsel %vm7261, %v7264, %v7267
    %v7269 = vsel %vm7258, nan, %v7268
    %v7270 = vmul.f32 %v6959, %v7269
    %v7272 = vsel %vm464, %v7114, 0
    %7274 = vmatpush.msra.mxu0 0.0
    %7275 = vmatpush.msra.mxu0 0.0
    %7276 = vmatpush.msra.mxu0 0.0
    %7277 = vmatpush.msra.mxu0 0.0
    %7278 = vmatpush.msra.mxu0 0.0
    %7279 = vmatpush.msra.mxu0 0.0
    %7280 = vmatpush.msra.mxu0 0.0
    %7281 = vmatpush.msra.mxu0 0.0
    %7282 = vmatpush.msra.mxu0 0.0
    %7283 = vmatpush.msra.mxu0 0.0
    %7284 = vmatpush.msra.mxu0 0.0
    %7285 = vmatpush.msra.mxu0 0.0
    %7286 = vmatpush.msra.mxu0 0.0
    %7287 = vmatpush.msra.mxu0 %v70
    %7288 = vmatpush.msra.mxu0 %v69
    %7289 = vmatpush.msra.mxu0 %v68
    %7290 = vmatmul.f32.gmra.mxu0 %v7272
    %v7291 = vpop.f32.mrf.mxu0
    %v7292 = vadd.f32 0.0, %v7291
    %7293 = vdwg.mxu0
    %v7295 = vsel %vm464, %v7270, 0
    %7297 = vmatpush.msra.mxu0 0.0
    %7298 = vmatpush.msra.mxu0 0.0
    %7299 = vmatpush.msra.mxu0 0.0
    %7300 = vmatpush.msra.mxu0 0.0
    %7301 = vmatpush.msra.mxu0 0.0
    %7302 = vmatpush.msra.mxu0 0.0
    %7303 = vmatpush.msra.mxu0 0.0
    %7304 = vmatpush.msra.mxu0 0.0
    %7305 = vmatpush.msra.mxu0 0.0
    %7306 = vmatpush.msra.mxu0 0.0
    %7307 = vmatpush.msra.mxu0 0.0
    %7308 = vmatpush.msra.mxu0 0.0
    %7309 = vmatpush.msra.mxu0 0.0
    %7310 = vmatpush.msra.mxu0 %v70
    %7311 = vmatpush.msra.mxu0 %v69
    %7312 = vmatpush.msra.mxu0 %v68
    %7313 = vmatmul.f32.gmra.mxu0 %v7295
    %v7314 = vpop.f32.mrf.mxu0
    %v7315 = vadd.f32 0.0, %v7314
    %7316 = vdwg.mxu0
    %7317 = vmatpush.msra.mxu0 0.0
    %7318 = vmatpush.msra.mxu0 0.0
    %7319 = vmatpush.msra.mxu0 0.0
    %7320 = vmatpush.msra.mxu0 0.0
    %7321 = vmatpush.msra.mxu0 0.0
    %7322 = vmatpush.msra.mxu0 0.0
    %7323 = vmatpush.msra.mxu0 0.0
    %7324 = vmatpush.msra.mxu0 0.0
    %7325 = vmatpush.msra.mxu0 0.0
    %7326 = vmatpush.msra.mxu0 0.0
    %7327 = vmatpush.msra.mxu0 0.0
    %7328 = vmatpush.msra.mxu0 0.0
    %7329 = vmatpush.msra.mxu0 0.0
    %7330 = vmatpush.msra.mxu0 0.0
    %7331 = vmatpush.msra.mxu0 0.0
    %7332 = vmatpush.msra.mxu0 %v71
    %7333 = vmatmul.f32.gmra.mxu0 %v6892
    %v7334 = vpop.f32.mrf.mxu0
    %v7335 = vadd.f32 0.0, %v7334
    %7336 = vdwg.mxu0
    %v7337 = vmul.f32 %v7292, %v6885
    %v7338 = vmul.f32 %v7315, %v7335
    %v7339 = vadd.f32 %v7337, %v7338
    %7341 = vrot.lane.b32.xlu0 %v7339, 120
    %v7342 = vpop.permute.xlu0 %7341
    %vm7344 = vcmask 1048512
    %7345 = vst.msk [vmem:[#allocation3] sm:$0xff] %vm7344, %v7342
    %7346 = vst.msk [vmem:[#allocation2] sm:$0xff] %vm76, %v7339
    // Predicated region
    $region42: #{tpu_custom_call.1} parent=1 // pred_check
      _
    $region43: #{tpu_custom_call.1} parent=1 // pred_check_branch
      %7348 = sbr.rel (0) target = $region45
    $region44: #{tpu_custom_call.1} parent=1 // pred_region
      %7350 = vsyncadd [#allocation4], 0
      %s7352 = sshll.u32 [#allocation3], 4
      %s7353 = int_to_ptr.vmem [resolvable:$true] %s7352
      %s7354 = sshll.u32 %s9, 4
      %s7355 = int_to_ptr.hbm [resolvable:$true] %s7354
      %7357 = dma.vmem_to_hbm [thread:$0]  %s7353, 128, %s7355, [#allocation4]
    $region45: #{tpu_custom_call.1} parent=1 // pred_fallthru
      _
    // Predicated region
    $region46: #{tpu_custom_call.1} parent=1 // pred_check
      _
    $region47: #{tpu_custom_call.1} parent=1 // pred_check_branch
      %7359 = sbr.rel (0) target = $region49
    $region48: #{tpu_custom_call.1} parent=1 // pred_region
      %7361 = dma.done [#allocation4], 128
    $region49: #{tpu_custom_call.1} parent=1 // pred_fallthru
      _
    %7362 = vsyncpa [#allocation4], 1

</llo_original>
